<compile_context>
chip_gen: v5e
topology: v5e:2x2
jax: 0.10.0
libtpu: 0.0.40
codegen_flags: <defaults>
</compile_context>

<pallas_src>
import functools

import jax
import jax.numpy as jnp
from jax.experimental import pallas as pl
from jax.experimental.pallas import tpu as pltpu


# ----------------------------------------------------------------------------
# Kernel 1: fused conv3x3 (stride 1, pad 1) + BatchNorm (eval, folded into a
# per-channel affine together with the conv bias) + maxpool 2x2 + relu.
# One batch element per grid step; row-chunked inside the kernel.
# ----------------------------------------------------------------------------
def conv_bn_pool_kernel(x_ref, w_ref, scale_ref, shift_ref, out_ref, *,
                        chunk_rows):
    # x_ref    : (1, H+2, W+2, Cin)    f32, spatially pre-padded input image
    # w_ref    : (3, 3, Cin, Cout)     bf16 conv weights (HWIO)
    # scale_ref: (1, Cout)             f32  gamma / sqrt(var + eps)
    # shift_ref: (1, Cout)             f32  (conv_bias - mean) * scale + beta
    # out_ref  : (1, H//2, W//2, Cout) f32  pooled+relu output
    Hp, Wp, Cin = x_ref.shape[1], x_ref.shape[2], x_ref.shape[3]
    H, W = Hp - 2, Wp - 2
    Cout = out_ref.shape[3]
    Ho = H // 2

    ch = chunk_rows            # pooled output rows per chunk
    sc = 2 * ch                # conv rows per chunk
    n_chunks = Ho // ch

    scale = scale_ref[0]       # (Cout,)
    shift = shift_ref[0]       # (Cout,)

    @pl.loop(0, n_chunks)
    def _(c):
        r0 = pl.multiple_of(c * sc, sc)                 # first padded row
        xs = x_ref[0, pl.ds(r0, sc + 2), :, :]          # (sc+2, Wp, Cin) f32

        acc = jnp.zeros((sc * W, Cout), jnp.float32)
        # 3x3 conv as 9 shifted (sc*W, Cin) @ (Cin, Cout) bf16 MXU matmuls.
        for ky in range(3):
            for kx in range(3):
                patch = xs[ky:ky + sc, kx:kx + W, :].reshape(sc * W, Cin)
                acc = acc + jnp.dot(patch.astype(jnp.bfloat16),
                                    w_ref[ky, kx],
                                    preferred_element_type=jnp.float32)

        # Fused conv bias + BatchNorm (eval mode) as per-channel affine.
        y = acc * scale + shift                         # (sc*W, Cout)

        # 2x2 max pool, then relu (relu commutes with max, as in torch).
        y = y.reshape(sc, W // 2, 2, Cout)
        y = jnp.maximum(y[:, :, 0, :], y[:, :, 1, :])   # pool along width
        y = y.reshape(ch, 2, W // 2, Cout)
        y = jnp.maximum(y[:, 0], y[:, 1])               # pool along height
        y = jnp.maximum(y, 0.0)                         # relu

        row0 = pl.multiple_of(c * ch, ch)
        out_ref[0, pl.ds(row0, ch), :, :] = y.astype(out_ref.dtype)


def conv_bn_pool(x_nhwc, w, scale, shift, *, chunk_rows):
    """x_nhwc: (N, H, W, Cin) f32 -> (N, H//2, W//2, Cout) f32."""
    N, H, W, Cin = x_nhwc.shape
    Cout = w.shape[-1]
    assert H % 2 == 0 and W % 2 == 0, "pooling needs even spatial dims"
    assert (H // 2) % chunk_rows == 0
    xpad = jnp.pad(x_nhwc, ((0, 0), (1, 1), (1, 1), (0, 0)))
    Hp, Wp = H + 2, W + 2

    kernel = functools.partial(conv_bn_pool_kernel, chunk_rows=chunk_rows)
    return pl.pallas_call(
        kernel,
        out_shape=jax.ShapeDtypeStruct((N, H // 2, W // 2, Cout), jnp.float32),
        grid=(N,),
        in_specs=[
            pl.BlockSpec((1, Hp, Wp, Cin), lambda n: (n, 0, 0, 0)),
            pl.BlockSpec((3, 3, Cin, Cout), lambda n: (0, 0, 0, 0)),
            pl.BlockSpec((1, Cout), lambda n: (0, 0)),
            pl.BlockSpec((1, Cout), lambda n: (0, 0)),
        ],
        out_specs=pl.BlockSpec((1, H // 2, W // 2, Cout),
                               lambda n: (n, 0, 0, 0)),
        compiler_params=pltpu.CompilerParams(
            dimension_semantics=("parallel",)),
    )(xpad, w, scale, shift)


# ----------------------------------------------------------------------------
# Kernel 2: fc1 (K-tiled, bf16, streamed weights) + BN1d (folded) + relu +
# dropout (identity in eval) + fc2 + softmax.
# ----------------------------------------------------------------------------
def fc_head_kernel(x_ref, w1_ref, s1_ref, t1_ref, w2_ref, b2_ref, out_ref,
                   acc_ref):
    k = pl.program_id(0)

    @pl.when(k == 0)
    def _():
        acc_ref[...] = jnp.zeros_like(acc_ref)

    acc_ref[...] += jnp.dot(x_ref[...], w1_ref[...],
                            preferred_element_type=jnp.float32)

    @pl.when(k == pl.num_programs(0) - 1)
    def _():
        h = acc_ref[...] * s1_ref[...] + t1_ref[...]    # fc1 bias + BN1d (eval)
        h = jnp.maximum(h, 0.0)                         # relu
        # TODO(synk): dropout(p=0.2) is identity in eval mode; training-mode
        # RNG mask not implemented.
        logits = jnp.dot(h, w2_ref[...],                # small fc2 kept in f32
                         preferred_element_type=jnp.float32) + b2_ref[...]
        m = jnp.max(logits, axis=-1, keepdims=True)
        e = jnp.exp(logits - m)
        out_ref[...] = (e / jnp.sum(e, axis=-1, keepdims=True)
                        ).astype(out_ref.dtype)


def fc_head(x_flat, w1, s1, t1, w2, b2, *, k_tile=1024):
    N, K = x_flat.shape
    Hd = w1.shape[1]
    C = w2.shape[1]
    assert K % k_tile == 0
    n_k = K // k_tile
    return pl.pallas_call(
        fc_head_kernel,
        out_shape=jax.ShapeDtypeStruct((N, C), jnp.float32),
        grid=(n_k,),
        in_specs=[
            pl.BlockSpec((N, k_tile), lambda k: (0, k)),
            pl.BlockSpec((k_tile, Hd), lambda k: (k, 0)),
            pl.BlockSpec((1, Hd), lambda k: (0, 0)),
            pl.BlockSpec((1, Hd), lambda k: (0, 0)),
            pl.BlockSpec((Hd, C), lambda k: (0, 0)),
            pl.BlockSpec((1, C), lambda k: (0, 0)),
        ],
        out_specs=pl.BlockSpec((N, C), lambda k: (0, 0)),
        scratch_shapes=[pltpu.VMEM((N, Hd), jnp.float32)],
        compiler_params=pltpu.CompilerParams(
            dimension_semantics=("arbitrary",)),
    )(x_flat, w1, s1, t1, w2, b2)


# ----------------------------------------------------------------------------
# Parameter setup / one-time inference weight prep
# ----------------------------------------------------------------------------
def bn_fold(gamma, beta, mean, var, bias, eps=1e-5):
    """Fold eval-mode BatchNorm + preceding bias into per-channel scale/shift."""
    scale = gamma / jnp.sqrt(var + eps)
    shift = (bias - mean) * scale + beta
    return scale.astype(jnp.float32), shift.astype(jnp.float32)


def init_params(key):
    ks = jax.random.split(key, 32)
    k = iter(ks)

    def conv_block(cin, cout):
        return dict(
            w=jax.random.normal(next(k), (3, 3, cin, cout), jnp.float32) * 0.05,
            b=jax.random.normal(next(k), (cout,), jnp.float32) * 0.01,
            gamma=1.0 + 0.1 * jax.random.normal(next(k), (cout,), jnp.float32),
            beta=0.1 * jax.random.normal(next(k), (cout,), jnp.float32),
            mean=0.1 * jax.random.normal(next(k), (cout,), jnp.float32),
            var=jax.random.uniform(next(k), (cout,), jnp.float32, 0.5, 1.5),
        )

    return dict(
        c1=conv_block(3, 32),
        c2=conv_block(32, 64),
        c3=conv_block(64, 128),
        # fc1_w rows are ordered like PyTorch's NCHW flatten: f = c*64 + h*8 + w
        fc1_w=jax.random.normal(next(k), (8 * 8 * 128, 256), jnp.float32) * 0.02,
        fc1_b=jax.random.normal(next(k), (256,), jnp.float32) * 0.01,
        fcbn1_gamma=1.0 + 0.1 * jax.random.normal(next(k), (256,), jnp.float32),
        fcbn1_beta=0.1 * jax.random.normal(next(k), (256,), jnp.float32),
        fcbn1_mean=0.1 * jax.random.normal(next(k), (256,), jnp.float32),
        fcbn1_var=jax.random.uniform(next(k), (256,), jnp.float32, 0.5, 1.5),
        fc2_w=jax.random.normal(next(k), (256, 200), jnp.float32) * 0.05,
        fc2_b=jax.random.normal(next(k), (200,), jnp.float32) * 0.01,
    )


def prepare_params(p):
    """One-time prep: BN folding, bf16 weight cast, Cin 3->8 zero-pad for
    block 1, and the NCHW->NHWC row permutation of fc1_w (so the runtime
    activation flatten is NHWC-native and needs no transpose)."""
    out = {}
    for name in ("c1", "c2", "c3"):
        c = p[name]
        s, t = bn_fold(c["gamma"], c["beta"], c["mean"], c["var"], c["b"])
        w = c["w"]
        if name == "c1":
            # Pad Cin 3 -> 8 with zero weight rows (input channels are
            # zero-padded to match) -- semantics unchanged, layout friendly.
            w = jnp.pad(w, ((0, 0), (0, 0), (0, 5), (0, 0)))
        out[name] = dict(w=w.astype(jnp.bfloat16),
                         scale=s.reshape(1, -1), shift=t.reshape(1, -1))

    fs, ft = bn_fold(p["fcbn1_gamma"], p["fcbn1_beta"], p["fcbn1_mean"],
                     p["fcbn1_var"], p["fc1_b"])
    # PyTorch flattens NCHW: feature index f = c*64 + h*8 + w.  Our activations
    # are flattened NHWC: g = h*1024 + w*128 + c.  Permute rows once so
    # w1_perm[g, :] == fc1_w[f, :] for the same (c, h, w).
    w1 = (p["fc1_w"].reshape(128, 8, 8, 256)
          .transpose(1, 2, 0, 3).reshape(8 * 8 * 128, 256))
    out["fc"] = dict(w1=w1.astype(jnp.bfloat16),
                     s1=fs.reshape(1, -1), t1=ft.reshape(1, -1),
                     w2=p["fc2_w"].astype(jnp.float32),
                     b2=p["fc2_b"].reshape(1, -1).astype(jnp.float32))
    return out


# ----------------------------------------------------------------------------
# Forward pass
# ----------------------------------------------------------------------------
@jax.jit
def tiny_imagenet_forward(x_nchw, prepped):
    # NCHW -> NHWC; zero-pad Cin 3 -> 8 to match zero-padded weight rows.
    x = jnp.transpose(x_nchw, (0, 2, 3, 1)).astype(jnp.float32)
    x = jnp.pad(x, ((0, 0), (0, 0), (0, 0), (0, 5)))

    c1 = prepped["c1"]
    x = conv_bn_pool(x, c1["w"], c1["scale"], c1["shift"], chunk_rows=2)
    # (N, 32, 32, 32)
    c2 = prepped["c2"]
    x = conv_bn_pool(x, c2["w"], c2["scale"], c2["shift"], chunk_rows=4)
    # (N, 16, 16, 64)
    c3 = prepped["c3"]
    x = conv_bn_pool(x, c3["w"], c3["scale"], c3["shift"], chunk_rows=4)
    # (N, 8, 8, 128)

    # NHWC flatten is a free reshape; the NCHW permutation lives in fc1_w.
    x = x.reshape(x.shape[0], 8 * 8 * 128).astype(jnp.bfloat16)

    fc = prepped["fc"]
    return fc_head(x, fc["w1"], fc["s1"], fc["t1"], fc["w2"], fc["b2"])
    # (N, 200) softmax probabilities


if __name__ == "__main__":
    key = jax.random.PRNGKey(0)
    k_x, k_p = jax.random.split(key)
    # Input must be 64x64 so three 2x pools give 8x8x128 before fc1.
    x = jax.random.normal(k_x, (2, 3, 64, 64), jnp.float32)
    params = init_params(k_p)
    prepped = prepare_params(params)

    y = tiny_imagenet_forward(x, prepped)
    jax.block_until_ready(y)

    assert y.shape == (2, 200)
    assert bool(jnp.all(jnp.isfinite(y)))
    # softmax rows sum to 1
    assert bool(jnp.allclose(jnp.sum(y, axis=-1), 1.0, atol=1e-4))
    print("KERNEL_OK")
</pallas_src>

<mosaic_0001>
module attributes {stable_mosaic.version = 11 : i64} {
  func.func @conv_bn_pool_kernel(%arg0: i32, %arg1: memref<1x66x66x8xf32, #tpu.memory_space<vmem>>, %arg2: memref<3x3x8x32xbf16, #tpu.memory_space<vmem>>, %arg3: memref<1x32xf32, #tpu.memory_space<vmem>>, %arg4: memref<1x32xf32, #tpu.memory_space<vmem>>, %arg5: memref<1x32x32x32xf32, #tpu.memory_space<vmem>>) attributes {dimension_semantics = [#tpu.dimension_semantics<parallel>], iteration_bounds = array<i64: 2>, scalar_prefetch = 0 : i64, scratch_operands = 0 : i64, tpu.core_type = #tpu.core_type<tc>, window_params = [{transform_indices = @transform_0, window_bounds = array<i64: 1, 66, 66, 8>}, {pipeline_mode = #tpu.pipeline_mode<synchronous>, transform_indices = @transform_1, window_bounds = array<i64: 3, 3, 8, 32>}, {pipeline_mode = #tpu.pipeline_mode<synchronous>, transform_indices = @transform_2, window_bounds = array<i64: 1, 32>}, {pipeline_mode = #tpu.pipeline_mode<synchronous>, transform_indices = @transform_3, window_bounds = array<i64: 1, 32>}, {transform_indices = @transform_4, window_bounds = array<i64: 1, 32, 32, 32>}]} {
    %c0 = arith.constant 0 : index
    %c0_0 = arith.constant 0 : index
    %0 = vector.load %arg3[%c0, %c0_0] : memref<1x32xf32, #tpu.memory_space<vmem>>, vector<1x32xf32>
    %1 = vector.shape_cast %0 : vector<1x32xf32> to vector<32xf32>
    %c0_1 = arith.constant 0 : index
    %c0_2 = arith.constant 0 : index
    %2 = vector.load %arg4[%c0_1, %c0_2] : memref<1x32xf32, #tpu.memory_space<vmem>>, vector<1x32xf32>
    %3 = vector.shape_cast %2 : vector<1x32xf32> to vector<32xf32>
    %c0_i32 = arith.constant 0 : i32
    %c16_i32 = arith.constant 16 : i32
    %4 = arith.addi %c0_i32, %c16_i32 : i32
    %c1_i32 = arith.constant 1 : i32
    scf.for %arg6 = %c0_i32 to %4 step %c1_i32  : i32 {
      %c1_i32_4 = arith.constant 1 : i32
      %5 = arith.muli %arg6, %c1_i32_4 : i32
      %c0_i32_5 = arith.constant 0 : i32
      %6 = arith.addi %c0_i32_5, %5 : i32
      %c4_i32 = arith.constant 4 : i32
      %7 = arith.muli %6, %c4_i32 : i32
      %8 = tpu.assume_multiple %7, 4 : i32
      %c0_6 = arith.constant 0 : index
      %9 = arith.index_cast %8 : i32 to index
      %c0_7 = arith.constant 0 : index
      %c0_8 = arith.constant 0 : index
      %10 = vector.load %arg1[%c0_6, %9, %c0_7, %c0_8] : memref<1x66x66x8xf32, #tpu.memory_space<vmem>>, vector<1x6x66x8xf32>
      %11 = vector.shape_cast %10 : vector<1x6x66x8xf32> to vector<6x66x8xf32>
      %cst = arith.constant 0.000000e+00 : f32
      %12 = vector.broadcast %cst : f32 to vector<256x32xf32>
      %13 = vector.extract_strided_slice %11 {offsets = [0, 0, 0], sizes = [4, 64, 8], strides = [1, 1, 1]} : vector<6x66x8xf32> to vector<4x64x8xf32>
      %14 = vector.shape_cast %13 : vector<4x64x8xf32> to vector<256x8xf32>
      %15 = arith.truncf %14 : vector<256x8xf32> to vector<256x8xbf16>
      %c0_9 = arith.constant 0 : index
      %c0_10 = arith.constant 0 : index
      %c0_11 = arith.constant 0 : index
      %c0_12 = arith.constant 0 : index
      %16 = vector.load %arg2[%c0_9, %c0_10, %c0_11, %c0_12] : memref<3x3x8x32xbf16, #tpu.memory_space<vmem>>, vector<1x1x8x32xbf16>
      %17 = vector.shape_cast %16 : vector<1x1x8x32xbf16> to vector<8x32xbf16>
      %cst_13 = arith.constant dense<0.000000e+00> : vector<256x32xf32>
      %18 = tpu.matmul %15, %17, %cst_13 {dimension_numbers = #tpu.dot_dimension_numbers<[1], [0], [0], [1], [0, 0, 1, 1], [], []>} : vector<256x8xbf16>, vector<8x32xbf16>, vector<256x32xf32> -> vector<256x32xf32>
      %19 = arith.addf %12, %18 : vector<256x32xf32>
      %20 = vector.extract_strided_slice %11 {offsets = [0, 1, 0], sizes = [4, 64, 8], strides = [1, 1, 1]} : vector<6x66x8xf32> to vector<4x64x8xf32>
      %21 = vector.shape_cast %20 : vector<4x64x8xf32> to vector<256x8xf32>
      %22 = arith.truncf %21 : vector<256x8xf32> to vector<256x8xbf16>
      %c0_14 = arith.constant 0 : index
      %c1 = arith.constant 1 : index
      %c0_15 = arith.constant 0 : index
      %c0_16 = arith.constant 0 : index
      %23 = vector.load %arg2[%c0_14, %c1, %c0_15, %c0_16] : memref<3x3x8x32xbf16, #tpu.memory_space<vmem>>, vector<1x1x8x32xbf16>
      %24 = vector.shape_cast %23 : vector<1x1x8x32xbf16> to vector<8x32xbf16>
      %cst_17 = arith.constant dense<0.000000e+00> : vector<256x32xf32>
      %25 = tpu.matmul %22, %24, %cst_17 {dimension_numbers = #tpu.dot_dimension_numbers<[1], [0], [0], [1], [0, 0, 1, 1], [], []>} : vector<256x8xbf16>, vector<8x32xbf16>, vector<256x32xf32> -> vector<256x32xf32>
      %26 = arith.addf %19, %25 : vector<256x32xf32>
      %27 = vector.extract_strided_slice %11 {offsets = [0, 2, 0], sizes = [4, 64, 8], strides = [1, 1, 1]} : vector<6x66x8xf32> to vector<4x64x8xf32>
      %28 = vector.shape_cast %27 : vector<4x64x8xf32> to vector<256x8xf32>
      %29 = arith.truncf %28 : vector<256x8xf32> to vector<256x8xbf16>
      %c0_18 = arith.constant 0 : index
      %c2 = arith.constant 2 : index
      %c0_19 = arith.constant 0 : index
      %c0_20 = arith.constant 0 : index
      %30 = vector.load %arg2[%c0_18, %c2, %c0_19, %c0_20] : memref<3x3x8x32xbf16, #tpu.memory_space<vmem>>, vector<1x1x8x32xbf16>
      %31 = vector.shape_cast %30 : vector<1x1x8x32xbf16> to vector<8x32xbf16>
      %cst_21 = arith.constant dense<0.000000e+00> : vector<256x32xf32>
      %32 = tpu.matmul %29, %31, %cst_21 {dimension_numbers = #tpu.dot_dimension_numbers<[1], [0], [0], [1], [0, 0, 1, 1], [], []>} : vector<256x8xbf16>, vector<8x32xbf16>, vector<256x32xf32> -> vector<256x32xf32>
      %33 = arith.addf %26, %32 : vector<256x32xf32>
      %34 = vector.extract_strided_slice %11 {offsets = [1, 0, 0], sizes = [4, 64, 8], strides = [1, 1, 1]} : vector<6x66x8xf32> to vector<4x64x8xf32>
      %35 = vector.shape_cast %34 : vector<4x64x8xf32> to vector<256x8xf32>
      %36 = arith.truncf %35 : vector<256x8xf32> to vector<256x8xbf16>
      %c1_22 = arith.constant 1 : index
      %c0_23 = arith.constant 0 : index
      %c0_24 = arith.constant 0 : index
      %c0_25 = arith.constant 0 : index
      %37 = vector.load %arg2[%c1_22, %c0_23, %c0_24, %c0_25] : memref<3x3x8x32xbf16, #tpu.memory_space<vmem>>, vector<1x1x8x32xbf16>
      %38 = vector.shape_cast %37 : vector<1x1x8x32xbf16> to vector<8x32xbf16>
      %cst_26 = arith.constant dense<0.000000e+00> : vector<256x32xf32>
      %39 = tpu.matmul %36, %38, %cst_26 {dimension_numbers = #tpu.dot_dimension_numbers<[1], [0], [0], [1], [0, 0, 1, 1], [], []>} : vector<256x8xbf16>, vector<8x32xbf16>, vector<256x32xf32> -> vector<256x32xf32>
      %40 = arith.addf %33, %39 : vector<256x32xf32>
      %41 = vector.extract_strided_slice %11 {offsets = [1, 1, 0], sizes = [4, 64, 8], strides = [1, 1, 1]} : vector<6x66x8xf32> to vector<4x64x8xf32>
      %42 = vector.shape_cast %41 : vector<4x64x8xf32> to vector<256x8xf32>
      %43 = arith.truncf %42 : vector<256x8xf32> to vector<256x8xbf16>
      %c1_27 = arith.constant 1 : index
      %c1_28 = arith.constant 1 : index
      %c0_29 = arith.constant 0 : index
      %c0_30 = arith.constant 0 : index
      %44 = vector.load %arg2[%c1_27, %c1_28, %c0_29, %c0_30] : memref<3x3x8x32xbf16, #tpu.memory_space<vmem>>, vector<1x1x8x32xbf16>
      %45 = vector.shape_cast %44 : vector<1x1x8x32xbf16> to vector<8x32xbf16>
      %cst_31 = arith.constant dense<0.000000e+00> : vector<256x32xf32>
      %46 = tpu.matmul %43, %45, %cst_31 {dimension_numbers = #tpu.dot_dimension_numbers<[1], [0], [0], [1], [0, 0, 1, 1], [], []>} : vector<256x8xbf16>, vector<8x32xbf16>, vector<256x32xf32> -> vector<256x32xf32>
      %47 = arith.addf %40, %46 : vector<256x32xf32>
      %48 = vector.extract_strided_slice %11 {offsets = [1, 2, 0], sizes = [4, 64, 8], strides = [1, 1, 1]} : vector<6x66x8xf32> to vector<4x64x8xf32>
      %49 = vector.shape_cast %48 : vector<4x64x8xf32> to vector<256x8xf32>
      %50 = arith.truncf %49 : vector<256x8xf32> to vector<256x8xbf16>
      %c1_32 = arith.constant 1 : index
      %c2_33 = arith.constant 2 : index
      %c0_34 = arith.constant 0 : index
      %c0_35 = arith.constant 0 : index
      %51 = vector.load %arg2[%c1_32, %c2_33, %c0_34, %c0_35] : memref<3x3x8x32xbf16, #tpu.memory_space<vmem>>, vector<1x1x8x32xbf16>
      %52 = vector.shape_cast %51 : vector<1x1x8x32xbf16> to vector<8x32xbf16>
      %cst_36 = arith.constant dense<0.000000e+00> : vector<256x32xf32>
      %53 = tpu.matmul %50, %52, %cst_36 {dimension_numbers = #tpu.dot_dimension_numbers<[1], [0], [0], [1], [0, 0, 1, 1], [], []>} : vector<256x8xbf16>, vector<8x32xbf16>, vector<256x32xf32> -> vector<256x32xf32>
      %54 = arith.addf %47, %53 : vector<256x32xf32>
      %55 = vector.extract_strided_slice %11 {offsets = [2, 0, 0], sizes = [4, 64, 8], strides = [1, 1, 1]} : vector<6x66x8xf32> to vector<4x64x8xf32>
      %56 = vector.shape_cast %55 : vector<4x64x8xf32> to vector<256x8xf32>
      %57 = arith.truncf %56 : vector<256x8xf32> to vector<256x8xbf16>
      %c2_37 = arith.constant 2 : index
      %c0_38 = arith.constant 0 : index
      %c0_39 = arith.constant 0 : index
      %c0_40 = arith.constant 0 : index
      %58 = vector.load %arg2[%c2_37, %c0_38, %c0_39, %c0_40] : memref<3x3x8x32xbf16, #tpu.memory_space<vmem>>, vector<1x1x8x32xbf16>
      %59 = vector.shape_cast %58 : vector<1x1x8x32xbf16> to vector<8x32xbf16>
      %cst_41 = arith.constant dense<0.000000e+00> : vector<256x32xf32>
      %60 = tpu.matmul %57, %59, %cst_41 {dimension_numbers = #tpu.dot_dimension_numbers<[1], [0], [0], [1], [0, 0, 1, 1], [], []>} : vector<256x8xbf16>, vector<8x32xbf16>, vector<256x32xf32> -> vector<256x32xf32>
      %61 = arith.addf %54, %60 : vector<256x32xf32>
      %62 = vector.extract_strided_slice %11 {offsets = [2, 1, 0], sizes = [4, 64, 8], strides = [1, 1, 1]} : vector<6x66x8xf32> to vector<4x64x8xf32>
      %63 = vector.shape_cast %62 : vector<4x64x8xf32> to vector<256x8xf32>
      %64 = arith.truncf %63 : vector<256x8xf32> to vector<256x8xbf16>
      %c2_42 = arith.constant 2 : index
      %c1_43 = arith.constant 1 : index
      %c0_44 = arith.constant 0 : index
      %c0_45 = arith.constant 0 : index
      %65 = vector.load %arg2[%c2_42, %c1_43, %c0_44, %c0_45] : memref<3x3x8x32xbf16, #tpu.memory_space<vmem>>, vector<1x1x8x32xbf16>
      %66 = vector.shape_cast %65 : vector<1x1x8x32xbf16> to vector<8x32xbf16>
      %cst_46 = arith.constant dense<0.000000e+00> : vector<256x32xf32>
      %67 = tpu.matmul %64, %66, %cst_46 {dimension_numbers = #tpu.dot_dimension_numbers<[1], [0], [0], [1], [0, 0, 1, 1], [], []>} : vector<256x8xbf16>, vector<8x32xbf16>, vector<256x32xf32> -> vector<256x32xf32>
      %68 = arith.addf %61, %67 : vector<256x32xf32>
      %69 = vector.extract_strided_slice %11 {offsets = [2, 2, 0], sizes = [4, 64, 8], strides = [1, 1, 1]} : vector<6x66x8xf32> to vector<4x64x8xf32>
      %70 = vector.shape_cast %69 : vector<4x64x8xf32> to vector<256x8xf32>
      %71 = arith.truncf %70 : vector<256x8xf32> to vector<256x8xbf16>
      %c2_47 = arith.constant 2 : index
      %c2_48 = arith.constant 2 : index
      %c0_49 = arith.constant 0 : index
      %c0_50 = arith.constant 0 : index
      %72 = vector.load %arg2[%c2_47, %c2_48, %c0_49, %c0_50] : memref<3x3x8x32xbf16, #tpu.memory_space<vmem>>, vector<1x1x8x32xbf16>
      %73 = vector.shape_cast %72 : vector<1x1x8x32xbf16> to vector<8x32xbf16>
      %cst_51 = arith.constant dense<0.000000e+00> : vector<256x32xf32>
      %74 = tpu.matmul %71, %73, %cst_51 {dimension_numbers = #tpu.dot_dimension_numbers<[1], [0], [0], [1], [0, 0, 1, 1], [], []>} : vector<256x8xbf16>, vector<8x32xbf16>, vector<256x32xf32> -> vector<256x32xf32>
      %75 = arith.addf %68, %74 : vector<256x32xf32>
      %76 = vector.shape_cast %1 : vector<32xf32> to vector<1x32xf32>
      %77 = vector.broadcast %76 : vector<1x32xf32> to vector<256x32xf32>
      %78 = arith.mulf %75, %77 : vector<256x32xf32>
      %79 = vector.shape_cast %3 : vector<32xf32> to vector<1x32xf32>
      %80 = vector.broadcast %79 : vector<1x32xf32> to vector<256x32xf32>
      %81 = arith.addf %78, %80 : vector<256x32xf32>
      %82 = vector.shape_cast %81 : vector<256x32xf32> to vector<4x32x2x32xf32>
      %83 = vector.extract_strided_slice %82 {offsets = [0, 0, 0, 0], sizes = [4, 32, 1, 32], strides = [1, 1, 1, 1]} : vector<4x32x2x32xf32> to vector<4x32x1x32xf32>
      %84 = vector.shape_cast %83 : vector<4x32x1x32xf32> to vector<4x32x32xf32>
      %85 = vector.extract_strided_slice %82 {offsets = [0, 0, 1, 0], sizes = [4, 32, 1, 32], strides = [1, 1, 1, 1]} : vector<4x32x2x32xf32> to vector<4x32x1x32xf32>
      %86 = vector.shape_cast %85 : vector<4x32x1x32xf32> to vector<4x32x32xf32>
      %87 = arith.maximumf %84, %86 : vector<4x32x32xf32>
      %88 = vector.shape_cast %87 : vector<4x32x32xf32> to vector<2x2x32x32xf32>
      %89 = vector.extract_strided_slice %88 {offsets = [0, 0, 0, 0], sizes = [2, 1, 32, 32], strides = [1, 1, 1, 1]} : vector<2x2x32x32xf32> to vector<2x1x32x32xf32>
      %90 = vector.shape_cast %89 : vector<2x1x32x32xf32> to vector<2x32x32xf32>
      %91 = vector.extract_strided_slice %88 {offsets = [0, 1, 0, 0], sizes = [2, 1, 32, 32], strides = [1, 1, 1, 1]} : vector<2x2x32x32xf32> to vector<2x1x32x32xf32>
      %92 = vector.shape_cast %91 : vector<2x1x32x32xf32> to vector<2x32x32xf32>
      %93 = arith.maximumf %90, %92 : vector<2x32x32xf32>
      %cst_52 = arith.constant 0.000000e+00 : f32
      %94 = vector.broadcast %cst_52 : f32 to vector<2x32x32xf32>
      %95 = arith.maximumf %93, %94 : vector<2x32x32xf32>
      %c2_i32 = arith.constant 2 : i32
      %96 = arith.muli %6, %c2_i32 : i32
      %97 = tpu.assume_multiple %96, 2 : i32
      %c0_53 = arith.constant 0 : index
      %98 = arith.index_cast %97 : i32 to index
      %c0_54 = arith.constant 0 : index
      %c0_55 = arith.constant 0 : index
      %99 = vector.load %arg5[%c0_53, %98, %c0_54, %c0_55] : memref<1x32x32x32xf32, #tpu.memory_space<vmem>>, vector<1x2x32x32xf32>
      %100 = vector.shape_cast %99 : vector<1x2x32x32xf32> to vector<2x32x32xf32>
      %101 = vector.shape_cast %95 : vector<2x32x32xf32> to vector<1x2x32x32xf32>
      tpu.vector_store %arg5[%c0_53, %98, %c0_54, %c0_55], %101 {strides = array<i32>} : memref<1x32x32x32xf32, #tpu.memory_space<vmem>>, vector<1x2x32x32xf32>,
    }
    %c16_i32_3 = arith.constant 16 : i32
    return
  }
  func.func @transform_0(%arg0: i32) -> (i32, i32, i32, i32) {
    %c0_i32 = arith.constant 0 : i32
    %c0_i32_0 = arith.constant 0 : i32
    %c0_i32_1 = arith.constant 0 : i32
    %c0_i32_2 = arith.constant 0 : i32
    return %arg0, %c0_i32, %c0_i32_0, %c0_i32_1 : i32, i32, i32, i32
  }
  func.func @transform_1(%arg0: i32) -> (i32, i32, i32, i32) {
    %c0_i32 = arith.constant 0 : i32
    %c0_i32_0 = arith.constant 0 : i32
    %c0_i32_1 = arith.constant 0 : i32
    %c0_i32_2 = arith.constant 0 : i32
    %c0_i32_3 = arith.constant 0 : i32
    return %c0_i32, %c0_i32_0, %c0_i32_1, %c0_i32_2 : i32, i32, i32, i32
  }
  func.func @transform_2(%arg0: i32) -> (i32, i32) {
    %c0_i32 = arith.constant 0 : i32
    %c0_i32_0 = arith.constant 0 : i32
    %c0_i32_1 = arith.constant 0 : i32
    return %c0_i32, %c0_i32_0 : i32, i32
  }
  func.func @transform_3(%arg0: i32) -> (i32, i32) {
    %c0_i32 = arith.constant 0 : i32
    %c0_i32_0 = arith.constant 0 : i32
    %c0_i32_1 = arith.constant 0 : i32
    return %c0_i32, %c0_i32_0 : i32, i32
  }
  func.func @transform_4(%arg0: i32) -> (i32, i32, i32, i32) {
    %c0_i32 = arith.constant 0 : i32
    %c0_i32_0 = arith.constant 0 : i32
    %c0_i32_1 = arith.constant 0 : i32
    %c0_i32_2 = arith.constant 0 : i32
    return %arg0, %c0_i32, %c0_i32_0, %c0_i32_1 : i32, i32, i32, i32
  }
}

module attributes {stable_mosaic.version = 11 : i64} {
  func.func @conv_bn_pool_kernel(%arg0: i32, %arg1: memref<1x34x34x32xf32, #tpu.memory_space<vmem>>, %arg2: memref<3x3x32x64xbf16, #tpu.memory_space<vmem>>, %arg3: memref<1x64xf32, #tpu.memory_space<vmem>>, %arg4: memref<1x64xf32, #tpu.memory_space<vmem>>, %arg5: memref<1x16x16x64xf32, #tpu.memory_space<vmem>>) attributes {dimension_semantics = [#tpu.dimension_semantics<parallel>], iteration_bounds = array<i64: 2>, scalar_prefetch = 0 : i64, scratch_operands = 0 : i64, tpu.core_type = #tpu.core_type<tc>, window_params = [{transform_indices = @transform_0, window_bounds = array<i64: 1, 34, 34, 32>}, {pipeline_mode = #tpu.pipeline_mode<synchronous>, transform_indices = @transform_1, window_bounds = array<i64: 3, 3, 32, 64>}, {pipeline_mode = #tpu.pipeline_mode<synchronous>, transform_indices = @transform_2, window_bounds = array<i64: 1, 64>}, {pipeline_mode = #tpu.pipeline_mode<synchronous>, transform_indices = @transform_3, window_bounds = array<i64: 1, 64>}, {transform_indices = @transform_4, window_bounds = array<i64: 1, 16, 16, 64>}]} {
    %c0 = arith.constant 0 : index
    %c0_0 = arith.constant 0 : index
    %0 = vector.load %arg3[%c0, %c0_0] : memref<1x64xf32, #tpu.memory_space<vmem>>, vector<1x64xf32>
    %1 = vector.shape_cast %0 : vector<1x64xf32> to vector<64xf32>
    %c0_1 = arith.constant 0 : index
    %c0_2 = arith.constant 0 : index
    %2 = vector.load %arg4[%c0_1, %c0_2] : memref<1x64xf32, #tpu.memory_space<vmem>>, vector<1x64xf32>
    %3 = vector.shape_cast %2 : vector<1x64xf32> to vector<64xf32>
    %c0_i32 = arith.constant 0 : i32
    %c4_i32 = arith.constant 4 : i32
    %4 = arith.addi %c0_i32, %c4_i32 : i32
    %c1_i32 = arith.constant 1 : i32
    scf.for %arg6 = %c0_i32 to %4 step %c1_i32  : i32 {
      %c1_i32_4 = arith.constant 1 : i32
      %5 = arith.muli %arg6, %c1_i32_4 : i32
      %c0_i32_5 = arith.constant 0 : i32
      %6 = arith.addi %c0_i32_5, %5 : i32
      %c8_i32 = arith.constant 8 : i32
      %7 = arith.muli %6, %c8_i32 : i32
      %8 = tpu.assume_multiple %7, 8 : i32
      %c0_6 = arith.constant 0 : index
      %9 = arith.index_cast %8 : i32 to index
      %c0_7 = arith.constant 0 : index
      %c0_8 = arith.constant 0 : index
      %10 = vector.load %arg1[%c0_6, %9, %c0_7, %c0_8] : memref<1x34x34x32xf32, #tpu.memory_space<vmem>>, vector<1x10x34x32xf32>
      %11 = vector.shape_cast %10 : vector<1x10x34x32xf32> to vector<10x34x32xf32>
      %cst = arith.constant 0.000000e+00 : f32
      %12 = vector.broadcast %cst : f32 to vector<256x64xf32>
      %13 = vector.extract_strided_slice %11 {offsets = [0, 0, 0], sizes = [8, 32, 32], strides = [1, 1, 1]} : vector<10x34x32xf32> to vector<8x32x32xf32>
      %14 = vector.shape_cast %13 : vector<8x32x32xf32> to vector<256x32xf32>
      %15 = arith.truncf %14 : vector<256x32xf32> to vector<256x32xbf16>
      %c0_9 = arith.constant 0 : index
      %c0_10 = arith.constant 0 : index
      %c0_11 = arith.constant 0 : index
      %c0_12 = arith.constant 0 : index
      %16 = vector.load %arg2[%c0_9, %c0_10, %c0_11, %c0_12] : memref<3x3x32x64xbf16, #tpu.memory_space<vmem>>, vector<1x1x32x64xbf16>
      %17 = vector.shape_cast %16 : vector<1x1x32x64xbf16> to vector<32x64xbf16>
      %cst_13 = arith.constant dense<0.000000e+00> : vector<256x64xf32>
      %18 = tpu.matmul %15, %17, %cst_13 {dimension_numbers = #tpu.dot_dimension_numbers<[1], [0], [0], [1], [0, 0, 1, 1], [], []>} : vector<256x32xbf16>, vector<32x64xbf16>, vector<256x64xf32> -> vector<256x64xf32>
      %19 = arith.addf %12, %18 : vector<256x64xf32>
      %20 = vector.extract_strided_slice %11 {offsets = [0, 1, 0], sizes = [8, 32, 32], strides = [1, 1, 1]} : vector<10x34x32xf32> to vector<8x32x32xf32>
      %21 = vector.shape_cast %20 : vector<8x32x32xf32> to vector<256x32xf32>
      %22 = arith.truncf %21 : vector<256x32xf32> to vector<256x32xbf16>
      %c0_14 = arith.constant 0 : index
      %c1 = arith.constant 1 : index
      %c0_15 = arith.constant 0 : index
      %c0_16 = arith.constant 0 : index
      %23 = vector.load %arg2[%c0_14, %c1, %c0_15, %c0_16] : memref<3x3x32x64xbf16, #tpu.memory_space<vmem>>, vector<1x1x32x64xbf16>
      %24 = vector.shape_cast %23 : vector<1x1x32x64xbf16> to vector<32x64xbf16>
      %cst_17 = arith.constant dense<0.000000e+00> : vector<256x64xf32>
      %25 = tpu.matmul %22, %24, %cst_17 {dimension_numbers = #tpu.dot_dimension_numbers<[1], [0], [0], [1], [0, 0, 1, 1], [], []>} : vector<256x32xbf16>, vector<32x64xbf16>, vector<256x64xf32> -> vector<256x64xf32>
      %26 = arith.addf %19, %25 : vector<256x64xf32>
      %27 = vector.extract_strided_slice %11 {offsets = [0, 2, 0], sizes = [8, 32, 32], strides = [1, 1, 1]} : vector<10x34x32xf32> to vector<8x32x32xf32>
      %28 = vector.shape_cast %27 : vector<8x32x32xf32> to vector<256x32xf32>
      %29 = arith.truncf %28 : vector<256x32xf32> to vector<256x32xbf16>
      %c0_18 = arith.constant 0 : index
      %c2 = arith.constant 2 : index
      %c0_19 = arith.constant 0 : index
      %c0_20 = arith.constant 0 : index
      %30 = vector.load %arg2[%c0_18, %c2, %c0_19, %c0_20] : memref<3x3x32x64xbf16, #tpu.memory_space<vmem>>, vector<1x1x32x64xbf16>
      %31 = vector.shape_cast %30 : vector<1x1x32x64xbf16> to vector<32x64xbf16>
      %cst_21 = arith.constant dense<0.000000e+00> : vector<256x64xf32>
      %32 = tpu.matmul %29, %31, %cst_21 {dimension_numbers = #tpu.dot_dimension_numbers<[1], [0], [0], [1], [0, 0, 1, 1], [], []>} : vector<256x32xbf16>, vector<32x64xbf16>, vector<256x64xf32> -> vector<256x64xf32>
      %33 = arith.addf %26, %32 : vector<256x64xf32>
      %34 = vector.extract_strided_slice %11 {offsets = [1, 0, 0], sizes = [8, 32, 32], strides = [1, 1, 1]} : vector<10x34x32xf32> to vector<8x32x32xf32>
      %35 = vector.shape_cast %34 : vector<8x32x32xf32> to vector<256x32xf32>
      %36 = arith.truncf %35 : vector<256x32xf32> to vector<256x32xbf16>
      %c1_22 = arith.constant 1 : index
      %c0_23 = arith.constant 0 : index
      %c0_24 = arith.constant 0 : index
      %c0_25 = arith.constant 0 : index
      %37 = vector.load %arg2[%c1_22, %c0_23, %c0_24, %c0_25] : memref<3x3x32x64xbf16, #tpu.memory_space<vmem>>, vector<1x1x32x64xbf16>
      %38 = vector.shape_cast %37 : vector<1x1x32x64xbf16> to vector<32x64xbf16>
      %cst_26 = arith.constant dense<0.000000e+00> : vector<256x64xf32>
      %39 = tpu.matmul %36, %38, %cst_26 {dimension_numbers = #tpu.dot_dimension_numbers<[1], [0], [0], [1], [0, 0, 1, 1], [], []>} : vector<256x32xbf16>, vector<32x64xbf16>, vector<256x64xf32> -> vector<256x64xf32>
      %40 = arith.addf %33, %39 : vector<256x64xf32>
      %41 = vector.extract_strided_slice %11 {offsets = [1, 1, 0], sizes = [8, 32, 32], strides = [1, 1, 1]} : vector<10x34x32xf32> to vector<8x32x32xf32>
      %42 = vector.shape_cast %41 : vector<8x32x32xf32> to vector<256x32xf32>
      %43 = arith.truncf %42 : vector<256x32xf32> to vector<256x32xbf16>
      %c1_27 = arith.constant 1 : index
      %c1_28 = arith.constant 1 : index
      %c0_29 = arith.constant 0 : index
      %c0_30 = arith.constant 0 : index
      %44 = vector.load %arg2[%c1_27, %c1_28, %c0_29, %c0_30] : memref<3x3x32x64xbf16, #tpu.memory_space<vmem>>, vector<1x1x32x64xbf16>
      %45 = vector.shape_cast %44 : vector<1x1x32x64xbf16> to vector<32x64xbf16>
      %cst_31 = arith.constant dense<0.000000e+00> : vector<256x64xf32>
      %46 = tpu.matmul %43, %45, %cst_31 {dimension_numbers = #tpu.dot_dimension_numbers<[1], [0], [0], [1], [0, 0, 1, 1], [], []>} : vector<256x32xbf16>, vector<32x64xbf16>, vector<256x64xf32> -> vector<256x64xf32>
      %47 = arith.addf %40, %46 : vector<256x64xf32>
      %48 = vector.extract_strided_slice %11 {offsets = [1, 2, 0], sizes = [8, 32, 32], strides = [1, 1, 1]} : vector<10x34x32xf32> to vector<8x32x32xf32>
      %49 = vector.shape_cast %48 : vector<8x32x32xf32> to vector<256x32xf32>
      %50 = arith.truncf %49 : vector<256x32xf32> to vector<256x32xbf16>
      %c1_32 = arith.constant 1 : index
      %c2_33 = arith.constant 2 : index
      %c0_34 = arith.constant 0 : index
      %c0_35 = arith.constant 0 : index
      %51 = vector.load %arg2[%c1_32, %c2_33, %c0_34, %c0_35] : memref<3x3x32x64xbf16, #tpu.memory_space<vmem>>, vector<1x1x32x64xbf16>
      %52 = vector.shape_cast %51 : vector<1x1x32x64xbf16> to vector<32x64xbf16>
      %cst_36 = arith.constant dense<0.000000e+00> : vector<256x64xf32>
      %53 = tpu.matmul %50, %52, %cst_36 {dimension_numbers = #tpu.dot_dimension_numbers<[1], [0], [0], [1], [0, 0, 1, 1], [], []>} : vector<256x32xbf16>, vector<32x64xbf16>, vector<256x64xf32> -> vector<256x64xf32>
      %54 = arith.addf %47, %53 : vector<256x64xf32>
      %55 = vector.extract_strided_slice %11 {offsets = [2, 0, 0], sizes = [8, 32, 32], strides = [1, 1, 1]} : vector<10x34x32xf32> to vector<8x32x32xf32>
      %56 = vector.shape_cast %55 : vector<8x32x32xf32> to vector<256x32xf32>
      %57 = arith.truncf %56 : vector<256x32xf32> to vector<256x32xbf16>
      %c2_37 = arith.constant 2 : index
      %c0_38 = arith.constant 0 : index
      %c0_39 = arith.constant 0 : index
      %c0_40 = arith.constant 0 : index
      %58 = vector.load %arg2[%c2_37, %c0_38, %c0_39, %c0_40] : memref<3x3x32x64xbf16, #tpu.memory_space<vmem>>, vector<1x1x32x64xbf16>
      %59 = vector.shape_cast %58 : vector<1x1x32x64xbf16> to vector<32x64xbf16>
      %cst_41 = arith.constant dense<0.000000e+00> : vector<256x64xf32>
      %60 = tpu.matmul %57, %59, %cst_41 {dimension_numbers = #tpu.dot_dimension_numbers<[1], [0], [0], [1], [0, 0, 1, 1], [], []>} : vector<256x32xbf16>, vector<32x64xbf16>, vector<256x64xf32> -> vector<256x64xf32>
      %61 = arith.addf %54, %60 : vector<256x64xf32>
      %62 = vector.extract_strided_slice %11 {offsets = [2, 1, 0], sizes = [8, 32, 32], strides = [1, 1, 1]} : vector<10x34x32xf32> to vector<8x32x32xf32>
      %63 = vector.shape_cast %62 : vector<8x32x32xf32> to vector<256x32xf32>
      %64 = arith.truncf %63 : vector<256x32xf32> to vector<256x32xbf16>
      %c2_42 = arith.constant 2 : index
      %c1_43 = arith.constant 1 : index
      %c0_44 = arith.constant 0 : index
      %c0_45 = arith.constant 0 : index
      %65 = vector.load %arg2[%c2_42, %c1_43, %c0_44, %c0_45] : memref<3x3x32x64xbf16, #tpu.memory_space<vmem>>, vector<1x1x32x64xbf16>
      %66 = vector.shape_cast %65 : vector<1x1x32x64xbf16> to vector<32x64xbf16>
      %cst_46 = arith.constant dense<0.000000e+00> : vector<256x64xf32>
      %67 = tpu.matmul %64, %66, %cst_46 {dimension_numbers = #tpu.dot_dimension_numbers<[1], [0], [0], [1], [0, 0, 1, 1], [], []>} : vector<256x32xbf16>, vector<32x64xbf16>, vector<256x64xf32> -> vector<256x64xf32>
      %68 = arith.addf %61, %67 : vector<256x64xf32>
      %69 = vector.extract_strided_slice %11 {offsets = [2, 2, 0], sizes = [8, 32, 32], strides = [1, 1, 1]} : vector<10x34x32xf32> to vector<8x32x32xf32>
      %70 = vector.shape_cast %69 : vector<8x32x32xf32> to vector<256x32xf32>
      %71 = arith.truncf %70 : vector<256x32xf32> to vector<256x32xbf16>
      %c2_47 = arith.constant 2 : index
      %c2_48 = arith.constant 2 : index
      %c0_49 = arith.constant 0 : index
      %c0_50 = arith.constant 0 : index
      %72 = vector.load %arg2[%c2_47, %c2_48, %c0_49, %c0_50] : memref<3x3x32x64xbf16, #tpu.memory_space<vmem>>, vector<1x1x32x64xbf16>
      %73 = vector.shape_cast %72 : vector<1x1x32x64xbf16> to vector<32x64xbf16>
      %cst_51 = arith.constant dense<0.000000e+00> : vector<256x64xf32>
      %74 = tpu.matmul %71, %73, %cst_51 {dimension_numbers = #tpu.dot_dimension_numbers<[1], [0], [0], [1], [0, 0, 1, 1], [], []>} : vector<256x32xbf16>, vector<32x64xbf16>, vector<256x64xf32> -> vector<256x64xf32>
      %75 = arith.addf %68, %74 : vector<256x64xf32>
      %76 = vector.shape_cast %1 : vector<64xf32> to vector<1x64xf32>
      %77 = vector.broadcast %76 : vector<1x64xf32> to vector<256x64xf32>
      %78 = arith.mulf %75, %77 : vector<256x64xf32>
      %79 = vector.shape_cast %3 : vector<64xf32> to vector<1x64xf32>
      %80 = vector.broadcast %79 : vector<1x64xf32> to vector<256x64xf32>
      %81 = arith.addf %78, %80 : vector<256x64xf32>
      %82 = vector.shape_cast %81 : vector<256x64xf32> to vector<8x16x2x64xf32>
      %83 = vector.extract_strided_slice %82 {offsets = [0, 0, 0, 0], sizes = [8, 16, 1, 64], strides = [1, 1, 1, 1]} : vector<8x16x2x64xf32> to vector<8x16x1x64xf32>
      %84 = vector.shape_cast %83 : vector<8x16x1x64xf32> to vector<8x16x64xf32>
      %85 = vector.extract_strided_slice %82 {offsets = [0, 0, 1, 0], sizes = [8, 16, 1, 64], strides = [1, 1, 1, 1]} : vector<8x16x2x64xf32> to vector<8x16x1x64xf32>
      %86 = vector.shape_cast %85 : vector<8x16x1x64xf32> to vector<8x16x64xf32>
      %87 = arith.maximumf %84, %86 : vector<8x16x64xf32>
      %88 = vector.shape_cast %87 : vector<8x16x64xf32> to vector<4x2x16x64xf32>
      %89 = vector.extract_strided_slice %88 {offsets = [0, 0, 0, 0], sizes = [4, 1, 16, 64], strides = [1, 1, 1, 1]} : vector<4x2x16x64xf32> to vector<4x1x16x64xf32>
      %90 = vector.shape_cast %89 : vector<4x1x16x64xf32> to vector<4x16x64xf32>
      %91 = vector.extract_strided_slice %88 {offsets = [0, 1, 0, 0], sizes = [4, 1, 16, 64], strides = [1, 1, 1, 1]} : vector<4x2x16x64xf32> to vector<4x1x16x64xf32>
      %92 = vector.shape_cast %91 : vector<4x1x16x64xf32> to vector<4x16x64xf32>
      %93 = arith.maximumf %90, %92 : vector<4x16x64xf32>
      %cst_52 = arith.constant 0.000000e+00 : f32
      %94 = vector.broadcast %cst_52 : f32 to vector<4x16x64xf32>
      %95 = arith.maximumf %93, %94 : vector<4x16x64xf32>
      %c4_i32_53 = arith.constant 4 : i32
      %96 = arith.muli %6, %c4_i32_53 : i32
      %97 = tpu.assume_multiple %96, 4 : i32
      %c0_54 = arith.constant 0 : index
      %98 = arith.index_cast %97 : i32 to index
      %c0_55 = arith.constant 0 : index
      %c0_56 = arith.constant 0 : index
      %99 = vector.load %arg5[%c0_54, %98, %c0_55, %c0_56] : memref<1x16x16x64xf32, #tpu.memory_space<vmem>>, vector<1x4x16x64xf32>
      %100 = vector.shape_cast %99 : vector<1x4x16x64xf32> to vector<4x16x64xf32>
      %101 = vector.shape_cast %95 : vector<4x16x64xf32> to vector<1x4x16x64xf32>
      tpu.vector_store %arg5[%c0_54, %98, %c0_55, %c0_56], %101 {strides = array<i32>} : memref<1x16x16x64xf32, #tpu.memory_space<vmem>>, vector<1x4x16x64xf32>,
    }
    %c4_i32_3 = arith.constant 4 : i32
    return
  }
  func.func @transform_0(%arg0: i32) -> (i32, i32, i32, i32) {
    %c0_i32 = arith.constant 0 : i32
    %c0_i32_0 = arith.constant 0 : i32
    %c0_i32_1 = arith.constant 0 : i32
    %c0_i32_2 = arith.constant 0 : i32
    return %arg0, %c0_i32, %c0_i32_0, %c0_i32_1 : i32, i32, i32, i32
  }
  func.func @transform_1(%arg0: i32) -> (i32, i32, i32, i32) {
    %c0_i32 = arith.constant 0 : i32
    %c0_i32_0 = arith.constant 0 : i32
    %c0_i32_1 = arith.constant 0 : i32
    %c0_i32_2 = arith.constant 0 : i32
    %c0_i32_3 = arith.constant 0 : i32
    return %c0_i32, %c0_i32_0, %c0_i32_1, %c0_i32_2 : i32, i32, i32, i32
  }
  func.func @transform_2(%arg0: i32) -> (i32, i32) {
    %c0_i32 = arith.constant 0 : i32
    %c0_i32_0 = arith.constant 0 : i32
    %c0_i32_1 = arith.constant 0 : i32
    return %c0_i32, %c0_i32_0 : i32, i32
  }
  func.func @transform_3(%arg0: i32) -> (i32, i32) {
    %c0_i32 = arith.constant 0 : i32
    %c0_i32_0 = arith.constant 0 : i32
    %c0_i32_1 = arith.constant 0 : i32
    return %c0_i32, %c0_i32_0 : i32, i32
  }
  func.func @transform_4(%arg0: i32) -> (i32, i32, i32, i32) {
    %c0_i32 = arith.constant 0 : i32
    %c0_i32_0 = arith.constant 0 : i32
    %c0_i32_1 = arith.constant 0 : i32
    %c0_i32_2 = arith.constant 0 : i32
    return %arg0, %c0_i32, %c0_i32_0, %c0_i32_1 : i32, i32, i32, i32
  }
}

module attributes {stable_mosaic.version = 11 : i64} {
  func.func @conv_bn_pool_kernel(%arg0: i32, %arg1: memref<1x18x18x64xf32, #tpu.memory_space<vmem>>, %arg2: memref<3x3x64x128xbf16, #tpu.memory_space<vmem>>, %arg3: memref<1x128xf32, #tpu.memory_space<vmem>>, %arg4: memref<1x128xf32, #tpu.memory_space<vmem>>, %arg5: memref<1x8x8x128xf32, #tpu.memory_space<vmem>>) attributes {dimension_semantics = [#tpu.dimension_semantics<parallel>], iteration_bounds = array<i64: 2>, scalar_prefetch = 0 : i64, scratch_operands = 0 : i64, tpu.core_type = #tpu.core_type<tc>, window_params = [{transform_indices = @transform_0, window_bounds = array<i64: 1, 18, 18, 64>}, {pipeline_mode = #tpu.pipeline_mode<synchronous>, transform_indices = @transform_1, window_bounds = array<i64: 3, 3, 64, 128>}, {pipeline_mode = #tpu.pipeline_mode<synchronous>, transform_indices = @transform_2, window_bounds = array<i64: 1, 128>}, {pipeline_mode = #tpu.pipeline_mode<synchronous>, transform_indices = @transform_3, window_bounds = array<i64: 1, 128>}, {transform_indices = @transform_4, window_bounds = array<i64: 1, 8, 8, 128>}]} {
    %c0 = arith.constant 0 : index
    %c0_0 = arith.constant 0 : index
    %0 = vector.load %arg3[%c0, %c0_0] : memref<1x128xf32, #tpu.memory_space<vmem>>, vector<1x128xf32>
    %1 = vector.shape_cast %0 : vector<1x128xf32> to vector<128xf32>
    %c0_1 = arith.constant 0 : index
    %c0_2 = arith.constant 0 : index
    %2 = vector.load %arg4[%c0_1, %c0_2] : memref<1x128xf32, #tpu.memory_space<vmem>>, vector<1x128xf32>
    %3 = vector.shape_cast %2 : vector<1x128xf32> to vector<128xf32>
    %c0_i32 = arith.constant 0 : i32
    %c2_i32 = arith.constant 2 : i32
    %4 = arith.addi %c0_i32, %c2_i32 : i32
    %c1_i32 = arith.constant 1 : i32
    scf.for %arg6 = %c0_i32 to %4 step %c1_i32  : i32 {
      %c1_i32_4 = arith.constant 1 : i32
      %5 = arith.muli %arg6, %c1_i32_4 : i32
      %c0_i32_5 = arith.constant 0 : i32
      %6 = arith.addi %c0_i32_5, %5 : i32
      %c8_i32 = arith.constant 8 : i32
      %7 = arith.muli %6, %c8_i32 : i32
      %8 = tpu.assume_multiple %7, 8 : i32
      %c0_6 = arith.constant 0 : index
      %9 = arith.index_cast %8 : i32 to index
      %c0_7 = arith.constant 0 : index
      %c0_8 = arith.constant 0 : index
      %10 = vector.load %arg1[%c0_6, %9, %c0_7, %c0_8] : memref<1x18x18x64xf32, #tpu.memory_space<vmem>>, vector<1x10x18x64xf32>
      %11 = vector.shape_cast %10 : vector<1x10x18x64xf32> to vector<10x18x64xf32>
      %cst = arith.constant 0.000000e+00 : f32
      %12 = vector.broadcast %cst : f32 to vector<128x128xf32>
      %13 = vector.extract_strided_slice %11 {offsets = [0, 0, 0], sizes = [8, 16, 64], strides = [1, 1, 1]} : vector<10x18x64xf32> to vector<8x16x64xf32>
      %14 = vector.shape_cast %13 : vector<8x16x64xf32> to vector<128x64xf32>
      %15 = arith.truncf %14 : vector<128x64xf32> to vector<128x64xbf16>
      %c0_9 = arith.constant 0 : index
      %c0_10 = arith.constant 0 : index
      %c0_11 = arith.constant 0 : index
      %c0_12 = arith.constant 0 : index
      %16 = vector.load %arg2[%c0_9, %c0_10, %c0_11, %c0_12] : memref<3x3x64x128xbf16, #tpu.memory_space<vmem>>, vector<1x1x64x128xbf16>
      %17 = vector.shape_cast %16 : vector<1x1x64x128xbf16> to vector<64x128xbf16>
      %cst_13 = arith.constant dense<0.000000e+00> : vector<128x128xf32>
      %18 = tpu.matmul %15, %17, %cst_13 {dimension_numbers = #tpu.dot_dimension_numbers<[1], [0], [0], [1], [0, 0, 1, 1], [], []>} : vector<128x64xbf16>, vector<64x128xbf16>, vector<128x128xf32> -> vector<128x128xf32>
      %19 = arith.addf %12, %18 : vector<128x128xf32>
      %20 = vector.extract_strided_slice %11 {offsets = [0, 1, 0], sizes = [8, 16, 64], strides = [1, 1, 1]} : vector<10x18x64xf32> to vector<8x16x64xf32>
      %21 = vector.shape_cast %20 : vector<8x16x64xf32> to vector<128x64xf32>
      %22 = arith.truncf %21 : vector<128x64xf32> to vector<128x64xbf16>
      %c0_14 = arith.constant 0 : index
      %c1 = arith.constant 1 : index
      %c0_15 = arith.constant 0 : index
      %c0_16 = arith.constant 0 : index
      %23 = vector.load %arg2[%c0_14, %c1, %c0_15, %c0_16] : memref<3x3x64x128xbf16, #tpu.memory_space<vmem>>, vector<1x1x64x128xbf16>
      %24 = vector.shape_cast %23 : vector<1x1x64x128xbf16> to vector<64x128xbf16>
      %cst_17 = arith.constant dense<0.000000e+00> : vector<128x128xf32>
      %25 = tpu.matmul %22, %24, %cst_17 {dimension_numbers = #tpu.dot_dimension_numbers<[1], [0], [0], [1], [0, 0, 1, 1], [], []>} : vector<128x64xbf16>, vector<64x128xbf16>, vector<128x128xf32> -> vector<128x128xf32>
      %26 = arith.addf %19, %25 : vector<128x128xf32>
      %27 = vector.extract_strided_slice %11 {offsets = [0, 2, 0], sizes = [8, 16, 64], strides = [1, 1, 1]} : vector<10x18x64xf32> to vector<8x16x64xf32>
      %28 = vector.shape_cast %27 : vector<8x16x64xf32> to vector<128x64xf32>
      %29 = arith.truncf %28 : vector<128x64xf32> to vector<128x64xbf16>
      %c0_18 = arith.constant 0 : index
      %c2 = arith.constant 2 : index
      %c0_19 = arith.constant 0 : index
      %c0_20 = arith.constant 0 : index
      %30 = vector.load %arg2[%c0_18, %c2, %c0_19, %c0_20] : memref<3x3x64x128xbf16, #tpu.memory_space<vmem>>, vector<1x1x64x128xbf16>
      %31 = vector.shape_cast %30 : vector<1x1x64x128xbf16> to vector<64x128xbf16>
      %cst_21 = arith.constant dense<0.000000e+00> : vector<128x128xf32>
      %32 = tpu.matmul %29, %31, %cst_21 {dimension_numbers = #tpu.dot_dimension_numbers<[1], [0], [0], [1], [0, 0, 1, 1], [], []>} : vector<128x64xbf16>, vector<64x128xbf16>, vector<128x128xf32> -> vector<128x128xf32>
      %33 = arith.addf %26, %32 : vector<128x128xf32>
      %34 = vector.extract_strided_slice %11 {offsets = [1, 0, 0], sizes = [8, 16, 64], strides = [1, 1, 1]} : vector<10x18x64xf32> to vector<8x16x64xf32>
      %35 = vector.shape_cast %34 : vector<8x16x64xf32> to vector<128x64xf32>
      %36 = arith.truncf %35 : vector<128x64xf32> to vector<128x64xbf16>
      %c1_22 = arith.constant 1 : index
      %c0_23 = arith.constant 0 : index
      %c0_24 = arith.constant 0 : index
      %c0_25 = arith.constant 0 : index
      %37 = vector.load %arg2[%c1_22, %c0_23, %c0_24, %c0_25] : memref<3x3x64x128xbf16, #tpu.memory_space<vmem>>, vector<1x1x64x128xbf16>
      %38 = vector.shape_cast %37 : vector<1x1x64x128xbf16> to vector<64x128xbf16>
      %cst_26 = arith.constant dense<0.000000e+00> : vector<128x128xf32>
      %39 = tpu.matmul %36, %38, %cst_26 {dimension_numbers = #tpu.dot_dimension_numbers<[1], [0], [0], [1], [0, 0, 1, 1], [], []>} : vector<128x64xbf16>, vector<64x128xbf16>, vector<128x128xf32> -> vector<128x128xf32>
      %40 = arith.addf %33, %39 : vector<128x128xf32>
      %41 = vector.extract_strided_slice %11 {offsets = [1, 1, 0], sizes = [8, 16, 64], strides = [1, 1, 1]} : vector<10x18x64xf32> to vector<8x16x64xf32>
      %42 = vector.shape_cast %41 : vector<8x16x64xf32> to vector<128x64xf32>
      %43 = arith.truncf %42 : vector<128x64xf32> to vector<128x64xbf16>
      %c1_27 = arith.constant 1 : index
      %c1_28 = arith.constant 1 : index
      %c0_29 = arith.constant 0 : index
      %c0_30 = arith.constant 0 : index
      %44 = vector.load %arg2[%c1_27, %c1_28, %c0_29, %c0_30] : memref<3x3x64x128xbf16, #tpu.memory_space<vmem>>, vector<1x1x64x128xbf16>
      %45 = vector.shape_cast %44 : vector<1x1x64x128xbf16> to vector<64x128xbf16>
      %cst_31 = arith.constant dense<0.000000e+00> : vector<128x128xf32>
      %46 = tpu.matmul %43, %45, %cst_31 {dimension_numbers = #tpu.dot_dimension_numbers<[1], [0], [0], [1], [0, 0, 1, 1], [], []>} : vector<128x64xbf16>, vector<64x128xbf16>, vector<128x128xf32> -> vector<128x128xf32>
      %47 = arith.addf %40, %46 : vector<128x128xf32>
      %48 = vector.extract_strided_slice %11 {offsets = [1, 2, 0], sizes = [8, 16, 64], strides = [1, 1, 1]} : vector<10x18x64xf32> to vector<8x16x64xf32>
      %49 = vector.shape_cast %48 : vector<8x16x64xf32> to vector<128x64xf32>
      %50 = arith.truncf %49 : vector<128x64xf32> to vector<128x64xbf16>
      %c1_32 = arith.constant 1 : index
      %c2_33 = arith.constant 2 : index
      %c0_34 = arith.constant 0 : index
      %c0_35 = arith.constant 0 : index
      %51 = vector.load %arg2[%c1_32, %c2_33, %c0_34, %c0_35] : memref<3x3x64x128xbf16, #tpu.memory_space<vmem>>, vector<1x1x64x128xbf16>
      %52 = vector.shape_cast %51 : vector<1x1x64x128xbf16> to vector<64x128xbf16>
      %cst_36 = arith.constant dense<0.000000e+00> : vector<128x128xf32>
      %53 = tpu.matmul %50, %52, %cst_36 {dimension_numbers = #tpu.dot_dimension_numbers<[1], [0], [0], [1], [0, 0, 1, 1], [], []>} : vector<128x64xbf16>, vector<64x128xbf16>, vector<128x128xf32> -> vector<128x128xf32>
      %54 = arith.addf %47, %53 : vector<128x128xf32>
      %55 = vector.extract_strided_slice %11 {offsets = [2, 0, 0], sizes = [8, 16, 64], strides = [1, 1, 1]} : vector<10x18x64xf32> to vector<8x16x64xf32>
      %56 = vector.shape_cast %55 : vector<8x16x64xf32> to vector<128x64xf32>
      %57 = arith.truncf %56 : vector<128x64xf32> to vector<128x64xbf16>
      %c2_37 = arith.constant 2 : index
      %c0_38 = arith.constant 0 : index
      %c0_39 = arith.constant 0 : index
      %c0_40 = arith.constant 0 : index
      %58 = vector.load %arg2[%c2_37, %c0_38, %c0_39, %c0_40] : memref<3x3x64x128xbf16, #tpu.memory_space<vmem>>, vector<1x1x64x128xbf16>
      %59 = vector.shape_cast %58 : vector<1x1x64x128xbf16> to vector<64x128xbf16>
      %cst_41 = arith.constant dense<0.000000e+00> : vector<128x128xf32>
      %60 = tpu.matmul %57, %59, %cst_41 {dimension_numbers = #tpu.dot_dimension_numbers<[1], [0], [0], [1], [0, 0, 1, 1], [], []>} : vector<128x64xbf16>, vector<64x128xbf16>, vector<128x128xf32> -> vector<128x128xf32>
      %61 = arith.addf %54, %60 : vector<128x128xf32>
      %62 = vector.extract_strided_slice %11 {offsets = [2, 1, 0], sizes = [8, 16, 64], strides = [1, 1, 1]} : vector<10x18x64xf32> to vector<8x16x64xf32>
      %63 = vector.shape_cast %62 : vector<8x16x64xf32> to vector<128x64xf32>
      %64 = arith.truncf %63 : vector<128x64xf32> to vector<128x64xbf16>
      %c2_42 = arith.constant 2 : index
      %c1_43 = arith.constant 1 : index
      %c0_44 = arith.constant 0 : index
      %c0_45 = arith.constant 0 : index
      %65 = vector.load %arg2[%c2_42, %c1_43, %c0_44, %c0_45] : memref<3x3x64x128xbf16, #tpu.memory_space<vmem>>, vector<1x1x64x128xbf16>
      %66 = vector.shape_cast %65 : vector<1x1x64x128xbf16> to vector<64x128xbf16>
      %cst_46 = arith.constant dense<0.000000e+00> : vector<128x128xf32>
      %67 = tpu.matmul %64, %66, %cst_46 {dimension_numbers = #tpu.dot_dimension_numbers<[1], [0], [0], [1], [0, 0, 1, 1], [], []>} : vector<128x64xbf16>, vector<64x128xbf16>, vector<128x128xf32> -> vector<128x128xf32>
      %68 = arith.addf %61, %67 : vector<128x128xf32>
      %69 = vector.extract_strided_slice %11 {offsets = [2, 2, 0], sizes = [8, 16, 64], strides = [1, 1, 1]} : vector<10x18x64xf32> to vector<8x16x64xf32>
      %70 = vector.shape_cast %69 : vector<8x16x64xf32> to vector<128x64xf32>
      %71 = arith.truncf %70 : vector<128x64xf32> to vector<128x64xbf16>
      %c2_47 = arith.constant 2 : index
      %c2_48 = arith.constant 2 : index
      %c0_49 = arith.constant 0 : index
      %c0_50 = arith.constant 0 : index
      %72 = vector.load %arg2[%c2_47, %c2_48, %c0_49, %c0_50] : memref<3x3x64x128xbf16, #tpu.memory_space<vmem>>, vector<1x1x64x128xbf16>
      %73 = vector.shape_cast %72 : vector<1x1x64x128xbf16> to vector<64x128xbf16>
      %cst_51 = arith.constant dense<0.000000e+00> : vector<128x128xf32>
      %74 = tpu.matmul %71, %73, %cst_51 {dimension_numbers = #tpu.dot_dimension_numbers<[1], [0], [0], [1], [0, 0, 1, 1], [], []>} : vector<128x64xbf16>, vector<64x128xbf16>, vector<128x128xf32> -> vector<128x128xf32>
      %75 = arith.addf %68, %74 : vector<128x128xf32>
      %76 = vector.shape_cast %1 : vector<128xf32> to vector<1x128xf32>
      %77 = vector.broadcast %76 : vector<1x128xf32> to vector<128x128xf32>
      %78 = arith.mulf %75, %77 : vector<128x128xf32>
      %79 = vector.shape_cast %3 : vector<128xf32> to vector<1x128xf32>
      %80 = vector.broadcast %79 : vector<1x128xf32> to vector<128x128xf32>
      %81 = arith.addf %78, %80 : vector<128x128xf32>
      %82 = vector.shape_cast %81 : vector<128x128xf32> to vector<8x8x2x128xf32>
      %83 = vector.extract_strided_slice %82 {offsets = [0, 0, 0, 0], sizes = [8, 8, 1, 128], strides = [1, 1, 1, 1]} : vector<8x8x2x128xf32> to vector<8x8x1x128xf32>
      %84 = vector.shape_cast %83 : vector<8x8x1x128xf32> to vector<8x8x128xf32>
      %85 = vector.extract_strided_slice %82 {offsets = [0, 0, 1, 0], sizes = [8, 8, 1, 128], strides = [1, 1, 1, 1]} : vector<8x8x2x128xf32> to vector<8x8x1x128xf32>
      %86 = vector.shape_cast %85 : vector<8x8x1x128xf32> to vector<8x8x128xf32>
      %87 = arith.maximumf %84, %86 : vector<8x8x128xf32>
      %88 = vector.shape_cast %87 : vector<8x8x128xf32> to vector<4x2x8x128xf32>
      %89 = vector.extract_strided_slice %88 {offsets = [0, 0, 0, 0], sizes = [4, 1, 8, 128], strides = [1, 1, 1, 1]} : vector<4x2x8x128xf32> to vector<4x1x8x128xf32>
      %90 = vector.shape_cast %89 : vector<4x1x8x128xf32> to vector<4x8x128xf32>
      %91 = vector.extract_strided_slice %88 {offsets = [0, 1, 0, 0], sizes = [4, 1, 8, 128], strides = [1, 1, 1, 1]} : vector<4x2x8x128xf32> to vector<4x1x8x128xf32>
      %92 = vector.shape_cast %91 : vector<4x1x8x128xf32> to vector<4x8x128xf32>
      %93 = arith.maximumf %90, %92 : vector<4x8x128xf32>
      %cst_52 = arith.constant 0.000000e+00 : f32
      %94 = vector.broadcast %cst_52 : f32 to vector<4x8x128xf32>
      %95 = arith.maximumf %93, %94 : vector<4x8x128xf32>
      %c4_i32 = arith.constant 4 : i32
      %96 = arith.muli %6, %c4_i32 : i32
      %97 = tpu.assume_multiple %96, 4 : i32
      %c0_53 = arith.constant 0 : index
      %98 = arith.index_cast %97 : i32 to index
      %c0_54 = arith.constant 0 : index
      %c0_55 = arith.constant 0 : index
      %99 = vector.load %arg5[%c0_53, %98, %c0_54, %c0_55] : memref<1x8x8x128xf32, #tpu.memory_space<vmem>>, vector<1x4x8x128xf32>
      %100 = vector.shape_cast %99 : vector<1x4x8x128xf32> to vector<4x8x128xf32>
      %101 = vector.shape_cast %95 : vector<4x8x128xf32> to vector<1x4x8x128xf32>
      tpu.vector_store %arg5[%c0_53, %98, %c0_54, %c0_55], %101 {strides = array<i32>} : memref<1x8x8x128xf32, #tpu.memory_space<vmem>>, vector<1x4x8x128xf32>,
    }
    %c2_i32_3 = arith.constant 2 : i32
    return
  }
  func.func @transform_0(%arg0: i32) -> (i32, i32, i32, i32) {
    %c0_i32 = arith.constant 0 : i32
    %c0_i32_0 = arith.constant 0 : i32
    %c0_i32_1 = arith.constant 0 : i32
    %c0_i32_2 = arith.constant 0 : i32
    return %arg0, %c0_i32, %c0_i32_0, %c0_i32_1 : i32, i32, i32, i32
  }
  func.func @transform_1(%arg0: i32) -> (i32, i32, i32, i32) {
    %c0_i32 = arith.constant 0 : i32
    %c0_i32_0 = arith.constant 0 : i32
    %c0_i32_1 = arith.constant 0 : i32
    %c0_i32_2 = arith.constant 0 : i32
    %c0_i32_3 = arith.constant 0 : i32
    return %c0_i32, %c0_i32_0, %c0_i32_1, %c0_i32_2 : i32, i32, i32, i32
  }
  func.func @transform_2(%arg0: i32) -> (i32, i32) {
    %c0_i32 = arith.constant 0 : i32
    %c0_i32_0 = arith.constant 0 : i32
    %c0_i32_1 = arith.constant 0 : i32
    return %c0_i32, %c0_i32_0 : i32, i32
  }
  func.func @transform_3(%arg0: i32) -> (i32, i32) {
    %c0_i32 = arith.constant 0 : i32
    %c0_i32_0 = arith.constant 0 : i32
    %c0_i32_1 = arith.constant 0 : i32
    return %c0_i32, %c0_i32_0 : i32, i32
  }
  func.func @transform_4(%arg0: i32) -> (i32, i32, i32, i32) {
    %c0_i32 = arith.constant 0 : i32
    %c0_i32_0 = arith.constant 0 : i32
    %c0_i32_1 = arith.constant 0 : i32
    %c0_i32_2 = arith.constant 0 : i32
    return %arg0, %c0_i32, %c0_i32_0, %c0_i32_1 : i32, i32, i32, i32
  }
}

module attributes {stable_mosaic.version = 11 : i64} {
  func.func @fc_head_kernel(%arg0: i32, %arg1: memref<2x1024xbf16, #tpu.memory_space<vmem>>, %arg2: memref<1024x256xbf16, #tpu.memory_space<vmem>>, %arg3: memref<1x256xf32, #tpu.memory_space<vmem>>, %arg4: memref<1x256xf32, #tpu.memory_space<vmem>>, %arg5: memref<256x200xf32, #tpu.memory_space<vmem>>, %arg6: memref<1x200xf32, #tpu.memory_space<vmem>>, %arg7: memref<2x200xf32, #tpu.memory_space<vmem>>, %arg8: memref<2x256xf32, #tpu.memory_space<vmem>>) attributes {dimension_semantics = [#tpu.dimension_semantics<arbitrary>], iteration_bounds = array<i64: 8>, scalar_prefetch = 0 : i64, scratch_operands = 1 : i64, tpu.core_type = #tpu.core_type<tc>, window_params = [{transform_indices = @transform_0, window_bounds = array<i64: 2, 1024>}, {transform_indices = @transform_1, window_bounds = array<i64: 1024, 256>}, {pipeline_mode = #tpu.pipeline_mode<synchronous>, transform_indices = @transform_2, window_bounds = array<i64: 1, 256>}, {pipeline_mode = #tpu.pipeline_mode<synchronous>, transform_indices = @transform_3, window_bounds = array<i64: 1, 256>}, {pipeline_mode = #tpu.pipeline_mode<synchronous>, transform_indices = @transform_4, window_bounds = array<i64: 256, 200>}, {pipeline_mode = #tpu.pipeline_mode<synchronous>, transform_indices = @transform_5, window_bounds = array<i64: 1, 200>}, {pipeline_mode = #tpu.pipeline_mode<synchronous>, transform_indices = @transform_6, window_bounds = array<i64: 2, 200>}]} {
    %c0_i32 = arith.constant 0 : i32
    %0 = arith.cmpi eq, %arg0, %c0_i32 : i32
    %1 = arith.extui %0 : i1 to i32
    %c0_i32_0 = arith.constant 0 : i32
    %2 = arith.cmpi ne, %1, %c0_i32_0 : i32
    scf.if %2 {
      %cst_9 = arith.constant 0.000000e+00 : f32
      %12 = vector.broadcast %cst_9 : f32 to vector<2x256xf32>
      %c0_10 = arith.constant 0 : index
      %c0_11 = arith.constant 0 : index
      %13 = vector.load %arg8[%c0_10, %c0_11] : memref<2x256xf32, #tpu.memory_space<vmem>>, vector<2x256xf32>
      tpu.vector_store %arg8[%c0_10, %c0_11], %12 {strides = array<i32>} : memref<2x256xf32, #tpu.memory_space<vmem>>, vector<2x256xf32>,
    } else {
    }
    %c0 = arith.constant 0 : index
    %c0_1 = arith.constant 0 : index
    %3 = vector.load %arg8[%c0, %c0_1] : memref<2x256xf32, #tpu.memory_space<vmem>>, vector<2x256xf32>
    %c0_2 = arith.constant 0 : index
    %c0_3 = arith.constant 0 : index
    %4 = vector.load %arg1[%c0_2, %c0_3] : memref<2x1024xbf16, #tpu.memory_space<vmem>>, vector<2x1024xbf16>
    %c0_4 = arith.constant 0 : index
    %c0_5 = arith.constant 0 : index
    %5 = vector.load %arg2[%c0_4, %c0_5] : memref<1024x256xbf16, #tpu.memory_space<vmem>>, vector<1024x256xbf16>
    %cst = arith.constant dense<0.000000e+00> : vector<2x256xf32>
    %6 = tpu.matmul %4, %5, %cst {dimension_numbers = #tpu.dot_dimension_numbers<[1], [0], [0], [1], [0, 0, 1, 1], [], []>} : vector<2x1024xbf16>, vector<1024x256xbf16>, vector<2x256xf32> -> vector<2x256xf32>
    %7 = arith.addf %3, %6 : vector<2x256xf32>
    %c0_6 = arith.constant 0 : index
    %c0_7 = arith.constant 0 : index
    %8 = vector.load %arg8[%c0_6, %c0_7] : memref<2x256xf32, #tpu.memory_space<vmem>>, vector<2x256xf32>
    tpu.vector_store %arg8[%c0_6, %c0_7], %7 {strides = array<i32>} : memref<2x256xf32, #tpu.memory_space<vmem>>, vector<2x256xf32>,
    %c7_i32 = arith.constant 7 : i32
    %9 = arith.cmpi eq, %arg0, %c7_i32 : i32
    %10 = arith.extui %9 : i1 to i32
    %c0_i32_8 = arith.constant 0 : i32
    %11 = arith.cmpi ne, %10, %c0_i32_8 : i32
    scf.if %11 {
      %c0_9 = arith.constant 0 : index
      %c0_10 = arith.constant 0 : index
      %12 = vector.load %arg8[%c0_9, %c0_10] : memref<2x256xf32, #tpu.memory_space<vmem>>, vector<2x256xf32>
      %c0_11 = arith.constant 0 : index
      %c0_12 = arith.constant 0 : index
      %13 = vector.load %arg3[%c0_11, %c0_12] : memref<1x256xf32, #tpu.memory_space<vmem>>, vector<1x256xf32>
      %14 = vector.broadcast %13 : vector<1x256xf32> to vector<2x256xf32>
      %15 = arith.mulf %12, %14 : vector<2x256xf32>
      %c0_13 = arith.constant 0 : index
      %c0_14 = arith.constant 0 : index
      %16 = vector.load %arg4[%c0_13, %c0_14] : memref<1x256xf32, #tpu.memory_space<vmem>>, vector<1x256xf32>
      %17 = vector.broadcast %16 : vector<1x256xf32> to vector<2x256xf32>
      %18 = arith.addf %15, %17 : vector<2x256xf32>
      %cst_15 = arith.constant 0.000000e+00 : f32
      %19 = vector.broadcast %cst_15 : f32 to vector<2x256xf32>
      %20 = arith.maximumf %18, %19 : vector<2x256xf32>
      %c0_16 = arith.constant 0 : index
      %c0_17 = arith.constant 0 : index
      %21 = vector.load %arg5[%c0_16, %c0_17] : memref<256x200xf32, #tpu.memory_space<vmem>>, vector<256x200xf32>
      %cst_18 = arith.constant dense<0.000000e+00> : vector<2x200xf32>
      %22 = tpu.matmul %20, %21, %cst_18 {dimension_numbers = #tpu.dot_dimension_numbers<[1], [0], [0], [1], [0, 0, 1, 1], [], []>} : vector<2x256xf32>, vector<256x200xf32>, vector<2x200xf32> -> vector<2x200xf32>
      %c0_19 = arith.constant 0 : index
      %c0_20 = arith.constant 0 : index
      %23 = vector.load %arg6[%c0_19, %c0_20] : memref<1x200xf32, #tpu.memory_space<vmem>>, vector<1x200xf32>
      %24 = vector.broadcast %23 : vector<1x200xf32> to vector<2x200xf32>
      %25 = arith.addf %22, %24 : vector<2x200xf32>
      %cst_21 = arith.constant dense<0xFF800000> : vector<2xf32>
      %26 = vector.multi_reduction <maximumf>, %25, %cst_21 [1] : vector<2x200xf32> to vector<2xf32>
      %27 = vector.shape_cast %26 : vector<2xf32> to vector<2x1xf32>
      %28 = vector.broadcast %27 : vector<2x1xf32> to vector<2x200xf32>
      %29 = arith.subf %25, %28 : vector<2x200xf32>
      %30 = math.exp %29 : vector<2x200xf32>
      %cst_22 = arith.constant dense<0.000000e+00> : vector<2xf32>
      %31 = vector.multi_reduction <add>, %30, %cst_22 [1] : vector<2x200xf32> to vector<2xf32>
      %32 = vector.shape_cast %31 : vector<2xf32> to vector<2x1xf32>
      %33 = vector.broadcast %32 : vector<2x1xf32> to vector<2x200xf32>
      %34 = arith.divf %30, %33 : vector<2x200xf32>
      %c0_23 = arith.constant 0 : index
      %c0_24 = arith.constant 0 : index
      %35 = vector.load %arg7[%c0_23, %c0_24] : memref<2x200xf32, #tpu.memory_space<vmem>>, vector<2x200xf32>
      tpu.vector_store %arg7[%c0_23, %c0_24], %34 {strides = array<i32>} : memref<2x200xf32, #tpu.memory_space<vmem>>, vector<2x200xf32>,
    } else {
    }
    return
  }
  func.func @transform_0(%arg0: i32) -> (i32, i32) {
    %c0_i32 = arith.constant 0 : i32
    %c0_i32_0 = arith.constant 0 : i32
    return %c0_i32, %arg0 : i32, i32
  }
  func.func @transform_1(%arg0: i32) -> (i32, i32) {
    %c0_i32 = arith.constant 0 : i32
    %c0_i32_0 = arith.constant 0 : i32
    return %arg0, %c0_i32 : i32, i32
  }
  func.func @transform_2(%arg0: i32) -> (i32, i32) {
    %c0_i32 = arith.constant 0 : i32
    %c0_i32_0 = arith.constant 0 : i32
    %c0_i32_1 = arith.constant 0 : i32
    return %c0_i32, %c0_i32_0 : i32, i32
  }
  func.func @transform_3(%arg0: i32) -> (i32, i32) {
    %c0_i32 = arith.constant 0 : i32
    %c0_i32_0 = arith.constant 0 : i32
    %c0_i32_1 = arith.constant 0 : i32
    return %c0_i32, %c0_i32_0 : i32, i32
  }
  func.func @transform_4(%arg0: i32) -> (i32, i32) {
    %c0_i32 = arith.constant 0 : i32
    %c0_i32_0 = arith.constant 0 : i32
    %c0_i32_1 = arith.constant 0 : i32
    return %c0_i32, %c0_i32_0 : i32, i32
  }
  func.func @transform_5(%arg0: i32) -> (i32, i32) {
    %c0_i32 = arith.constant 0 : i32
    %c0_i32_0 = arith.constant 0 : i32
    %c0_i32_1 = arith.constant 0 : i32
    return %c0_i32, %c0_i32_0 : i32, i32
  }
  func.func @transform_6(%arg0: i32) -> (i32, i32) {
    %c0_i32 = arith.constant 0 : i32
    %c0_i32_0 = arith.constant 0 : i32
    %c0_i32_1 = arith.constant 0 : i32
    return %c0_i32, %c0_i32_0 : i32, i32
  }
}

</mosaic_0001>

<llo_original>
// kernel: tiny_imagenet_forward.4
$region0: #{tiny_imagenet_forward.4}
  #allocation0 [shape = 'u32[]', space=smem, size = 0x4, offset = 0x4, fixed_abs, tag = 'smem constant byte address 0x4 - core index']
  #allocation1 [shape = 'u32[72,128]{1,0:T(1,128)}', space=vmem, size = 0x9000, scoped, tag = 'internal scratch']
  %s0 = inlined_call_operand.vmem [shape: f32[2,66,66,8], index: 0, kind: input, shape index: {}]
  %s1 = inlined_call_operand.vmem [shape: bf16[3,3,8,32], index: 1, kind: input, shape index: {}]
  %s2 = inlined_call_operand.vmem [shape: f32[1,32], index: 2, kind: input, shape index: {}]
  %s3 = inlined_call_operand.vmem [shape: f32[1,32], index: 3, kind: input, shape index: {}]
  %s4 = inlined_call_operand.vmem [shape: f32[2,32,32,32], index: 4, kind: output, shape index: {}]
  %s5 = sld [smem:[#allocation0]]
  $region56: #{tiny_imagenet_forward.4} parent=0
    _
  %s7 = ssub.s32 1, %s5
  %s8 = scalar_select 0, %s7, %s5
  loop: start=0, step=1, limit=4
  $region2: #{tiny_imagenet_forward.4} parent=0 // loop_pre_header
    _
  $region3: #{tiny_imagenet_forward.4} parent=0 // loop_header
    %s10 = sphi 0, %s14
    %p11 = scmp.ge.s32.totalorder %s10, 4
    %s20 = sphi 0, %s22
    %s23 = sphi 0, %s20
    %s24 = sphi 0, %s23
    %s40 = sphi 0, %s24
    %s44 = sphi 0, %s44
    %s46 = sphi 0, %s44
    %s47 = sphi 0, %s46
    %s61 = sphi 0, %s47
    %s65 = sphi 0, %s65
    %s67 = sphi 0, %s65
    %s68 = sphi 0, %s67
    %s82 = sphi 0, %s68
    %s86 = sphi 0, %s86
    %s88 = sphi 0, %s86
    %s89 = sphi 0, %s88
    %s103 = sphi 0, %s89
    %s109 = sphi 0, %s111
    %s112 = sphi 0, %s109
    %s113 = sphi 0, %s112
    %s129 = sphi 0, %s113
  $region4: #{tiny_imagenet_forward.4} parent=0 // loop_header_branch
    %13 = sbr.rel (%p11) target = $region8
  $region5: #{tiny_imagenet_forward.4} parent=0 // loop_body
    %s15 = ssub.s32 %s10, 1
    %s16 = ssub.s32 %s10, 2
    %s17 = sadd.s32 %s10, 1
    %s18 = ssub.s32 %s10, %s17
    %p19 = scmp.eq.s32.totalorder %s18, 0
    %s21 = sadd.s32 %s20, 1
    %s22 = scalar_select %p19, %s20, %s21
    %p25 = pneg %p19
    %p26 = scmp.eq.s32.totalorder %s10, 1
    %p27 = por %p25, %p26
    %p28 = scmp.ne.s32.totalorder %s20, %s23
    %p29 = scmp.eq.s32.totalorder %s10, 0
    %p30 = por %p28, %p29
    %p31 = scmp.ne.s32.totalorder %s20, %s23
    %p32 = scmp.eq.s32.totalorder %s15, 1
    %p33 = por %p31, %p32
    %p34 = scmp.ne.s32.totalorder %s23, %s24
    %p35 = scmp.eq.s32.totalorder %s15, 0
    %p36 = por %p34, %p35
    %p37 = scmp.ne.s32.totalorder %s23, %s24
    %p38 = scmp.eq.s32.totalorder %s16, 1
    %p39 = por %p37, %p38
    %p41 = scmp.ne.s32.totalorder %s24, %s40
    %p42 = scmp.eq.s32.totalorder %s16, 0
    %p43 = por %p41, %p42
    %s45 = sadd.s32 %s44, 1
    %p48 = scmp.eq.s32.totalorder %s10, 1
    %p49 = scmp.ne.s32.totalorder %s44, %s46
    %p50 = scmp.eq.s32.totalorder %s10, 0
    %p51 = por %p49, %p50
    %p52 = scmp.ne.s32.totalorder %s44, %s46
    %p53 = scmp.eq.s32.totalorder %s15, 1
    %p54 = por %p52, %p53
    %p55 = scmp.ne.s32.totalorder %s46, %s47
    %p56 = scmp.eq.s32.totalorder %s15, 0
    %p57 = por %p55, %p56
    %p58 = scmp.ne.s32.totalorder %s46, %s47
    %p59 = scmp.eq.s32.totalorder %s16, 1
    %p60 = por %p58, %p59
    %p62 = scmp.ne.s32.totalorder %s47, %s61
    %p63 = scmp.eq.s32.totalorder %s16, 0
    %p64 = por %p62, %p63
    %s66 = sadd.s32 %s65, 1
    %p69 = scmp.eq.s32.totalorder %s10, 1
    %p70 = scmp.ne.s32.totalorder %s65, %s67
    %p71 = scmp.eq.s32.totalorder %s10, 0
    %p72 = por %p70, %p71
    %p73 = scmp.ne.s32.totalorder %s65, %s67
    %p74 = scmp.eq.s32.totalorder %s15, 1
    %p75 = por %p73, %p74
    %p76 = scmp.ne.s32.totalorder %s67, %s68
    %p77 = scmp.eq.s32.totalorder %s15, 0
    %p78 = por %p76, %p77
    %p79 = scmp.ne.s32.totalorder %s67, %s68
    %p80 = scmp.eq.s32.totalorder %s16, 1
    %p81 = por %p79, %p80
    %p83 = scmp.ne.s32.totalorder %s68, %s82
    %p84 = scmp.eq.s32.totalorder %s16, 0
    %p85 = por %p83, %p84
    %s87 = sadd.s32 %s86, 1
    %p90 = scmp.eq.s32.totalorder %s10, 1
    %p91 = scmp.ne.s32.totalorder %s86, %s88
    %p92 = scmp.eq.s32.totalorder %s10, 0
    %p93 = por %p91, %p92
    %p94 = scmp.ne.s32.totalorder %s86, %s88
    %p95 = scmp.eq.s32.totalorder %s15, 1
    %p96 = por %p94, %p95
    %p97 = scmp.ne.s32.totalorder %s88, %s89
    %p98 = scmp.eq.s32.totalorder %s15, 0
    %p99 = por %p97, %p98
    %p100 = scmp.ne.s32.totalorder %s88, %s89
    %p101 = scmp.eq.s32.totalorder %s16, 1
    %p102 = por %p100, %p101
    %p104 = scmp.ne.s32.totalorder %s89, %s103
    %p105 = scmp.eq.s32.totalorder %s16, 0
    %p106 = por %p104, %p105
    %s107 = ssub.s32 %s10, %s17
    %p108 = scmp.eq.s32.totalorder %s107, 0
    %s110 = sadd.s32 %s109, 1
    %s111 = scalar_select %p108, %s109, %s110
    %p114 = pneg %p108
    %p115 = scmp.eq.s32.totalorder %s10, 1
    %p116 = por %p114, %p115
    %p117 = scmp.ne.s32.totalorder %s109, %s112
    %p118 = scmp.eq.s32.totalorder %s10, 0
    %p119 = por %p117, %p118
    %p120 = scmp.ne.s32.totalorder %s109, %s112
    %p121 = scmp.eq.s32.totalorder %s15, 1
    %p122 = por %p120, %p121
    %p123 = scmp.ne.s32.totalorder %s112, %s113
    %p124 = scmp.eq.s32.totalorder %s15, 0
    %p125 = por %p123, %p124
    %p126 = scmp.ne.s32.totalorder %s112, %s113
    %p127 = scmp.eq.s32.totalorder %s16, 1
    %p128 = por %p126, %p127
    %p130 = scmp.ne.s32.totalorder %s113, %s129
    %p131 = scmp.eq.s32.totalorder %s16, 0
    %p132 = por %p130, %p131
    %p133 = scmp.le.s32.totalorder 1, %s10
    %p134 = scmp.lt.s32.totalorder %s10, 3
    %p135 = pnand %p133, %p134
    %p136 = pneg %p135
    // Predicated region
    $region9: #{tiny_imagenet_forward.4} parent=5 // pred_check
      _
    $region10: #{tiny_imagenet_forward.4} parent=5 // pred_check_branch
      %138 = sbr.rel (%p135) target = $region12
    $region11: #{tiny_imagenet_forward.4} parent=5 // pred_region
      %s139 = ssub.s32 %s10, 1
      // Predicated region
      $region13: #{tiny_imagenet_forward.4} parent=11 // pred_check
        %p140 = pneg %p57
      $region14: #{tiny_imagenet_forward.4} parent=11 // pred_check_branch
        %142 = sbr.rel (%p140) target = $region16
      $region15: #{tiny_imagenet_forward.4} parent=11 // pred_region
        _
      $region16: #{tiny_imagenet_forward.4} parent=11 // pred_fallthru
        _
      // Predicated region
      $region17: #{tiny_imagenet_forward.4} parent=11 // pred_check
        %p143 = pneg %p78
      $region18: #{tiny_imagenet_forward.4} parent=11 // pred_check_branch
        %145 = sbr.rel (%p143) target = $region20
      $region19: #{tiny_imagenet_forward.4} parent=11 // pred_region
        _
      $region20: #{tiny_imagenet_forward.4} parent=11 // pred_fallthru
        _
      // Predicated region
      $region21: #{tiny_imagenet_forward.4} parent=11 // pred_check
        %p146 = pneg %p99
      $region22: #{tiny_imagenet_forward.4} parent=11 // pred_check_branch
        %148 = sbr.rel (%p146) target = $region24
      $region23: #{tiny_imagenet_forward.4} parent=11 // pred_region
        _
      $region24: #{tiny_imagenet_forward.4} parent=11 // pred_fallthru
        _
    $region12: #{tiny_imagenet_forward.4} parent=5 // pred_fallthru
      _
    %p149 = scmp.lt.s32.totalorder %s10, 2
    // Predicated region
    $region25: #{tiny_imagenet_forward.4} parent=5 // pred_check
      %p150 = pneg %p149
    $region26: #{tiny_imagenet_forward.4} parent=5 // pred_check_branch
      %152 = sbr.rel (%p150) target = $region28
    $region27: #{tiny_imagenet_forward.4} parent=5 // pred_region
      // Predicated region
      $region29: #{tiny_imagenet_forward.4} parent=27 // pred_check
        %p153 = pneg %p30
      $region30: #{tiny_imagenet_forward.4} parent=27 // pred_check_branch
        %155 = sbr.rel (%p153) target = $region32
      $region31: #{tiny_imagenet_forward.4} parent=27 // pred_region
        %p156 = scmp.lt.s32.totalorder %s10, 1
        %s157 = scalar_select %p156, %s10, 1
        %s158 = smul.addr %s157, 594
        %s159 = smul.addr %s158, 8
        %s160 = scalar_lea.vmem %s0, %s159
      $region32: #{tiny_imagenet_forward.4} parent=27 // pred_fallthru
        _
    $region28: #{tiny_imagenet_forward.4} parent=5 // pred_fallthru
      _
    %p161 = scmp.le.s32.totalorder 1, %s10
    %p162 = scmp.lt.s32.totalorder %s10, 3
    %p163 = pnand %p161, %p162
    %p164 = pneg %p163
    // Predicated region
    $region33: #{tiny_imagenet_forward.4} parent=5 // pred_check
      _
    $region34: #{tiny_imagenet_forward.4} parent=5 // pred_check_branch
      %166 = sbr.rel (%p163) target = $region36
    $region35: #{tiny_imagenet_forward.4} parent=5 // pred_region
      %s167 = ssub.s32 %s10, 1
      %p168 = scmp.lt.s32.totalorder %s15, 1
      %s169 = scalar_select %p168, %s15, 1
      %s170 = smul.addr %s169, 594
      %s171 = smul.addr %s170, 8
      %s172 = scalar_lea.vmem %s0, %s171
      %p173 = pneg %p36
      %p174 = pneg %p33
      %p175 = pneg %p57
      %p176 = pneg %p54
      %p177 = pneg %p78
      %p178 = pneg %p75
      %p179 = pneg %p99
      %p180 = pneg %p96
      %p181 = pneg %p125
      %p182 = pneg %p122
      %p183 = scmp.lt.s32.totalorder %s15, 1
      %s184 = scalar_select %p183, %s15, 1
      %s185 = smul.addr %s184, 128
      %s186 = smul.addr %s185, 8
      %s187 = scalar_lea.vmem %s4, %s186
      %p188 = scmp.lt.s32.totalorder %s15, 1
      %s189 = scalar_select %p188, %s15, 1
      %s190 = smul.addr %s189, 594
      %s191 = smul.addr %s190, 8
      %s192 = scalar_lea.vmem %s0, %s191
      %p193 = scmp.lt.s32.totalorder %s15, 1
      %s194 = scalar_select %p193, %s15, 1
      %s195 = smul.addr %s194, 128
      %s196 = smul.addr %s195, 8
      %s197 = scalar_lea.vmem %s4, %s196
      %v199 = vld [vmem:[%s2] sm:$0x1]
      %v200 = vld [vmem:[%s3] sm:$0x1]
      loop: start=0, step=1, limit=16
      $region37: #{tiny_imagenet_forward.4} parent=35 // loop_pre_header
        _
      $region38: #{tiny_imagenet_forward.4} parent=35 // loop_header
        %s202 = sphi 0, %s206
        %p203 = scmp.ge.s32.totalorder %s202, 16
      $region39: #{tiny_imagenet_forward.4} parent=35 // loop_header_branch
        %205 = sbr.rel (%p203) target = $region43
      $region40: #{tiny_imagenet_forward.4} parent=35 // loop_body
        %s207 = smul.u32 %s202, 4
        %s208 = smul.u32 %s207, 72
        %s209 = scalar_lea.vmem %s192, %s208
        %v210 = vld [vmem:[%s209] sm:$0xff]
        %v211 = vld [vmem:[%s209 + $0x8] sm:$0xff]
        %v212 = vld [vmem:[%s209 + $0x10] sm:$0xff]
        %v213 = vld [vmem:[%s209 + $0x18] sm:$0xff]
        %v214 = vld [vmem:[%s209 + $0x20] sm:$0xff]
        %v215 = vld [vmem:[%s209 + $0x28] sm:$0xff]
        %v216 = vld [vmem:[%s209 + $0x30] sm:$0xff]
        %v217 = vld [vmem:[%s209 + $0x38] sm:$0xff]
        %v218 = vld [vmem:[%s209 + $0x40] sm:$0x3]
        %v219 = vld [vmem:[%s209 + $0x48] sm:$0xff]
        %v220 = vld [vmem:[%s209 + $0x50] sm:$0xff]
        %v221 = vld [vmem:[%s209 + $0x58] sm:$0xff]
        %v222 = vld [vmem:[%s209 + $0x60] sm:$0xff]
        %v223 = vld [vmem:[%s209 + $0x68] sm:$0xff]
        %v224 = vld [vmem:[%s209 + $0x70] sm:$0xff]
        %v225 = vld [vmem:[%s209 + $0x78] sm:$0xff]
        %v226 = vld [vmem:[%s209 + $0x80] sm:$0xff]
        %v227 = vld [vmem:[%s209 + $0x88] sm:$0x3]
        %v228 = vld [vmem:[%s209 + $0x90] sm:$0xff]
        %v229 = vld [vmem:[%s209 + $0x98] sm:$0xff]
        %v230 = vld [vmem:[%s209 + $0xa0] sm:$0xff]
        %v231 = vld [vmem:[%s209 + $0xa8] sm:$0xff]
        %v232 = vld [vmem:[%s209 + $0xb0] sm:$0xff]
        %v233 = vld [vmem:[%s209 + $0xb8] sm:$0xff]
        %v234 = vld [vmem:[%s209 + $0xc0] sm:$0xff]
        %v235 = vld [vmem:[%s209 + $0xc8] sm:$0xff]
        %v236 = vld [vmem:[%s209 + $0xd0] sm:$0x3]
        %v237 = vld [vmem:[%s209 + $0xd8] sm:$0xff]
        %v238 = vld [vmem:[%s209 + $0xe0] sm:$0xff]
        %v239 = vld [vmem:[%s209 + $0xe8] sm:$0xff]
        %v240 = vld [vmem:[%s209 + $0xf0] sm:$0xff]
        %v241 = vld [vmem:[%s209 + $0xf8] sm:$0xff]
        %v242 = vld [vmem:[%s209 + $0x100] sm:$0xff]
        %v243 = vld [vmem:[%s209 + $0x108] sm:$0xff]
        %v244 = vld [vmem:[%s209 + $0x110] sm:$0xff]
        %v245 = vld [vmem:[%s209 + $0x118] sm:$0x3]
        %v246 = vld [vmem:[%s209 + $0x120] sm:$0xff]
        %v247 = vld [vmem:[%s209 + $0x128] sm:$0xff]
        %v248 = vld [vmem:[%s209 + $0x130] sm:$0xff]
        %v249 = vld [vmem:[%s209 + $0x138] sm:$0xff]
        %v250 = vld [vmem:[%s209 + $0x140] sm:$0xff]
        %v251 = vld [vmem:[%s209 + $0x148] sm:$0xff]
        %v252 = vld [vmem:[%s209 + $0x150] sm:$0xff]
        %v253 = vld [vmem:[%s209 + $0x158] sm:$0xff]
        %v254 = vld [vmem:[%s209 + $0x160] sm:$0x3]
        %v255 = vld [vmem:[%s209 + $0x168] sm:$0xff]
        %v256 = vld [vmem:[%s209 + $0x170] sm:$0xff]
        %v257 = vld [vmem:[%s209 + $0x178] sm:$0xff]
        %v258 = vld [vmem:[%s209 + $0x180] sm:$0xff]
        %v259 = vld [vmem:[%s209 + $0x188] sm:$0xff]
        %v260 = vld [vmem:[%s209 + $0x190] sm:$0xff]
        %v261 = vld [vmem:[%s209 + $0x198] sm:$0xff]
        %v262 = vld [vmem:[%s209 + $0x1a0] sm:$0xff]
        %v263 = vld [vmem:[%s209 + $0x1a8] sm:$0x3]
        %v264 = vpack.c.bf16 %v211, %v210
        %v265 = vpack.c.bf16 %v213, %v212
        %v266 = vpack.c.bf16 %v215, %v214
        %v267 = vpack.c.bf16 %v217, %v216
        %v268 = vpack.c.bf16 %v220, %v219
        %v269 = vpack.c.bf16 %v222, %v221
        %v270 = vpack.c.bf16 %v224, %v223
        %v271 = vpack.c.bf16 %v226, %v225
        %v272 = vpack.c.bf16 %v229, %v228
        %v273 = vpack.c.bf16 %v231, %v230
        %v274 = vpack.c.bf16 %v233, %v232
        %v275 = vpack.c.bf16 %v235, %v234
        %v276 = vpack.c.bf16 %v238, %v237
        %v277 = vpack.c.bf16 %v240, %v239
        %v278 = vpack.c.bf16 %v242, %v241
        %v279 = vpack.c.bf16 %v244, %v243
        %v280 = vld [vmem:[%s1] sm:$0xf]
        %vm317 = vcmask 1046528
        %v318 = vrot.slane %v210, 1
        %v319 = vrot.slane %v211, 1
        %v320 = vsel %vm317, %v318, %v319
        %v321 = vrot.slane %v212, 1
        %v322 = vsel %vm317, %v319, %v321
        %v323 = vrot.slane %v213, 1
        %v324 = vsel %vm317, %v321, %v323
        %v325 = vrot.slane %v214, 1
        %v326 = vsel %vm317, %v323, %v325
        %v327 = vrot.slane %v215, 1
        %v328 = vsel %vm317, %v325, %v327
        %v329 = vrot.slane %v216, 1
        %v330 = vsel %vm317, %v327, %v329
        %v331 = vrot.slane %v217, 1
        %v332 = vsel %vm317, %v329, %v331
        %v333 = vrot.slane %v218, 1
        %v334 = vsel %vm317, %v331, %v333
        %v335 = vrot.slane %v219, 1
        %v336 = vrot.slane %v220, 1
        %v337 = vsel %vm317, %v335, %v336
        %v338 = vrot.slane %v221, 1
        %v339 = vsel %vm317, %v336, %v338
        %v340 = vrot.slane %v222, 1
        %v341 = vsel %vm317, %v338, %v340
        %v342 = vrot.slane %v223, 1
        %v343 = vsel %vm317, %v340, %v342
        %v344 = vrot.slane %v224, 1
        %v345 = vsel %vm317, %v342, %v344
        %v346 = vrot.slane %v225, 1
        %v347 = vsel %vm317, %v344, %v346
        %v348 = vrot.slane %v226, 1
        %v349 = vsel %vm317, %v346, %v348
        %v350 = vrot.slane %v227, 1
        %v351 = vsel %vm317, %v348, %v350
        %v352 = vrot.slane %v228, 1
        %v353 = vrot.slane %v229, 1
        %v354 = vsel %vm317, %v352, %v353
        %v355 = vrot.slane %v230, 1
        %v356 = vsel %vm317, %v353, %v355
        %v357 = vrot.slane %v231, 1
        %v358 = vsel %vm317, %v355, %v357
        %v359 = vrot.slane %v232, 1
        %v360 = vsel %vm317, %v357, %v359
        %v361 = vrot.slane %v233, 1
        %v362 = vsel %vm317, %v359, %v361
        %v363 = vrot.slane %v234, 1
        %v364 = vsel %vm317, %v361, %v363
        %v365 = vrot.slane %v235, 1
        %v366 = vsel %vm317, %v363, %v365
        %v367 = vrot.slane %v236, 1
        %v368 = vsel %vm317, %v365, %v367
        %v369 = vrot.slane %v237, 1
        %v370 = vrot.slane %v238, 1
        %v371 = vsel %vm317, %v369, %v370
        %v372 = vrot.slane %v239, 1
        %v373 = vsel %vm317, %v370, %v372
        %v374 = vrot.slane %v240, 1
        %v375 = vsel %vm317, %v372, %v374
        %v376 = vrot.slane %v241, 1
        %v377 = vsel %vm317, %v374, %v376
        %v378 = vrot.slane %v242, 1
        %v379 = vsel %vm317, %v376, %v378
        %v380 = vrot.slane %v243, 1
        %v381 = vsel %vm317, %v378, %v380
        %v382 = vrot.slane %v244, 1
        %v383 = vsel %vm317, %v380, %v382
        %v384 = vrot.slane %v245, 1
        %v385 = vsel %vm317, %v382, %v384
        %v418 = vpack.c.bf16 %v322, %v320
        %v419 = vpack.c.bf16 %v326, %v324
        %v420 = vpack.c.bf16 %v330, %v328
        %v421 = vpack.c.bf16 %v334, %v332
        %v422 = vpack.c.bf16 %v339, %v337
        %v423 = vpack.c.bf16 %v343, %v341
        %v424 = vpack.c.bf16 %v347, %v345
        %v425 = vpack.c.bf16 %v351, %v349
        %v426 = vpack.c.bf16 %v356, %v354
        %v427 = vpack.c.bf16 %v360, %v358
        %v428 = vpack.c.bf16 %v364, %v362
        %v429 = vpack.c.bf16 %v368, %v366
        %v430 = vpack.c.bf16 %v373, %v371
        %v431 = vpack.c.bf16 %v377, %v375
        %v432 = vpack.c.bf16 %v381, %v379
        %v433 = vpack.c.bf16 %v385, %v383
        %s434 = scalar_lea.vmem %s1, 4
        %v435 = vld [vmem:[%s434] sm:$0xf]
        %vm436 = vcmask 64512
        %v438 = vsel %vm436, %v418, 0
        %v441 = vsel %vm436, %v419, 0
        %v444 = vsel %vm436, %v420, 0
        %v447 = vsel %vm436, %v421, 0
        %v450 = vsel %vm436, %v422, 0
        %v453 = vsel %vm436, %v423, 0
        %v456 = vsel %vm436, %v424, 0
        %v459 = vsel %vm436, %v425, 0
        %v462 = vsel %vm436, %v426, 0
        %v465 = vsel %vm436, %v427, 0
        %v468 = vsel %vm436, %v428, 0
        %v471 = vsel %vm436, %v429, 0
        %v474 = vsel %vm436, %v430, 0
        %v477 = vsel %vm436, %v431, 0
        %v480 = vsel %vm436, %v432, 0
        %v483 = vsel %vm436, %v433, 0
        %vm485 = vcmask 1043456
        %v487 = vsel %vm485, %v435, 0
        %489 = vmatpush.bf16.msra.mxu0 0
        %490 = vmatpush.bf16.msra.mxu0 0
        %491 = vmatpush.bf16.msra.mxu0 0
        %492 = vmatpush.bf16.msra.mxu0 0
        %493 = vmatpush.bf16.msra.mxu0 0
        %494 = vmatpush.bf16.msra.mxu0 0
        %495 = vmatpush.bf16.msra.mxu0 0
        %496 = vmatpush.bf16.msra.mxu0 %v487
        %497 = vmatmul.bf16.gmra.mxu0 %v438
        %v498 = vpop.f32.mrf.mxu0
        %v499 = vadd.f32 0.0, %v498
        %v500 = vpop.f32.mrf.mxu0
        %v501 = vadd.f32 0.0, %v500
        %502 = vmatmul.bf16.gmra.mxu0 %v441
        %v503 = vpop.f32.mrf.mxu0
        %v504 = vadd.f32 0.0, %v503
        %v505 = vpop.f32.mrf.mxu0
        %v506 = vadd.f32 0.0, %v505
        %507 = vmatmul.bf16.gmra.mxu0 %v444
        %v508 = vpop.f32.mrf.mxu0
        %v509 = vadd.f32 0.0, %v508
        %v510 = vpop.f32.mrf.mxu0
        %v511 = vadd.f32 0.0, %v510
        %512 = vmatmul.bf16.gmra.mxu0 %v447
        %v513 = vpop.f32.mrf.mxu0
        %v514 = vadd.f32 0.0, %v513
        %v515 = vpop.f32.mrf.mxu0
        %v516 = vadd.f32 0.0, %v515
        %517 = vmatmul.bf16.gmra.mxu0 %v450
        %v518 = vpop.f32.mrf.mxu0
        %v519 = vadd.f32 0.0, %v518
        %v520 = vpop.f32.mrf.mxu0
        %v521 = vadd.f32 0.0, %v520
        %522 = vmatmul.bf16.gmra.mxu0 %v453
        %v523 = vpop.f32.mrf.mxu0
        %v524 = vadd.f32 0.0, %v523
        %v525 = vpop.f32.mrf.mxu0
        %v526 = vadd.f32 0.0, %v525
        %527 = vmatmul.bf16.gmra.mxu0 %v456
        %v528 = vpop.f32.mrf.mxu0
        %v529 = vadd.f32 0.0, %v528
        %v530 = vpop.f32.mrf.mxu0
        %v531 = vadd.f32 0.0, %v530
        %532 = vmatmul.bf16.gmra.mxu0 %v459
        %v533 = vpop.f32.mrf.mxu0
        %v534 = vadd.f32 0.0, %v533
        %v535 = vpop.f32.mrf.mxu0
        %v536 = vadd.f32 0.0, %v535
        %537 = vmatmul.bf16.gmra.mxu0 %v462
        %v538 = vpop.f32.mrf.mxu0
        %v539 = vadd.f32 0.0, %v538
        %v540 = vpop.f32.mrf.mxu0
        %v541 = vadd.f32 0.0, %v540
        %542 = vmatmul.bf16.gmra.mxu0 %v465
        %v543 = vpop.f32.mrf.mxu0
        %v544 = vadd.f32 0.0, %v543
        %v545 = vpop.f32.mrf.mxu0
        %v546 = vadd.f32 0.0, %v545
        %547 = vmatmul.bf16.gmra.mxu0 %v468
        %v548 = vpop.f32.mrf.mxu0
        %v549 = vadd.f32 0.0, %v548
        %v550 = vpop.f32.mrf.mxu0
        %v551 = vadd.f32 0.0, %v550
        %552 = vmatmul.bf16.gmra.mxu0 %v471
        %v553 = vpop.f32.mrf.mxu0
        %v554 = vadd.f32 0.0, %v553
        %v555 = vpop.f32.mrf.mxu0
        %v556 = vadd.f32 0.0, %v555
        %557 = vmatmul.bf16.gmra.mxu0 %v474
        %v558 = vpop.f32.mrf.mxu0
        %v559 = vadd.f32 0.0, %v558
        %v560 = vpop.f32.mrf.mxu0
        %v561 = vadd.f32 0.0, %v560
        %562 = vmatmul.bf16.gmra.mxu0 %v477
        %v563 = vpop.f32.mrf.mxu0
        %v564 = vadd.f32 0.0, %v563
        %v565 = vpop.f32.mrf.mxu0
        %v566 = vadd.f32 0.0, %v565
        %567 = vmatmul.bf16.gmra.mxu0 %v480
        %v568 = vpop.f32.mrf.mxu0
        %v569 = vadd.f32 0.0, %v568
        %v570 = vpop.f32.mrf.mxu0
        %v571 = vadd.f32 0.0, %v570
        %572 = vmatmul.bf16.gmra.mxu0 %v483
        %v573 = vpop.f32.mrf.mxu0
        %v574 = vadd.f32 0.0, %v573
        %v575 = vpop.f32.mrf.mxu0
        %v576 = vadd.f32 0.0, %v575
        %577 = vdwg.mxu0
        %v579 = vsel %vm436, %v264, 0
        %v582 = vsel %vm436, %v265, 0
        %v585 = vsel %vm436, %v266, 0
        %v588 = vsel %vm436, %v267, 0
        %v591 = vsel %vm436, %v268, 0
        %v594 = vsel %vm436, %v269, 0
        %v597 = vsel %vm436, %v270, 0
        %v600 = vsel %vm436, %v271, 0
        %v603 = vsel %vm436, %v272, 0
        %v606 = vsel %vm436, %v273, 0
        %v609 = vsel %vm436, %v274, 0
        %v612 = vsel %vm436, %v275, 0
        %v615 = vsel %vm436, %v276, 0
        %v618 = vsel %vm436, %v277, 0
        %v621 = vsel %vm436, %v278, 0
        %v624 = vsel %vm436, %v279, 0
        %v627 = vsel %vm485, %v280, 0
        %629 = vmatpush.bf16.msra.mxu0 0
        %630 = vmatpush.bf16.msra.mxu0 0
        %631 = vmatpush.bf16.msra.mxu0 0
        %632 = vmatpush.bf16.msra.mxu0 0
        %633 = vmatpush.bf16.msra.mxu0 0
        %634 = vmatpush.bf16.msra.mxu0 0
        %635 = vmatpush.bf16.msra.mxu0 0
        %636 = vmatpush.bf16.msra.mxu0 %v627
        %637 = vmatmul.bf16.gmra.mxu0 %v579
        %v638 = vpop.f32.mrf.mxu0
        %v639 = vadd.f32 %v499, %v638
        %v640 = vpop.f32.mrf.mxu0
        %v641 = vadd.f32 %v501, %v640
        %642 = vmatmul.bf16.gmra.mxu0 %v582
        %v643 = vpop.f32.mrf.mxu0
        %v644 = vadd.f32 %v504, %v643
        %v645 = vpop.f32.mrf.mxu0
        %v646 = vadd.f32 %v506, %v645
        %647 = vmatmul.bf16.gmra.mxu0 %v585
        %v648 = vpop.f32.mrf.mxu0
        %v649 = vadd.f32 %v509, %v648
        %v650 = vpop.f32.mrf.mxu0
        %v651 = vadd.f32 %v511, %v650
        %652 = vmatmul.bf16.gmra.mxu0 %v588
        %v653 = vpop.f32.mrf.mxu0
        %v654 = vadd.f32 %v514, %v653
        %v655 = vpop.f32.mrf.mxu0
        %v656 = vadd.f32 %v516, %v655
        %657 = vmatmul.bf16.gmra.mxu0 %v591
        %v658 = vpop.f32.mrf.mxu0
        %v659 = vadd.f32 %v519, %v658
        %v660 = vpop.f32.mrf.mxu0
        %v661 = vadd.f32 %v521, %v660
        %662 = vmatmul.bf16.gmra.mxu0 %v594
        %v663 = vpop.f32.mrf.mxu0
        %v664 = vadd.f32 %v524, %v663
        %v665 = vpop.f32.mrf.mxu0
        %v666 = vadd.f32 %v526, %v665
        %667 = vmatmul.bf16.gmra.mxu0 %v597
        %v668 = vpop.f32.mrf.mxu0
        %v669 = vadd.f32 %v529, %v668
        %v670 = vpop.f32.mrf.mxu0
        %v671 = vadd.f32 %v531, %v670
        %672 = vmatmul.bf16.gmra.mxu0 %v600
        %v673 = vpop.f32.mrf.mxu0
        %v674 = vadd.f32 %v534, %v673
        %v675 = vpop.f32.mrf.mxu0
        %v676 = vadd.f32 %v536, %v675
        %677 = vmatmul.bf16.gmra.mxu0 %v603
        %v678 = vpop.f32.mrf.mxu0
        %v679 = vadd.f32 %v539, %v678
        %v680 = vpop.f32.mrf.mxu0
        %v681 = vadd.f32 %v541, %v680
        %682 = vmatmul.bf16.gmra.mxu0 %v606
        %v683 = vpop.f32.mrf.mxu0
        %v684 = vadd.f32 %v544, %v683
        %v685 = vpop.f32.mrf.mxu0
        %v686 = vadd.f32 %v546, %v685
        %687 = vmatmul.bf16.gmra.mxu0 %v609
        %v688 = vpop.f32.mrf.mxu0
        %v689 = vadd.f32 %v549, %v688
        %v690 = vpop.f32.mrf.mxu0
        %v691 = vadd.f32 %v551, %v690
        %692 = vmatmul.bf16.gmra.mxu0 %v612
        %v693 = vpop.f32.mrf.mxu0
        %v694 = vadd.f32 %v554, %v693
        %v695 = vpop.f32.mrf.mxu0
        %v696 = vadd.f32 %v556, %v695
        %697 = vmatmul.bf16.gmra.mxu0 %v615
        %v698 = vpop.f32.mrf.mxu0
        %v699 = vadd.f32 %v559, %v698
        %v700 = vpop.f32.mrf.mxu0
        %v701 = vadd.f32 %v561, %v700
        %702 = vmatmul.bf16.gmra.mxu0 %v618
        %v703 = vpop.f32.mrf.mxu0
        %v704 = vadd.f32 %v564, %v703
        %v705 = vpop.f32.mrf.mxu0
        %v706 = vadd.f32 %v566, %v705
        %707 = vmatmul.bf16.gmra.mxu0 %v621
        %v708 = vpop.f32.mrf.mxu0
        %v709 = vadd.f32 %v569, %v708
        %v710 = vpop.f32.mrf.mxu0
        %v711 = vadd.f32 %v571, %v710
        %712 = vmatmul.bf16.gmra.mxu0 %v624
        %v713 = vpop.f32.mrf.mxu0
        %v714 = vadd.f32 %v574, %v713
        %v715 = vpop.f32.mrf.mxu0
        %v716 = vadd.f32 %v576, %v715
        %717 = vdwg.mxu0
        %vm718 = vcmask 1045504
        %v719 = vrot.slane %v210, 2
        %v720 = vrot.slane %v211, 2
        %v721 = vsel %vm718, %v719, %v720
        %v722 = vrot.slane %v212, 2
        %v723 = vsel %vm718, %v720, %v722
        %v724 = vrot.slane %v213, 2
        %v725 = vsel %vm718, %v722, %v724
        %v726 = vrot.slane %v214, 2
        %v727 = vsel %vm718, %v724, %v726
        %v728 = vrot.slane %v215, 2
        %v729 = vsel %vm718, %v726, %v728
        %v730 = vrot.slane %v216, 2
        %v731 = vsel %vm718, %v728, %v730
        %v732 = vrot.slane %v217, 2
        %v733 = vsel %vm718, %v730, %v732
        %v734 = vrot.slane %v218, 2
        %v735 = vsel %vm718, %v732, %v734
        %v736 = vrot.slane %v219, 2
        %v737 = vrot.slane %v220, 2
        %v738 = vsel %vm718, %v736, %v737
        %v739 = vrot.slane %v221, 2
        %v740 = vsel %vm718, %v737, %v739
        %v741 = vrot.slane %v222, 2
        %v742 = vsel %vm718, %v739, %v741
        %v743 = vrot.slane %v223, 2
        %v744 = vsel %vm718, %v741, %v743
        %v745 = vrot.slane %v224, 2
        %v746 = vsel %vm718, %v743, %v745
        %v747 = vrot.slane %v225, 2
        %v748 = vsel %vm718, %v745, %v747
        %v749 = vrot.slane %v226, 2
        %v750 = vsel %vm718, %v747, %v749
        %v751 = vrot.slane %v227, 2
        %v752 = vsel %vm718, %v749, %v751
        %v753 = vrot.slane %v228, 2
        %v754 = vrot.slane %v229, 2
        %v755 = vsel %vm718, %v753, %v754
        %v756 = vrot.slane %v230, 2
        %v757 = vsel %vm718, %v754, %v756
        %v758 = vrot.slane %v231, 2
        %v759 = vsel %vm718, %v756, %v758
        %v760 = vrot.slane %v232, 2
        %v761 = vsel %vm718, %v758, %v760
        %v762 = vrot.slane %v233, 2
        %v763 = vsel %vm718, %v760, %v762
        %v764 = vrot.slane %v234, 2
        %v765 = vsel %vm718, %v762, %v764
        %v766 = vrot.slane %v235, 2
        %v767 = vsel %vm718, %v764, %v766
        %v768 = vrot.slane %v236, 2
        %v769 = vsel %vm718, %v766, %v768
        %v770 = vrot.slane %v237, 2
        %v771 = vrot.slane %v238, 2
        %v772 = vsel %vm718, %v770, %v771
        %v773 = vrot.slane %v239, 2
        %v774 = vsel %vm718, %v771, %v773
        %v775 = vrot.slane %v240, 2
        %v776 = vsel %vm718, %v773, %v775
        %v777 = vrot.slane %v241, 2
        %v778 = vsel %vm718, %v775, %v777
        %v779 = vrot.slane %v242, 2
        %v780 = vsel %vm718, %v777, %v779
        %v781 = vrot.slane %v243, 2
        %v782 = vsel %vm718, %v779, %v781
        %v783 = vrot.slane %v244, 2
        %v784 = vsel %vm718, %v781, %v783
        %v785 = vrot.slane %v245, 2
        %v786 = vsel %vm718, %v783, %v785
        %v819 = vpack.c.bf16 %v723, %v721
        %v820 = vpack.c.bf16 %v727, %v725
        %v821 = vpack.c.bf16 %v731, %v729
        %v822 = vpack.c.bf16 %v735, %v733
        %v823 = vpack.c.bf16 %v740, %v738
        %v824 = vpack.c.bf16 %v744, %v742
        %v825 = vpack.c.bf16 %v748, %v746
        %v826 = vpack.c.bf16 %v752, %v750
        %v827 = vpack.c.bf16 %v757, %v755
        %v828 = vpack.c.bf16 %v761, %v759
        %v829 = vpack.c.bf16 %v765, %v763
        %v830 = vpack.c.bf16 %v769, %v767
        %v831 = vpack.c.bf16 %v774, %v772
        %v832 = vpack.c.bf16 %v778, %v776
        %v833 = vpack.c.bf16 %v782, %v780
        %v834 = vpack.c.bf16 %v786, %v784
        %s835 = scalar_lea.vmem %s1, 8
        %v836 = vld [vmem:[%s835] sm:$0xf]
        %v838 = vsel %vm436, %v819, 0
        %v841 = vsel %vm436, %v820, 0
        %v844 = vsel %vm436, %v821, 0
        %v847 = vsel %vm436, %v822, 0
        %v850 = vsel %vm436, %v823, 0
        %v853 = vsel %vm436, %v824, 0
        %v856 = vsel %vm436, %v825, 0
        %v859 = vsel %vm436, %v826, 0
        %v862 = vsel %vm436, %v827, 0
        %v865 = vsel %vm436, %v828, 0
        %v868 = vsel %vm436, %v829, 0
        %v871 = vsel %vm436, %v830, 0
        %v874 = vsel %vm436, %v831, 0
        %v877 = vsel %vm436, %v832, 0
        %v880 = vsel %vm436, %v833, 0
        %v883 = vsel %vm436, %v834, 0
        %v886 = vsel %vm485, %v836, 0
        %888 = vmatpush.bf16.msra.mxu0 0
        %889 = vmatpush.bf16.msra.mxu0 0
        %890 = vmatpush.bf16.msra.mxu0 0
        %891 = vmatpush.bf16.msra.mxu0 0
        %892 = vmatpush.bf16.msra.mxu0 0
        %893 = vmatpush.bf16.msra.mxu0 0
        %894 = vmatpush.bf16.msra.mxu0 0
        %895 = vmatpush.bf16.msra.mxu0 %v886
        %896 = vmatmul.bf16.gmra.mxu0 %v838
        %v897 = vpop.f32.mrf.mxu0
        %v898 = vadd.f32 0.0, %v897
        %v899 = vpop.f32.mrf.mxu0
        %v900 = vadd.f32 0.0, %v899
        %901 = vmatmul.bf16.gmra.mxu0 %v841
        %v902 = vpop.f32.mrf.mxu0
        %v903 = vadd.f32 0.0, %v902
        %v904 = vpop.f32.mrf.mxu0
        %v905 = vadd.f32 0.0, %v904
        %906 = vmatmul.bf16.gmra.mxu0 %v844
        %v907 = vpop.f32.mrf.mxu0
        %v908 = vadd.f32 0.0, %v907
        %v909 = vpop.f32.mrf.mxu0
        %v910 = vadd.f32 0.0, %v909
        %911 = vmatmul.bf16.gmra.mxu0 %v847
        %v912 = vpop.f32.mrf.mxu0
        %v913 = vadd.f32 0.0, %v912
        %v914 = vpop.f32.mrf.mxu0
        %v915 = vadd.f32 0.0, %v914
        %916 = vmatmul.bf16.gmra.mxu0 %v850
        %v917 = vpop.f32.mrf.mxu0
        %v918 = vadd.f32 0.0, %v917
        %v919 = vpop.f32.mrf.mxu0
        %v920 = vadd.f32 0.0, %v919
        %921 = vmatmul.bf16.gmra.mxu0 %v853
        %v922 = vpop.f32.mrf.mxu0
        %v923 = vadd.f32 0.0, %v922
        %v924 = vpop.f32.mrf.mxu0
        %v925 = vadd.f32 0.0, %v924
        %926 = vmatmul.bf16.gmra.mxu0 %v856
        %v927 = vpop.f32.mrf.mxu0
        %v928 = vadd.f32 0.0, %v927
        %v929 = vpop.f32.mrf.mxu0
        %v930 = vadd.f32 0.0, %v929
        %931 = vmatmul.bf16.gmra.mxu0 %v859
        %v932 = vpop.f32.mrf.mxu0
        %v933 = vadd.f32 0.0, %v932
        %v934 = vpop.f32.mrf.mxu0
        %v935 = vadd.f32 0.0, %v934
        %936 = vmatmul.bf16.gmra.mxu0 %v862
        %v937 = vpop.f32.mrf.mxu0
        %v938 = vadd.f32 0.0, %v937
        %v939 = vpop.f32.mrf.mxu0
        %v940 = vadd.f32 0.0, %v939
        %941 = vmatmul.bf16.gmra.mxu0 %v865
        %v942 = vpop.f32.mrf.mxu0
        %v943 = vadd.f32 0.0, %v942
        %v944 = vpop.f32.mrf.mxu0
        %v945 = vadd.f32 0.0, %v944
        %946 = vmatmul.bf16.gmra.mxu0 %v868
        %v947 = vpop.f32.mrf.mxu0
        %v948 = vadd.f32 0.0, %v947
        %v949 = vpop.f32.mrf.mxu0
        %v950 = vadd.f32 0.0, %v949
        %951 = vmatmul.bf16.gmra.mxu0 %v871
        %v952 = vpop.f32.mrf.mxu0
        %v953 = vadd.f32 0.0, %v952
        %v954 = vpop.f32.mrf.mxu0
        %v955 = vadd.f32 0.0, %v954
        %956 = vmatmul.bf16.gmra.mxu0 %v874
        %v957 = vpop.f32.mrf.mxu0
        %v958 = vadd.f32 0.0, %v957
        %v959 = vpop.f32.mrf.mxu0
        %v960 = vadd.f32 0.0, %v959
        %961 = vmatmul.bf16.gmra.mxu0 %v877
        %v962 = vpop.f32.mrf.mxu0
        %v963 = vadd.f32 0.0, %v962
        %v964 = vpop.f32.mrf.mxu0
        %v965 = vadd.f32 0.0, %v964
        %966 = vmatmul.bf16.gmra.mxu0 %v880
        %v967 = vpop.f32.mrf.mxu0
        %v968 = vadd.f32 0.0, %v967
        %v969 = vpop.f32.mrf.mxu0
        %v970 = vadd.f32 0.0, %v969
        %971 = vmatmul.bf16.gmra.mxu0 %v883
        %v972 = vpop.f32.mrf.mxu0
        %v973 = vadd.f32 0.0, %v972
        %v974 = vpop.f32.mrf.mxu0
        %v975 = vadd.f32 0.0, %v974
        %976 = vdwg.mxu0
        %v977 = vadd.f32 %v639, %v898
        %v978 = vadd.f32 %v641, %v900
        %v979 = vadd.f32 %v644, %v903
        %v980 = vadd.f32 %v646, %v905
        %v981 = vadd.f32 %v649, %v908
        %v982 = vadd.f32 %v651, %v910
        %v983 = vadd.f32 %v654, %v913
        %v984 = vadd.f32 %v656, %v915
        %v985 = vadd.f32 %v659, %v918
        %v986 = vadd.f32 %v661, %v920
        %v987 = vadd.f32 %v664, %v923
        %v988 = vadd.f32 %v666, %v925
        %v989 = vadd.f32 %v669, %v928
        %v990 = vadd.f32 %v671, %v930
        %v991 = vadd.f32 %v674, %v933
        %v992 = vadd.f32 %v676, %v935
        %v993 = vadd.f32 %v679, %v938
        %v994 = vadd.f32 %v681, %v940
        %v995 = vadd.f32 %v684, %v943
        %v996 = vadd.f32 %v686, %v945
        %v997 = vadd.f32 %v689, %v948
        %v998 = vadd.f32 %v691, %v950
        %v999 = vadd.f32 %v694, %v953
        %v1000 = vadd.f32 %v696, %v955
        %v1001 = vadd.f32 %v699, %v958
        %v1002 = vadd.f32 %v701, %v960
        %v1003 = vadd.f32 %v704, %v963
        %v1004 = vadd.f32 %v706, %v965
        %v1005 = vadd.f32 %v709, %v968
        %v1006 = vadd.f32 %v711, %v970
        %v1007 = vadd.f32 %v714, %v973
        %v1008 = vadd.f32 %v716, %v975
        %v1009 = vpack.c.bf16 %v247, %v246
        %v1010 = vpack.c.bf16 %v249, %v248
        %v1011 = vpack.c.bf16 %v251, %v250
        %v1012 = vpack.c.bf16 %v253, %v252
        %s1013 = scalar_lea.vmem %s1, 12
        %v1014 = vld [vmem:[%s1013] sm:$0xf]
        %v1016 = vsel %vm436, %v1009, 0
        %v1019 = vsel %vm436, %v1010, 0
        %v1022 = vsel %vm436, %v1011, 0
        %v1025 = vsel %vm436, %v1012, 0
        %v1028 = vsel %vm485, %v1014, 0
        %1030 = vmatpush.bf16.msra.mxu0 0
        %1031 = vmatpush.bf16.msra.mxu0 0
        %1032 = vmatpush.bf16.msra.mxu0 0
        %1033 = vmatpush.bf16.msra.mxu0 0
        %1034 = vmatpush.bf16.msra.mxu0 0
        %1035 = vmatpush.bf16.msra.mxu0 0
        %1036 = vmatpush.bf16.msra.mxu0 0
        %1037 = vmatpush.bf16.msra.mxu0 %v1028
        %1038 = vmatmul.bf16.gmra.mxu0 %v591
        %v1039 = vpop.f32.mrf.mxu0
        %v1040 = vadd.f32 0.0, %v1039
        %v1041 = vpop.f32.mrf.mxu0
        %v1042 = vadd.f32 0.0, %v1041
        %1043 = vmatmul.bf16.gmra.mxu0 %v594
        %v1044 = vpop.f32.mrf.mxu0
        %v1045 = vadd.f32 0.0, %v1044
        %v1046 = vpop.f32.mrf.mxu0
        %v1047 = vadd.f32 0.0, %v1046
        %1048 = vmatmul.bf16.gmra.mxu0 %v597
        %v1049 = vpop.f32.mrf.mxu0
        %v1050 = vadd.f32 0.0, %v1049
        %v1051 = vpop.f32.mrf.mxu0
        %v1052 = vadd.f32 0.0, %v1051
        %1053 = vmatmul.bf16.gmra.mxu0 %v600
        %v1054 = vpop.f32.mrf.mxu0
        %v1055 = vadd.f32 0.0, %v1054
        %v1056 = vpop.f32.mrf.mxu0
        %v1057 = vadd.f32 0.0, %v1056
        %1058 = vmatmul.bf16.gmra.mxu0 %v603
        %v1059 = vpop.f32.mrf.mxu0
        %v1060 = vadd.f32 0.0, %v1059
        %v1061 = vpop.f32.mrf.mxu0
        %v1062 = vadd.f32 0.0, %v1061
        %1063 = vmatmul.bf16.gmra.mxu0 %v606
        %v1064 = vpop.f32.mrf.mxu0
        %v1065 = vadd.f32 0.0, %v1064
        %v1066 = vpop.f32.mrf.mxu0
        %v1067 = vadd.f32 0.0, %v1066
        %1068 = vmatmul.bf16.gmra.mxu0 %v609
        %v1069 = vpop.f32.mrf.mxu0
        %v1070 = vadd.f32 0.0, %v1069
        %v1071 = vpop.f32.mrf.mxu0
        %v1072 = vadd.f32 0.0, %v1071
        %1073 = vmatmul.bf16.gmra.mxu0 %v612
        %v1074 = vpop.f32.mrf.mxu0
        %v1075 = vadd.f32 0.0, %v1074
        %v1076 = vpop.f32.mrf.mxu0
        %v1077 = vadd.f32 0.0, %v1076
        %1078 = vmatmul.bf16.gmra.mxu0 %v615
        %v1079 = vpop.f32.mrf.mxu0
        %v1080 = vadd.f32 0.0, %v1079
        %v1081 = vpop.f32.mrf.mxu0
        %v1082 = vadd.f32 0.0, %v1081
        %1083 = vmatmul.bf16.gmra.mxu0 %v618
        %v1084 = vpop.f32.mrf.mxu0
        %v1085 = vadd.f32 0.0, %v1084
        %v1086 = vpop.f32.mrf.mxu0
        %v1087 = vadd.f32 0.0, %v1086
        %1088 = vmatmul.bf16.gmra.mxu0 %v621
        %v1089 = vpop.f32.mrf.mxu0
        %v1090 = vadd.f32 0.0, %v1089
        %v1091 = vpop.f32.mrf.mxu0
        %v1092 = vadd.f32 0.0, %v1091
        %1093 = vmatmul.bf16.gmra.mxu0 %v624
        %v1094 = vpop.f32.mrf.mxu0
        %v1095 = vadd.f32 0.0, %v1094
        %v1096 = vpop.f32.mrf.mxu0
        %v1097 = vadd.f32 0.0, %v1096
        %1098 = vmatmul.bf16.gmra.mxu0 %v1016
        %v1099 = vpop.f32.mrf.mxu0
        %v1100 = vadd.f32 0.0, %v1099
        %v1101 = vpop.f32.mrf.mxu0
        %v1102 = vadd.f32 0.0, %v1101
        %1103 = vmatmul.bf16.gmra.mxu0 %v1019
        %v1104 = vpop.f32.mrf.mxu0
        %v1105 = vadd.f32 0.0, %v1104
        %v1106 = vpop.f32.mrf.mxu0
        %v1107 = vadd.f32 0.0, %v1106
        %1108 = vmatmul.bf16.gmra.mxu0 %v1022
        %v1109 = vpop.f32.mrf.mxu0
        %v1110 = vadd.f32 0.0, %v1109
        %v1111 = vpop.f32.mrf.mxu0
        %v1112 = vadd.f32 0.0, %v1111
        %1113 = vmatmul.bf16.gmra.mxu0 %v1025
        %v1114 = vpop.f32.mrf.mxu0
        %v1115 = vadd.f32 0.0, %v1114
        %v1116 = vpop.f32.mrf.mxu0
        %v1117 = vadd.f32 0.0, %v1116
        %1118 = vdwg.mxu0
        %v1119 = vadd.f32 %v977, %v1040
        %v1120 = vadd.f32 %v978, %v1042
        %v1121 = vadd.f32 %v979, %v1045
        %v1122 = vadd.f32 %v980, %v1047
        %v1123 = vadd.f32 %v981, %v1050
        %v1124 = vadd.f32 %v982, %v1052
        %v1125 = vadd.f32 %v983, %v1055
        %v1126 = vadd.f32 %v984, %v1057
        %v1127 = vadd.f32 %v985, %v1060
        %v1128 = vadd.f32 %v986, %v1062
        %v1129 = vadd.f32 %v987, %v1065
        %v1130 = vadd.f32 %v988, %v1067
        %v1131 = vadd.f32 %v989, %v1070
        %v1132 = vadd.f32 %v990, %v1072
        %v1133 = vadd.f32 %v991, %v1075
        %v1134 = vadd.f32 %v992, %v1077
        %v1135 = vadd.f32 %v993, %v1080
        %v1136 = vadd.f32 %v994, %v1082
        %v1137 = vadd.f32 %v995, %v1085
        %v1138 = vadd.f32 %v996, %v1087
        %v1139 = vadd.f32 %v997, %v1090
        %v1140 = vadd.f32 %v998, %v1092
        %v1141 = vadd.f32 %v999, %v1095
        %v1142 = vadd.f32 %v1000, %v1097
        %v1143 = vadd.f32 %v1001, %v1100
        %v1144 = vadd.f32 %v1002, %v1102
        %v1145 = vadd.f32 %v1003, %v1105
        %v1146 = vadd.f32 %v1004, %v1107
        %v1147 = vadd.f32 %v1005, %v1110
        %v1148 = vadd.f32 %v1006, %v1112
        %v1149 = vadd.f32 %v1007, %v1115
        %v1150 = vadd.f32 %v1008, %v1117
        %v1160 = vrot.slane %v246, 1
        %v1161 = vrot.slane %v247, 1
        %v1162 = vsel %vm317, %v1160, %v1161
        %v1163 = vrot.slane %v248, 1
        %v1164 = vsel %vm317, %v1161, %v1163
        %v1165 = vrot.slane %v249, 1
        %v1166 = vsel %vm317, %v1163, %v1165
        %v1167 = vrot.slane %v250, 1
        %v1168 = vsel %vm317, %v1165, %v1167
        %v1169 = vrot.slane %v251, 1
        %v1170 = vsel %vm317, %v1167, %v1169
        %v1171 = vrot.slane %v252, 1
        %v1172 = vsel %vm317, %v1169, %v1171
        %v1173 = vrot.slane %v253, 1
        %v1174 = vsel %vm317, %v1171, %v1173
        %v1175 = vrot.slane %v254, 1
        %v1176 = vsel %vm317, %v1173, %v1175
        %v1185 = vpack.c.bf16 %v1164, %v1162
        %v1186 = vpack.c.bf16 %v1168, %v1166
        %v1187 = vpack.c.bf16 %v1172, %v1170
        %v1188 = vpack.c.bf16 %v1176, %v1174
        %s1189 = scalar_lea.vmem %s1, 16
        %v1190 = vld [vmem:[%s1189] sm:$0xf]
        %v1192 = vsel %vm436, %v1185, 0
        %v1195 = vsel %vm436, %v1186, 0
        %v1198 = vsel %vm436, %v1187, 0
        %v1201 = vsel %vm436, %v1188, 0
        %v1204 = vsel %vm485, %v1190, 0
        %1206 = vmatpush.bf16.msra.mxu0 0
        %1207 = vmatpush.bf16.msra.mxu0 0
        %1208 = vmatpush.bf16.msra.mxu0 0
        %1209 = vmatpush.bf16.msra.mxu0 0
        %1210 = vmatpush.bf16.msra.mxu0 0
        %1211 = vmatpush.bf16.msra.mxu0 0
        %1212 = vmatpush.bf16.msra.mxu0 0
        %1213 = vmatpush.bf16.msra.mxu0 %v1204
        %1214 = vmatmul.bf16.gmra.mxu0 %v450
        %v1215 = vpop.f32.mrf.mxu0
        %v1216 = vadd.f32 0.0, %v1215
        %v1217 = vpop.f32.mrf.mxu0
        %v1218 = vadd.f32 0.0, %v1217
        %1219 = vmatmul.bf16.gmra.mxu0 %v453
        %v1220 = vpop.f32.mrf.mxu0
        %v1221 = vadd.f32 0.0, %v1220
        %v1222 = vpop.f32.mrf.mxu0
        %v1223 = vadd.f32 0.0, %v1222
        %1224 = vmatmul.bf16.gmra.mxu0 %v456
        %v1225 = vpop.f32.mrf.mxu0
        %v1226 = vadd.f32 0.0, %v1225
        %v1227 = vpop.f32.mrf.mxu0
        %v1228 = vadd.f32 0.0, %v1227
        %1229 = vmatmul.bf16.gmra.mxu0 %v459
        %v1230 = vpop.f32.mrf.mxu0
        %v1231 = vadd.f32 0.0, %v1230
        %v1232 = vpop.f32.mrf.mxu0
        %v1233 = vadd.f32 0.0, %v1232
        %1234 = vmatmul.bf16.gmra.mxu0 %v462
        %v1235 = vpop.f32.mrf.mxu0
        %v1236 = vadd.f32 0.0, %v1235
        %v1237 = vpop.f32.mrf.mxu0
        %v1238 = vadd.f32 0.0, %v1237
        %1239 = vmatmul.bf16.gmra.mxu0 %v465
        %v1240 = vpop.f32.mrf.mxu0
        %v1241 = vadd.f32 0.0, %v1240
        %v1242 = vpop.f32.mrf.mxu0
        %v1243 = vadd.f32 0.0, %v1242
        %1244 = vmatmul.bf16.gmra.mxu0 %v468
        %v1245 = vpop.f32.mrf.mxu0
        %v1246 = vadd.f32 0.0, %v1245
        %v1247 = vpop.f32.mrf.mxu0
        %v1248 = vadd.f32 0.0, %v1247
        %1249 = vmatmul.bf16.gmra.mxu0 %v471
        %v1250 = vpop.f32.mrf.mxu0
        %v1251 = vadd.f32 0.0, %v1250
        %v1252 = vpop.f32.mrf.mxu0
        %v1253 = vadd.f32 0.0, %v1252
        %1254 = vmatmul.bf16.gmra.mxu0 %v474
        %v1255 = vpop.f32.mrf.mxu0
        %v1256 = vadd.f32 0.0, %v1255
        %v1257 = vpop.f32.mrf.mxu0
        %v1258 = vadd.f32 0.0, %v1257
        %1259 = vmatmul.bf16.gmra.mxu0 %v477
        %v1260 = vpop.f32.mrf.mxu0
        %v1261 = vadd.f32 0.0, %v1260
        %v1262 = vpop.f32.mrf.mxu0
        %v1263 = vadd.f32 0.0, %v1262
        %1264 = vmatmul.bf16.gmra.mxu0 %v480
        %v1265 = vpop.f32.mrf.mxu0
        %v1266 = vadd.f32 0.0, %v1265
        %v1267 = vpop.f32.mrf.mxu0
        %v1268 = vadd.f32 0.0, %v1267
        %1269 = vmatmul.bf16.gmra.mxu0 %v483
        %v1270 = vpop.f32.mrf.mxu0
        %v1271 = vadd.f32 0.0, %v1270
        %v1272 = vpop.f32.mrf.mxu0
        %v1273 = vadd.f32 0.0, %v1272
        %1274 = vmatmul.bf16.gmra.mxu0 %v1192
        %v1275 = vpop.f32.mrf.mxu0
        %v1276 = vadd.f32 0.0, %v1275
        %v1277 = vpop.f32.mrf.mxu0
        %v1278 = vadd.f32 0.0, %v1277
        %1279 = vmatmul.bf16.gmra.mxu0 %v1195
        %v1280 = vpop.f32.mrf.mxu0
        %v1281 = vadd.f32 0.0, %v1280
        %v1282 = vpop.f32.mrf.mxu0
        %v1283 = vadd.f32 0.0, %v1282
        %1284 = vmatmul.bf16.gmra.mxu0 %v1198
        %v1285 = vpop.f32.mrf.mxu0
        %v1286 = vadd.f32 0.0, %v1285
        %v1287 = vpop.f32.mrf.mxu0
        %v1288 = vadd.f32 0.0, %v1287
        %1289 = vmatmul.bf16.gmra.mxu0 %v1201
        %v1290 = vpop.f32.mrf.mxu0
        %v1291 = vadd.f32 0.0, %v1290
        %v1292 = vpop.f32.mrf.mxu0
        %v1293 = vadd.f32 0.0, %v1292
        %1294 = vdwg.mxu0
        %v1295 = vadd.f32 %v1119, %v1216
        %v1296 = vadd.f32 %v1120, %v1218
        %v1297 = vadd.f32 %v1121, %v1221
        %v1298 = vadd.f32 %v1122, %v1223
        %v1299 = vadd.f32 %v1123, %v1226
        %v1300 = vadd.f32 %v1124, %v1228
        %v1301 = vadd.f32 %v1125, %v1231
        %v1302 = vadd.f32 %v1126, %v1233
        %v1303 = vadd.f32 %v1127, %v1236
        %v1304 = vadd.f32 %v1128, %v1238
        %v1305 = vadd.f32 %v1129, %v1241
        %v1306 = vadd.f32 %v1130, %v1243
        %v1307 = vadd.f32 %v1131, %v1246
        %v1308 = vadd.f32 %v1132, %v1248
        %v1309 = vadd.f32 %v1133, %v1251
        %v1310 = vadd.f32 %v1134, %v1253
        %v1311 = vadd.f32 %v1135, %v1256
        %v1312 = vadd.f32 %v1136, %v1258
        %v1313 = vadd.f32 %v1137, %v1261
        %v1314 = vadd.f32 %v1138, %v1263
        %v1315 = vadd.f32 %v1139, %v1266
        %v1316 = vadd.f32 %v1140, %v1268
        %v1317 = vadd.f32 %v1141, %v1271
        %v1318 = vadd.f32 %v1142, %v1273
        %v1319 = vadd.f32 %v1143, %v1276
        %v1320 = vadd.f32 %v1144, %v1278
        %v1321 = vadd.f32 %v1145, %v1281
        %v1322 = vadd.f32 %v1146, %v1283
        %v1323 = vadd.f32 %v1147, %v1286
        %v1324 = vadd.f32 %v1148, %v1288
        %v1325 = vadd.f32 %v1149, %v1291
        %v1326 = vadd.f32 %v1150, %v1293
        %v1327 = vrot.slane %v246, 2
        %v1328 = vrot.slane %v247, 2
        %v1329 = vsel %vm718, %v1327, %v1328
        %v1330 = vrot.slane %v248, 2
        %v1331 = vsel %vm718, %v1328, %v1330
        %v1332 = vrot.slane %v249, 2
        %v1333 = vsel %vm718, %v1330, %v1332
        %v1334 = vrot.slane %v250, 2
        %v1335 = vsel %vm718, %v1332, %v1334
        %v1336 = vrot.slane %v251, 2
        %v1337 = vsel %vm718, %v1334, %v1336
        %v1338 = vrot.slane %v252, 2
        %v1339 = vsel %vm718, %v1336, %v1338
        %v1340 = vrot.slane %v253, 2
        %v1341 = vsel %vm718, %v1338, %v1340
        %v1342 = vrot.slane %v254, 2
        %v1343 = vsel %vm718, %v1340, %v1342
        %v1352 = vpack.c.bf16 %v1331, %v1329
        %v1353 = vpack.c.bf16 %v1335, %v1333
        %v1354 = vpack.c.bf16 %v1339, %v1337
        %v1355 = vpack.c.bf16 %v1343, %v1341
        %s1356 = scalar_lea.vmem %s1, 20
        %v1357 = vld [vmem:[%s1356] sm:$0xf]
        %v1359 = vsel %vm436, %v1352, 0
        %v1362 = vsel %vm436, %v1353, 0
        %v1365 = vsel %vm436, %v1354, 0
        %v1368 = vsel %vm436, %v1355, 0
        %v1371 = vsel %vm485, %v1357, 0
        %1373 = vmatpush.bf16.msra.mxu0 0
        %1374 = vmatpush.bf16.msra.mxu0 0
        %1375 = vmatpush.bf16.msra.mxu0 0
        %1376 = vmatpush.bf16.msra.mxu0 0
        %1377 = vmatpush.bf16.msra.mxu0 0
        %1378 = vmatpush.bf16.msra.mxu0 0
        %1379 = vmatpush.bf16.msra.mxu0 0
        %1380 = vmatpush.bf16.msra.mxu0 %v1371
        %1381 = vmatmul.bf16.gmra.mxu0 %v850
        %v1382 = vpop.f32.mrf.mxu0
        %v1383 = vadd.f32 0.0, %v1382
        %v1384 = vpop.f32.mrf.mxu0
        %v1385 = vadd.f32 0.0, %v1384
        %1386 = vmatmul.bf16.gmra.mxu0 %v853
        %v1387 = vpop.f32.mrf.mxu0
        %v1388 = vadd.f32 0.0, %v1387
        %v1389 = vpop.f32.mrf.mxu0
        %v1390 = vadd.f32 0.0, %v1389
        %1391 = vmatmul.bf16.gmra.mxu0 %v856
        %v1392 = vpop.f32.mrf.mxu0
        %v1393 = vadd.f32 0.0, %v1392
        %v1394 = vpop.f32.mrf.mxu0
        %v1395 = vadd.f32 0.0, %v1394
        %1396 = vmatmul.bf16.gmra.mxu0 %v859
        %v1397 = vpop.f32.mrf.mxu0
        %v1398 = vadd.f32 0.0, %v1397
        %v1399 = vpop.f32.mrf.mxu0
        %v1400 = vadd.f32 0.0, %v1399
        %1401 = vmatmul.bf16.gmra.mxu0 %v862
        %v1402 = vpop.f32.mrf.mxu0
        %v1403 = vadd.f32 0.0, %v1402
        %v1404 = vpop.f32.mrf.mxu0
        %v1405 = vadd.f32 0.0, %v1404
        %1406 = vmatmul.bf16.gmra.mxu0 %v865
        %v1407 = vpop.f32.mrf.mxu0
        %v1408 = vadd.f32 0.0, %v1407
        %v1409 = vpop.f32.mrf.mxu0
        %v1410 = vadd.f32 0.0, %v1409
        %1411 = vmatmul.bf16.gmra.mxu0 %v868
        %v1412 = vpop.f32.mrf.mxu0
        %v1413 = vadd.f32 0.0, %v1412
        %v1414 = vpop.f32.mrf.mxu0
        %v1415 = vadd.f32 0.0, %v1414
        %1416 = vmatmul.bf16.gmra.mxu0 %v871
        %v1417 = vpop.f32.mrf.mxu0
        %v1418 = vadd.f32 0.0, %v1417
        %v1419 = vpop.f32.mrf.mxu0
        %v1420 = vadd.f32 0.0, %v1419
        %1421 = vmatmul.bf16.gmra.mxu0 %v874
        %v1422 = vpop.f32.mrf.mxu0
        %v1423 = vadd.f32 0.0, %v1422
        %v1424 = vpop.f32.mrf.mxu0
        %v1425 = vadd.f32 0.0, %v1424
        %1426 = vmatmul.bf16.gmra.mxu0 %v877
        %v1427 = vpop.f32.mrf.mxu0
        %v1428 = vadd.f32 0.0, %v1427
        %v1429 = vpop.f32.mrf.mxu0
        %v1430 = vadd.f32 0.0, %v1429
        %1431 = vmatmul.bf16.gmra.mxu0 %v880
        %v1432 = vpop.f32.mrf.mxu0
        %v1433 = vadd.f32 0.0, %v1432
        %v1434 = vpop.f32.mrf.mxu0
        %v1435 = vadd.f32 0.0, %v1434
        %1436 = vmatmul.bf16.gmra.mxu0 %v883
        %v1437 = vpop.f32.mrf.mxu0
        %v1438 = vadd.f32 0.0, %v1437
        %v1439 = vpop.f32.mrf.mxu0
        %v1440 = vadd.f32 0.0, %v1439
        %1441 = vmatmul.bf16.gmra.mxu0 %v1359
        %v1442 = vpop.f32.mrf.mxu0
        %v1443 = vadd.f32 0.0, %v1442
        %v1444 = vpop.f32.mrf.mxu0
        %v1445 = vadd.f32 0.0, %v1444
        %1446 = vmatmul.bf16.gmra.mxu0 %v1362
        %v1447 = vpop.f32.mrf.mxu0
        %v1448 = vadd.f32 0.0, %v1447
        %v1449 = vpop.f32.mrf.mxu0
        %v1450 = vadd.f32 0.0, %v1449
        %1451 = vmatmul.bf16.gmra.mxu0 %v1365
        %v1452 = vpop.f32.mrf.mxu0
        %v1453 = vadd.f32 0.0, %v1452
        %v1454 = vpop.f32.mrf.mxu0
        %v1455 = vadd.f32 0.0, %v1454
        %1456 = vmatmul.bf16.gmra.mxu0 %v1368
        %v1457 = vpop.f32.mrf.mxu0
        %v1458 = vadd.f32 0.0, %v1457
        %v1459 = vpop.f32.mrf.mxu0
        %v1460 = vadd.f32 0.0, %v1459
        %1461 = vdwg.mxu0
        %v1462 = vadd.f32 %v1295, %v1383
        %v1463 = vadd.f32 %v1296, %v1385
        %v1464 = vadd.f32 %v1297, %v1388
        %v1465 = vadd.f32 %v1298, %v1390
        %v1466 = vadd.f32 %v1299, %v1393
        %v1467 = vadd.f32 %v1300, %v1395
        %v1468 = vadd.f32 %v1301, %v1398
        %v1469 = vadd.f32 %v1302, %v1400
        %v1470 = vadd.f32 %v1303, %v1403
        %v1471 = vadd.f32 %v1304, %v1405
        %v1472 = vadd.f32 %v1305, %v1408
        %v1473 = vadd.f32 %v1306, %v1410
        %v1474 = vadd.f32 %v1307, %v1413
        %v1475 = vadd.f32 %v1308, %v1415
        %v1476 = vadd.f32 %v1309, %v1418
        %v1477 = vadd.f32 %v1310, %v1420
        %v1478 = vadd.f32 %v1311, %v1423
        %v1479 = vadd.f32 %v1312, %v1425
        %v1480 = vadd.f32 %v1313, %v1428
        %v1481 = vadd.f32 %v1314, %v1430
        %v1482 = vadd.f32 %v1315, %v1433
        %v1483 = vadd.f32 %v1316, %v1435
        %v1484 = vadd.f32 %v1317, %v1438
        %v1485 = vadd.f32 %v1318, %v1440
        %v1486 = vadd.f32 %v1319, %v1443
        %v1487 = vadd.f32 %v1320, %v1445
        %v1488 = vadd.f32 %v1321, %v1448
        %v1489 = vadd.f32 %v1322, %v1450
        %v1490 = vadd.f32 %v1323, %v1453
        %v1491 = vadd.f32 %v1324, %v1455
        %v1492 = vadd.f32 %v1325, %v1458
        %v1493 = vadd.f32 %v1326, %v1460
        %v1494 = vpack.c.bf16 %v256, %v255
        %v1495 = vpack.c.bf16 %v258, %v257
        %v1496 = vpack.c.bf16 %v260, %v259
        %v1497 = vpack.c.bf16 %v262, %v261
        %s1498 = scalar_lea.vmem %s1, 24
        %v1499 = vld [vmem:[%s1498] sm:$0xf]
        %v1501 = vsel %vm436, %v1494, 0
        %v1504 = vsel %vm436, %v1495, 0
        %v1507 = vsel %vm436, %v1496, 0
        %v1510 = vsel %vm436, %v1497, 0
        %v1513 = vsel %vm485, %v1499, 0
        %1515 = vmatpush.bf16.msra.mxu0 0
        %1516 = vmatpush.bf16.msra.mxu0 0
        %1517 = vmatpush.bf16.msra.mxu0 0
        %1518 = vmatpush.bf16.msra.mxu0 0
        %1519 = vmatpush.bf16.msra.mxu0 0
        %1520 = vmatpush.bf16.msra.mxu0 0
        %1521 = vmatpush.bf16.msra.mxu0 0
        %1522 = vmatpush.bf16.msra.mxu0 %v1513
        %1523 = vmatmul.bf16.gmra.mxu0 %v603
        %v1524 = vpop.f32.mrf.mxu0
        %v1525 = vadd.f32 0.0, %v1524
        %v1526 = vpop.f32.mrf.mxu0
        %v1527 = vadd.f32 0.0, %v1526
        %1528 = vmatmul.bf16.gmra.mxu0 %v606
        %v1529 = vpop.f32.mrf.mxu0
        %v1530 = vadd.f32 0.0, %v1529
        %v1531 = vpop.f32.mrf.mxu0
        %v1532 = vadd.f32 0.0, %v1531
        %1533 = vmatmul.bf16.gmra.mxu0 %v609
        %v1534 = vpop.f32.mrf.mxu0
        %v1535 = vadd.f32 0.0, %v1534
        %v1536 = vpop.f32.mrf.mxu0
        %v1537 = vadd.f32 0.0, %v1536
        %1538 = vmatmul.bf16.gmra.mxu0 %v612
        %v1539 = vpop.f32.mrf.mxu0
        %v1540 = vadd.f32 0.0, %v1539
        %v1541 = vpop.f32.mrf.mxu0
        %v1542 = vadd.f32 0.0, %v1541
        %1543 = vmatmul.bf16.gmra.mxu0 %v615
        %v1544 = vpop.f32.mrf.mxu0
        %v1545 = vadd.f32 0.0, %v1544
        %v1546 = vpop.f32.mrf.mxu0
        %v1547 = vadd.f32 0.0, %v1546
        %1548 = vmatmul.bf16.gmra.mxu0 %v618
        %v1549 = vpop.f32.mrf.mxu0
        %v1550 = vadd.f32 0.0, %v1549
        %v1551 = vpop.f32.mrf.mxu0
        %v1552 = vadd.f32 0.0, %v1551
        %1553 = vmatmul.bf16.gmra.mxu0 %v621
        %v1554 = vpop.f32.mrf.mxu0
        %v1555 = vadd.f32 0.0, %v1554
        %v1556 = vpop.f32.mrf.mxu0
        %v1557 = vadd.f32 0.0, %v1556
        %1558 = vmatmul.bf16.gmra.mxu0 %v624
        %v1559 = vpop.f32.mrf.mxu0
        %v1560 = vadd.f32 0.0, %v1559
        %v1561 = vpop.f32.mrf.mxu0
        %v1562 = vadd.f32 0.0, %v1561
        %1563 = vmatmul.bf16.gmra.mxu0 %v1016
        %v1564 = vpop.f32.mrf.mxu0
        %v1565 = vadd.f32 0.0, %v1564
        %v1566 = vpop.f32.mrf.mxu0
        %v1567 = vadd.f32 0.0, %v1566
        %1568 = vmatmul.bf16.gmra.mxu0 %v1019
        %v1569 = vpop.f32.mrf.mxu0
        %v1570 = vadd.f32 0.0, %v1569
        %v1571 = vpop.f32.mrf.mxu0
        %v1572 = vadd.f32 0.0, %v1571
        %1573 = vmatmul.bf16.gmra.mxu0 %v1022
        %v1574 = vpop.f32.mrf.mxu0
        %v1575 = vadd.f32 0.0, %v1574
        %v1576 = vpop.f32.mrf.mxu0
        %v1577 = vadd.f32 0.0, %v1576
        %1578 = vmatmul.bf16.gmra.mxu0 %v1025
        %v1579 = vpop.f32.mrf.mxu0
        %v1580 = vadd.f32 0.0, %v1579
        %v1581 = vpop.f32.mrf.mxu0
        %v1582 = vadd.f32 0.0, %v1581
        %1583 = vmatmul.bf16.gmra.mxu0 %v1501
        %v1584 = vpop.f32.mrf.mxu0
        %v1585 = vadd.f32 0.0, %v1584
        %v1586 = vpop.f32.mrf.mxu0
        %v1587 = vadd.f32 0.0, %v1586
        %1588 = vmatmul.bf16.gmra.mxu0 %v1504
        %v1589 = vpop.f32.mrf.mxu0
        %v1590 = vadd.f32 0.0, %v1589
        %v1591 = vpop.f32.mrf.mxu0
        %v1592 = vadd.f32 0.0, %v1591
        %1593 = vmatmul.bf16.gmra.mxu0 %v1507
        %v1594 = vpop.f32.mrf.mxu0
        %v1595 = vadd.f32 0.0, %v1594
        %v1596 = vpop.f32.mrf.mxu0
        %v1597 = vadd.f32 0.0, %v1596
        %1598 = vmatmul.bf16.gmra.mxu0 %v1510
        %v1599 = vpop.f32.mrf.mxu0
        %v1600 = vadd.f32 0.0, %v1599
        %v1601 = vpop.f32.mrf.mxu0
        %v1602 = vadd.f32 0.0, %v1601
        %1603 = vdwg.mxu0
        %v1604 = vadd.f32 %v1462, %v1525
        %v1605 = vadd.f32 %v1463, %v1527
        %v1606 = vadd.f32 %v1464, %v1530
        %v1607 = vadd.f32 %v1465, %v1532
        %v1608 = vadd.f32 %v1466, %v1535
        %v1609 = vadd.f32 %v1467, %v1537
        %v1610 = vadd.f32 %v1468, %v1540
        %v1611 = vadd.f32 %v1469, %v1542
        %v1612 = vadd.f32 %v1470, %v1545
        %v1613 = vadd.f32 %v1471, %v1547
        %v1614 = vadd.f32 %v1472, %v1550
        %v1615 = vadd.f32 %v1473, %v1552
        %v1616 = vadd.f32 %v1474, %v1555
        %v1617 = vadd.f32 %v1475, %v1557
        %v1618 = vadd.f32 %v1476, %v1560
        %v1619 = vadd.f32 %v1477, %v1562
        %v1620 = vadd.f32 %v1478, %v1565
        %v1621 = vadd.f32 %v1479, %v1567
        %v1622 = vadd.f32 %v1480, %v1570
        %v1623 = vadd.f32 %v1481, %v1572
        %v1624 = vadd.f32 %v1482, %v1575
        %v1625 = vadd.f32 %v1483, %v1577
        %v1626 = vadd.f32 %v1484, %v1580
        %v1627 = vadd.f32 %v1485, %v1582
        %v1628 = vadd.f32 %v1486, %v1585
        %v1629 = vadd.f32 %v1487, %v1587
        %v1630 = vadd.f32 %v1488, %v1590
        %v1631 = vadd.f32 %v1489, %v1592
        %v1632 = vadd.f32 %v1490, %v1595
        %v1633 = vadd.f32 %v1491, %v1597
        %v1634 = vadd.f32 %v1492, %v1600
        %v1635 = vadd.f32 %v1493, %v1602
        %v1645 = vrot.slane %v255, 1
        %v1646 = vrot.slane %v256, 1
        %v1647 = vsel %vm317, %v1645, %v1646
        %v1648 = vrot.slane %v257, 1
        %v1649 = vsel %vm317, %v1646, %v1648
        %v1650 = vrot.slane %v258, 1
        %v1651 = vsel %vm317, %v1648, %v1650
        %v1652 = vrot.slane %v259, 1
        %v1653 = vsel %vm317, %v1650, %v1652
        %v1654 = vrot.slane %v260, 1
        %v1655 = vsel %vm317, %v1652, %v1654
        %v1656 = vrot.slane %v261, 1
        %v1657 = vsel %vm317, %v1654, %v1656
        %v1658 = vrot.slane %v262, 1
        %v1659 = vsel %vm317, %v1656, %v1658
        %v1660 = vrot.slane %v263, 1
        %v1661 = vsel %vm317, %v1658, %v1660
        %v1670 = vpack.c.bf16 %v1649, %v1647
        %v1671 = vpack.c.bf16 %v1653, %v1651
        %v1672 = vpack.c.bf16 %v1657, %v1655
        %v1673 = vpack.c.bf16 %v1661, %v1659
        %s1674 = scalar_lea.vmem %s1, 28
        %v1675 = vld [vmem:[%s1674] sm:$0xf]
        %v1677 = vsel %vm436, %v1670, 0
        %v1680 = vsel %vm436, %v1671, 0
        %v1683 = vsel %vm436, %v1672, 0
        %v1686 = vsel %vm436, %v1673, 0
        %v1689 = vsel %vm485, %v1675, 0
        %1691 = vmatpush.bf16.msra.mxu0 0
        %1692 = vmatpush.bf16.msra.mxu0 0
        %1693 = vmatpush.bf16.msra.mxu0 0
        %1694 = vmatpush.bf16.msra.mxu0 0
        %1695 = vmatpush.bf16.msra.mxu0 0
        %1696 = vmatpush.bf16.msra.mxu0 0
        %1697 = vmatpush.bf16.msra.mxu0 0
        %1698 = vmatpush.bf16.msra.mxu0 %v1689
        %1699 = vmatmul.bf16.gmra.mxu0 %v462
        %v1700 = vpop.f32.mrf.mxu0
        %v1701 = vadd.f32 0.0, %v1700
        %v1702 = vpop.f32.mrf.mxu0
        %v1703 = vadd.f32 0.0, %v1702
        %1704 = vmatmul.bf16.gmra.mxu0 %v465
        %v1705 = vpop.f32.mrf.mxu0
        %v1706 = vadd.f32 0.0, %v1705
        %v1707 = vpop.f32.mrf.mxu0
        %v1708 = vadd.f32 0.0, %v1707
        %1709 = vmatmul.bf16.gmra.mxu0 %v468
        %v1710 = vpop.f32.mrf.mxu0
        %v1711 = vadd.f32 0.0, %v1710
        %v1712 = vpop.f32.mrf.mxu0
        %v1713 = vadd.f32 0.0, %v1712
        %1714 = vmatmul.bf16.gmra.mxu0 %v471
        %v1715 = vpop.f32.mrf.mxu0
        %v1716 = vadd.f32 0.0, %v1715
        %v1717 = vpop.f32.mrf.mxu0
        %v1718 = vadd.f32 0.0, %v1717
        %1719 = vmatmul.bf16.gmra.mxu0 %v474
        %v1720 = vpop.f32.mrf.mxu0
        %v1721 = vadd.f32 0.0, %v1720
        %v1722 = vpop.f32.mrf.mxu0
        %v1723 = vadd.f32 0.0, %v1722
        %1724 = vmatmul.bf16.gmra.mxu0 %v477
        %v1725 = vpop.f32.mrf.mxu0
        %v1726 = vadd.f32 0.0, %v1725
        %v1727 = vpop.f32.mrf.mxu0
        %v1728 = vadd.f32 0.0, %v1727
        %1729 = vmatmul.bf16.gmra.mxu0 %v480
        %v1730 = vpop.f32.mrf.mxu0
        %v1731 = vadd.f32 0.0, %v1730
        %v1732 = vpop.f32.mrf.mxu0
        %v1733 = vadd.f32 0.0, %v1732
        %1734 = vmatmul.bf16.gmra.mxu0 %v483
        %v1735 = vpop.f32.mrf.mxu0
        %v1736 = vadd.f32 0.0, %v1735
        %v1737 = vpop.f32.mrf.mxu0
        %v1738 = vadd.f32 0.0, %v1737
        %1739 = vmatmul.bf16.gmra.mxu0 %v1192
        %v1740 = vpop.f32.mrf.mxu0
        %v1741 = vadd.f32 0.0, %v1740
        %v1742 = vpop.f32.mrf.mxu0
        %v1743 = vadd.f32 0.0, %v1742
        %1744 = vmatmul.bf16.gmra.mxu0 %v1195
        %v1745 = vpop.f32.mrf.mxu0
        %v1746 = vadd.f32 0.0, %v1745
        %v1747 = vpop.f32.mrf.mxu0
        %v1748 = vadd.f32 0.0, %v1747
        %1749 = vmatmul.bf16.gmra.mxu0 %v1198
        %v1750 = vpop.f32.mrf.mxu0
        %v1751 = vadd.f32 0.0, %v1750
        %v1752 = vpop.f32.mrf.mxu0
        %v1753 = vadd.f32 0.0, %v1752
        %1754 = vmatmul.bf16.gmra.mxu0 %v1201
        %v1755 = vpop.f32.mrf.mxu0
        %v1756 = vadd.f32 0.0, %v1755
        %v1757 = vpop.f32.mrf.mxu0
        %v1758 = vadd.f32 0.0, %v1757
        %1759 = vmatmul.bf16.gmra.mxu0 %v1677
        %v1760 = vpop.f32.mrf.mxu0
        %v1761 = vadd.f32 0.0, %v1760
        %v1762 = vpop.f32.mrf.mxu0
        %v1763 = vadd.f32 0.0, %v1762
        %1764 = vmatmul.bf16.gmra.mxu0 %v1680
        %v1765 = vpop.f32.mrf.mxu0
        %v1766 = vadd.f32 0.0, %v1765
        %v1767 = vpop.f32.mrf.mxu0
        %v1768 = vadd.f32 0.0, %v1767
        %1769 = vmatmul.bf16.gmra.mxu0 %v1683
        %v1770 = vpop.f32.mrf.mxu0
        %v1771 = vadd.f32 0.0, %v1770
        %v1772 = vpop.f32.mrf.mxu0
        %v1773 = vadd.f32 0.0, %v1772
        %1774 = vmatmul.bf16.gmra.mxu0 %v1686
        %v1775 = vpop.f32.mrf.mxu0
        %v1776 = vadd.f32 0.0, %v1775
        %v1777 = vpop.f32.mrf.mxu0
        %v1778 = vadd.f32 0.0, %v1777
        %1779 = vdwg.mxu0
        %v1780 = vadd.f32 %v1604, %v1701
        %v1781 = vadd.f32 %v1605, %v1703
        %v1782 = vadd.f32 %v1606, %v1706
        %v1783 = vadd.f32 %v1607, %v1708
        %v1784 = vadd.f32 %v1608, %v1711
        %v1785 = vadd.f32 %v1609, %v1713
        %v1786 = vadd.f32 %v1610, %v1716
        %v1787 = vadd.f32 %v1611, %v1718
        %v1788 = vadd.f32 %v1612, %v1721
        %v1789 = vadd.f32 %v1613, %v1723
        %v1790 = vadd.f32 %v1614, %v1726
        %v1791 = vadd.f32 %v1615, %v1728
        %v1792 = vadd.f32 %v1616, %v1731
        %v1793 = vadd.f32 %v1617, %v1733
        %v1794 = vadd.f32 %v1618, %v1736
        %v1795 = vadd.f32 %v1619, %v1738
        %v1796 = vadd.f32 %v1620, %v1741
        %v1797 = vadd.f32 %v1621, %v1743
        %v1798 = vadd.f32 %v1622, %v1746
        %v1799 = vadd.f32 %v1623, %v1748
        %v1800 = vadd.f32 %v1624, %v1751
        %v1801 = vadd.f32 %v1625, %v1753
        %v1802 = vadd.f32 %v1626, %v1756
        %v1803 = vadd.f32 %v1627, %v1758
        %v1804 = vadd.f32 %v1628, %v1761
        %v1805 = vadd.f32 %v1629, %v1763
        %v1806 = vadd.f32 %v1630, %v1766
        %v1807 = vadd.f32 %v1631, %v1768
        %v1808 = vadd.f32 %v1632, %v1771
        %v1809 = vadd.f32 %v1633, %v1773
        %v1810 = vadd.f32 %v1634, %v1776
        %v1811 = vadd.f32 %v1635, %v1778
        %v1812 = vrot.slane %v255, 2
        %v1813 = vrot.slane %v256, 2
        %v1814 = vsel %vm718, %v1812, %v1813
        %v1815 = vrot.slane %v257, 2
        %v1816 = vsel %vm718, %v1813, %v1815
        %v1817 = vrot.slane %v258, 2
        %v1818 = vsel %vm718, %v1815, %v1817
        %v1819 = vrot.slane %v259, 2
        %v1820 = vsel %vm718, %v1817, %v1819
        %v1821 = vrot.slane %v260, 2
        %v1822 = vsel %vm718, %v1819, %v1821
        %v1823 = vrot.slane %v261, 2
        %v1824 = vsel %vm718, %v1821, %v1823
        %v1825 = vrot.slane %v262, 2
        %v1826 = vsel %vm718, %v1823, %v1825
        %v1827 = vrot.slane %v263, 2
        %v1828 = vsel %vm718, %v1825, %v1827
        %v1837 = vpack.c.bf16 %v1816, %v1814
        %v1838 = vpack.c.bf16 %v1820, %v1818
        %v1839 = vpack.c.bf16 %v1824, %v1822
        %v1840 = vpack.c.bf16 %v1828, %v1826
        %s1841 = scalar_lea.vmem %s1, 32
        %v1842 = vld [vmem:[%s1841] sm:$0xf]
        %v1844 = vsel %vm436, %v1837, 0
        %v1847 = vsel %vm436, %v1838, 0
        %v1850 = vsel %vm436, %v1839, 0
        %v1853 = vsel %vm436, %v1840, 0
        %v1856 = vsel %vm485, %v1842, 0
        %1858 = vmatpush.bf16.msra.mxu0 0
        %1859 = vmatpush.bf16.msra.mxu0 0
        %1860 = vmatpush.bf16.msra.mxu0 0
        %1861 = vmatpush.bf16.msra.mxu0 0
        %1862 = vmatpush.bf16.msra.mxu0 0
        %1863 = vmatpush.bf16.msra.mxu0 0
        %1864 = vmatpush.bf16.msra.mxu0 0
        %1865 = vmatpush.bf16.msra.mxu0 %v1856
        %1866 = vmatmul.bf16.gmra.mxu0 %v862
        %v1867 = vpop.f32.mrf.mxu0
        %v1868 = vadd.f32 0.0, %v1867
        %v1869 = vpop.f32.mrf.mxu0
        %v1870 = vadd.f32 0.0, %v1869
        %1871 = vmatmul.bf16.gmra.mxu0 %v865
        %v1872 = vpop.f32.mrf.mxu0
        %v1873 = vadd.f32 0.0, %v1872
        %v1874 = vpop.f32.mrf.mxu0
        %v1875 = vadd.f32 0.0, %v1874
        %1876 = vmatmul.bf16.gmra.mxu0 %v868
        %v1877 = vpop.f32.mrf.mxu0
        %v1878 = vadd.f32 0.0, %v1877
        %v1879 = vpop.f32.mrf.mxu0
        %v1880 = vadd.f32 0.0, %v1879
        %1881 = vmatmul.bf16.gmra.mxu0 %v871
        %v1882 = vpop.f32.mrf.mxu0
        %v1883 = vadd.f32 0.0, %v1882
        %v1884 = vpop.f32.mrf.mxu0
        %v1885 = vadd.f32 0.0, %v1884
        %1886 = vmatmul.bf16.gmra.mxu0 %v874
        %v1887 = vpop.f32.mrf.mxu0
        %v1888 = vadd.f32 0.0, %v1887
        %v1889 = vpop.f32.mrf.mxu0
        %v1890 = vadd.f32 0.0, %v1889
        %1891 = vmatmul.bf16.gmra.mxu0 %v877
        %v1892 = vpop.f32.mrf.mxu0
        %v1893 = vadd.f32 0.0, %v1892
        %v1894 = vpop.f32.mrf.mxu0
        %v1895 = vadd.f32 0.0, %v1894
        %1896 = vmatmul.bf16.gmra.mxu0 %v880
        %v1897 = vpop.f32.mrf.mxu0
        %v1898 = vadd.f32 0.0, %v1897
        %v1899 = vpop.f32.mrf.mxu0
        %v1900 = vadd.f32 0.0, %v1899
        %1901 = vmatmul.bf16.gmra.mxu0 %v883
        %v1902 = vpop.f32.mrf.mxu0
        %v1903 = vadd.f32 0.0, %v1902
        %v1904 = vpop.f32.mrf.mxu0
        %v1905 = vadd.f32 0.0, %v1904
        %1906 = vmatmul.bf16.gmra.mxu0 %v1359
        %v1907 = vpop.f32.mrf.mxu0
        %v1908 = vadd.f32 0.0, %v1907
        %v1909 = vpop.f32.mrf.mxu0
        %v1910 = vadd.f32 0.0, %v1909
        %1911 = vmatmul.bf16.gmra.mxu0 %v1362
        %v1912 = vpop.f32.mrf.mxu0
        %v1913 = vadd.f32 0.0, %v1912
        %v1914 = vpop.f32.mrf.mxu0
        %v1915 = vadd.f32 0.0, %v1914
        %1916 = vmatmul.bf16.gmra.mxu0 %v1365
        %v1917 = vpop.f32.mrf.mxu0
        %v1918 = vadd.f32 0.0, %v1917
        %v1919 = vpop.f32.mrf.mxu0
        %v1920 = vadd.f32 0.0, %v1919
        %1921 = vmatmul.bf16.gmra.mxu0 %v1368
        %v1922 = vpop.f32.mrf.mxu0
        %v1923 = vadd.f32 0.0, %v1922
        %v1924 = vpop.f32.mrf.mxu0
        %v1925 = vadd.f32 0.0, %v1924
        %1926 = vmatmul.bf16.gmra.mxu0 %v1844
        %v1927 = vpop.f32.mrf.mxu0
        %v1928 = vadd.f32 0.0, %v1927
        %v1929 = vpop.f32.mrf.mxu0
        %v1930 = vadd.f32 0.0, %v1929
        %1931 = vmatmul.bf16.gmra.mxu0 %v1847
        %v1932 = vpop.f32.mrf.mxu0
        %v1933 = vadd.f32 0.0, %v1932
        %v1934 = vpop.f32.mrf.mxu0
        %v1935 = vadd.f32 0.0, %v1934
        %1936 = vmatmul.bf16.gmra.mxu0 %v1850
        %v1937 = vpop.f32.mrf.mxu0
        %v1938 = vadd.f32 0.0, %v1937
        %v1939 = vpop.f32.mrf.mxu0
        %v1940 = vadd.f32 0.0, %v1939
        %1941 = vmatmul.bf16.gmra.mxu0 %v1853
        %v1942 = vpop.f32.mrf.mxu0
        %v1943 = vadd.f32 0.0, %v1942
        %v1944 = vpop.f32.mrf.mxu0
        %v1945 = vadd.f32 0.0, %v1944
        %1946 = vdwg.mxu0
        %v1947 = vadd.f32 %v1780, %v1868
        %v1948 = vadd.f32 %v1781, %v1870
        %v1949 = vadd.f32 %v1782, %v1873
        %v1950 = vadd.f32 %v1783, %v1875
        %v1951 = vadd.f32 %v1784, %v1878
        %v1952 = vadd.f32 %v1785, %v1880
        %v1953 = vadd.f32 %v1786, %v1883
        %v1954 = vadd.f32 %v1787, %v1885
        %v1955 = vadd.f32 %v1788, %v1888
        %v1956 = vadd.f32 %v1789, %v1890
        %v1957 = vadd.f32 %v1790, %v1893
        %v1958 = vadd.f32 %v1791, %v1895
        %v1959 = vadd.f32 %v1792, %v1898
        %v1960 = vadd.f32 %v1793, %v1900
        %v1961 = vadd.f32 %v1794, %v1903
        %v1962 = vadd.f32 %v1795, %v1905
        %v1963 = vadd.f32 %v1796, %v1908
        %v1964 = vadd.f32 %v1797, %v1910
        %v1965 = vadd.f32 %v1798, %v1913
        %v1966 = vadd.f32 %v1799, %v1915
        %v1967 = vadd.f32 %v1800, %v1918
        %v1968 = vadd.f32 %v1801, %v1920
        %v1969 = vadd.f32 %v1802, %v1923
        %v1970 = vadd.f32 %v1803, %v1925
        %v1971 = vadd.f32 %v1804, %v1928
        %v1972 = vadd.f32 %v1805, %v1930
        %v1973 = vadd.f32 %v1806, %v1933
        %v1974 = vadd.f32 %v1807, %v1935
        %v1975 = vadd.f32 %v1808, %v1938
        %v1976 = vadd.f32 %v1809, %v1940
        %v1977 = vadd.f32 %v1810, %v1943
        %v1978 = vadd.f32 %v1811, %v1945
        %v1980 = vperm.slane %v199, 0
        %v1982 = vmul.f32 %v1947, %v1980
        %v1983 = vmul.f32 %v1948, %v1980
        %v1984 = vmul.f32 %v1949, %v1980
        %v1985 = vmul.f32 %v1950, %v1980
        %v1986 = vmul.f32 %v1951, %v1980
        %v1987 = vmul.f32 %v1952, %v1980
        %v1988 = vmul.f32 %v1953, %v1980
        %v1989 = vmul.f32 %v1954, %v1980
        %v1990 = vmul.f32 %v1955, %v1980
        %v1991 = vmul.f32 %v1956, %v1980
        %v1992 = vmul.f32 %v1957, %v1980
        %v1993 = vmul.f32 %v1958, %v1980
        %v1994 = vmul.f32 %v1959, %v1980
        %v1995 = vmul.f32 %v1960, %v1980
        %v1996 = vmul.f32 %v1961, %v1980
        %v1997 = vmul.f32 %v1962, %v1980
        %v1998 = vmul.f32 %v1963, %v1980
        %v1999 = vmul.f32 %v1964, %v1980
        %v2000 = vmul.f32 %v1965, %v1980
        %v2001 = vmul.f32 %v1966, %v1980
        %v2002 = vmul.f32 %v1967, %v1980
        %v2003 = vmul.f32 %v1968, %v1980
        %v2004 = vmul.f32 %v1969, %v1980
        %v2005 = vmul.f32 %v1970, %v1980
        %v2006 = vmul.f32 %v1971, %v1980
        %v2007 = vmul.f32 %v1972, %v1980
        %v2008 = vmul.f32 %v1973, %v1980
        %v2009 = vmul.f32 %v1974, %v1980
        %v2010 = vmul.f32 %v1975, %v1980
        %v2011 = vmul.f32 %v1976, %v1980
        %v2012 = vmul.f32 %v1977, %v1980
        %v2013 = vmul.f32 %v1978, %v1980
        %v2015 = vperm.slane %v200, 0
        %v2017 = vadd.f32 %v1982, %v2015
        %v2018 = vadd.f32 %v1983, %v2015
        %v2019 = vadd.f32 %v1984, %v2015
        %v2020 = vadd.f32 %v1985, %v2015
        %v2021 = vadd.f32 %v1986, %v2015
        %v2022 = vadd.f32 %v1987, %v2015
        %v2023 = vadd.f32 %v1988, %v2015
        %v2024 = vadd.f32 %v1989, %v2015
        %v2025 = vadd.f32 %v1990, %v2015
        %v2026 = vadd.f32 %v1991, %v2015
        %v2027 = vadd.f32 %v1992, %v2015
        %v2028 = vadd.f32 %v1993, %v2015
        %v2029 = vadd.f32 %v1994, %v2015
        %v2030 = vadd.f32 %v1995, %v2015
        %v2031 = vadd.f32 %v1996, %v2015
        %v2032 = vadd.f32 %v1997, %v2015
        %v2033 = vadd.f32 %v1998, %v2015
        %v2034 = vadd.f32 %v1999, %v2015
        %v2035 = vadd.f32 %v2000, %v2015
        %v2036 = vadd.f32 %v2001, %v2015
        %v2037 = vadd.f32 %v2002, %v2015
        %v2038 = vadd.f32 %v2003, %v2015
        %v2039 = vadd.f32 %v2004, %v2015
        %v2040 = vadd.f32 %v2005, %v2015
        %v2041 = vadd.f32 %v2006, %v2015
        %v2042 = vadd.f32 %v2007, %v2015
        %v2043 = vadd.f32 %v2008, %v2015
        %v2044 = vadd.f32 %v2009, %v2015
        %v2045 = vadd.f32 %v2010, %v2015
        %v2046 = vadd.f32 %v2011, %v2015
        %v2047 = vadd.f32 %v2012, %v2015
        %v2048 = vadd.f32 %v2013, %v2015
        %v2081 = vrot.slane %v2017, 2
        %v2082 = vrot.slane %v2017, 4
        %v2083 = vrot.slane %v2017, 6
        %v2084 = vrot.slane %v2018, 2
        %v2085 = vrot.slane %v2018, 4
        %v2086 = vrot.slane %v2018, 6
        %v2087 = vrot.slane %v2019, 2
        %v2088 = vrot.slane %v2019, 4
        %v2089 = vrot.slane %v2019, 6
        %v2090 = vrot.slane %v2020, 2
        %v2091 = vrot.slane %v2020, 4
        %v2092 = vrot.slane %v2020, 6
        %v2093 = vrot.slane %v2021, 2
        %v2094 = vrot.slane %v2021, 4
        %v2095 = vrot.slane %v2021, 6
        %v2096 = vrot.slane %v2022, 2
        %v2097 = vrot.slane %v2022, 4
        %v2098 = vrot.slane %v2022, 6
        %v2099 = vrot.slane %v2023, 2
        %v2100 = vrot.slane %v2023, 4
        %v2101 = vrot.slane %v2023, 6
        %v2102 = vrot.slane %v2024, 2
        %v2103 = vrot.slane %v2024, 4
        %v2104 = vrot.slane %v2024, 6
        %v2105 = vrot.slane %v2025, 2
        %v2106 = vrot.slane %v2025, 4
        %v2107 = vrot.slane %v2025, 6
        %v2108 = vrot.slane %v2026, 2
        %v2109 = vrot.slane %v2026, 4
        %v2110 = vrot.slane %v2026, 6
        %v2111 = vrot.slane %v2027, 2
        %v2112 = vrot.slane %v2027, 4
        %v2113 = vrot.slane %v2027, 6
        %v2114 = vrot.slane %v2028, 2
        %v2115 = vrot.slane %v2028, 4
        %v2116 = vrot.slane %v2028, 6
        %v2117 = vrot.slane %v2029, 2
        %v2118 = vrot.slane %v2029, 4
        %v2119 = vrot.slane %v2029, 6
        %v2120 = vrot.slane %v2030, 2
        %v2121 = vrot.slane %v2030, 4
        %v2122 = vrot.slane %v2030, 6
        %v2123 = vrot.slane %v2031, 2
        %v2124 = vrot.slane %v2031, 4
        %v2125 = vrot.slane %v2031, 6
        %v2126 = vrot.slane %v2032, 2
        %v2127 = vrot.slane %v2032, 4
        %v2128 = vrot.slane %v2032, 6
        %v2129 = vrot.slane %v2033, 2
        %v2130 = vrot.slane %v2033, 4
        %v2131 = vrot.slane %v2033, 6
        %v2132 = vrot.slane %v2034, 2
        %v2133 = vrot.slane %v2034, 4
        %v2134 = vrot.slane %v2034, 6
        %v2135 = vrot.slane %v2035, 2
        %v2136 = vrot.slane %v2035, 4
        %v2137 = vrot.slane %v2035, 6
        %v2138 = vrot.slane %v2036, 2
        %v2139 = vrot.slane %v2036, 4
        %v2140 = vrot.slane %v2036, 6
        %v2141 = vrot.slane %v2037, 2
        %v2142 = vrot.slane %v2037, 4
        %v2143 = vrot.slane %v2037, 6
        %v2144 = vrot.slane %v2038, 2
        %v2145 = vrot.slane %v2038, 4
        %v2146 = vrot.slane %v2038, 6
        %v2147 = vrot.slane %v2039, 2
        %v2148 = vrot.slane %v2039, 4
        %v2149 = vrot.slane %v2039, 6
        %v2150 = vrot.slane %v2040, 2
        %v2151 = vrot.slane %v2040, 4
        %v2152 = vrot.slane %v2040, 6
        %v2153 = vrot.slane %v2041, 2
        %v2154 = vrot.slane %v2041, 4
        %v2155 = vrot.slane %v2041, 6
        %v2156 = vrot.slane %v2042, 2
        %v2157 = vrot.slane %v2042, 4
        %v2158 = vrot.slane %v2042, 6
        %v2159 = vrot.slane %v2043, 2
        %v2160 = vrot.slane %v2043, 4
        %v2161 = vrot.slane %v2043, 6
        %v2162 = vrot.slane %v2044, 2
        %v2163 = vrot.slane %v2044, 4
        %v2164 = vrot.slane %v2044, 6
        %v2165 = vrot.slane %v2045, 2
        %v2166 = vrot.slane %v2045, 4
        %v2167 = vrot.slane %v2045, 6
        %v2168 = vrot.slane %v2046, 2
        %v2169 = vrot.slane %v2046, 4
        %v2170 = vrot.slane %v2046, 6
        %v2171 = vrot.slane %v2047, 2
        %v2172 = vrot.slane %v2047, 4
        %v2173 = vrot.slane %v2047, 6
        %v2174 = vrot.slane %v2048, 2
        %v2175 = vrot.slane %v2048, 4
        %v2176 = vrot.slane %v2048, 6
        %v2273 = vrot.slane %v2017, 7
        %v2274 = vrot.slane %v2273, 2
        %v2275 = vrot.slane %v2081, 7
        %v2276 = vrot.slane %v2275, 2
        %v2277 = vrot.slane %v2082, 7
        %v2278 = vrot.slane %v2277, 2
        %v2279 = vrot.slane %v2083, 7
        %v2280 = vrot.slane %v2279, 2
        %v2281 = vrot.slane %v2018, 7
        %v2282 = vrot.slane %v2281, 2
        %v2283 = vrot.slane %v2084, 7
        %v2284 = vrot.slane %v2283, 2
        %v2285 = vrot.slane %v2085, 7
        %v2286 = vrot.slane %v2285, 2
        %v2287 = vrot.slane %v2086, 7
        %v2288 = vrot.slane %v2287, 2
        %v2289 = vrot.slane %v2019, 7
        %v2290 = vrot.slane %v2289, 2
        %v2291 = vrot.slane %v2087, 7
        %v2292 = vrot.slane %v2291, 2
        %v2293 = vrot.slane %v2088, 7
        %v2294 = vrot.slane %v2293, 2
        %v2295 = vrot.slane %v2089, 7
        %v2296 = vrot.slane %v2295, 2
        %v2297 = vrot.slane %v2020, 7
        %v2298 = vrot.slane %v2297, 2
        %v2299 = vrot.slane %v2090, 7
        %v2300 = vrot.slane %v2299, 2
        %v2301 = vrot.slane %v2091, 7
        %v2302 = vrot.slane %v2301, 2
        %v2303 = vrot.slane %v2092, 7
        %v2304 = vrot.slane %v2303, 2
        %v2305 = vrot.slane %v2021, 7
        %v2306 = vrot.slane %v2305, 2
        %v2307 = vrot.slane %v2093, 7
        %v2308 = vrot.slane %v2307, 2
        %v2309 = vrot.slane %v2094, 7
        %v2310 = vrot.slane %v2309, 2
        %v2311 = vrot.slane %v2095, 7
        %v2312 = vrot.slane %v2311, 2
        %v2313 = vrot.slane %v2022, 7
        %v2314 = vrot.slane %v2313, 2
        %v2315 = vrot.slane %v2096, 7
        %v2316 = vrot.slane %v2315, 2
        %v2317 = vrot.slane %v2097, 7
        %v2318 = vrot.slane %v2317, 2
        %v2319 = vrot.slane %v2098, 7
        %v2320 = vrot.slane %v2319, 2
        %v2321 = vrot.slane %v2023, 7
        %v2322 = vrot.slane %v2321, 2
        %v2323 = vrot.slane %v2099, 7
        %v2324 = vrot.slane %v2323, 2
        %v2325 = vrot.slane %v2100, 7
        %v2326 = vrot.slane %v2325, 2
        %v2327 = vrot.slane %v2101, 7
        %v2328 = vrot.slane %v2327, 2
        %v2329 = vrot.slane %v2024, 7
        %v2330 = vrot.slane %v2329, 2
        %v2331 = vrot.slane %v2102, 7
        %v2332 = vrot.slane %v2331, 2
        %v2333 = vrot.slane %v2103, 7
        %v2334 = vrot.slane %v2333, 2
        %v2335 = vrot.slane %v2104, 7
        %v2336 = vrot.slane %v2335, 2
        %v2337 = vrot.slane %v2025, 7
        %v2338 = vrot.slane %v2337, 2
        %v2339 = vrot.slane %v2105, 7
        %v2340 = vrot.slane %v2339, 2
        %v2341 = vrot.slane %v2106, 7
        %v2342 = vrot.slane %v2341, 2
        %v2343 = vrot.slane %v2107, 7
        %v2344 = vrot.slane %v2343, 2
        %v2345 = vrot.slane %v2026, 7
        %v2346 = vrot.slane %v2345, 2
        %v2347 = vrot.slane %v2108, 7
        %v2348 = vrot.slane %v2347, 2
        %v2349 = vrot.slane %v2109, 7
        %v2350 = vrot.slane %v2349, 2
        %v2351 = vrot.slane %v2110, 7
        %v2352 = vrot.slane %v2351, 2
        %v2353 = vrot.slane %v2027, 7
        %v2354 = vrot.slane %v2353, 2
        %v2355 = vrot.slane %v2111, 7
        %v2356 = vrot.slane %v2355, 2
        %v2357 = vrot.slane %v2112, 7
        %v2358 = vrot.slane %v2357, 2
        %v2359 = vrot.slane %v2113, 7
        %v2360 = vrot.slane %v2359, 2
        %v2361 = vrot.slane %v2028, 7
        %v2362 = vrot.slane %v2361, 2
        %v2363 = vrot.slane %v2114, 7
        %v2364 = vrot.slane %v2363, 2
        %v2365 = vrot.slane %v2115, 7
        %v2366 = vrot.slane %v2365, 2
        %v2367 = vrot.slane %v2116, 7
        %v2368 = vrot.slane %v2367, 2
        %v2369 = vrot.slane %v2029, 7
        %v2370 = vrot.slane %v2369, 2
        %v2371 = vrot.slane %v2117, 7
        %v2372 = vrot.slane %v2371, 2
        %v2373 = vrot.slane %v2118, 7
        %v2374 = vrot.slane %v2373, 2
        %v2375 = vrot.slane %v2119, 7
        %v2376 = vrot.slane %v2375, 2
        %v2377 = vrot.slane %v2030, 7
        %v2378 = vrot.slane %v2377, 2
        %v2379 = vrot.slane %v2120, 7
        %v2380 = vrot.slane %v2379, 2
        %v2381 = vrot.slane %v2121, 7
        %v2382 = vrot.slane %v2381, 2
        %v2383 = vrot.slane %v2122, 7
        %v2384 = vrot.slane %v2383, 2
        %v2385 = vrot.slane %v2031, 7
        %v2386 = vrot.slane %v2385, 2
        %v2387 = vrot.slane %v2123, 7
        %v2388 = vrot.slane %v2387, 2
        %v2389 = vrot.slane %v2124, 7
        %v2390 = vrot.slane %v2389, 2
        %v2391 = vrot.slane %v2125, 7
        %v2392 = vrot.slane %v2391, 2
        %v2393 = vrot.slane %v2032, 7
        %v2394 = vrot.slane %v2393, 2
        %v2395 = vrot.slane %v2126, 7
        %v2396 = vrot.slane %v2395, 2
        %v2397 = vrot.slane %v2127, 7
        %v2398 = vrot.slane %v2397, 2
        %v2399 = vrot.slane %v2128, 7
        %v2400 = vrot.slane %v2399, 2
        %v2401 = vrot.slane %v2033, 7
        %v2402 = vrot.slane %v2401, 2
        %v2403 = vrot.slane %v2129, 7
        %v2404 = vrot.slane %v2403, 2
        %v2405 = vrot.slane %v2130, 7
        %v2406 = vrot.slane %v2405, 2
        %v2407 = vrot.slane %v2131, 7
        %v2408 = vrot.slane %v2407, 2
        %v2409 = vrot.slane %v2034, 7
        %v2410 = vrot.slane %v2409, 2
        %v2411 = vrot.slane %v2132, 7
        %v2412 = vrot.slane %v2411, 2
        %v2413 = vrot.slane %v2133, 7
        %v2414 = vrot.slane %v2413, 2
        %v2415 = vrot.slane %v2134, 7
        %v2416 = vrot.slane %v2415, 2
        %v2417 = vrot.slane %v2035, 7
        %v2418 = vrot.slane %v2417, 2
        %v2419 = vrot.slane %v2135, 7
        %v2420 = vrot.slane %v2419, 2
        %v2421 = vrot.slane %v2136, 7
        %v2422 = vrot.slane %v2421, 2
        %v2423 = vrot.slane %v2137, 7
        %v2424 = vrot.slane %v2423, 2
        %v2425 = vrot.slane %v2036, 7
        %v2426 = vrot.slane %v2425, 2
        %v2427 = vrot.slane %v2138, 7
        %v2428 = vrot.slane %v2427, 2
        %v2429 = vrot.slane %v2139, 7
        %v2430 = vrot.slane %v2429, 2
        %v2431 = vrot.slane %v2140, 7
        %v2432 = vrot.slane %v2431, 2
        %v2433 = vrot.slane %v2037, 7
        %v2434 = vrot.slane %v2433, 2
        %v2435 = vrot.slane %v2141, 7
        %v2436 = vrot.slane %v2435, 2
        %v2437 = vrot.slane %v2142, 7
        %v2438 = vrot.slane %v2437, 2
        %v2439 = vrot.slane %v2143, 7
        %v2440 = vrot.slane %v2439, 2
        %v2441 = vrot.slane %v2038, 7
        %v2442 = vrot.slane %v2441, 2
        %v2443 = vrot.slane %v2144, 7
        %v2444 = vrot.slane %v2443, 2
        %v2445 = vrot.slane %v2145, 7
        %v2446 = vrot.slane %v2445, 2
        %v2447 = vrot.slane %v2146, 7
        %v2448 = vrot.slane %v2447, 2
        %v2449 = vrot.slane %v2039, 7
        %v2450 = vrot.slane %v2449, 2
        %v2451 = vrot.slane %v2147, 7
        %v2452 = vrot.slane %v2451, 2
        %v2453 = vrot.slane %v2148, 7
        %v2454 = vrot.slane %v2453, 2
        %v2455 = vrot.slane %v2149, 7
        %v2456 = vrot.slane %v2455, 2
        %v2457 = vrot.slane %v2040, 7
        %v2458 = vrot.slane %v2457, 2
        %v2459 = vrot.slane %v2150, 7
        %v2460 = vrot.slane %v2459, 2
        %v2461 = vrot.slane %v2151, 7
        %v2462 = vrot.slane %v2461, 2
        %v2463 = vrot.slane %v2152, 7
        %v2464 = vrot.slane %v2463, 2
        %v2465 = vrot.slane %v2041, 7
        %v2466 = vrot.slane %v2465, 2
        %v2467 = vrot.slane %v2153, 7
        %v2468 = vrot.slane %v2467, 2
        %v2469 = vrot.slane %v2154, 7
        %v2470 = vrot.slane %v2469, 2
        %v2471 = vrot.slane %v2155, 7
        %v2472 = vrot.slane %v2471, 2
        %v2473 = vrot.slane %v2042, 7
        %v2474 = vrot.slane %v2473, 2
        %v2475 = vrot.slane %v2156, 7
        %v2476 = vrot.slane %v2475, 2
        %v2477 = vrot.slane %v2157, 7
        %v2478 = vrot.slane %v2477, 2
        %v2479 = vrot.slane %v2158, 7
        %v2480 = vrot.slane %v2479, 2
        %v2481 = vrot.slane %v2043, 7
        %v2482 = vrot.slane %v2481, 2
        %v2483 = vrot.slane %v2159, 7
        %v2484 = vrot.slane %v2483, 2
        %v2485 = vrot.slane %v2160, 7
        %v2486 = vrot.slane %v2485, 2
        %v2487 = vrot.slane %v2161, 7
        %v2488 = vrot.slane %v2487, 2
        %v2489 = vrot.slane %v2044, 7
        %v2490 = vrot.slane %v2489, 2
        %v2491 = vrot.slane %v2162, 7
        %v2492 = vrot.slane %v2491, 2
        %v2493 = vrot.slane %v2163, 7
        %v2494 = vrot.slane %v2493, 2
        %v2495 = vrot.slane %v2164, 7
        %v2496 = vrot.slane %v2495, 2
        %v2497 = vrot.slane %v2045, 7
        %v2498 = vrot.slane %v2497, 2
        %v2499 = vrot.slane %v2165, 7
        %v2500 = vrot.slane %v2499, 2
        %v2501 = vrot.slane %v2166, 7
        %v2502 = vrot.slane %v2501, 2
        %v2503 = vrot.slane %v2167, 7
        %v2504 = vrot.slane %v2503, 2
        %v2505 = vrot.slane %v2046, 7
        %v2506 = vrot.slane %v2505, 2
        %v2507 = vrot.slane %v2168, 7
        %v2508 = vrot.slane %v2507, 2
        %v2509 = vrot.slane %v2169, 7
        %v2510 = vrot.slane %v2509, 2
        %v2511 = vrot.slane %v2170, 7
        %v2512 = vrot.slane %v2511, 2
        %v2513 = vrot.slane %v2047, 7
        %v2514 = vrot.slane %v2513, 2
        %v2515 = vrot.slane %v2171, 7
        %v2516 = vrot.slane %v2515, 2
        %v2517 = vrot.slane %v2172, 7
        %v2518 = vrot.slane %v2517, 2
        %v2519 = vrot.slane %v2173, 7
        %v2520 = vrot.slane %v2519, 2
        %v2521 = vrot.slane %v2048, 7
        %v2522 = vrot.slane %v2521, 2
        %v2523 = vrot.slane %v2174, 7
        %v2524 = vrot.slane %v2523, 2
        %v2525 = vrot.slane %v2175, 7
        %v2526 = vrot.slane %v2525, 2
        %v2527 = vrot.slane %v2176, 7
        %v2528 = vrot.slane %v2527, 2
        %v2657 = vmax.f32 %v2017, %v2274
        %v2658 = vmax.f32 %v2081, %v2276
        %v2659 = vmax.f32 %v2082, %v2278
        %v2660 = vmax.f32 %v2083, %v2280
        %v2661 = vmax.f32 %v2018, %v2282
        %v2662 = vmax.f32 %v2084, %v2284
        %v2663 = vmax.f32 %v2085, %v2286
        %v2664 = vmax.f32 %v2086, %v2288
        %v2665 = vmax.f32 %v2019, %v2290
        %v2666 = vmax.f32 %v2087, %v2292
        %v2667 = vmax.f32 %v2088, %v2294
        %v2668 = vmax.f32 %v2089, %v2296
        %v2669 = vmax.f32 %v2020, %v2298
        %v2670 = vmax.f32 %v2090, %v2300
        %v2671 = vmax.f32 %v2091, %v2302
        %v2672 = vmax.f32 %v2092, %v2304
        %v2673 = vmax.f32 %v2021, %v2306
        %v2674 = vmax.f32 %v2093, %v2308
        %v2675 = vmax.f32 %v2094, %v2310
        %v2676 = vmax.f32 %v2095, %v2312
        %v2677 = vmax.f32 %v2022, %v2314
        %v2678 = vmax.f32 %v2096, %v2316
        %v2679 = vmax.f32 %v2097, %v2318
        %v2680 = vmax.f32 %v2098, %v2320
        %v2681 = vmax.f32 %v2023, %v2322
        %v2682 = vmax.f32 %v2099, %v2324
        %v2683 = vmax.f32 %v2100, %v2326
        %v2684 = vmax.f32 %v2101, %v2328
        %v2685 = vmax.f32 %v2024, %v2330
        %v2686 = vmax.f32 %v2102, %v2332
        %v2687 = vmax.f32 %v2103, %v2334
        %v2688 = vmax.f32 %v2104, %v2336
        %v2689 = vmax.f32 %v2025, %v2338
        %v2690 = vmax.f32 %v2105, %v2340
        %v2691 = vmax.f32 %v2106, %v2342
        %v2692 = vmax.f32 %v2107, %v2344
        %v2693 = vmax.f32 %v2026, %v2346
        %v2694 = vmax.f32 %v2108, %v2348
        %v2695 = vmax.f32 %v2109, %v2350
        %v2696 = vmax.f32 %v2110, %v2352
        %v2697 = vmax.f32 %v2027, %v2354
        %v2698 = vmax.f32 %v2111, %v2356
        %v2699 = vmax.f32 %v2112, %v2358
        %v2700 = vmax.f32 %v2113, %v2360
        %v2701 = vmax.f32 %v2028, %v2362
        %v2702 = vmax.f32 %v2114, %v2364
        %v2703 = vmax.f32 %v2115, %v2366
        %v2704 = vmax.f32 %v2116, %v2368
        %v2705 = vmax.f32 %v2029, %v2370
        %v2706 = vmax.f32 %v2117, %v2372
        %v2707 = vmax.f32 %v2118, %v2374
        %v2708 = vmax.f32 %v2119, %v2376
        %v2709 = vmax.f32 %v2030, %v2378
        %v2710 = vmax.f32 %v2120, %v2380
        %v2711 = vmax.f32 %v2121, %v2382
        %v2712 = vmax.f32 %v2122, %v2384
        %v2713 = vmax.f32 %v2031, %v2386
        %v2714 = vmax.f32 %v2123, %v2388
        %v2715 = vmax.f32 %v2124, %v2390
        %v2716 = vmax.f32 %v2125, %v2392
        %v2717 = vmax.f32 %v2032, %v2394
        %v2718 = vmax.f32 %v2126, %v2396
        %v2719 = vmax.f32 %v2127, %v2398
        %v2720 = vmax.f32 %v2128, %v2400
        %v2721 = vmax.f32 %v2033, %v2402
        %v2722 = vmax.f32 %v2129, %v2404
        %v2723 = vmax.f32 %v2130, %v2406
        %v2724 = vmax.f32 %v2131, %v2408
        %v2725 = vmax.f32 %v2034, %v2410
        %v2726 = vmax.f32 %v2132, %v2412
        %v2727 = vmax.f32 %v2133, %v2414
        %v2728 = vmax.f32 %v2134, %v2416
        %v2729 = vmax.f32 %v2035, %v2418
        %v2730 = vmax.f32 %v2135, %v2420
        %v2731 = vmax.f32 %v2136, %v2422
        %v2732 = vmax.f32 %v2137, %v2424
        %v2733 = vmax.f32 %v2036, %v2426
        %v2734 = vmax.f32 %v2138, %v2428
        %v2735 = vmax.f32 %v2139, %v2430
        %v2736 = vmax.f32 %v2140, %v2432
        %v2737 = vmax.f32 %v2037, %v2434
        %v2738 = vmax.f32 %v2141, %v2436
        %v2739 = vmax.f32 %v2142, %v2438
        %v2740 = vmax.f32 %v2143, %v2440
        %v2741 = vmax.f32 %v2038, %v2442
        %v2742 = vmax.f32 %v2144, %v2444
        %v2743 = vmax.f32 %v2145, %v2446
        %v2744 = vmax.f32 %v2146, %v2448
        %v2745 = vmax.f32 %v2039, %v2450
        %v2746 = vmax.f32 %v2147, %v2452
        %v2747 = vmax.f32 %v2148, %v2454
        %v2748 = vmax.f32 %v2149, %v2456
        %v2749 = vmax.f32 %v2040, %v2458
        %v2750 = vmax.f32 %v2150, %v2460
        %v2751 = vmax.f32 %v2151, %v2462
        %v2752 = vmax.f32 %v2152, %v2464
        %v2753 = vmax.f32 %v2041, %v2466
        %v2754 = vmax.f32 %v2153, %v2468
        %v2755 = vmax.f32 %v2154, %v2470
        %v2756 = vmax.f32 %v2155, %v2472
        %v2757 = vmax.f32 %v2042, %v2474
        %v2758 = vmax.f32 %v2156, %v2476
        %v2759 = vmax.f32 %v2157, %v2478
        %v2760 = vmax.f32 %v2158, %v2480
        %v2761 = vmax.f32 %v2043, %v2482
        %v2762 = vmax.f32 %v2159, %v2484
        %v2763 = vmax.f32 %v2160, %v2486
        %v2764 = vmax.f32 %v2161, %v2488
        %v2765 = vmax.f32 %v2044, %v2490
        %v2766 = vmax.f32 %v2162, %v2492
        %v2767 = vmax.f32 %v2163, %v2494
        %v2768 = vmax.f32 %v2164, %v2496
        %v2769 = vmax.f32 %v2045, %v2498
        %v2770 = vmax.f32 %v2165, %v2500
        %v2771 = vmax.f32 %v2166, %v2502
        %v2772 = vmax.f32 %v2167, %v2504
        %v2773 = vmax.f32 %v2046, %v2506
        %v2774 = vmax.f32 %v2168, %v2508
        %v2775 = vmax.f32 %v2169, %v2510
        %v2776 = vmax.f32 %v2170, %v2512
        %v2777 = vmax.f32 %v2047, %v2514
        %v2778 = vmax.f32 %v2171, %v2516
        %v2779 = vmax.f32 %v2172, %v2518
        %v2780 = vmax.f32 %v2173, %v2520
        %v2781 = vmax.f32 %v2048, %v2522
        %v2782 = vmax.f32 %v2174, %v2524
        %v2783 = vmax.f32 %v2175, %v2526
        %v2784 = vmax.f32 %v2176, %v2528
        %v2785 = vmax.f32 %v2657, %v2689
        %v2786 = vmax.f32 %v2658, %v2690
        %v2787 = vmax.f32 %v2659, %v2691
        %v2788 = vmax.f32 %v2660, %v2692
        %v2789 = vmax.f32 %v2661, %v2693
        %v2790 = vmax.f32 %v2662, %v2694
        %v2791 = vmax.f32 %v2663, %v2695
        %v2792 = vmax.f32 %v2664, %v2696
        %v2793 = vmax.f32 %v2665, %v2697
        %v2794 = vmax.f32 %v2666, %v2698
        %v2795 = vmax.f32 %v2667, %v2699
        %v2796 = vmax.f32 %v2668, %v2700
        %v2797 = vmax.f32 %v2669, %v2701
        %v2798 = vmax.f32 %v2670, %v2702
        %v2799 = vmax.f32 %v2671, %v2703
        %v2800 = vmax.f32 %v2672, %v2704
        %v2801 = vmax.f32 %v2673, %v2705
        %v2802 = vmax.f32 %v2674, %v2706
        %v2803 = vmax.f32 %v2675, %v2707
        %v2804 = vmax.f32 %v2676, %v2708
        %v2805 = vmax.f32 %v2677, %v2709
        %v2806 = vmax.f32 %v2678, %v2710
        %v2807 = vmax.f32 %v2679, %v2711
        %v2808 = vmax.f32 %v2680, %v2712
        %v2809 = vmax.f32 %v2681, %v2713
        %v2810 = vmax.f32 %v2682, %v2714
        %v2811 = vmax.f32 %v2683, %v2715
        %v2812 = vmax.f32 %v2684, %v2716
        %v2813 = vmax.f32 %v2685, %v2717
        %v2814 = vmax.f32 %v2686, %v2718
        %v2815 = vmax.f32 %v2687, %v2719
        %v2816 = vmax.f32 %v2688, %v2720
        %v2817 = vmax.f32 %v2721, %v2753
        %v2818 = vmax.f32 %v2722, %v2754
        %v2819 = vmax.f32 %v2723, %v2755
        %v2820 = vmax.f32 %v2724, %v2756
        %v2821 = vmax.f32 %v2725, %v2757
        %v2822 = vmax.f32 %v2726, %v2758
        %v2823 = vmax.f32 %v2727, %v2759
        %v2824 = vmax.f32 %v2728, %v2760
        %v2825 = vmax.f32 %v2729, %v2761
        %v2826 = vmax.f32 %v2730, %v2762
        %v2827 = vmax.f32 %v2731, %v2763
        %v2828 = vmax.f32 %v2732, %v2764
        %v2829 = vmax.f32 %v2733, %v2765
        %v2830 = vmax.f32 %v2734, %v2766
        %v2831 = vmax.f32 %v2735, %v2767
        %v2832 = vmax.f32 %v2736, %v2768
        %v2833 = vmax.f32 %v2737, %v2769
        %v2834 = vmax.f32 %v2738, %v2770
        %v2835 = vmax.f32 %v2739, %v2771
        %v2836 = vmax.f32 %v2740, %v2772
        %v2837 = vmax.f32 %v2741, %v2773
        %v2838 = vmax.f32 %v2742, %v2774
        %v2839 = vmax.f32 %v2743, %v2775
        %v2840 = vmax.f32 %v2744, %v2776
        %v2841 = vmax.f32 %v2745, %v2777
        %v2842 = vmax.f32 %v2746, %v2778
        %v2843 = vmax.f32 %v2747, %v2779
        %v2844 = vmax.f32 %v2748, %v2780
        %v2845 = vmax.f32 %v2749, %v2781
        %v2846 = vmax.f32 %v2750, %v2782
        %v2847 = vmax.f32 %v2751, %v2783
        %v2848 = vmax.f32 %v2752, %v2784
        %v2849 = vmax.f32 %v2785, 0.0
        %v2850 = vmax.f32 %v2786, 0.0
        %v2851 = vmax.f32 %v2787, 0.0
        %v2852 = vmax.f32 %v2788, 0.0
        %v2853 = vmax.f32 %v2789, 0.0
        %v2854 = vmax.f32 %v2790, 0.0
        %v2855 = vmax.f32 %v2791, 0.0
        %v2856 = vmax.f32 %v2792, 0.0
        %v2857 = vmax.f32 %v2793, 0.0
        %v2858 = vmax.f32 %v2794, 0.0
        %v2859 = vmax.f32 %v2795, 0.0
        %v2860 = vmax.f32 %v2796, 0.0
        %v2861 = vmax.f32 %v2797, 0.0
        %v2862 = vmax.f32 %v2798, 0.0
        %v2863 = vmax.f32 %v2799, 0.0
        %v2864 = vmax.f32 %v2800, 0.0
        %v2865 = vmax.f32 %v2801, 0.0
        %v2866 = vmax.f32 %v2802, 0.0
        %v2867 = vmax.f32 %v2803, 0.0
        %v2868 = vmax.f32 %v2804, 0.0
        %v2869 = vmax.f32 %v2805, 0.0
        %v2870 = vmax.f32 %v2806, 0.0
        %v2871 = vmax.f32 %v2807, 0.0
        %v2872 = vmax.f32 %v2808, 0.0
        %v2873 = vmax.f32 %v2809, 0.0
        %v2874 = vmax.f32 %v2810, 0.0
        %v2875 = vmax.f32 %v2811, 0.0
        %v2876 = vmax.f32 %v2812, 0.0
        %v2877 = vmax.f32 %v2813, 0.0
        %v2878 = vmax.f32 %v2814, 0.0
        %v2879 = vmax.f32 %v2815, 0.0
        %v2880 = vmax.f32 %v2816, 0.0
        %v2881 = vmax.f32 %v2817, 0.0
        %v2882 = vmax.f32 %v2818, 0.0
        %v2883 = vmax.f32 %v2819, 0.0
        %v2884 = vmax.f32 %v2820, 0.0
        %v2885 = vmax.f32 %v2821, 0.0
        %v2886 = vmax.f32 %v2822, 0.0
        %v2887 = vmax.f32 %v2823, 0.0
        %v2888 = vmax.f32 %v2824, 0.0
        %v2889 = vmax.f32 %v2825, 0.0
        %v2890 = vmax.f32 %v2826, 0.0
        %v2891 = vmax.f32 %v2827, 0.0
        %v2892 = vmax.f32 %v2828, 0.0
        %v2893 = vmax.f32 %v2829, 0.0
        %v2894 = vmax.f32 %v2830, 0.0
        %v2895 = vmax.f32 %v2831, 0.0
        %v2896 = vmax.f32 %v2832, 0.0
        %v2897 = vmax.f32 %v2833, 0.0
        %v2898 = vmax.f32 %v2834, 0.0
        %v2899 = vmax.f32 %v2835, 0.0
        %v2900 = vmax.f32 %v2836, 0.0
        %v2901 = vmax.f32 %v2837, 0.0
        %v2902 = vmax.f32 %v2838, 0.0
        %v2903 = vmax.f32 %v2839, 0.0
        %v2904 = vmax.f32 %v2840, 0.0
        %v2905 = vmax.f32 %v2841, 0.0
        %v2906 = vmax.f32 %v2842, 0.0
        %v2907 = vmax.f32 %v2843, 0.0
        %v2908 = vmax.f32 %v2844, 0.0
        %v2909 = vmax.f32 %v2845, 0.0
        %v2910 = vmax.f32 %v2846, 0.0
        %v2911 = vmax.f32 %v2847, 0.0
        %v2912 = vmax.f32 %v2848, 0.0
        %s2913 = smul.u32 %s202, 2
        %v2978 = vperm.slane %v2849, 0
        %v2979 = vperm.slane %v2850, 0
        %v2980 = vperm.slane %v2851, 0
        %v2981 = vperm.slane %v2852, 0
        %v2982 = vperm.slane %v2853, 0
        %v2983 = vperm.slane %v2854, 0
        %v2984 = vperm.slane %v2855, 0
        %v2985 = vperm.slane %v2856, 0
        %v2986 = vperm.slane %v2857, 0
        %v2987 = vperm.slane %v2858, 0
        %v2988 = vperm.slane %v2859, 0
        %v2989 = vperm.slane %v2860, 0
        %v2990 = vperm.slane %v2861, 0
        %v2991 = vperm.slane %v2862, 0
        %v2992 = vperm.slane %v2863, 0
        %v2993 = vperm.slane %v2864, 0
        %v2994 = vperm.slane %v2865, 0
        %v2995 = vperm.slane %v2866, 0
        %v2996 = vperm.slane %v2867, 0
        %v2997 = vperm.slane %v2868, 0
        %v2998 = vperm.slane %v2869, 0
        %v2999 = vperm.slane %v2870, 0
        %v3000 = vperm.slane %v2871, 0
        %v3001 = vperm.slane %v2872, 0
        %v3002 = vperm.slane %v2873, 0
        %v3003 = vperm.slane %v2874, 0
        %v3004 = vperm.slane %v2875, 0
        %v3005 = vperm.slane %v2876, 0
        %v3006 = vperm.slane %v2877, 0
        %v3007 = vperm.slane %v2878, 0
        %v3008 = vperm.slane %v2879, 0
        %v3009 = vperm.slane %v2880, 0
        %v3010 = vperm.slane %v2881, 0
        %v3011 = vperm.slane %v2882, 0
        %v3012 = vperm.slane %v2883, 0
        %v3013 = vperm.slane %v2884, 0
        %v3014 = vperm.slane %v2885, 0
        %v3015 = vperm.slane %v2886, 0
        %v3016 = vperm.slane %v2887, 0
        %v3017 = vperm.slane %v2888, 0
        %v3018 = vperm.slane %v2889, 0
        %v3019 = vperm.slane %v2890, 0
        %v3020 = vperm.slane %v2891, 0
        %v3021 = vperm.slane %v2892, 0
        %v3022 = vperm.slane %v2893, 0
        %v3023 = vperm.slane %v2894, 0
        %v3024 = vperm.slane %v2895, 0
        %v3025 = vperm.slane %v2896, 0
        %v3026 = vperm.slane %v2897, 0
        %v3027 = vperm.slane %v2898, 0
        %v3028 = vperm.slane %v2899, 0
        %v3029 = vperm.slane %v2900, 0
        %v3030 = vperm.slane %v2901, 0
        %v3031 = vperm.slane %v2902, 0
        %v3032 = vperm.slane %v2903, 0
        %v3033 = vperm.slane %v2904, 0
        %v3034 = vperm.slane %v2905, 0
        %v3035 = vperm.slane %v2906, 0
        %v3036 = vperm.slane %v2907, 0
        %v3037 = vperm.slane %v2908, 0
        %v3038 = vperm.slane %v2909, 0
        %v3039 = vperm.slane %v2910, 0
        %v3040 = vperm.slane %v2911, 0
        %v3041 = vperm.slane %v2912, 0
        %vm3042 = vcmask 1041409
        %v3043 = vsel %vm3042, %v2979, %v2978
        %vm3044 = vcmask 1042434
        %v3045 = vsel %vm3044, %v2980, %v3043
        %vm3046 = vcmask 1043459
        %v3047 = vsel %vm3046, %v2981, %v3045
        %vm3048 = vcmask 1044484
        %v3049 = vsel %vm3048, %v2982, %v3047
        %vm3050 = vcmask 1045509
        %v3051 = vsel %vm3050, %v2983, %v3049
        %vm3052 = vcmask 1046534
        %v3053 = vsel %vm3052, %v2984, %v3051
        %vm3054 = vcmask 1047559
        %v3055 = vsel %vm3054, %v2985, %v3053
        %v3056 = vsel %vm3042, %v2987, %v2986
        %v3057 = vsel %vm3044, %v2988, %v3056
        %v3058 = vsel %vm3046, %v2989, %v3057
        %v3059 = vsel %vm3048, %v2990, %v3058
        %v3060 = vsel %vm3050, %v2991, %v3059
        %v3061 = vsel %vm3052, %v2992, %v3060
        %v3062 = vsel %vm3054, %v2993, %v3061
        %v3063 = vsel %vm3042, %v2995, %v2994
        %v3064 = vsel %vm3044, %v2996, %v3063
        %v3065 = vsel %vm3046, %v2997, %v3064
        %v3066 = vsel %vm3048, %v2998, %v3065
        %v3067 = vsel %vm3050, %v2999, %v3066
        %v3068 = vsel %vm3052, %v3000, %v3067
        %v3069 = vsel %vm3054, %v3001, %v3068
        %v3070 = vsel %vm3042, %v3003, %v3002
        %v3071 = vsel %vm3044, %v3004, %v3070
        %v3072 = vsel %vm3046, %v3005, %v3071
        %v3073 = vsel %vm3048, %v3006, %v3072
        %v3074 = vsel %vm3050, %v3007, %v3073
        %v3075 = vsel %vm3052, %v3008, %v3074
        %v3076 = vsel %vm3054, %v3009, %v3075
        %v3077 = vsel %vm3042, %v3011, %v3010
        %v3078 = vsel %vm3044, %v3012, %v3077
        %v3079 = vsel %vm3046, %v3013, %v3078
        %v3080 = vsel %vm3048, %v3014, %v3079
        %v3081 = vsel %vm3050, %v3015, %v3080
        %v3082 = vsel %vm3052, %v3016, %v3081
        %v3083 = vsel %vm3054, %v3017, %v3082
        %v3084 = vsel %vm3042, %v3019, %v3018
        %v3085 = vsel %vm3044, %v3020, %v3084
        %v3086 = vsel %vm3046, %v3021, %v3085
        %v3087 = vsel %vm3048, %v3022, %v3086
        %v3088 = vsel %vm3050, %v3023, %v3087
        %v3089 = vsel %vm3052, %v3024, %v3088
        %v3090 = vsel %vm3054, %v3025, %v3089
        %v3091 = vsel %vm3042, %v3027, %v3026
        %v3092 = vsel %vm3044, %v3028, %v3091
        %v3093 = vsel %vm3046, %v3029, %v3092
        %v3094 = vsel %vm3048, %v3030, %v3093
        %v3095 = vsel %vm3050, %v3031, %v3094
        %v3096 = vsel %vm3052, %v3032, %v3095
        %v3097 = vsel %vm3054, %v3033, %v3096
        %v3098 = vsel %vm3042, %v3035, %v3034
        %v3099 = vsel %vm3044, %v3036, %v3098
        %v3100 = vsel %vm3046, %v3037, %v3099
        %v3101 = vsel %vm3048, %v3038, %v3100
        %v3102 = vsel %vm3050, %v3039, %v3101
        %v3103 = vsel %vm3052, %v3040, %v3102
        %v3104 = vsel %vm3054, %v3041, %v3103
        %s3113 = smul.u32 %s2913, 32
        %s3114 = scalar_lea.vmem %s197, %s3113
        %vm3115 = vcmask 261120
        %3116 = vst.msk [vmem:[%s3114] sm:$0xff] %vm3115, %v3055
        %3117 = vst.msk [vmem:[%s3114 + $0x8] sm:$0xff] %vm3115, %v3062
        %3118 = vst.msk [vmem:[%s3114 + $0x10] sm:$0xff] %vm3115, %v3069
        %3119 = vst.msk [vmem:[%s3114 + $0x18] sm:$0xff] %vm3115, %v3076
        %3120 = vst.msk [vmem:[%s3114 + $0x20] sm:$0xff] %vm3115, %v3083
        %3121 = vst.msk [vmem:[%s3114 + $0x28] sm:$0xff] %vm3115, %v3090
        %3122 = vst.msk [vmem:[%s3114 + $0x30] sm:$0xff] %vm3115, %v3097
        %3123 = vst.msk [vmem:[%s3114 + $0x38] sm:$0xff] %vm3115, %v3104
      $region41: #{tiny_imagenet_forward.4} parent=35 // loop_footer
        %s206 = sadd.s32 1, %s202
      $region42: #{tiny_imagenet_forward.4} parent=35 // loop_footer_branch
        %201 = sbr.rel target = $region38
      $region43: #{tiny_imagenet_forward.4} parent=35 // loop_exit
        _
      %p3124 = scmp.lt.s32.totalorder %s15, 1
      %s3125 = scalar_select %p3124, %s15, 1
      %s3126 = smul.addr %s3125, 128
      %s3127 = smul.addr %s3126, 8
      %s3128 = scalar_lea.vmem %s4, %s3127
      // Predicated region
      $region44: #{tiny_imagenet_forward.4} parent=35 // pred_check
        %p3129 = pneg %p122
      $region45: #{tiny_imagenet_forward.4} parent=35 // pred_check_branch
        %3131 = sbr.rel (%p3129) target = $region47
      $region46: #{tiny_imagenet_forward.4} parent=35 // pred_region
        _
      $region47: #{tiny_imagenet_forward.4} parent=35 // pred_fallthru
        _
    $region36: #{tiny_imagenet_forward.4} parent=5 // pred_fallthru
      _
    %p3132 = scmp.le.s32.totalorder 2, %s10
    // Predicated region
    $region48: #{tiny_imagenet_forward.4} parent=5 // pred_check
      %p3133 = pneg %p3132
    $region49: #{tiny_imagenet_forward.4} parent=5 // pred_check_branch
      %3135 = sbr.rel (%p3133) target = $region51
    $region50: #{tiny_imagenet_forward.4} parent=5 // pred_region
      %s3136 = ssub.s32 %s10, 2
      // Predicated region
      $region52: #{tiny_imagenet_forward.4} parent=50 // pred_check
        %p3137 = pneg %p128
      $region53: #{tiny_imagenet_forward.4} parent=50 // pred_check_branch
        %3139 = sbr.rel (%p3137) target = $region55
      $region54: #{tiny_imagenet_forward.4} parent=50 // pred_region
        %p3140 = scmp.lt.s32.totalorder %s16, 1
        %s3141 = scalar_select %p3140, %s16, 1
        %s3142 = smul.addr %s3141, 128
        %s3143 = smul.addr %s3142, 8
        %s3144 = scalar_lea.vmem %s4, %s3143
      $region55: #{tiny_imagenet_forward.4} parent=50 // pred_fallthru
        _
    $region51: #{tiny_imagenet_forward.4} parent=5 // pred_fallthru
      _
  $region6: #{tiny_imagenet_forward.4} parent=0 // loop_footer
    %s14 = sadd.s32 1, %s10
  $region7: #{tiny_imagenet_forward.4} parent=0 // loop_footer_branch
    %9 = sbr.rel target = $region3
  $region8: #{tiny_imagenet_forward.4} parent=0 // loop_exit
    _

// kernel: tiny_imagenet_forward.5
$region0: #{tiny_imagenet_forward.5}
  #allocation0 [shape = 'u32[]', space=smem, size = 0x4, offset = 0x4, fixed_abs, tag = 'smem constant byte address 0x4 - core index']
  #allocation1 [shape = 'u32[72,128]{1,0:T(1,128)}', space=vmem, size = 0x9000, scoped, tag = 'internal scratch']
  %s0 = inlined_call_operand.vmem [shape: f32[2,34,34,32], index: 0, kind: input, shape index: {}]
  %s1 = inlined_call_operand.vmem [shape: bf16[3,3,32,64], index: 1, kind: input, shape index: {}]
  %s2 = inlined_call_operand.vmem [shape: f32[1,64], index: 2, kind: input, shape index: {}]
  %s3 = inlined_call_operand.vmem [shape: f32[1,64], index: 3, kind: input, shape index: {}]
  %s4 = inlined_call_operand.vmem [shape: f32[2,16,16,64], index: 4, kind: output, shape index: {}]
  %s5 = sld [smem:[#allocation0]]
  $region56: #{tiny_imagenet_forward.5} parent=0
    _
  %s7 = ssub.s32 1, %s5
  %s8 = scalar_select 0, %s7, %s5
  loop: start=0, step=1, limit=4
  $region2: #{tiny_imagenet_forward.5} parent=0 // loop_pre_header
    _
  $region3: #{tiny_imagenet_forward.5} parent=0 // loop_header
    %s10 = sphi 0, %s14
    %p11 = scmp.ge.s32.totalorder %s10, 4
    %s20 = sphi 0, %s22
    %s23 = sphi 0, %s20
    %s24 = sphi 0, %s23
    %s40 = sphi 0, %s24
    %s44 = sphi 0, %s44
    %s46 = sphi 0, %s44
    %s47 = sphi 0, %s46
    %s61 = sphi 0, %s47
    %s65 = sphi 0, %s65
    %s67 = sphi 0, %s65
    %s68 = sphi 0, %s67
    %s82 = sphi 0, %s68
    %s86 = sphi 0, %s86
    %s88 = sphi 0, %s86
    %s89 = sphi 0, %s88
    %s103 = sphi 0, %s89
    %s109 = sphi 0, %s111
    %s112 = sphi 0, %s109
    %s113 = sphi 0, %s112
    %s129 = sphi 0, %s113
  $region4: #{tiny_imagenet_forward.5} parent=0 // loop_header_branch
    %13 = sbr.rel (%p11) target = $region8
  $region5: #{tiny_imagenet_forward.5} parent=0 // loop_body
    %s15 = ssub.s32 %s10, 1
    %s16 = ssub.s32 %s10, 2
    %s17 = sadd.s32 %s10, 1
    %s18 = ssub.s32 %s10, %s17
    %p19 = scmp.eq.s32.totalorder %s18, 0
    %s21 = sadd.s32 %s20, 1
    %s22 = scalar_select %p19, %s20, %s21
    %p25 = pneg %p19
    %p26 = scmp.eq.s32.totalorder %s10, 1
    %p27 = por %p25, %p26
    %p28 = scmp.ne.s32.totalorder %s20, %s23
    %p29 = scmp.eq.s32.totalorder %s10, 0
    %p30 = por %p28, %p29
    %p31 = scmp.ne.s32.totalorder %s20, %s23
    %p32 = scmp.eq.s32.totalorder %s15, 1
    %p33 = por %p31, %p32
    %p34 = scmp.ne.s32.totalorder %s23, %s24
    %p35 = scmp.eq.s32.totalorder %s15, 0
    %p36 = por %p34, %p35
    %p37 = scmp.ne.s32.totalorder %s23, %s24
    %p38 = scmp.eq.s32.totalorder %s16, 1
    %p39 = por %p37, %p38
    %p41 = scmp.ne.s32.totalorder %s24, %s40
    %p42 = scmp.eq.s32.totalorder %s16, 0
    %p43 = por %p41, %p42
    %s45 = sadd.s32 %s44, 1
    %p48 = scmp.eq.s32.totalorder %s10, 1
    %p49 = scmp.ne.s32.totalorder %s44, %s46
    %p50 = scmp.eq.s32.totalorder %s10, 0
    %p51 = por %p49, %p50
    %p52 = scmp.ne.s32.totalorder %s44, %s46
    %p53 = scmp.eq.s32.totalorder %s15, 1
    %p54 = por %p52, %p53
    %p55 = scmp.ne.s32.totalorder %s46, %s47
    %p56 = scmp.eq.s32.totalorder %s15, 0
    %p57 = por %p55, %p56
    %p58 = scmp.ne.s32.totalorder %s46, %s47
    %p59 = scmp.eq.s32.totalorder %s16, 1
    %p60 = por %p58, %p59
    %p62 = scmp.ne.s32.totalorder %s47, %s61
    %p63 = scmp.eq.s32.totalorder %s16, 0
    %p64 = por %p62, %p63
    %s66 = sadd.s32 %s65, 1
    %p69 = scmp.eq.s32.totalorder %s10, 1
    %p70 = scmp.ne.s32.totalorder %s65, %s67
    %p71 = scmp.eq.s32.totalorder %s10, 0
    %p72 = por %p70, %p71
    %p73 = scmp.ne.s32.totalorder %s65, %s67
    %p74 = scmp.eq.s32.totalorder %s15, 1
    %p75 = por %p73, %p74
    %p76 = scmp.ne.s32.totalorder %s67, %s68
    %p77 = scmp.eq.s32.totalorder %s15, 0
    %p78 = por %p76, %p77
    %p79 = scmp.ne.s32.totalorder %s67, %s68
    %p80 = scmp.eq.s32.totalorder %s16, 1
    %p81 = por %p79, %p80
    %p83 = scmp.ne.s32.totalorder %s68, %s82
    %p84 = scmp.eq.s32.totalorder %s16, 0
    %p85 = por %p83, %p84
    %s87 = sadd.s32 %s86, 1
    %p90 = scmp.eq.s32.totalorder %s10, 1
    %p91 = scmp.ne.s32.totalorder %s86, %s88
    %p92 = scmp.eq.s32.totalorder %s10, 0
    %p93 = por %p91, %p92
    %p94 = scmp.ne.s32.totalorder %s86, %s88
    %p95 = scmp.eq.s32.totalorder %s15, 1
    %p96 = por %p94, %p95
    %p97 = scmp.ne.s32.totalorder %s88, %s89
    %p98 = scmp.eq.s32.totalorder %s15, 0
    %p99 = por %p97, %p98
    %p100 = scmp.ne.s32.totalorder %s88, %s89
    %p101 = scmp.eq.s32.totalorder %s16, 1
    %p102 = por %p100, %p101
    %p104 = scmp.ne.s32.totalorder %s89, %s103
    %p105 = scmp.eq.s32.totalorder %s16, 0
    %p106 = por %p104, %p105
    %s107 = ssub.s32 %s10, %s17
    %p108 = scmp.eq.s32.totalorder %s107, 0
    %s110 = sadd.s32 %s109, 1
    %s111 = scalar_select %p108, %s109, %s110
    %p114 = pneg %p108
    %p115 = scmp.eq.s32.totalorder %s10, 1
    %p116 = por %p114, %p115
    %p117 = scmp.ne.s32.totalorder %s109, %s112
    %p118 = scmp.eq.s32.totalorder %s10, 0
    %p119 = por %p117, %p118
    %p120 = scmp.ne.s32.totalorder %s109, %s112
    %p121 = scmp.eq.s32.totalorder %s15, 1
    %p122 = por %p120, %p121
    %p123 = scmp.ne.s32.totalorder %s112, %s113
    %p124 = scmp.eq.s32.totalorder %s15, 0
    %p125 = por %p123, %p124
    %p126 = scmp.ne.s32.totalorder %s112, %s113
    %p127 = scmp.eq.s32.totalorder %s16, 1
    %p128 = por %p126, %p127
    %p130 = scmp.ne.s32.totalorder %s113, %s129
    %p131 = scmp.eq.s32.totalorder %s16, 0
    %p132 = por %p130, %p131
    %p133 = scmp.le.s32.totalorder 1, %s10
    %p134 = scmp.lt.s32.totalorder %s10, 3
    %p135 = pnand %p133, %p134
    %p136 = pneg %p135
    // Predicated region
    $region9: #{tiny_imagenet_forward.5} parent=5 // pred_check
      _
    $region10: #{tiny_imagenet_forward.5} parent=5 // pred_check_branch
      %138 = sbr.rel (%p135) target = $region12
    $region11: #{tiny_imagenet_forward.5} parent=5 // pred_region
      %s139 = ssub.s32 %s10, 1
      // Predicated region
      $region13: #{tiny_imagenet_forward.5} parent=11 // pred_check
        %p140 = pneg %p57
      $region14: #{tiny_imagenet_forward.5} parent=11 // pred_check_branch
        %142 = sbr.rel (%p140) target = $region16
      $region15: #{tiny_imagenet_forward.5} parent=11 // pred_region
        _
      $region16: #{tiny_imagenet_forward.5} parent=11 // pred_fallthru
        _
      // Predicated region
      $region17: #{tiny_imagenet_forward.5} parent=11 // pred_check
        %p143 = pneg %p78
      $region18: #{tiny_imagenet_forward.5} parent=11 // pred_check_branch
        %145 = sbr.rel (%p143) target = $region20
      $region19: #{tiny_imagenet_forward.5} parent=11 // pred_region
        _
      $region20: #{tiny_imagenet_forward.5} parent=11 // pred_fallthru
        _
      // Predicated region
      $region21: #{tiny_imagenet_forward.5} parent=11 // pred_check
        %p146 = pneg %p99
      $region22: #{tiny_imagenet_forward.5} parent=11 // pred_check_branch
        %148 = sbr.rel (%p146) target = $region24
      $region23: #{tiny_imagenet_forward.5} parent=11 // pred_region
        _
      $region24: #{tiny_imagenet_forward.5} parent=11 // pred_fallthru
        _
    $region12: #{tiny_imagenet_forward.5} parent=5 // pred_fallthru
      _
    %p149 = scmp.lt.s32.totalorder %s10, 2
    // Predicated region
    $region25: #{tiny_imagenet_forward.5} parent=5 // pred_check
      %p150 = pneg %p149
    $region26: #{tiny_imagenet_forward.5} parent=5 // pred_check_branch
      %152 = sbr.rel (%p150) target = $region28
    $region27: #{tiny_imagenet_forward.5} parent=5 // pred_region
      // Predicated region
      $region29: #{tiny_imagenet_forward.5} parent=27 // pred_check
        %p153 = pneg %p30
      $region30: #{tiny_imagenet_forward.5} parent=27 // pred_check_branch
        %155 = sbr.rel (%p153) target = $region32
      $region31: #{tiny_imagenet_forward.5} parent=27 // pred_region
        %p156 = scmp.lt.s32.totalorder %s10, 1
        %s157 = scalar_select %p156, %s10, 1
        %s158 = smul.addr %s157, 170
        %s159 = smul.addr %s158, 8
        %s160 = scalar_lea.vmem %s0, %s159
      $region32: #{tiny_imagenet_forward.5} parent=27 // pred_fallthru
        _
    $region28: #{tiny_imagenet_forward.5} parent=5 // pred_fallthru
      _
    %p161 = scmp.le.s32.totalorder 1, %s10
    %p162 = scmp.lt.s32.totalorder %s10, 3
    %p163 = pnand %p161, %p162
    %p164 = pneg %p163
    // Predicated region
    $region33: #{tiny_imagenet_forward.5} parent=5 // pred_check
      _
    $region34: #{tiny_imagenet_forward.5} parent=5 // pred_check_branch
      %166 = sbr.rel (%p163) target = $region36
    $region35: #{tiny_imagenet_forward.5} parent=5 // pred_region
      %s167 = ssub.s32 %s10, 1
      %p168 = scmp.lt.s32.totalorder %s15, 1
      %s169 = scalar_select %p168, %s15, 1
      %s170 = smul.addr %s169, 170
      %s171 = smul.addr %s170, 8
      %s172 = scalar_lea.vmem %s0, %s171
      %p173 = pneg %p36
      %p174 = pneg %p33
      %p175 = pneg %p57
      %p176 = pneg %p54
      %p177 = pneg %p78
      %p178 = pneg %p75
      %p179 = pneg %p99
      %p180 = pneg %p96
      %p181 = pneg %p125
      %p182 = pneg %p122
      %p183 = scmp.lt.s32.totalorder %s15, 1
      %s184 = scalar_select %p183, %s15, 1
      %s185 = smul.addr %s184, 32
      %s186 = smul.addr %s185, 8
      %s187 = scalar_lea.vmem %s4, %s186
      %p188 = scmp.lt.s32.totalorder %s15, 1
      %s189 = scalar_select %p188, %s15, 1
      %s190 = smul.addr %s189, 170
      %s191 = smul.addr %s190, 8
      %s192 = scalar_lea.vmem %s0, %s191
      %p193 = scmp.lt.s32.totalorder %s15, 1
      %s194 = scalar_select %p193, %s15, 1
      %s195 = smul.addr %s194, 32
      %s196 = smul.addr %s195, 8
      %s197 = scalar_lea.vmem %s4, %s196
      %v199 = vld [vmem:[%s2] sm:$0x1]
      %v200 = vld [vmem:[%s3] sm:$0x1]
      loop: start=0, step=1, limit=4
      $region37: #{tiny_imagenet_forward.5} parent=35 // loop_pre_header
        _
      $region38: #{tiny_imagenet_forward.5} parent=35 // loop_header
        %s202 = sphi 0, %s206
        %p203 = scmp.ge.s32.totalorder %s202, 4
      $region39: #{tiny_imagenet_forward.5} parent=35 // loop_header_branch
        %205 = sbr.rel (%p203) target = $region43
      $region40: #{tiny_imagenet_forward.5} parent=35 // loop_body
        %s207 = smul.u32 %s202, 8
        %s208 = smul.u32 %s207, 40
        %s209 = scalar_lea.vmem %s192, %s208
        %v210 = vld [vmem:[%s209] sm:$0xff]
        %v211 = vld [vmem:[%s209 + $0x8] sm:$0xff]
        %v212 = vld [vmem:[%s209 + $0x10] sm:$0xff]
        %v213 = vld [vmem:[%s209 + $0x18] sm:$0xff]
        %v214 = vld [vmem:[%s209 + $0x20] sm:$0x3]
        %v215 = vld [vmem:[%s209 + $0x28] sm:$0xff]
        %v216 = vld [vmem:[%s209 + $0x30] sm:$0xff]
        %v217 = vld [vmem:[%s209 + $0x38] sm:$0xff]
        %v218 = vld [vmem:[%s209 + $0x40] sm:$0xff]
        %v219 = vld [vmem:[%s209 + $0x48] sm:$0x3]
        %v220 = vld [vmem:[%s209 + $0x50] sm:$0xff]
        %v221 = vld [vmem:[%s209 + $0x58] sm:$0xff]
        %v222 = vld [vmem:[%s209 + $0x60] sm:$0xff]
        %v223 = vld [vmem:[%s209 + $0x68] sm:$0xff]
        %v224 = vld [vmem:[%s209 + $0x70] sm:$0x3]
        %v225 = vld [vmem:[%s209 + $0x78] sm:$0xff]
        %v226 = vld [vmem:[%s209 + $0x80] sm:$0xff]
        %v227 = vld [vmem:[%s209 + $0x88] sm:$0xff]
        %v228 = vld [vmem:[%s209 + $0x90] sm:$0xff]
        %v229 = vld [vmem:[%s209 + $0x98] sm:$0x3]
        %v230 = vld [vmem:[%s209 + $0xa0] sm:$0xff]
        %v231 = vld [vmem:[%s209 + $0xa8] sm:$0xff]
        %v232 = vld [vmem:[%s209 + $0xb0] sm:$0xff]
        %v233 = vld [vmem:[%s209 + $0xb8] sm:$0xff]
        %v234 = vld [vmem:[%s209 + $0xc0] sm:$0x3]
        %v235 = vld [vmem:[%s209 + $0xc8] sm:$0xff]
        %v236 = vld [vmem:[%s209 + $0xd0] sm:$0xff]
        %v237 = vld [vmem:[%s209 + $0xd8] sm:$0xff]
        %v238 = vld [vmem:[%s209 + $0xe0] sm:$0xff]
        %v239 = vld [vmem:[%s209 + $0xe8] sm:$0x3]
        %v240 = vld [vmem:[%s209 + $0xf0] sm:$0xff]
        %v241 = vld [vmem:[%s209 + $0xf8] sm:$0xff]
        %v242 = vld [vmem:[%s209 + $0x100] sm:$0xff]
        %v243 = vld [vmem:[%s209 + $0x108] sm:$0xff]
        %v244 = vld [vmem:[%s209 + $0x110] sm:$0x3]
        %v245 = vld [vmem:[%s209 + $0x118] sm:$0xff]
        %v246 = vld [vmem:[%s209 + $0x120] sm:$0xff]
        %v247 = vld [vmem:[%s209 + $0x128] sm:$0xff]
        %v248 = vld [vmem:[%s209 + $0x130] sm:$0xff]
        %v249 = vld [vmem:[%s209 + $0x138] sm:$0x3]
        %v250 = vld [vmem:[%s209 + $0x140] sm:$0xff]
        %v251 = vld [vmem:[%s209 + $0x148] sm:$0xff]
        %v252 = vld [vmem:[%s209 + $0x150] sm:$0xff]
        %v253 = vld [vmem:[%s209 + $0x158] sm:$0xff]
        %v254 = vld [vmem:[%s209 + $0x160] sm:$0x3]
        %v255 = vld [vmem:[%s209 + $0x168] sm:$0xff]
        %v256 = vld [vmem:[%s209 + $0x170] sm:$0xff]
        %v257 = vld [vmem:[%s209 + $0x178] sm:$0xff]
        %v258 = vld [vmem:[%s209 + $0x180] sm:$0xff]
        %v259 = vld [vmem:[%s209 + $0x188] sm:$0x3]
        %v260 = vpack.c.bf16 %v211, %v210
        %v261 = vpack.c.bf16 %v213, %v212
        %v262 = vpack.c.bf16 %v216, %v215
        %v263 = vpack.c.bf16 %v218, %v217
        %v264 = vpack.c.bf16 %v221, %v220
        %v265 = vpack.c.bf16 %v223, %v222
        %v266 = vpack.c.bf16 %v226, %v225
        %v267 = vpack.c.bf16 %v228, %v227
        %v268 = vpack.c.bf16 %v231, %v230
        %v269 = vpack.c.bf16 %v233, %v232
        %v270 = vpack.c.bf16 %v236, %v235
        %v271 = vpack.c.bf16 %v238, %v237
        %v272 = vpack.c.bf16 %v241, %v240
        %v273 = vpack.c.bf16 %v243, %v242
        %v274 = vpack.c.bf16 %v246, %v245
        %v275 = vpack.c.bf16 %v248, %v247
        %v276 = vld [vmem:[%s1] sm:$0xf]
        %v277 = vld [vmem:[%s1 + $0x4] sm:$0xf]
        %v278 = vld [vmem:[%s1 + $0x8] sm:$0xf]
        %v279 = vld [vmem:[%s1 + $0xc] sm:$0xf]
        %vm320 = vcmask 1046528
        %v321 = vrot.slane %v210, 1
        %v322 = vrot.slane %v211, 1
        %v323 = vsel %vm320, %v321, %v322
        %v324 = vrot.slane %v212, 1
        %v325 = vsel %vm320, %v322, %v324
        %v326 = vrot.slane %v213, 1
        %v327 = vsel %vm320, %v324, %v326
        %v328 = vrot.slane %v214, 1
        %v329 = vsel %vm320, %v326, %v328
        %v330 = vrot.slane %v215, 1
        %v331 = vrot.slane %v216, 1
        %v332 = vsel %vm320, %v330, %v331
        %v333 = vrot.slane %v217, 1
        %v334 = vsel %vm320, %v331, %v333
        %v335 = vrot.slane %v218, 1
        %v336 = vsel %vm320, %v333, %v335
        %v337 = vrot.slane %v219, 1
        %v338 = vsel %vm320, %v335, %v337
        %v339 = vrot.slane %v220, 1
        %v340 = vrot.slane %v221, 1
        %v341 = vsel %vm320, %v339, %v340
        %v342 = vrot.slane %v222, 1
        %v343 = vsel %vm320, %v340, %v342
        %v344 = vrot.slane %v223, 1
        %v345 = vsel %vm320, %v342, %v344
        %v346 = vrot.slane %v224, 1
        %v347 = vsel %vm320, %v344, %v346
        %v348 = vrot.slane %v225, 1
        %v349 = vrot.slane %v226, 1
        %v350 = vsel %vm320, %v348, %v349
        %v351 = vrot.slane %v227, 1
        %v352 = vsel %vm320, %v349, %v351
        %v353 = vrot.slane %v228, 1
        %v354 = vsel %vm320, %v351, %v353
        %v355 = vrot.slane %v229, 1
        %v356 = vsel %vm320, %v353, %v355
        %v357 = vrot.slane %v230, 1
        %v358 = vrot.slane %v231, 1
        %v359 = vsel %vm320, %v357, %v358
        %v360 = vrot.slane %v232, 1
        %v361 = vsel %vm320, %v358, %v360
        %v362 = vrot.slane %v233, 1
        %v363 = vsel %vm320, %v360, %v362
        %v364 = vrot.slane %v234, 1
        %v365 = vsel %vm320, %v362, %v364
        %v366 = vrot.slane %v235, 1
        %v367 = vrot.slane %v236, 1
        %v368 = vsel %vm320, %v366, %v367
        %v369 = vrot.slane %v237, 1
        %v370 = vsel %vm320, %v367, %v369
        %v371 = vrot.slane %v238, 1
        %v372 = vsel %vm320, %v369, %v371
        %v373 = vrot.slane %v239, 1
        %v374 = vsel %vm320, %v371, %v373
        %v375 = vrot.slane %v240, 1
        %v376 = vrot.slane %v241, 1
        %v377 = vsel %vm320, %v375, %v376
        %v378 = vrot.slane %v242, 1
        %v379 = vsel %vm320, %v376, %v378
        %v380 = vrot.slane %v243, 1
        %v381 = vsel %vm320, %v378, %v380
        %v382 = vrot.slane %v244, 1
        %v383 = vsel %vm320, %v380, %v382
        %v384 = vrot.slane %v245, 1
        %v385 = vrot.slane %v246, 1
        %v386 = vsel %vm320, %v384, %v385
        %v387 = vrot.slane %v247, 1
        %v388 = vsel %vm320, %v385, %v387
        %v389 = vrot.slane %v248, 1
        %v390 = vsel %vm320, %v387, %v389
        %v391 = vrot.slane %v249, 1
        %v392 = vsel %vm320, %v389, %v391
        %v425 = vpack.c.bf16 %v325, %v323
        %v426 = vpack.c.bf16 %v329, %v327
        %v427 = vpack.c.bf16 %v334, %v332
        %v428 = vpack.c.bf16 %v338, %v336
        %v429 = vpack.c.bf16 %v343, %v341
        %v430 = vpack.c.bf16 %v347, %v345
        %v431 = vpack.c.bf16 %v352, %v350
        %v432 = vpack.c.bf16 %v356, %v354
        %v433 = vpack.c.bf16 %v361, %v359
        %v434 = vpack.c.bf16 %v365, %v363
        %v435 = vpack.c.bf16 %v370, %v368
        %v436 = vpack.c.bf16 %v374, %v372
        %v437 = vpack.c.bf16 %v379, %v377
        %v438 = vpack.c.bf16 %v383, %v381
        %v439 = vpack.c.bf16 %v388, %v386
        %v440 = vpack.c.bf16 %v392, %v390
        %s441 = scalar_lea.vmem %s1, 16
        %v442 = vld [vmem:[%s441] sm:$0xf]
        %v443 = vld [vmem:[%s441 + $0x4] sm:$0xf]
        %v444 = vld [vmem:[%s441 + $0x8] sm:$0xf]
        %v445 = vld [vmem:[%s441 + $0xc] sm:$0xf]
        %v450 = vunpack.c.l.b16 %v442
        %v451 = vunpack.c.l.b16 %v443
        %v452 = vunpack.c.l.b16 %v444
        %v453 = vunpack.c.l.b16 %v445
        %v454 = vpack.c.b16 %v451, %v450
        %v455 = vpack.c.b16 %v453, %v452
        %vm458 = vcmask 261120
        %v460 = vsel %vm458, %v425, 0
        %v463 = vsel %vm458, %v426, 0
        %v466 = vsel %vm458, %v427, 0
        %v469 = vsel %vm458, %v428, 0
        %v472 = vsel %vm458, %v429, 0
        %v475 = vsel %vm458, %v430, 0
        %v478 = vsel %vm458, %v431, 0
        %v481 = vsel %vm458, %v432, 0
        %v484 = vsel %vm458, %v433, 0
        %v487 = vsel %vm458, %v434, 0
        %v490 = vsel %vm458, %v435, 0
        %v493 = vsel %vm458, %v436, 0
        %v496 = vsel %vm458, %v437, 0
        %v499 = vsel %vm458, %v438, 0
        %v502 = vsel %vm458, %v439, 0
        %v505 = vsel %vm458, %v440, 0
        %507 = vmatpush.bf16.msra.mxu0 0
        %508 = vmatpush.bf16.msra.mxu0 0
        %509 = vmatpush.bf16.msra.mxu0 0
        %510 = vmatpush.bf16.msra.mxu0 0
        %511 = vmatpush.bf16.msra.mxu0 0
        %512 = vmatpush.bf16.msra.mxu0 0
        %513 = vmatpush.bf16.msra.mxu0 %v455
        %514 = vmatpush.bf16.msra.mxu0 %v454
        %515 = vmatmul.bf16.gmra.mxu0 %v460
        %v516 = vpop.f32.mrf.mxu0
        %v517 = vadd.f32 0.0, %v516
        %v518 = vpop.f32.mrf.mxu0
        %v519 = vadd.f32 0.0, %v518
        %520 = vmatmul.bf16.gmra.mxu0 %v463
        %v521 = vpop.f32.mrf.mxu0
        %v522 = vadd.f32 0.0, %v521
        %v523 = vpop.f32.mrf.mxu0
        %v524 = vadd.f32 0.0, %v523
        %525 = vmatmul.bf16.gmra.mxu0 %v466
        %v526 = vpop.f32.mrf.mxu0
        %v527 = vadd.f32 0.0, %v526
        %v528 = vpop.f32.mrf.mxu0
        %v529 = vadd.f32 0.0, %v528
        %530 = vmatmul.bf16.gmra.mxu0 %v469
        %v531 = vpop.f32.mrf.mxu0
        %v532 = vadd.f32 0.0, %v531
        %v533 = vpop.f32.mrf.mxu0
        %v534 = vadd.f32 0.0, %v533
        %535 = vmatmul.bf16.gmra.mxu0 %v472
        %v536 = vpop.f32.mrf.mxu0
        %v537 = vadd.f32 0.0, %v536
        %v538 = vpop.f32.mrf.mxu0
        %v539 = vadd.f32 0.0, %v538
        %540 = vmatmul.bf16.gmra.mxu0 %v475
        %v541 = vpop.f32.mrf.mxu0
        %v542 = vadd.f32 0.0, %v541
        %v543 = vpop.f32.mrf.mxu0
        %v544 = vadd.f32 0.0, %v543
        %545 = vmatmul.bf16.gmra.mxu0 %v478
        %v546 = vpop.f32.mrf.mxu0
        %v547 = vadd.f32 0.0, %v546
        %v548 = vpop.f32.mrf.mxu0
        %v549 = vadd.f32 0.0, %v548
        %550 = vmatmul.bf16.gmra.mxu0 %v481
        %v551 = vpop.f32.mrf.mxu0
        %v552 = vadd.f32 0.0, %v551
        %v553 = vpop.f32.mrf.mxu0
        %v554 = vadd.f32 0.0, %v553
        %555 = vmatmul.bf16.gmra.mxu0 %v484
        %v556 = vpop.f32.mrf.mxu0
        %v557 = vadd.f32 0.0, %v556
        %v558 = vpop.f32.mrf.mxu0
        %v559 = vadd.f32 0.0, %v558
        %560 = vmatmul.bf16.gmra.mxu0 %v487
        %v561 = vpop.f32.mrf.mxu0
        %v562 = vadd.f32 0.0, %v561
        %v563 = vpop.f32.mrf.mxu0
        %v564 = vadd.f32 0.0, %v563
        %565 = vmatmul.bf16.gmra.mxu0 %v490
        %v566 = vpop.f32.mrf.mxu0
        %v567 = vadd.f32 0.0, %v566
        %v568 = vpop.f32.mrf.mxu0
        %v569 = vadd.f32 0.0, %v568
        %570 = vmatmul.bf16.gmra.mxu0 %v493
        %v571 = vpop.f32.mrf.mxu0
        %v572 = vadd.f32 0.0, %v571
        %v573 = vpop.f32.mrf.mxu0
        %v574 = vadd.f32 0.0, %v573
        %575 = vmatmul.bf16.gmra.mxu0 %v496
        %v576 = vpop.f32.mrf.mxu0
        %v577 = vadd.f32 0.0, %v576
        %v578 = vpop.f32.mrf.mxu0
        %v579 = vadd.f32 0.0, %v578
        %580 = vmatmul.bf16.gmra.mxu0 %v499
        %v581 = vpop.f32.mrf.mxu0
        %v582 = vadd.f32 0.0, %v581
        %v583 = vpop.f32.mrf.mxu0
        %v584 = vadd.f32 0.0, %v583
        %585 = vmatmul.bf16.gmra.mxu0 %v502
        %v586 = vpop.f32.mrf.mxu0
        %v587 = vadd.f32 0.0, %v586
        %v588 = vpop.f32.mrf.mxu0
        %v589 = vadd.f32 0.0, %v588
        %590 = vmatmul.bf16.gmra.mxu0 %v505
        %v591 = vpop.f32.mrf.mxu0
        %v592 = vadd.f32 0.0, %v591
        %v593 = vpop.f32.mrf.mxu0
        %v594 = vadd.f32 0.0, %v593
        %595 = vdwg.mxu0
        %v600 = vunpack.c.l.b16 %v276
        %v601 = vunpack.c.l.b16 %v277
        %v602 = vunpack.c.l.b16 %v278
        %v603 = vunpack.c.l.b16 %v279
        %v604 = vpack.c.b16 %v601, %v600
        %v605 = vpack.c.b16 %v603, %v602
        %v609 = vsel %vm458, %v260, 0
        %v612 = vsel %vm458, %v261, 0
        %v615 = vsel %vm458, %v262, 0
        %v618 = vsel %vm458, %v263, 0
        %v621 = vsel %vm458, %v264, 0
        %v624 = vsel %vm458, %v265, 0
        %v627 = vsel %vm458, %v266, 0
        %v630 = vsel %vm458, %v267, 0
        %v633 = vsel %vm458, %v268, 0
        %v636 = vsel %vm458, %v269, 0
        %v639 = vsel %vm458, %v270, 0
        %v642 = vsel %vm458, %v271, 0
        %v645 = vsel %vm458, %v272, 0
        %v648 = vsel %vm458, %v273, 0
        %v651 = vsel %vm458, %v274, 0
        %v654 = vsel %vm458, %v275, 0
        %656 = vmatpush.bf16.msra.mxu0 0
        %657 = vmatpush.bf16.msra.mxu0 0
        %658 = vmatpush.bf16.msra.mxu0 0
        %659 = vmatpush.bf16.msra.mxu0 0
        %660 = vmatpush.bf16.msra.mxu0 0
        %661 = vmatpush.bf16.msra.mxu0 0
        %662 = vmatpush.bf16.msra.mxu0 %v605
        %663 = vmatpush.bf16.msra.mxu0 %v604
        %664 = vmatmul.bf16.gmra.mxu0 %v609
        %v665 = vpop.f32.mrf.mxu0
        %v666 = vadd.f32 %v517, %v665
        %v667 = vpop.f32.mrf.mxu0
        %v668 = vadd.f32 %v519, %v667
        %669 = vmatmul.bf16.gmra.mxu0 %v612
        %v670 = vpop.f32.mrf.mxu0
        %v671 = vadd.f32 %v522, %v670
        %v672 = vpop.f32.mrf.mxu0
        %v673 = vadd.f32 %v524, %v672
        %674 = vmatmul.bf16.gmra.mxu0 %v615
        %v675 = vpop.f32.mrf.mxu0
        %v676 = vadd.f32 %v527, %v675
        %v677 = vpop.f32.mrf.mxu0
        %v678 = vadd.f32 %v529, %v677
        %679 = vmatmul.bf16.gmra.mxu0 %v618
        %v680 = vpop.f32.mrf.mxu0
        %v681 = vadd.f32 %v532, %v680
        %v682 = vpop.f32.mrf.mxu0
        %v683 = vadd.f32 %v534, %v682
        %684 = vmatmul.bf16.gmra.mxu0 %v621
        %v685 = vpop.f32.mrf.mxu0
        %v686 = vadd.f32 %v537, %v685
        %v687 = vpop.f32.mrf.mxu0
        %v688 = vadd.f32 %v539, %v687
        %689 = vmatmul.bf16.gmra.mxu0 %v624
        %v690 = vpop.f32.mrf.mxu0
        %v691 = vadd.f32 %v542, %v690
        %v692 = vpop.f32.mrf.mxu0
        %v693 = vadd.f32 %v544, %v692
        %694 = vmatmul.bf16.gmra.mxu0 %v627
        %v695 = vpop.f32.mrf.mxu0
        %v696 = vadd.f32 %v547, %v695
        %v697 = vpop.f32.mrf.mxu0
        %v698 = vadd.f32 %v549, %v697
        %699 = vmatmul.bf16.gmra.mxu0 %v630
        %v700 = vpop.f32.mrf.mxu0
        %v701 = vadd.f32 %v552, %v700
        %v702 = vpop.f32.mrf.mxu0
        %v703 = vadd.f32 %v554, %v702
        %704 = vmatmul.bf16.gmra.mxu0 %v633
        %v705 = vpop.f32.mrf.mxu0
        %v706 = vadd.f32 %v557, %v705
        %v707 = vpop.f32.mrf.mxu0
        %v708 = vadd.f32 %v559, %v707
        %709 = vmatmul.bf16.gmra.mxu0 %v636
        %v710 = vpop.f32.mrf.mxu0
        %v711 = vadd.f32 %v562, %v710
        %v712 = vpop.f32.mrf.mxu0
        %v713 = vadd.f32 %v564, %v712
        %714 = vmatmul.bf16.gmra.mxu0 %v639
        %v715 = vpop.f32.mrf.mxu0
        %v716 = vadd.f32 %v567, %v715
        %v717 = vpop.f32.mrf.mxu0
        %v718 = vadd.f32 %v569, %v717
        %719 = vmatmul.bf16.gmra.mxu0 %v642
        %v720 = vpop.f32.mrf.mxu0
        %v721 = vadd.f32 %v572, %v720
        %v722 = vpop.f32.mrf.mxu0
        %v723 = vadd.f32 %v574, %v722
        %724 = vmatmul.bf16.gmra.mxu0 %v645
        %v725 = vpop.f32.mrf.mxu0
        %v726 = vadd.f32 %v577, %v725
        %v727 = vpop.f32.mrf.mxu0
        %v728 = vadd.f32 %v579, %v727
        %729 = vmatmul.bf16.gmra.mxu0 %v648
        %v730 = vpop.f32.mrf.mxu0
        %v731 = vadd.f32 %v582, %v730
        %v732 = vpop.f32.mrf.mxu0
        %v733 = vadd.f32 %v584, %v732
        %734 = vmatmul.bf16.gmra.mxu0 %v651
        %v735 = vpop.f32.mrf.mxu0
        %v736 = vadd.f32 %v587, %v735
        %v737 = vpop.f32.mrf.mxu0
        %v738 = vadd.f32 %v589, %v737
        %739 = vmatmul.bf16.gmra.mxu0 %v654
        %v740 = vpop.f32.mrf.mxu0
        %v741 = vadd.f32 %v592, %v740
        %v742 = vpop.f32.mrf.mxu0
        %v743 = vadd.f32 %v594, %v742
        %744 = vdwg.mxu0
        %vm745 = vcmask 1045504
        %v746 = vrot.slane %v210, 2
        %v747 = vrot.slane %v211, 2
        %v748 = vsel %vm745, %v746, %v747
        %v749 = vrot.slane %v212, 2
        %v750 = vsel %vm745, %v747, %v749
        %v751 = vrot.slane %v213, 2
        %v752 = vsel %vm745, %v749, %v751
        %v753 = vrot.slane %v214, 2
        %v754 = vsel %vm745, %v751, %v753
        %v755 = vrot.slane %v215, 2
        %v756 = vrot.slane %v216, 2
        %v757 = vsel %vm745, %v755, %v756
        %v758 = vrot.slane %v217, 2
        %v759 = vsel %vm745, %v756, %v758
        %v760 = vrot.slane %v218, 2
        %v761 = vsel %vm745, %v758, %v760
        %v762 = vrot.slane %v219, 2
        %v763 = vsel %vm745, %v760, %v762
        %v764 = vrot.slane %v220, 2
        %v765 = vrot.slane %v221, 2
        %v766 = vsel %vm745, %v764, %v765
        %v767 = vrot.slane %v222, 2
        %v768 = vsel %vm745, %v765, %v767
        %v769 = vrot.slane %v223, 2
        %v770 = vsel %vm745, %v767, %v769
        %v771 = vrot.slane %v224, 2
        %v772 = vsel %vm745, %v769, %v771
        %v773 = vrot.slane %v225, 2
        %v774 = vrot.slane %v226, 2
        %v775 = vsel %vm745, %v773, %v774
        %v776 = vrot.slane %v227, 2
        %v777 = vsel %vm745, %v774, %v776
        %v778 = vrot.slane %v228, 2
        %v779 = vsel %vm745, %v776, %v778
        %v780 = vrot.slane %v229, 2
        %v781 = vsel %vm745, %v778, %v780
        %v782 = vrot.slane %v230, 2
        %v783 = vrot.slane %v231, 2
        %v784 = vsel %vm745, %v782, %v783
        %v785 = vrot.slane %v232, 2
        %v786 = vsel %vm745, %v783, %v785
        %v787 = vrot.slane %v233, 2
        %v788 = vsel %vm745, %v785, %v787
        %v789 = vrot.slane %v234, 2
        %v790 = vsel %vm745, %v787, %v789
        %v791 = vrot.slane %v235, 2
        %v792 = vrot.slane %v236, 2
        %v793 = vsel %vm745, %v791, %v792
        %v794 = vrot.slane %v237, 2
        %v795 = vsel %vm745, %v792, %v794
        %v796 = vrot.slane %v238, 2
        %v797 = vsel %vm745, %v794, %v796
        %v798 = vrot.slane %v239, 2
        %v799 = vsel %vm745, %v796, %v798
        %v800 = vrot.slane %v240, 2
        %v801 = vrot.slane %v241, 2
        %v802 = vsel %vm745, %v800, %v801
        %v803 = vrot.slane %v242, 2
        %v804 = vsel %vm745, %v801, %v803
        %v805 = vrot.slane %v243, 2
        %v806 = vsel %vm745, %v803, %v805
        %v807 = vrot.slane %v244, 2
        %v808 = vsel %vm745, %v805, %v807
        %v809 = vrot.slane %v245, 2
        %v810 = vrot.slane %v246, 2
        %v811 = vsel %vm745, %v809, %v810
        %v812 = vrot.slane %v247, 2
        %v813 = vsel %vm745, %v810, %v812
        %v814 = vrot.slane %v248, 2
        %v815 = vsel %vm745, %v812, %v814
        %v816 = vrot.slane %v249, 2
        %v817 = vsel %vm745, %v814, %v816
        %v850 = vpack.c.bf16 %v750, %v748
        %v851 = vpack.c.bf16 %v754, %v752
        %v852 = vpack.c.bf16 %v759, %v757
        %v853 = vpack.c.bf16 %v763, %v761
        %v854 = vpack.c.bf16 %v768, %v766
        %v855 = vpack.c.bf16 %v772, %v770
        %v856 = vpack.c.bf16 %v777, %v775
        %v857 = vpack.c.bf16 %v781, %v779
        %v858 = vpack.c.bf16 %v786, %v784
        %v859 = vpack.c.bf16 %v790, %v788
        %v860 = vpack.c.bf16 %v795, %v793
        %v861 = vpack.c.bf16 %v799, %v797
        %v862 = vpack.c.bf16 %v804, %v802
        %v863 = vpack.c.bf16 %v808, %v806
        %v864 = vpack.c.bf16 %v813, %v811
        %v865 = vpack.c.bf16 %v817, %v815
        %s866 = scalar_lea.vmem %s1, 32
        %v867 = vld [vmem:[%s866] sm:$0xf]
        %v868 = vld [vmem:[%s866 + $0x4] sm:$0xf]
        %v869 = vld [vmem:[%s866 + $0x8] sm:$0xf]
        %v870 = vld [vmem:[%s866 + $0xc] sm:$0xf]
        %v875 = vunpack.c.l.b16 %v867
        %v876 = vunpack.c.l.b16 %v868
        %v877 = vunpack.c.l.b16 %v869
        %v878 = vunpack.c.l.b16 %v870
        %v879 = vpack.c.b16 %v876, %v875
        %v880 = vpack.c.b16 %v878, %v877
        %v884 = vsel %vm458, %v850, 0
        %v887 = vsel %vm458, %v851, 0
        %v890 = vsel %vm458, %v852, 0
        %v893 = vsel %vm458, %v853, 0
        %v896 = vsel %vm458, %v854, 0
        %v899 = vsel %vm458, %v855, 0
        %v902 = vsel %vm458, %v856, 0
        %v905 = vsel %vm458, %v857, 0
        %v908 = vsel %vm458, %v858, 0
        %v911 = vsel %vm458, %v859, 0
        %v914 = vsel %vm458, %v860, 0
        %v917 = vsel %vm458, %v861, 0
        %v920 = vsel %vm458, %v862, 0
        %v923 = vsel %vm458, %v863, 0
        %v926 = vsel %vm458, %v864, 0
        %v929 = vsel %vm458, %v865, 0
        %931 = vmatpush.bf16.msra.mxu0 0
        %932 = vmatpush.bf16.msra.mxu0 0
        %933 = vmatpush.bf16.msra.mxu0 0
        %934 = vmatpush.bf16.msra.mxu0 0
        %935 = vmatpush.bf16.msra.mxu0 0
        %936 = vmatpush.bf16.msra.mxu0 0
        %937 = vmatpush.bf16.msra.mxu0 %v880
        %938 = vmatpush.bf16.msra.mxu0 %v879
        %939 = vmatmul.bf16.gmra.mxu0 %v884
        %v940 = vpop.f32.mrf.mxu0
        %v941 = vadd.f32 0.0, %v940
        %v942 = vpop.f32.mrf.mxu0
        %v943 = vadd.f32 0.0, %v942
        %944 = vmatmul.bf16.gmra.mxu0 %v887
        %v945 = vpop.f32.mrf.mxu0
        %v946 = vadd.f32 0.0, %v945
        %v947 = vpop.f32.mrf.mxu0
        %v948 = vadd.f32 0.0, %v947
        %949 = vmatmul.bf16.gmra.mxu0 %v890
        %v950 = vpop.f32.mrf.mxu0
        %v951 = vadd.f32 0.0, %v950
        %v952 = vpop.f32.mrf.mxu0
        %v953 = vadd.f32 0.0, %v952
        %954 = vmatmul.bf16.gmra.mxu0 %v893
        %v955 = vpop.f32.mrf.mxu0
        %v956 = vadd.f32 0.0, %v955
        %v957 = vpop.f32.mrf.mxu0
        %v958 = vadd.f32 0.0, %v957
        %959 = vmatmul.bf16.gmra.mxu0 %v896
        %v960 = vpop.f32.mrf.mxu0
        %v961 = vadd.f32 0.0, %v960
        %v962 = vpop.f32.mrf.mxu0
        %v963 = vadd.f32 0.0, %v962
        %964 = vmatmul.bf16.gmra.mxu0 %v899
        %v965 = vpop.f32.mrf.mxu0
        %v966 = vadd.f32 0.0, %v965
        %v967 = vpop.f32.mrf.mxu0
        %v968 = vadd.f32 0.0, %v967
        %969 = vmatmul.bf16.gmra.mxu0 %v902
        %v970 = vpop.f32.mrf.mxu0
        %v971 = vadd.f32 0.0, %v970
        %v972 = vpop.f32.mrf.mxu0
        %v973 = vadd.f32 0.0, %v972
        %974 = vmatmul.bf16.gmra.mxu0 %v905
        %v975 = vpop.f32.mrf.mxu0
        %v976 = vadd.f32 0.0, %v975
        %v977 = vpop.f32.mrf.mxu0
        %v978 = vadd.f32 0.0, %v977
        %979 = vmatmul.bf16.gmra.mxu0 %v908
        %v980 = vpop.f32.mrf.mxu0
        %v981 = vadd.f32 0.0, %v980
        %v982 = vpop.f32.mrf.mxu0
        %v983 = vadd.f32 0.0, %v982
        %984 = vmatmul.bf16.gmra.mxu0 %v911
        %v985 = vpop.f32.mrf.mxu0
        %v986 = vadd.f32 0.0, %v985
        %v987 = vpop.f32.mrf.mxu0
        %v988 = vadd.f32 0.0, %v987
        %989 = vmatmul.bf16.gmra.mxu0 %v914
        %v990 = vpop.f32.mrf.mxu0
        %v991 = vadd.f32 0.0, %v990
        %v992 = vpop.f32.mrf.mxu0
        %v993 = vadd.f32 0.0, %v992
        %994 = vmatmul.bf16.gmra.mxu0 %v917
        %v995 = vpop.f32.mrf.mxu0
        %v996 = vadd.f32 0.0, %v995
        %v997 = vpop.f32.mrf.mxu0
        %v998 = vadd.f32 0.0, %v997
        %999 = vmatmul.bf16.gmra.mxu0 %v920
        %v1000 = vpop.f32.mrf.mxu0
        %v1001 = vadd.f32 0.0, %v1000
        %v1002 = vpop.f32.mrf.mxu0
        %v1003 = vadd.f32 0.0, %v1002
        %1004 = vmatmul.bf16.gmra.mxu0 %v923
        %v1005 = vpop.f32.mrf.mxu0
        %v1006 = vadd.f32 0.0, %v1005
        %v1007 = vpop.f32.mrf.mxu0
        %v1008 = vadd.f32 0.0, %v1007
        %1009 = vmatmul.bf16.gmra.mxu0 %v926
        %v1010 = vpop.f32.mrf.mxu0
        %v1011 = vadd.f32 0.0, %v1010
        %v1012 = vpop.f32.mrf.mxu0
        %v1013 = vadd.f32 0.0, %v1012
        %1014 = vmatmul.bf16.gmra.mxu0 %v929
        %v1015 = vpop.f32.mrf.mxu0
        %v1016 = vadd.f32 0.0, %v1015
        %v1017 = vpop.f32.mrf.mxu0
        %v1018 = vadd.f32 0.0, %v1017
        %1019 = vdwg.mxu0
        %v1020 = vadd.f32 %v666, %v941
        %v1021 = vadd.f32 %v668, %v943
        %v1022 = vadd.f32 %v671, %v946
        %v1023 = vadd.f32 %v673, %v948
        %v1024 = vadd.f32 %v676, %v951
        %v1025 = vadd.f32 %v678, %v953
        %v1026 = vadd.f32 %v681, %v956
        %v1027 = vadd.f32 %v683, %v958
        %v1028 = vadd.f32 %v686, %v961
        %v1029 = vadd.f32 %v688, %v963
        %v1030 = vadd.f32 %v691, %v966
        %v1031 = vadd.f32 %v693, %v968
        %v1032 = vadd.f32 %v696, %v971
        %v1033 = vadd.f32 %v698, %v973
        %v1034 = vadd.f32 %v701, %v976
        %v1035 = vadd.f32 %v703, %v978
        %v1036 = vadd.f32 %v706, %v981
        %v1037 = vadd.f32 %v708, %v983
        %v1038 = vadd.f32 %v711, %v986
        %v1039 = vadd.f32 %v713, %v988
        %v1040 = vadd.f32 %v716, %v991
        %v1041 = vadd.f32 %v718, %v993
        %v1042 = vadd.f32 %v721, %v996
        %v1043 = vadd.f32 %v723, %v998
        %v1044 = vadd.f32 %v726, %v1001
        %v1045 = vadd.f32 %v728, %v1003
        %v1046 = vadd.f32 %v731, %v1006
        %v1047 = vadd.f32 %v733, %v1008
        %v1048 = vadd.f32 %v736, %v1011
        %v1049 = vadd.f32 %v738, %v1013
        %v1050 = vadd.f32 %v741, %v1016
        %v1051 = vadd.f32 %v743, %v1018
        %v1052 = vpack.c.bf16 %v251, %v250
        %v1053 = vpack.c.bf16 %v253, %v252
        %s1054 = scalar_lea.vmem %s1, 48
        %v1055 = vld [vmem:[%s1054] sm:$0xf]
        %v1056 = vld [vmem:[%s1054 + $0x4] sm:$0xf]
        %v1057 = vld [vmem:[%s1054 + $0x8] sm:$0xf]
        %v1058 = vld [vmem:[%s1054 + $0xc] sm:$0xf]
        %v1063 = vunpack.c.l.b16 %v1055
        %v1064 = vunpack.c.l.b16 %v1056
        %v1065 = vunpack.c.l.b16 %v1057
        %v1066 = vunpack.c.l.b16 %v1058
        %v1067 = vpack.c.b16 %v1064, %v1063
        %v1068 = vpack.c.b16 %v1066, %v1065
        %v1072 = vsel %vm458, %v1052, 0
        %v1075 = vsel %vm458, %v1053, 0
        %1077 = vmatpush.bf16.msra.mxu0 0
        %1078 = vmatpush.bf16.msra.mxu0 0
        %1079 = vmatpush.bf16.msra.mxu0 0
        %1080 = vmatpush.bf16.msra.mxu0 0
        %1081 = vmatpush.bf16.msra.mxu0 0
        %1082 = vmatpush.bf16.msra.mxu0 0
        %1083 = vmatpush.bf16.msra.mxu0 %v1068
        %1084 = vmatpush.bf16.msra.mxu0 %v1067
        %1085 = vmatmul.bf16.gmra.mxu0 %v615
        %v1086 = vpop.f32.mrf.mxu0
        %v1087 = vadd.f32 0.0, %v1086
        %v1088 = vpop.f32.mrf.mxu0
        %v1089 = vadd.f32 0.0, %v1088
        %1090 = vmatmul.bf16.gmra.mxu0 %v618
        %v1091 = vpop.f32.mrf.mxu0
        %v1092 = vadd.f32 0.0, %v1091
        %v1093 = vpop.f32.mrf.mxu0
        %v1094 = vadd.f32 0.0, %v1093
        %1095 = vmatmul.bf16.gmra.mxu0 %v621
        %v1096 = vpop.f32.mrf.mxu0
        %v1097 = vadd.f32 0.0, %v1096
        %v1098 = vpop.f32.mrf.mxu0
        %v1099 = vadd.f32 0.0, %v1098
        %1100 = vmatmul.bf16.gmra.mxu0 %v624
        %v1101 = vpop.f32.mrf.mxu0
        %v1102 = vadd.f32 0.0, %v1101
        %v1103 = vpop.f32.mrf.mxu0
        %v1104 = vadd.f32 0.0, %v1103
        %1105 = vmatmul.bf16.gmra.mxu0 %v627
        %v1106 = vpop.f32.mrf.mxu0
        %v1107 = vadd.f32 0.0, %v1106
        %v1108 = vpop.f32.mrf.mxu0
        %v1109 = vadd.f32 0.0, %v1108
        %1110 = vmatmul.bf16.gmra.mxu0 %v630
        %v1111 = vpop.f32.mrf.mxu0
        %v1112 = vadd.f32 0.0, %v1111
        %v1113 = vpop.f32.mrf.mxu0
        %v1114 = vadd.f32 0.0, %v1113
        %1115 = vmatmul.bf16.gmra.mxu0 %v633
        %v1116 = vpop.f32.mrf.mxu0
        %v1117 = vadd.f32 0.0, %v1116
        %v1118 = vpop.f32.mrf.mxu0
        %v1119 = vadd.f32 0.0, %v1118
        %1120 = vmatmul.bf16.gmra.mxu0 %v636
        %v1121 = vpop.f32.mrf.mxu0
        %v1122 = vadd.f32 0.0, %v1121
        %v1123 = vpop.f32.mrf.mxu0
        %v1124 = vadd.f32 0.0, %v1123
        %1125 = vmatmul.bf16.gmra.mxu0 %v639
        %v1126 = vpop.f32.mrf.mxu0
        %v1127 = vadd.f32 0.0, %v1126
        %v1128 = vpop.f32.mrf.mxu0
        %v1129 = vadd.f32 0.0, %v1128
        %1130 = vmatmul.bf16.gmra.mxu0 %v642
        %v1131 = vpop.f32.mrf.mxu0
        %v1132 = vadd.f32 0.0, %v1131
        %v1133 = vpop.f32.mrf.mxu0
        %v1134 = vadd.f32 0.0, %v1133
        %1135 = vmatmul.bf16.gmra.mxu0 %v645
        %v1136 = vpop.f32.mrf.mxu0
        %v1137 = vadd.f32 0.0, %v1136
        %v1138 = vpop.f32.mrf.mxu0
        %v1139 = vadd.f32 0.0, %v1138
        %1140 = vmatmul.bf16.gmra.mxu0 %v648
        %v1141 = vpop.f32.mrf.mxu0
        %v1142 = vadd.f32 0.0, %v1141
        %v1143 = vpop.f32.mrf.mxu0
        %v1144 = vadd.f32 0.0, %v1143
        %1145 = vmatmul.bf16.gmra.mxu0 %v651
        %v1146 = vpop.f32.mrf.mxu0
        %v1147 = vadd.f32 0.0, %v1146
        %v1148 = vpop.f32.mrf.mxu0
        %v1149 = vadd.f32 0.0, %v1148
        %1150 = vmatmul.bf16.gmra.mxu0 %v654
        %v1151 = vpop.f32.mrf.mxu0
        %v1152 = vadd.f32 0.0, %v1151
        %v1153 = vpop.f32.mrf.mxu0
        %v1154 = vadd.f32 0.0, %v1153
        %1155 = vmatmul.bf16.gmra.mxu0 %v1072
        %v1156 = vpop.f32.mrf.mxu0
        %v1157 = vadd.f32 0.0, %v1156
        %v1158 = vpop.f32.mrf.mxu0
        %v1159 = vadd.f32 0.0, %v1158
        %1160 = vmatmul.bf16.gmra.mxu0 %v1075
        %v1161 = vpop.f32.mrf.mxu0
        %v1162 = vadd.f32 0.0, %v1161
        %v1163 = vpop.f32.mrf.mxu0
        %v1164 = vadd.f32 0.0, %v1163
        %1165 = vdwg.mxu0
        %v1166 = vadd.f32 %v1020, %v1087
        %v1167 = vadd.f32 %v1021, %v1089
        %v1168 = vadd.f32 %v1022, %v1092
        %v1169 = vadd.f32 %v1023, %v1094
        %v1170 = vadd.f32 %v1024, %v1097
        %v1171 = vadd.f32 %v1025, %v1099
        %v1172 = vadd.f32 %v1026, %v1102
        %v1173 = vadd.f32 %v1027, %v1104
        %v1174 = vadd.f32 %v1028, %v1107
        %v1175 = vadd.f32 %v1029, %v1109
        %v1176 = vadd.f32 %v1030, %v1112
        %v1177 = vadd.f32 %v1031, %v1114
        %v1178 = vadd.f32 %v1032, %v1117
        %v1179 = vadd.f32 %v1033, %v1119
        %v1180 = vadd.f32 %v1034, %v1122
        %v1181 = vadd.f32 %v1035, %v1124
        %v1182 = vadd.f32 %v1036, %v1127
        %v1183 = vadd.f32 %v1037, %v1129
        %v1184 = vadd.f32 %v1038, %v1132
        %v1185 = vadd.f32 %v1039, %v1134
        %v1186 = vadd.f32 %v1040, %v1137
        %v1187 = vadd.f32 %v1041, %v1139
        %v1188 = vadd.f32 %v1042, %v1142
        %v1189 = vadd.f32 %v1043, %v1144
        %v1190 = vadd.f32 %v1044, %v1147
        %v1191 = vadd.f32 %v1045, %v1149
        %v1192 = vadd.f32 %v1046, %v1152
        %v1193 = vadd.f32 %v1047, %v1154
        %v1194 = vadd.f32 %v1048, %v1157
        %v1195 = vadd.f32 %v1049, %v1159
        %v1196 = vadd.f32 %v1050, %v1162
        %v1197 = vadd.f32 %v1051, %v1164
        %v1203 = vrot.slane %v250, 1
        %v1204 = vrot.slane %v251, 1
        %v1205 = vsel %vm320, %v1203, %v1204
        %v1206 = vrot.slane %v252, 1
        %v1207 = vsel %vm320, %v1204, %v1206
        %v1208 = vrot.slane %v253, 1
        %v1209 = vsel %vm320, %v1206, %v1208
        %v1210 = vrot.slane %v254, 1
        %v1211 = vsel %vm320, %v1208, %v1210
        %v1216 = vpack.c.bf16 %v1207, %v1205
        %v1217 = vpack.c.bf16 %v1211, %v1209
        %s1218 = scalar_lea.vmem %s1, 64
        %v1219 = vld [vmem:[%s1218] sm:$0xf]
        %v1220 = vld [vmem:[%s1218 + $0x4] sm:$0xf]
        %v1221 = vld [vmem:[%s1218 + $0x8] sm:$0xf]
        %v1222 = vld [vmem:[%s1218 + $0xc] sm:$0xf]
        %v1227 = vunpack.c.l.b16 %v1219
        %v1228 = vunpack.c.l.b16 %v1220
        %v1229 = vunpack.c.l.b16 %v1221
        %v1230 = vunpack.c.l.b16 %v1222
        %v1231 = vpack.c.b16 %v1228, %v1227
        %v1232 = vpack.c.b16 %v1230, %v1229
        %v1236 = vsel %vm458, %v1216, 0
        %v1239 = vsel %vm458, %v1217, 0
        %1241 = vmatpush.bf16.msra.mxu0 0
        %1242 = vmatpush.bf16.msra.mxu0 0
        %1243 = vmatpush.bf16.msra.mxu0 0
        %1244 = vmatpush.bf16.msra.mxu0 0
        %1245 = vmatpush.bf16.msra.mxu0 0
        %1246 = vmatpush.bf16.msra.mxu0 0
        %1247 = vmatpush.bf16.msra.mxu0 %v1232
        %1248 = vmatpush.bf16.msra.mxu0 %v1231
        %1249 = vmatmul.bf16.gmra.mxu0 %v466
        %v1250 = vpop.f32.mrf.mxu0
        %v1251 = vadd.f32 0.0, %v1250
        %v1252 = vpop.f32.mrf.mxu0
        %v1253 = vadd.f32 0.0, %v1252
        %1254 = vmatmul.bf16.gmra.mxu0 %v469
        %v1255 = vpop.f32.mrf.mxu0
        %v1256 = vadd.f32 0.0, %v1255
        %v1257 = vpop.f32.mrf.mxu0
        %v1258 = vadd.f32 0.0, %v1257
        %1259 = vmatmul.bf16.gmra.mxu0 %v472
        %v1260 = vpop.f32.mrf.mxu0
        %v1261 = vadd.f32 0.0, %v1260
        %v1262 = vpop.f32.mrf.mxu0
        %v1263 = vadd.f32 0.0, %v1262
        %1264 = vmatmul.bf16.gmra.mxu0 %v475
        %v1265 = vpop.f32.mrf.mxu0
        %v1266 = vadd.f32 0.0, %v1265
        %v1267 = vpop.f32.mrf.mxu0
        %v1268 = vadd.f32 0.0, %v1267
        %1269 = vmatmul.bf16.gmra.mxu0 %v478
        %v1270 = vpop.f32.mrf.mxu0
        %v1271 = vadd.f32 0.0, %v1270
        %v1272 = vpop.f32.mrf.mxu0
        %v1273 = vadd.f32 0.0, %v1272
        %1274 = vmatmul.bf16.gmra.mxu0 %v481
        %v1275 = vpop.f32.mrf.mxu0
        %v1276 = vadd.f32 0.0, %v1275
        %v1277 = vpop.f32.mrf.mxu0
        %v1278 = vadd.f32 0.0, %v1277
        %1279 = vmatmul.bf16.gmra.mxu0 %v484
        %v1280 = vpop.f32.mrf.mxu0
        %v1281 = vadd.f32 0.0, %v1280
        %v1282 = vpop.f32.mrf.mxu0
        %v1283 = vadd.f32 0.0, %v1282
        %1284 = vmatmul.bf16.gmra.mxu0 %v487
        %v1285 = vpop.f32.mrf.mxu0
        %v1286 = vadd.f32 0.0, %v1285
        %v1287 = vpop.f32.mrf.mxu0
        %v1288 = vadd.f32 0.0, %v1287
        %1289 = vmatmul.bf16.gmra.mxu0 %v490
        %v1290 = vpop.f32.mrf.mxu0
        %v1291 = vadd.f32 0.0, %v1290
        %v1292 = vpop.f32.mrf.mxu0
        %v1293 = vadd.f32 0.0, %v1292
        %1294 = vmatmul.bf16.gmra.mxu0 %v493
        %v1295 = vpop.f32.mrf.mxu0
        %v1296 = vadd.f32 0.0, %v1295
        %v1297 = vpop.f32.mrf.mxu0
        %v1298 = vadd.f32 0.0, %v1297
        %1299 = vmatmul.bf16.gmra.mxu0 %v496
        %v1300 = vpop.f32.mrf.mxu0
        %v1301 = vadd.f32 0.0, %v1300
        %v1302 = vpop.f32.mrf.mxu0
        %v1303 = vadd.f32 0.0, %v1302
        %1304 = vmatmul.bf16.gmra.mxu0 %v499
        %v1305 = vpop.f32.mrf.mxu0
        %v1306 = vadd.f32 0.0, %v1305
        %v1307 = vpop.f32.mrf.mxu0
        %v1308 = vadd.f32 0.0, %v1307
        %1309 = vmatmul.bf16.gmra.mxu0 %v502
        %v1310 = vpop.f32.mrf.mxu0
        %v1311 = vadd.f32 0.0, %v1310
        %v1312 = vpop.f32.mrf.mxu0
        %v1313 = vadd.f32 0.0, %v1312
        %1314 = vmatmul.bf16.gmra.mxu0 %v505
        %v1315 = vpop.f32.mrf.mxu0
        %v1316 = vadd.f32 0.0, %v1315
        %v1317 = vpop.f32.mrf.mxu0
        %v1318 = vadd.f32 0.0, %v1317
        %1319 = vmatmul.bf16.gmra.mxu0 %v1236
        %v1320 = vpop.f32.mrf.mxu0
        %v1321 = vadd.f32 0.0, %v1320
        %v1322 = vpop.f32.mrf.mxu0
        %v1323 = vadd.f32 0.0, %v1322
        %1324 = vmatmul.bf16.gmra.mxu0 %v1239
        %v1325 = vpop.f32.mrf.mxu0
        %v1326 = vadd.f32 0.0, %v1325
        %v1327 = vpop.f32.mrf.mxu0
        %v1328 = vadd.f32 0.0, %v1327
        %1329 = vdwg.mxu0
        %v1330 = vadd.f32 %v1166, %v1251
        %v1331 = vadd.f32 %v1167, %v1253
        %v1332 = vadd.f32 %v1168, %v1256
        %v1333 = vadd.f32 %v1169, %v1258
        %v1334 = vadd.f32 %v1170, %v1261
        %v1335 = vadd.f32 %v1171, %v1263
        %v1336 = vadd.f32 %v1172, %v1266
        %v1337 = vadd.f32 %v1173, %v1268
        %v1338 = vadd.f32 %v1174, %v1271
        %v1339 = vadd.f32 %v1175, %v1273
        %v1340 = vadd.f32 %v1176, %v1276
        %v1341 = vadd.f32 %v1177, %v1278
        %v1342 = vadd.f32 %v1178, %v1281
        %v1343 = vadd.f32 %v1179, %v1283
        %v1344 = vadd.f32 %v1180, %v1286
        %v1345 = vadd.f32 %v1181, %v1288
        %v1346 = vadd.f32 %v1182, %v1291
        %v1347 = vadd.f32 %v1183, %v1293
        %v1348 = vadd.f32 %v1184, %v1296
        %v1349 = vadd.f32 %v1185, %v1298
        %v1350 = vadd.f32 %v1186, %v1301
        %v1351 = vadd.f32 %v1187, %v1303
        %v1352 = vadd.f32 %v1188, %v1306
        %v1353 = vadd.f32 %v1189, %v1308
        %v1354 = vadd.f32 %v1190, %v1311
        %v1355 = vadd.f32 %v1191, %v1313
        %v1356 = vadd.f32 %v1192, %v1316
        %v1357 = vadd.f32 %v1193, %v1318
        %v1358 = vadd.f32 %v1194, %v1321
        %v1359 = vadd.f32 %v1195, %v1323
        %v1360 = vadd.f32 %v1196, %v1326
        %v1361 = vadd.f32 %v1197, %v1328
        %v1362 = vrot.slane %v250, 2
        %v1363 = vrot.slane %v251, 2
        %v1364 = vsel %vm745, %v1362, %v1363
        %v1365 = vrot.slane %v252, 2
        %v1366 = vsel %vm745, %v1363, %v1365
        %v1367 = vrot.slane %v253, 2
        %v1368 = vsel %vm745, %v1365, %v1367
        %v1369 = vrot.slane %v254, 2
        %v1370 = vsel %vm745, %v1367, %v1369
        %v1375 = vpack.c.bf16 %v1366, %v1364
        %v1376 = vpack.c.bf16 %v1370, %v1368
        %s1377 = scalar_lea.vmem %s1, 80
        %v1378 = vld [vmem:[%s1377] sm:$0xf]
        %v1379 = vld [vmem:[%s1377 + $0x4] sm:$0xf]
        %v1380 = vld [vmem:[%s1377 + $0x8] sm:$0xf]
        %v1381 = vld [vmem:[%s1377 + $0xc] sm:$0xf]
        %v1386 = vunpack.c.l.b16 %v1378
        %v1387 = vunpack.c.l.b16 %v1379
        %v1388 = vunpack.c.l.b16 %v1380
        %v1389 = vunpack.c.l.b16 %v1381
        %v1390 = vpack.c.b16 %v1387, %v1386
        %v1391 = vpack.c.b16 %v1389, %v1388
        %v1395 = vsel %vm458, %v1375, 0
        %v1398 = vsel %vm458, %v1376, 0
        %1400 = vmatpush.bf16.msra.mxu0 0
        %1401 = vmatpush.bf16.msra.mxu0 0
        %1402 = vmatpush.bf16.msra.mxu0 0
        %1403 = vmatpush.bf16.msra.mxu0 0
        %1404 = vmatpush.bf16.msra.mxu0 0
        %1405 = vmatpush.bf16.msra.mxu0 0
        %1406 = vmatpush.bf16.msra.mxu0 %v1391
        %1407 = vmatpush.bf16.msra.mxu0 %v1390
        %1408 = vmatmul.bf16.gmra.mxu0 %v890
        %v1409 = vpop.f32.mrf.mxu0
        %v1410 = vadd.f32 0.0, %v1409
        %v1411 = vpop.f32.mrf.mxu0
        %v1412 = vadd.f32 0.0, %v1411
        %1413 = vmatmul.bf16.gmra.mxu0 %v893
        %v1414 = vpop.f32.mrf.mxu0
        %v1415 = vadd.f32 0.0, %v1414
        %v1416 = vpop.f32.mrf.mxu0
        %v1417 = vadd.f32 0.0, %v1416
        %1418 = vmatmul.bf16.gmra.mxu0 %v896
        %v1419 = vpop.f32.mrf.mxu0
        %v1420 = vadd.f32 0.0, %v1419
        %v1421 = vpop.f32.mrf.mxu0
        %v1422 = vadd.f32 0.0, %v1421
        %1423 = vmatmul.bf16.gmra.mxu0 %v899
        %v1424 = vpop.f32.mrf.mxu0
        %v1425 = vadd.f32 0.0, %v1424
        %v1426 = vpop.f32.mrf.mxu0
        %v1427 = vadd.f32 0.0, %v1426
        %1428 = vmatmul.bf16.gmra.mxu0 %v902
        %v1429 = vpop.f32.mrf.mxu0
        %v1430 = vadd.f32 0.0, %v1429
        %v1431 = vpop.f32.mrf.mxu0
        %v1432 = vadd.f32 0.0, %v1431
        %1433 = vmatmul.bf16.gmra.mxu0 %v905
        %v1434 = vpop.f32.mrf.mxu0
        %v1435 = vadd.f32 0.0, %v1434
        %v1436 = vpop.f32.mrf.mxu0
        %v1437 = vadd.f32 0.0, %v1436
        %1438 = vmatmul.bf16.gmra.mxu0 %v908
        %v1439 = vpop.f32.mrf.mxu0
        %v1440 = vadd.f32 0.0, %v1439
        %v1441 = vpop.f32.mrf.mxu0
        %v1442 = vadd.f32 0.0, %v1441
        %1443 = vmatmul.bf16.gmra.mxu0 %v911
        %v1444 = vpop.f32.mrf.mxu0
        %v1445 = vadd.f32 0.0, %v1444
        %v1446 = vpop.f32.mrf.mxu0
        %v1447 = vadd.f32 0.0, %v1446
        %1448 = vmatmul.bf16.gmra.mxu0 %v914
        %v1449 = vpop.f32.mrf.mxu0
        %v1450 = vadd.f32 0.0, %v1449
        %v1451 = vpop.f32.mrf.mxu0
        %v1452 = vadd.f32 0.0, %v1451
        %1453 = vmatmul.bf16.gmra.mxu0 %v917
        %v1454 = vpop.f32.mrf.mxu0
        %v1455 = vadd.f32 0.0, %v1454
        %v1456 = vpop.f32.mrf.mxu0
        %v1457 = vadd.f32 0.0, %v1456
        %1458 = vmatmul.bf16.gmra.mxu0 %v920
        %v1459 = vpop.f32.mrf.mxu0
        %v1460 = vadd.f32 0.0, %v1459
        %v1461 = vpop.f32.mrf.mxu0
        %v1462 = vadd.f32 0.0, %v1461
        %1463 = vmatmul.bf16.gmra.mxu0 %v923
        %v1464 = vpop.f32.mrf.mxu0
        %v1465 = vadd.f32 0.0, %v1464
        %v1466 = vpop.f32.mrf.mxu0
        %v1467 = vadd.f32 0.0, %v1466
        %1468 = vmatmul.bf16.gmra.mxu0 %v926
        %v1469 = vpop.f32.mrf.mxu0
        %v1470 = vadd.f32 0.0, %v1469
        %v1471 = vpop.f32.mrf.mxu0
        %v1472 = vadd.f32 0.0, %v1471
        %1473 = vmatmul.bf16.gmra.mxu0 %v929
        %v1474 = vpop.f32.mrf.mxu0
        %v1475 = vadd.f32 0.0, %v1474
        %v1476 = vpop.f32.mrf.mxu0
        %v1477 = vadd.f32 0.0, %v1476
        %1478 = vmatmul.bf16.gmra.mxu0 %v1395
        %v1479 = vpop.f32.mrf.mxu0
        %v1480 = vadd.f32 0.0, %v1479
        %v1481 = vpop.f32.mrf.mxu0
        %v1482 = vadd.f32 0.0, %v1481
        %1483 = vmatmul.bf16.gmra.mxu0 %v1398
        %v1484 = vpop.f32.mrf.mxu0
        %v1485 = vadd.f32 0.0, %v1484
        %v1486 = vpop.f32.mrf.mxu0
        %v1487 = vadd.f32 0.0, %v1486
        %1488 = vdwg.mxu0
        %v1489 = vadd.f32 %v1330, %v1410
        %v1490 = vadd.f32 %v1331, %v1412
        %v1491 = vadd.f32 %v1332, %v1415
        %v1492 = vadd.f32 %v1333, %v1417
        %v1493 = vadd.f32 %v1334, %v1420
        %v1494 = vadd.f32 %v1335, %v1422
        %v1495 = vadd.f32 %v1336, %v1425
        %v1496 = vadd.f32 %v1337, %v1427
        %v1497 = vadd.f32 %v1338, %v1430
        %v1498 = vadd.f32 %v1339, %v1432
        %v1499 = vadd.f32 %v1340, %v1435
        %v1500 = vadd.f32 %v1341, %v1437
        %v1501 = vadd.f32 %v1342, %v1440
        %v1502 = vadd.f32 %v1343, %v1442
        %v1503 = vadd.f32 %v1344, %v1445
        %v1504 = vadd.f32 %v1345, %v1447
        %v1505 = vadd.f32 %v1346, %v1450
        %v1506 = vadd.f32 %v1347, %v1452
        %v1507 = vadd.f32 %v1348, %v1455
        %v1508 = vadd.f32 %v1349, %v1457
        %v1509 = vadd.f32 %v1350, %v1460
        %v1510 = vadd.f32 %v1351, %v1462
        %v1511 = vadd.f32 %v1352, %v1465
        %v1512 = vadd.f32 %v1353, %v1467
        %v1513 = vadd.f32 %v1354, %v1470
        %v1514 = vadd.f32 %v1355, %v1472
        %v1515 = vadd.f32 %v1356, %v1475
        %v1516 = vadd.f32 %v1357, %v1477
        %v1517 = vadd.f32 %v1358, %v1480
        %v1518 = vadd.f32 %v1359, %v1482
        %v1519 = vadd.f32 %v1360, %v1485
        %v1520 = vadd.f32 %v1361, %v1487
        %v1521 = vpack.c.bf16 %v256, %v255
        %v1522 = vpack.c.bf16 %v258, %v257
        %s1523 = scalar_lea.vmem %s1, 96
        %v1524 = vld [vmem:[%s1523] sm:$0xf]
        %v1525 = vld [vmem:[%s1523 + $0x4] sm:$0xf]
        %v1526 = vld [vmem:[%s1523 + $0x8] sm:$0xf]
        %v1527 = vld [vmem:[%s1523 + $0xc] sm:$0xf]
        %v1532 = vunpack.c.l.b16 %v1524
        %v1533 = vunpack.c.l.b16 %v1525
        %v1534 = vunpack.c.l.b16 %v1526
        %v1535 = vunpack.c.l.b16 %v1527
        %v1536 = vpack.c.b16 %v1533, %v1532
        %v1537 = vpack.c.b16 %v1535, %v1534
        %v1541 = vsel %vm458, %v1521, 0
        %v1544 = vsel %vm458, %v1522, 0
        %1546 = vmatpush.bf16.msra.mxu0 0
        %1547 = vmatpush.bf16.msra.mxu0 0
        %1548 = vmatpush.bf16.msra.mxu0 0
        %1549 = vmatpush.bf16.msra.mxu0 0
        %1550 = vmatpush.bf16.msra.mxu0 0
        %1551 = vmatpush.bf16.msra.mxu0 0
        %1552 = vmatpush.bf16.msra.mxu0 %v1537
        %1553 = vmatpush.bf16.msra.mxu0 %v1536
        %1554 = vmatmul.bf16.gmra.mxu0 %v621
        %v1555 = vpop.f32.mrf.mxu0
        %v1556 = vadd.f32 0.0, %v1555
        %v1557 = vpop.f32.mrf.mxu0
        %v1558 = vadd.f32 0.0, %v1557
        %1559 = vmatmul.bf16.gmra.mxu0 %v624
        %v1560 = vpop.f32.mrf.mxu0
        %v1561 = vadd.f32 0.0, %v1560
        %v1562 = vpop.f32.mrf.mxu0
        %v1563 = vadd.f32 0.0, %v1562
        %1564 = vmatmul.bf16.gmra.mxu0 %v627
        %v1565 = vpop.f32.mrf.mxu0
        %v1566 = vadd.f32 0.0, %v1565
        %v1567 = vpop.f32.mrf.mxu0
        %v1568 = vadd.f32 0.0, %v1567
        %1569 = vmatmul.bf16.gmra.mxu0 %v630
        %v1570 = vpop.f32.mrf.mxu0
        %v1571 = vadd.f32 0.0, %v1570
        %v1572 = vpop.f32.mrf.mxu0
        %v1573 = vadd.f32 0.0, %v1572
        %1574 = vmatmul.bf16.gmra.mxu0 %v633
        %v1575 = vpop.f32.mrf.mxu0
        %v1576 = vadd.f32 0.0, %v1575
        %v1577 = vpop.f32.mrf.mxu0
        %v1578 = vadd.f32 0.0, %v1577
        %1579 = vmatmul.bf16.gmra.mxu0 %v636
        %v1580 = vpop.f32.mrf.mxu0
        %v1581 = vadd.f32 0.0, %v1580
        %v1582 = vpop.f32.mrf.mxu0
        %v1583 = vadd.f32 0.0, %v1582
        %1584 = vmatmul.bf16.gmra.mxu0 %v639
        %v1585 = vpop.f32.mrf.mxu0
        %v1586 = vadd.f32 0.0, %v1585
        %v1587 = vpop.f32.mrf.mxu0
        %v1588 = vadd.f32 0.0, %v1587
        %1589 = vmatmul.bf16.gmra.mxu0 %v642
        %v1590 = vpop.f32.mrf.mxu0
        %v1591 = vadd.f32 0.0, %v1590
        %v1592 = vpop.f32.mrf.mxu0
        %v1593 = vadd.f32 0.0, %v1592
        %1594 = vmatmul.bf16.gmra.mxu0 %v645
        %v1595 = vpop.f32.mrf.mxu0
        %v1596 = vadd.f32 0.0, %v1595
        %v1597 = vpop.f32.mrf.mxu0
        %v1598 = vadd.f32 0.0, %v1597
        %1599 = vmatmul.bf16.gmra.mxu0 %v648
        %v1600 = vpop.f32.mrf.mxu0
        %v1601 = vadd.f32 0.0, %v1600
        %v1602 = vpop.f32.mrf.mxu0
        %v1603 = vadd.f32 0.0, %v1602
        %1604 = vmatmul.bf16.gmra.mxu0 %v651
        %v1605 = vpop.f32.mrf.mxu0
        %v1606 = vadd.f32 0.0, %v1605
        %v1607 = vpop.f32.mrf.mxu0
        %v1608 = vadd.f32 0.0, %v1607
        %1609 = vmatmul.bf16.gmra.mxu0 %v654
        %v1610 = vpop.f32.mrf.mxu0
        %v1611 = vadd.f32 0.0, %v1610
        %v1612 = vpop.f32.mrf.mxu0
        %v1613 = vadd.f32 0.0, %v1612
        %1614 = vmatmul.bf16.gmra.mxu0 %v1072
        %v1615 = vpop.f32.mrf.mxu0
        %v1616 = vadd.f32 0.0, %v1615
        %v1617 = vpop.f32.mrf.mxu0
        %v1618 = vadd.f32 0.0, %v1617
        %1619 = vmatmul.bf16.gmra.mxu0 %v1075
        %v1620 = vpop.f32.mrf.mxu0
        %v1621 = vadd.f32 0.0, %v1620
        %v1622 = vpop.f32.mrf.mxu0
        %v1623 = vadd.f32 0.0, %v1622
        %1624 = vmatmul.bf16.gmra.mxu0 %v1541
        %v1625 = vpop.f32.mrf.mxu0
        %v1626 = vadd.f32 0.0, %v1625
        %v1627 = vpop.f32.mrf.mxu0
        %v1628 = vadd.f32 0.0, %v1627
        %1629 = vmatmul.bf16.gmra.mxu0 %v1544
        %v1630 = vpop.f32.mrf.mxu0
        %v1631 = vadd.f32 0.0, %v1630
        %v1632 = vpop.f32.mrf.mxu0
        %v1633 = vadd.f32 0.0, %v1632
        %1634 = vdwg.mxu0
        %v1635 = vadd.f32 %v1489, %v1556
        %v1636 = vadd.f32 %v1490, %v1558
        %v1637 = vadd.f32 %v1491, %v1561
        %v1638 = vadd.f32 %v1492, %v1563
        %v1639 = vadd.f32 %v1493, %v1566
        %v1640 = vadd.f32 %v1494, %v1568
        %v1641 = vadd.f32 %v1495, %v1571
        %v1642 = vadd.f32 %v1496, %v1573
        %v1643 = vadd.f32 %v1497, %v1576
        %v1644 = vadd.f32 %v1498, %v1578
        %v1645 = vadd.f32 %v1499, %v1581
        %v1646 = vadd.f32 %v1500, %v1583
        %v1647 = vadd.f32 %v1501, %v1586
        %v1648 = vadd.f32 %v1502, %v1588
        %v1649 = vadd.f32 %v1503, %v1591
        %v1650 = vadd.f32 %v1504, %v1593
        %v1651 = vadd.f32 %v1505, %v1596
        %v1652 = vadd.f32 %v1506, %v1598
        %v1653 = vadd.f32 %v1507, %v1601
        %v1654 = vadd.f32 %v1508, %v1603
        %v1655 = vadd.f32 %v1509, %v1606
        %v1656 = vadd.f32 %v1510, %v1608
        %v1657 = vadd.f32 %v1511, %v1611
        %v1658 = vadd.f32 %v1512, %v1613
        %v1659 = vadd.f32 %v1513, %v1616
        %v1660 = vadd.f32 %v1514, %v1618
        %v1661 = vadd.f32 %v1515, %v1621
        %v1662 = vadd.f32 %v1516, %v1623
        %v1663 = vadd.f32 %v1517, %v1626
        %v1664 = vadd.f32 %v1518, %v1628
        %v1665 = vadd.f32 %v1519, %v1631
        %v1666 = vadd.f32 %v1520, %v1633
        %v1672 = vrot.slane %v255, 1
        %v1673 = vrot.slane %v256, 1
        %v1674 = vsel %vm320, %v1672, %v1673
        %v1675 = vrot.slane %v257, 1
        %v1676 = vsel %vm320, %v1673, %v1675
        %v1677 = vrot.slane %v258, 1
        %v1678 = vsel %vm320, %v1675, %v1677
        %v1679 = vrot.slane %v259, 1
        %v1680 = vsel %vm320, %v1677, %v1679
        %v1685 = vpack.c.bf16 %v1676, %v1674
        %v1686 = vpack.c.bf16 %v1680, %v1678
        %s1687 = scalar_lea.vmem %s1, 112
        %v1688 = vld [vmem:[%s1687] sm:$0xf]
        %v1689 = vld [vmem:[%s1687 + $0x4] sm:$0xf]
        %v1690 = vld [vmem:[%s1687 + $0x8] sm:$0xf]
        %v1691 = vld [vmem:[%s1687 + $0xc] sm:$0xf]
        %v1696 = vunpack.c.l.b16 %v1688
        %v1697 = vunpack.c.l.b16 %v1689
        %v1698 = vunpack.c.l.b16 %v1690
        %v1699 = vunpack.c.l.b16 %v1691
        %v1700 = vpack.c.b16 %v1697, %v1696
        %v1701 = vpack.c.b16 %v1699, %v1698
        %v1705 = vsel %vm458, %v1685, 0
        %v1708 = vsel %vm458, %v1686, 0
        %1710 = vmatpush.bf16.msra.mxu0 0
        %1711 = vmatpush.bf16.msra.mxu0 0
        %1712 = vmatpush.bf16.msra.mxu0 0
        %1713 = vmatpush.bf16.msra.mxu0 0
        %1714 = vmatpush.bf16.msra.mxu0 0
        %1715 = vmatpush.bf16.msra.mxu0 0
        %1716 = vmatpush.bf16.msra.mxu0 %v1701
        %1717 = vmatpush.bf16.msra.mxu0 %v1700
        %1718 = vmatmul.bf16.gmra.mxu0 %v472
        %v1719 = vpop.f32.mrf.mxu0
        %v1720 = vadd.f32 0.0, %v1719
        %v1721 = vpop.f32.mrf.mxu0
        %v1722 = vadd.f32 0.0, %v1721
        %1723 = vmatmul.bf16.gmra.mxu0 %v475
        %v1724 = vpop.f32.mrf.mxu0
        %v1725 = vadd.f32 0.0, %v1724
        %v1726 = vpop.f32.mrf.mxu0
        %v1727 = vadd.f32 0.0, %v1726
        %1728 = vmatmul.bf16.gmra.mxu0 %v478
        %v1729 = vpop.f32.mrf.mxu0
        %v1730 = vadd.f32 0.0, %v1729
        %v1731 = vpop.f32.mrf.mxu0
        %v1732 = vadd.f32 0.0, %v1731
        %1733 = vmatmul.bf16.gmra.mxu0 %v481
        %v1734 = vpop.f32.mrf.mxu0
        %v1735 = vadd.f32 0.0, %v1734
        %v1736 = vpop.f32.mrf.mxu0
        %v1737 = vadd.f32 0.0, %v1736
        %1738 = vmatmul.bf16.gmra.mxu0 %v484
        %v1739 = vpop.f32.mrf.mxu0
        %v1740 = vadd.f32 0.0, %v1739
        %v1741 = vpop.f32.mrf.mxu0
        %v1742 = vadd.f32 0.0, %v1741
        %1743 = vmatmul.bf16.gmra.mxu0 %v487
        %v1744 = vpop.f32.mrf.mxu0
        %v1745 = vadd.f32 0.0, %v1744
        %v1746 = vpop.f32.mrf.mxu0
        %v1747 = vadd.f32 0.0, %v1746
        %1748 = vmatmul.bf16.gmra.mxu0 %v490
        %v1749 = vpop.f32.mrf.mxu0
        %v1750 = vadd.f32 0.0, %v1749
        %v1751 = vpop.f32.mrf.mxu0
        %v1752 = vadd.f32 0.0, %v1751
        %1753 = vmatmul.bf16.gmra.mxu0 %v493
        %v1754 = vpop.f32.mrf.mxu0
        %v1755 = vadd.f32 0.0, %v1754
        %v1756 = vpop.f32.mrf.mxu0
        %v1757 = vadd.f32 0.0, %v1756
        %1758 = vmatmul.bf16.gmra.mxu0 %v496
        %v1759 = vpop.f32.mrf.mxu0
        %v1760 = vadd.f32 0.0, %v1759
        %v1761 = vpop.f32.mrf.mxu0
        %v1762 = vadd.f32 0.0, %v1761
        %1763 = vmatmul.bf16.gmra.mxu0 %v499
        %v1764 = vpop.f32.mrf.mxu0
        %v1765 = vadd.f32 0.0, %v1764
        %v1766 = vpop.f32.mrf.mxu0
        %v1767 = vadd.f32 0.0, %v1766
        %1768 = vmatmul.bf16.gmra.mxu0 %v502
        %v1769 = vpop.f32.mrf.mxu0
        %v1770 = vadd.f32 0.0, %v1769
        %v1771 = vpop.f32.mrf.mxu0
        %v1772 = vadd.f32 0.0, %v1771
        %1773 = vmatmul.bf16.gmra.mxu0 %v505
        %v1774 = vpop.f32.mrf.mxu0
        %v1775 = vadd.f32 0.0, %v1774
        %v1776 = vpop.f32.mrf.mxu0
        %v1777 = vadd.f32 0.0, %v1776
        %1778 = vmatmul.bf16.gmra.mxu0 %v1236
        %v1779 = vpop.f32.mrf.mxu0
        %v1780 = vadd.f32 0.0, %v1779
        %v1781 = vpop.f32.mrf.mxu0
        %v1782 = vadd.f32 0.0, %v1781
        %1783 = vmatmul.bf16.gmra.mxu0 %v1239
        %v1784 = vpop.f32.mrf.mxu0
        %v1785 = vadd.f32 0.0, %v1784
        %v1786 = vpop.f32.mrf.mxu0
        %v1787 = vadd.f32 0.0, %v1786
        %1788 = vmatmul.bf16.gmra.mxu0 %v1705
        %v1789 = vpop.f32.mrf.mxu0
        %v1790 = vadd.f32 0.0, %v1789
        %v1791 = vpop.f32.mrf.mxu0
        %v1792 = vadd.f32 0.0, %v1791
        %1793 = vmatmul.bf16.gmra.mxu0 %v1708
        %v1794 = vpop.f32.mrf.mxu0
        %v1795 = vadd.f32 0.0, %v1794
        %v1796 = vpop.f32.mrf.mxu0
        %v1797 = vadd.f32 0.0, %v1796
        %1798 = vdwg.mxu0
        %v1799 = vadd.f32 %v1635, %v1720
        %v1800 = vadd.f32 %v1636, %v1722
        %v1801 = vadd.f32 %v1637, %v1725
        %v1802 = vadd.f32 %v1638, %v1727
        %v1803 = vadd.f32 %v1639, %v1730
        %v1804 = vadd.f32 %v1640, %v1732
        %v1805 = vadd.f32 %v1641, %v1735
        %v1806 = vadd.f32 %v1642, %v1737
        %v1807 = vadd.f32 %v1643, %v1740
        %v1808 = vadd.f32 %v1644, %v1742
        %v1809 = vadd.f32 %v1645, %v1745
        %v1810 = vadd.f32 %v1646, %v1747
        %v1811 = vadd.f32 %v1647, %v1750
        %v1812 = vadd.f32 %v1648, %v1752
        %v1813 = vadd.f32 %v1649, %v1755
        %v1814 = vadd.f32 %v1650, %v1757
        %v1815 = vadd.f32 %v1651, %v1760
        %v1816 = vadd.f32 %v1652, %v1762
        %v1817 = vadd.f32 %v1653, %v1765
        %v1818 = vadd.f32 %v1654, %v1767
        %v1819 = vadd.f32 %v1655, %v1770
        %v1820 = vadd.f32 %v1656, %v1772
        %v1821 = vadd.f32 %v1657, %v1775
        %v1822 = vadd.f32 %v1658, %v1777
        %v1823 = vadd.f32 %v1659, %v1780
        %v1824 = vadd.f32 %v1660, %v1782
        %v1825 = vadd.f32 %v1661, %v1785
        %v1826 = vadd.f32 %v1662, %v1787
        %v1827 = vadd.f32 %v1663, %v1790
        %v1828 = vadd.f32 %v1664, %v1792
        %v1829 = vadd.f32 %v1665, %v1795
        %v1830 = vadd.f32 %v1666, %v1797
        %v1831 = vrot.slane %v255, 2
        %v1832 = vrot.slane %v256, 2
        %v1833 = vsel %vm745, %v1831, %v1832
        %v1834 = vrot.slane %v257, 2
        %v1835 = vsel %vm745, %v1832, %v1834
        %v1836 = vrot.slane %v258, 2
        %v1837 = vsel %vm745, %v1834, %v1836
        %v1838 = vrot.slane %v259, 2
        %v1839 = vsel %vm745, %v1836, %v1838
        %v1844 = vpack.c.bf16 %v1835, %v1833
        %v1845 = vpack.c.bf16 %v1839, %v1837
        %s1846 = scalar_lea.vmem %s1, 128
        %v1847 = vld [vmem:[%s1846] sm:$0xf]
        %v1848 = vld [vmem:[%s1846 + $0x4] sm:$0xf]
        %v1849 = vld [vmem:[%s1846 + $0x8] sm:$0xf]
        %v1850 = vld [vmem:[%s1846 + $0xc] sm:$0xf]
        %v1855 = vunpack.c.l.b16 %v1847
        %v1856 = vunpack.c.l.b16 %v1848
        %v1857 = vunpack.c.l.b16 %v1849
        %v1858 = vunpack.c.l.b16 %v1850
        %v1859 = vpack.c.b16 %v1856, %v1855
        %v1860 = vpack.c.b16 %v1858, %v1857
        %v1864 = vsel %vm458, %v1844, 0
        %v1867 = vsel %vm458, %v1845, 0
        %1869 = vmatpush.bf16.msra.mxu0 0
        %1870 = vmatpush.bf16.msra.mxu0 0
        %1871 = vmatpush.bf16.msra.mxu0 0
        %1872 = vmatpush.bf16.msra.mxu0 0
        %1873 = vmatpush.bf16.msra.mxu0 0
        %1874 = vmatpush.bf16.msra.mxu0 0
        %1875 = vmatpush.bf16.msra.mxu0 %v1860
        %1876 = vmatpush.bf16.msra.mxu0 %v1859
        %1877 = vmatmul.bf16.gmra.mxu0 %v896
        %v1878 = vpop.f32.mrf.mxu0
        %v1879 = vadd.f32 0.0, %v1878
        %v1880 = vpop.f32.mrf.mxu0
        %v1881 = vadd.f32 0.0, %v1880
        %1882 = vmatmul.bf16.gmra.mxu0 %v899
        %v1883 = vpop.f32.mrf.mxu0
        %v1884 = vadd.f32 0.0, %v1883
        %v1885 = vpop.f32.mrf.mxu0
        %v1886 = vadd.f32 0.0, %v1885
        %1887 = vmatmul.bf16.gmra.mxu0 %v902
        %v1888 = vpop.f32.mrf.mxu0
        %v1889 = vadd.f32 0.0, %v1888
        %v1890 = vpop.f32.mrf.mxu0
        %v1891 = vadd.f32 0.0, %v1890
        %1892 = vmatmul.bf16.gmra.mxu0 %v905
        %v1893 = vpop.f32.mrf.mxu0
        %v1894 = vadd.f32 0.0, %v1893
        %v1895 = vpop.f32.mrf.mxu0
        %v1896 = vadd.f32 0.0, %v1895
        %1897 = vmatmul.bf16.gmra.mxu0 %v908
        %v1898 = vpop.f32.mrf.mxu0
        %v1899 = vadd.f32 0.0, %v1898
        %v1900 = vpop.f32.mrf.mxu0
        %v1901 = vadd.f32 0.0, %v1900
        %1902 = vmatmul.bf16.gmra.mxu0 %v911
        %v1903 = vpop.f32.mrf.mxu0
        %v1904 = vadd.f32 0.0, %v1903
        %v1905 = vpop.f32.mrf.mxu0
        %v1906 = vadd.f32 0.0, %v1905
        %1907 = vmatmul.bf16.gmra.mxu0 %v914
        %v1908 = vpop.f32.mrf.mxu0
        %v1909 = vadd.f32 0.0, %v1908
        %v1910 = vpop.f32.mrf.mxu0
        %v1911 = vadd.f32 0.0, %v1910
        %1912 = vmatmul.bf16.gmra.mxu0 %v917
        %v1913 = vpop.f32.mrf.mxu0
        %v1914 = vadd.f32 0.0, %v1913
        %v1915 = vpop.f32.mrf.mxu0
        %v1916 = vadd.f32 0.0, %v1915
        %1917 = vmatmul.bf16.gmra.mxu0 %v920
        %v1918 = vpop.f32.mrf.mxu0
        %v1919 = vadd.f32 0.0, %v1918
        %v1920 = vpop.f32.mrf.mxu0
        %v1921 = vadd.f32 0.0, %v1920
        %1922 = vmatmul.bf16.gmra.mxu0 %v923
        %v1923 = vpop.f32.mrf.mxu0
        %v1924 = vadd.f32 0.0, %v1923
        %v1925 = vpop.f32.mrf.mxu0
        %v1926 = vadd.f32 0.0, %v1925
        %1927 = vmatmul.bf16.gmra.mxu0 %v926
        %v1928 = vpop.f32.mrf.mxu0
        %v1929 = vadd.f32 0.0, %v1928
        %v1930 = vpop.f32.mrf.mxu0
        %v1931 = vadd.f32 0.0, %v1930
        %1932 = vmatmul.bf16.gmra.mxu0 %v929
        %v1933 = vpop.f32.mrf.mxu0
        %v1934 = vadd.f32 0.0, %v1933
        %v1935 = vpop.f32.mrf.mxu0
        %v1936 = vadd.f32 0.0, %v1935
        %1937 = vmatmul.bf16.gmra.mxu0 %v1395
        %v1938 = vpop.f32.mrf.mxu0
        %v1939 = vadd.f32 0.0, %v1938
        %v1940 = vpop.f32.mrf.mxu0
        %v1941 = vadd.f32 0.0, %v1940
        %1942 = vmatmul.bf16.gmra.mxu0 %v1398
        %v1943 = vpop.f32.mrf.mxu0
        %v1944 = vadd.f32 0.0, %v1943
        %v1945 = vpop.f32.mrf.mxu0
        %v1946 = vadd.f32 0.0, %v1945
        %1947 = vmatmul.bf16.gmra.mxu0 %v1864
        %v1948 = vpop.f32.mrf.mxu0
        %v1949 = vadd.f32 0.0, %v1948
        %v1950 = vpop.f32.mrf.mxu0
        %v1951 = vadd.f32 0.0, %v1950
        %1952 = vmatmul.bf16.gmra.mxu0 %v1867
        %v1953 = vpop.f32.mrf.mxu0
        %v1954 = vadd.f32 0.0, %v1953
        %v1955 = vpop.f32.mrf.mxu0
        %v1956 = vadd.f32 0.0, %v1955
        %1957 = vdwg.mxu0
        %v1958 = vadd.f32 %v1799, %v1879
        %v1959 = vadd.f32 %v1800, %v1881
        %v1960 = vadd.f32 %v1801, %v1884
        %v1961 = vadd.f32 %v1802, %v1886
        %v1962 = vadd.f32 %v1803, %v1889
        %v1963 = vadd.f32 %v1804, %v1891
        %v1964 = vadd.f32 %v1805, %v1894
        %v1965 = vadd.f32 %v1806, %v1896
        %v1966 = vadd.f32 %v1807, %v1899
        %v1967 = vadd.f32 %v1808, %v1901
        %v1968 = vadd.f32 %v1809, %v1904
        %v1969 = vadd.f32 %v1810, %v1906
        %v1970 = vadd.f32 %v1811, %v1909
        %v1971 = vadd.f32 %v1812, %v1911
        %v1972 = vadd.f32 %v1813, %v1914
        %v1973 = vadd.f32 %v1814, %v1916
        %v1974 = vadd.f32 %v1815, %v1919
        %v1975 = vadd.f32 %v1816, %v1921
        %v1976 = vadd.f32 %v1817, %v1924
        %v1977 = vadd.f32 %v1818, %v1926
        %v1978 = vadd.f32 %v1819, %v1929
        %v1979 = vadd.f32 %v1820, %v1931
        %v1980 = vadd.f32 %v1821, %v1934
        %v1981 = vadd.f32 %v1822, %v1936
        %v1982 = vadd.f32 %v1823, %v1939
        %v1983 = vadd.f32 %v1824, %v1941
        %v1984 = vadd.f32 %v1825, %v1944
        %v1985 = vadd.f32 %v1826, %v1946
        %v1986 = vadd.f32 %v1827, %v1949
        %v1987 = vadd.f32 %v1828, %v1951
        %v1988 = vadd.f32 %v1829, %v1954
        %v1989 = vadd.f32 %v1830, %v1956
        %v1991 = vperm.slane %v199, 0
        %v1993 = vmul.f32 %v1958, %v1991
        %v1994 = vmul.f32 %v1959, %v1991
        %v1995 = vmul.f32 %v1960, %v1991
        %v1996 = vmul.f32 %v1961, %v1991
        %v1997 = vmul.f32 %v1962, %v1991
        %v1998 = vmul.f32 %v1963, %v1991
        %v1999 = vmul.f32 %v1964, %v1991
        %v2000 = vmul.f32 %v1965, %v1991
        %v2001 = vmul.f32 %v1966, %v1991
        %v2002 = vmul.f32 %v1967, %v1991
        %v2003 = vmul.f32 %v1968, %v1991
        %v2004 = vmul.f32 %v1969, %v1991
        %v2005 = vmul.f32 %v1970, %v1991
        %v2006 = vmul.f32 %v1971, %v1991
        %v2007 = vmul.f32 %v1972, %v1991
        %v2008 = vmul.f32 %v1973, %v1991
        %v2009 = vmul.f32 %v1974, %v1991
        %v2010 = vmul.f32 %v1975, %v1991
        %v2011 = vmul.f32 %v1976, %v1991
        %v2012 = vmul.f32 %v1977, %v1991
        %v2013 = vmul.f32 %v1978, %v1991
        %v2014 = vmul.f32 %v1979, %v1991
        %v2015 = vmul.f32 %v1980, %v1991
        %v2016 = vmul.f32 %v1981, %v1991
        %v2017 = vmul.f32 %v1982, %v1991
        %v2018 = vmul.f32 %v1983, %v1991
        %v2019 = vmul.f32 %v1984, %v1991
        %v2020 = vmul.f32 %v1985, %v1991
        %v2021 = vmul.f32 %v1986, %v1991
        %v2022 = vmul.f32 %v1987, %v1991
        %v2023 = vmul.f32 %v1988, %v1991
        %v2024 = vmul.f32 %v1989, %v1991
        %v2026 = vperm.slane %v200, 0
        %v2028 = vadd.f32 %v1993, %v2026
        %v2029 = vadd.f32 %v1994, %v2026
        %v2030 = vadd.f32 %v1995, %v2026
        %v2031 = vadd.f32 %v1996, %v2026
        %v2032 = vadd.f32 %v1997, %v2026
        %v2033 = vadd.f32 %v1998, %v2026
        %v2034 = vadd.f32 %v1999, %v2026
        %v2035 = vadd.f32 %v2000, %v2026
        %v2036 = vadd.f32 %v2001, %v2026
        %v2037 = vadd.f32 %v2002, %v2026
        %v2038 = vadd.f32 %v2003, %v2026
        %v2039 = vadd.f32 %v2004, %v2026
        %v2040 = vadd.f32 %v2005, %v2026
        %v2041 = vadd.f32 %v2006, %v2026
        %v2042 = vadd.f32 %v2007, %v2026
        %v2043 = vadd.f32 %v2008, %v2026
        %v2044 = vadd.f32 %v2009, %v2026
        %v2045 = vadd.f32 %v2010, %v2026
        %v2046 = vadd.f32 %v2011, %v2026
        %v2047 = vadd.f32 %v2012, %v2026
        %v2048 = vadd.f32 %v2013, %v2026
        %v2049 = vadd.f32 %v2014, %v2026
        %v2050 = vadd.f32 %v2015, %v2026
        %v2051 = vadd.f32 %v2016, %v2026
        %v2052 = vadd.f32 %v2017, %v2026
        %v2053 = vadd.f32 %v2018, %v2026
        %v2054 = vadd.f32 %v2019, %v2026
        %v2055 = vadd.f32 %v2020, %v2026
        %v2056 = vadd.f32 %v2021, %v2026
        %v2057 = vadd.f32 %v2022, %v2026
        %v2058 = vadd.f32 %v2023, %v2026
        %v2059 = vadd.f32 %v2024, %v2026
        %v2092 = vrot.slane %v2028, 2
        %v2093 = vrot.slane %v2028, 4
        %v2094 = vrot.slane %v2028, 6
        %v2095 = vrot.slane %v2029, 2
        %v2096 = vrot.slane %v2029, 4
        %v2097 = vrot.slane %v2029, 6
        %v2098 = vrot.slane %v2030, 2
        %v2099 = vrot.slane %v2030, 4
        %v2100 = vrot.slane %v2030, 6
        %v2101 = vrot.slane %v2031, 2
        %v2102 = vrot.slane %v2031, 4
        %v2103 = vrot.slane %v2031, 6
        %v2104 = vrot.slane %v2032, 2
        %v2105 = vrot.slane %v2032, 4
        %v2106 = vrot.slane %v2032, 6
        %v2107 = vrot.slane %v2033, 2
        %v2108 = vrot.slane %v2033, 4
        %v2109 = vrot.slane %v2033, 6
        %v2110 = vrot.slane %v2034, 2
        %v2111 = vrot.slane %v2034, 4
        %v2112 = vrot.slane %v2034, 6
        %v2113 = vrot.slane %v2035, 2
        %v2114 = vrot.slane %v2035, 4
        %v2115 = vrot.slane %v2035, 6
        %v2116 = vrot.slane %v2036, 2
        %v2117 = vrot.slane %v2036, 4
        %v2118 = vrot.slane %v2036, 6
        %v2119 = vrot.slane %v2037, 2
        %v2120 = vrot.slane %v2037, 4
        %v2121 = vrot.slane %v2037, 6
        %v2122 = vrot.slane %v2038, 2
        %v2123 = vrot.slane %v2038, 4
        %v2124 = vrot.slane %v2038, 6
        %v2125 = vrot.slane %v2039, 2
        %v2126 = vrot.slane %v2039, 4
        %v2127 = vrot.slane %v2039, 6
        %v2128 = vrot.slane %v2040, 2
        %v2129 = vrot.slane %v2040, 4
        %v2130 = vrot.slane %v2040, 6
        %v2131 = vrot.slane %v2041, 2
        %v2132 = vrot.slane %v2041, 4
        %v2133 = vrot.slane %v2041, 6
        %v2134 = vrot.slane %v2042, 2
        %v2135 = vrot.slane %v2042, 4
        %v2136 = vrot.slane %v2042, 6
        %v2137 = vrot.slane %v2043, 2
        %v2138 = vrot.slane %v2043, 4
        %v2139 = vrot.slane %v2043, 6
        %v2140 = vrot.slane %v2044, 2
        %v2141 = vrot.slane %v2044, 4
        %v2142 = vrot.slane %v2044, 6
        %v2143 = vrot.slane %v2045, 2
        %v2144 = vrot.slane %v2045, 4
        %v2145 = vrot.slane %v2045, 6
        %v2146 = vrot.slane %v2046, 2
        %v2147 = vrot.slane %v2046, 4
        %v2148 = vrot.slane %v2046, 6
        %v2149 = vrot.slane %v2047, 2
        %v2150 = vrot.slane %v2047, 4
        %v2151 = vrot.slane %v2047, 6
        %v2152 = vrot.slane %v2048, 2
        %v2153 = vrot.slane %v2048, 4
        %v2154 = vrot.slane %v2048, 6
        %v2155 = vrot.slane %v2049, 2
        %v2156 = vrot.slane %v2049, 4
        %v2157 = vrot.slane %v2049, 6
        %v2158 = vrot.slane %v2050, 2
        %v2159 = vrot.slane %v2050, 4
        %v2160 = vrot.slane %v2050, 6
        %v2161 = vrot.slane %v2051, 2
        %v2162 = vrot.slane %v2051, 4
        %v2163 = vrot.slane %v2051, 6
        %v2164 = vrot.slane %v2052, 2
        %v2165 = vrot.slane %v2052, 4
        %v2166 = vrot.slane %v2052, 6
        %v2167 = vrot.slane %v2053, 2
        %v2168 = vrot.slane %v2053, 4
        %v2169 = vrot.slane %v2053, 6
        %v2170 = vrot.slane %v2054, 2
        %v2171 = vrot.slane %v2054, 4
        %v2172 = vrot.slane %v2054, 6
        %v2173 = vrot.slane %v2055, 2
        %v2174 = vrot.slane %v2055, 4
        %v2175 = vrot.slane %v2055, 6
        %v2176 = vrot.slane %v2056, 2
        %v2177 = vrot.slane %v2056, 4
        %v2178 = vrot.slane %v2056, 6
        %v2179 = vrot.slane %v2057, 2
        %v2180 = vrot.slane %v2057, 4
        %v2181 = vrot.slane %v2057, 6
        %v2182 = vrot.slane %v2058, 2
        %v2183 = vrot.slane %v2058, 4
        %v2184 = vrot.slane %v2058, 6
        %v2185 = vrot.slane %v2059, 2
        %v2186 = vrot.slane %v2059, 4
        %v2187 = vrot.slane %v2059, 6
        %v2284 = vrot.slane %v2028, 7
        %v2285 = vrot.slane %v2284, 2
        %v2286 = vrot.slane %v2092, 7
        %v2287 = vrot.slane %v2286, 2
        %v2288 = vrot.slane %v2093, 7
        %v2289 = vrot.slane %v2288, 2
        %v2290 = vrot.slane %v2094, 7
        %v2291 = vrot.slane %v2290, 2
        %v2292 = vrot.slane %v2029, 7
        %v2293 = vrot.slane %v2292, 2
        %v2294 = vrot.slane %v2095, 7
        %v2295 = vrot.slane %v2294, 2
        %v2296 = vrot.slane %v2096, 7
        %v2297 = vrot.slane %v2296, 2
        %v2298 = vrot.slane %v2097, 7
        %v2299 = vrot.slane %v2298, 2
        %v2300 = vrot.slane %v2030, 7
        %v2301 = vrot.slane %v2300, 2
        %v2302 = vrot.slane %v2098, 7
        %v2303 = vrot.slane %v2302, 2
        %v2304 = vrot.slane %v2099, 7
        %v2305 = vrot.slane %v2304, 2
        %v2306 = vrot.slane %v2100, 7
        %v2307 = vrot.slane %v2306, 2
        %v2308 = vrot.slane %v2031, 7
        %v2309 = vrot.slane %v2308, 2
        %v2310 = vrot.slane %v2101, 7
        %v2311 = vrot.slane %v2310, 2
        %v2312 = vrot.slane %v2102, 7
        %v2313 = vrot.slane %v2312, 2
        %v2314 = vrot.slane %v2103, 7
        %v2315 = vrot.slane %v2314, 2
        %v2316 = vrot.slane %v2032, 7
        %v2317 = vrot.slane %v2316, 2
        %v2318 = vrot.slane %v2104, 7
        %v2319 = vrot.slane %v2318, 2
        %v2320 = vrot.slane %v2105, 7
        %v2321 = vrot.slane %v2320, 2
        %v2322 = vrot.slane %v2106, 7
        %v2323 = vrot.slane %v2322, 2
        %v2324 = vrot.slane %v2033, 7
        %v2325 = vrot.slane %v2324, 2
        %v2326 = vrot.slane %v2107, 7
        %v2327 = vrot.slane %v2326, 2
        %v2328 = vrot.slane %v2108, 7
        %v2329 = vrot.slane %v2328, 2
        %v2330 = vrot.slane %v2109, 7
        %v2331 = vrot.slane %v2330, 2
        %v2332 = vrot.slane %v2034, 7
        %v2333 = vrot.slane %v2332, 2
        %v2334 = vrot.slane %v2110, 7
        %v2335 = vrot.slane %v2334, 2
        %v2336 = vrot.slane %v2111, 7
        %v2337 = vrot.slane %v2336, 2
        %v2338 = vrot.slane %v2112, 7
        %v2339 = vrot.slane %v2338, 2
        %v2340 = vrot.slane %v2035, 7
        %v2341 = vrot.slane %v2340, 2
        %v2342 = vrot.slane %v2113, 7
        %v2343 = vrot.slane %v2342, 2
        %v2344 = vrot.slane %v2114, 7
        %v2345 = vrot.slane %v2344, 2
        %v2346 = vrot.slane %v2115, 7
        %v2347 = vrot.slane %v2346, 2
        %v2348 = vrot.slane %v2036, 7
        %v2349 = vrot.slane %v2348, 2
        %v2350 = vrot.slane %v2116, 7
        %v2351 = vrot.slane %v2350, 2
        %v2352 = vrot.slane %v2117, 7
        %v2353 = vrot.slane %v2352, 2
        %v2354 = vrot.slane %v2118, 7
        %v2355 = vrot.slane %v2354, 2
        %v2356 = vrot.slane %v2037, 7
        %v2357 = vrot.slane %v2356, 2
        %v2358 = vrot.slane %v2119, 7
        %v2359 = vrot.slane %v2358, 2
        %v2360 = vrot.slane %v2120, 7
        %v2361 = vrot.slane %v2360, 2
        %v2362 = vrot.slane %v2121, 7
        %v2363 = vrot.slane %v2362, 2
        %v2364 = vrot.slane %v2038, 7
        %v2365 = vrot.slane %v2364, 2
        %v2366 = vrot.slane %v2122, 7
        %v2367 = vrot.slane %v2366, 2
        %v2368 = vrot.slane %v2123, 7
        %v2369 = vrot.slane %v2368, 2
        %v2370 = vrot.slane %v2124, 7
        %v2371 = vrot.slane %v2370, 2
        %v2372 = vrot.slane %v2039, 7
        %v2373 = vrot.slane %v2372, 2
        %v2374 = vrot.slane %v2125, 7
        %v2375 = vrot.slane %v2374, 2
        %v2376 = vrot.slane %v2126, 7
        %v2377 = vrot.slane %v2376, 2
        %v2378 = vrot.slane %v2127, 7
        %v2379 = vrot.slane %v2378, 2
        %v2380 = vrot.slane %v2040, 7
        %v2381 = vrot.slane %v2380, 2
        %v2382 = vrot.slane %v2128, 7
        %v2383 = vrot.slane %v2382, 2
        %v2384 = vrot.slane %v2129, 7
        %v2385 = vrot.slane %v2384, 2
        %v2386 = vrot.slane %v2130, 7
        %v2387 = vrot.slane %v2386, 2
        %v2388 = vrot.slane %v2041, 7
        %v2389 = vrot.slane %v2388, 2
        %v2390 = vrot.slane %v2131, 7
        %v2391 = vrot.slane %v2390, 2
        %v2392 = vrot.slane %v2132, 7
        %v2393 = vrot.slane %v2392, 2
        %v2394 = vrot.slane %v2133, 7
        %v2395 = vrot.slane %v2394, 2
        %v2396 = vrot.slane %v2042, 7
        %v2397 = vrot.slane %v2396, 2
        %v2398 = vrot.slane %v2134, 7
        %v2399 = vrot.slane %v2398, 2
        %v2400 = vrot.slane %v2135, 7
        %v2401 = vrot.slane %v2400, 2
        %v2402 = vrot.slane %v2136, 7
        %v2403 = vrot.slane %v2402, 2
        %v2404 = vrot.slane %v2043, 7
        %v2405 = vrot.slane %v2404, 2
        %v2406 = vrot.slane %v2137, 7
        %v2407 = vrot.slane %v2406, 2
        %v2408 = vrot.slane %v2138, 7
        %v2409 = vrot.slane %v2408, 2
        %v2410 = vrot.slane %v2139, 7
        %v2411 = vrot.slane %v2410, 2
        %v2412 = vrot.slane %v2044, 7
        %v2413 = vrot.slane %v2412, 2
        %v2414 = vrot.slane %v2140, 7
        %v2415 = vrot.slane %v2414, 2
        %v2416 = vrot.slane %v2141, 7
        %v2417 = vrot.slane %v2416, 2
        %v2418 = vrot.slane %v2142, 7
        %v2419 = vrot.slane %v2418, 2
        %v2420 = vrot.slane %v2045, 7
        %v2421 = vrot.slane %v2420, 2
        %v2422 = vrot.slane %v2143, 7
        %v2423 = vrot.slane %v2422, 2
        %v2424 = vrot.slane %v2144, 7
        %v2425 = vrot.slane %v2424, 2
        %v2426 = vrot.slane %v2145, 7
        %v2427 = vrot.slane %v2426, 2
        %v2428 = vrot.slane %v2046, 7
        %v2429 = vrot.slane %v2428, 2
        %v2430 = vrot.slane %v2146, 7
        %v2431 = vrot.slane %v2430, 2
        %v2432 = vrot.slane %v2147, 7
        %v2433 = vrot.slane %v2432, 2
        %v2434 = vrot.slane %v2148, 7
        %v2435 = vrot.slane %v2434, 2
        %v2436 = vrot.slane %v2047, 7
        %v2437 = vrot.slane %v2436, 2
        %v2438 = vrot.slane %v2149, 7
        %v2439 = vrot.slane %v2438, 2
        %v2440 = vrot.slane %v2150, 7
        %v2441 = vrot.slane %v2440, 2
        %v2442 = vrot.slane %v2151, 7
        %v2443 = vrot.slane %v2442, 2
        %v2444 = vrot.slane %v2048, 7
        %v2445 = vrot.slane %v2444, 2
        %v2446 = vrot.slane %v2152, 7
        %v2447 = vrot.slane %v2446, 2
        %v2448 = vrot.slane %v2153, 7
        %v2449 = vrot.slane %v2448, 2
        %v2450 = vrot.slane %v2154, 7
        %v2451 = vrot.slane %v2450, 2
        %v2452 = vrot.slane %v2049, 7
        %v2453 = vrot.slane %v2452, 2
        %v2454 = vrot.slane %v2155, 7
        %v2455 = vrot.slane %v2454, 2
        %v2456 = vrot.slane %v2156, 7
        %v2457 = vrot.slane %v2456, 2
        %v2458 = vrot.slane %v2157, 7
        %v2459 = vrot.slane %v2458, 2
        %v2460 = vrot.slane %v2050, 7
        %v2461 = vrot.slane %v2460, 2
        %v2462 = vrot.slane %v2158, 7
        %v2463 = vrot.slane %v2462, 2
        %v2464 = vrot.slane %v2159, 7
        %v2465 = vrot.slane %v2464, 2
        %v2466 = vrot.slane %v2160, 7
        %v2467 = vrot.slane %v2466, 2
        %v2468 = vrot.slane %v2051, 7
        %v2469 = vrot.slane %v2468, 2
        %v2470 = vrot.slane %v2161, 7
        %v2471 = vrot.slane %v2470, 2
        %v2472 = vrot.slane %v2162, 7
        %v2473 = vrot.slane %v2472, 2
        %v2474 = vrot.slane %v2163, 7
        %v2475 = vrot.slane %v2474, 2
        %v2476 = vrot.slane %v2052, 7
        %v2477 = vrot.slane %v2476, 2
        %v2478 = vrot.slane %v2164, 7
        %v2479 = vrot.slane %v2478, 2
        %v2480 = vrot.slane %v2165, 7
        %v2481 = vrot.slane %v2480, 2
        %v2482 = vrot.slane %v2166, 7
        %v2483 = vrot.slane %v2482, 2
        %v2484 = vrot.slane %v2053, 7
        %v2485 = vrot.slane %v2484, 2
        %v2486 = vrot.slane %v2167, 7
        %v2487 = vrot.slane %v2486, 2
        %v2488 = vrot.slane %v2168, 7
        %v2489 = vrot.slane %v2488, 2
        %v2490 = vrot.slane %v2169, 7
        %v2491 = vrot.slane %v2490, 2
        %v2492 = vrot.slane %v2054, 7
        %v2493 = vrot.slane %v2492, 2
        %v2494 = vrot.slane %v2170, 7
        %v2495 = vrot.slane %v2494, 2
        %v2496 = vrot.slane %v2171, 7
        %v2497 = vrot.slane %v2496, 2
        %v2498 = vrot.slane %v2172, 7
        %v2499 = vrot.slane %v2498, 2
        %v2500 = vrot.slane %v2055, 7
        %v2501 = vrot.slane %v2500, 2
        %v2502 = vrot.slane %v2173, 7
        %v2503 = vrot.slane %v2502, 2
        %v2504 = vrot.slane %v2174, 7
        %v2505 = vrot.slane %v2504, 2
        %v2506 = vrot.slane %v2175, 7
        %v2507 = vrot.slane %v2506, 2
        %v2508 = vrot.slane %v2056, 7
        %v2509 = vrot.slane %v2508, 2
        %v2510 = vrot.slane %v2176, 7
        %v2511 = vrot.slane %v2510, 2
        %v2512 = vrot.slane %v2177, 7
        %v2513 = vrot.slane %v2512, 2
        %v2514 = vrot.slane %v2178, 7
        %v2515 = vrot.slane %v2514, 2
        %v2516 = vrot.slane %v2057, 7
        %v2517 = vrot.slane %v2516, 2
        %v2518 = vrot.slane %v2179, 7
        %v2519 = vrot.slane %v2518, 2
        %v2520 = vrot.slane %v2180, 7
        %v2521 = vrot.slane %v2520, 2
        %v2522 = vrot.slane %v2181, 7
        %v2523 = vrot.slane %v2522, 2
        %v2524 = vrot.slane %v2058, 7
        %v2525 = vrot.slane %v2524, 2
        %v2526 = vrot.slane %v2182, 7
        %v2527 = vrot.slane %v2526, 2
        %v2528 = vrot.slane %v2183, 7
        %v2529 = vrot.slane %v2528, 2
        %v2530 = vrot.slane %v2184, 7
        %v2531 = vrot.slane %v2530, 2
        %v2532 = vrot.slane %v2059, 7
        %v2533 = vrot.slane %v2532, 2
        %v2534 = vrot.slane %v2185, 7
        %v2535 = vrot.slane %v2534, 2
        %v2536 = vrot.slane %v2186, 7
        %v2537 = vrot.slane %v2536, 2
        %v2538 = vrot.slane %v2187, 7
        %v2539 = vrot.slane %v2538, 2
        %v2668 = vmax.f32 %v2028, %v2285
        %v2669 = vmax.f32 %v2092, %v2287
        %v2670 = vmax.f32 %v2093, %v2289
        %v2671 = vmax.f32 %v2094, %v2291
        %v2672 = vmax.f32 %v2029, %v2293
        %v2673 = vmax.f32 %v2095, %v2295
        %v2674 = vmax.f32 %v2096, %v2297
        %v2675 = vmax.f32 %v2097, %v2299
        %v2676 = vmax.f32 %v2030, %v2301
        %v2677 = vmax.f32 %v2098, %v2303
        %v2678 = vmax.f32 %v2099, %v2305
        %v2679 = vmax.f32 %v2100, %v2307
        %v2680 = vmax.f32 %v2031, %v2309
        %v2681 = vmax.f32 %v2101, %v2311
        %v2682 = vmax.f32 %v2102, %v2313
        %v2683 = vmax.f32 %v2103, %v2315
        %v2684 = vmax.f32 %v2032, %v2317
        %v2685 = vmax.f32 %v2104, %v2319
        %v2686 = vmax.f32 %v2105, %v2321
        %v2687 = vmax.f32 %v2106, %v2323
        %v2688 = vmax.f32 %v2033, %v2325
        %v2689 = vmax.f32 %v2107, %v2327
        %v2690 = vmax.f32 %v2108, %v2329
        %v2691 = vmax.f32 %v2109, %v2331
        %v2692 = vmax.f32 %v2034, %v2333
        %v2693 = vmax.f32 %v2110, %v2335
        %v2694 = vmax.f32 %v2111, %v2337
        %v2695 = vmax.f32 %v2112, %v2339
        %v2696 = vmax.f32 %v2035, %v2341
        %v2697 = vmax.f32 %v2113, %v2343
        %v2698 = vmax.f32 %v2114, %v2345
        %v2699 = vmax.f32 %v2115, %v2347
        %v2700 = vmax.f32 %v2036, %v2349
        %v2701 = vmax.f32 %v2116, %v2351
        %v2702 = vmax.f32 %v2117, %v2353
        %v2703 = vmax.f32 %v2118, %v2355
        %v2704 = vmax.f32 %v2037, %v2357
        %v2705 = vmax.f32 %v2119, %v2359
        %v2706 = vmax.f32 %v2120, %v2361
        %v2707 = vmax.f32 %v2121, %v2363
        %v2708 = vmax.f32 %v2038, %v2365
        %v2709 = vmax.f32 %v2122, %v2367
        %v2710 = vmax.f32 %v2123, %v2369
        %v2711 = vmax.f32 %v2124, %v2371
        %v2712 = vmax.f32 %v2039, %v2373
        %v2713 = vmax.f32 %v2125, %v2375
        %v2714 = vmax.f32 %v2126, %v2377
        %v2715 = vmax.f32 %v2127, %v2379
        %v2716 = vmax.f32 %v2040, %v2381
        %v2717 = vmax.f32 %v2128, %v2383
        %v2718 = vmax.f32 %v2129, %v2385
        %v2719 = vmax.f32 %v2130, %v2387
        %v2720 = vmax.f32 %v2041, %v2389
        %v2721 = vmax.f32 %v2131, %v2391
        %v2722 = vmax.f32 %v2132, %v2393
        %v2723 = vmax.f32 %v2133, %v2395
        %v2724 = vmax.f32 %v2042, %v2397
        %v2725 = vmax.f32 %v2134, %v2399
        %v2726 = vmax.f32 %v2135, %v2401
        %v2727 = vmax.f32 %v2136, %v2403
        %v2728 = vmax.f32 %v2043, %v2405
        %v2729 = vmax.f32 %v2137, %v2407
        %v2730 = vmax.f32 %v2138, %v2409
        %v2731 = vmax.f32 %v2139, %v2411
        %v2732 = vmax.f32 %v2044, %v2413
        %v2733 = vmax.f32 %v2140, %v2415
        %v2734 = vmax.f32 %v2141, %v2417
        %v2735 = vmax.f32 %v2142, %v2419
        %v2736 = vmax.f32 %v2045, %v2421
        %v2737 = vmax.f32 %v2143, %v2423
        %v2738 = vmax.f32 %v2144, %v2425
        %v2739 = vmax.f32 %v2145, %v2427
        %v2740 = vmax.f32 %v2046, %v2429
        %v2741 = vmax.f32 %v2146, %v2431
        %v2742 = vmax.f32 %v2147, %v2433
        %v2743 = vmax.f32 %v2148, %v2435
        %v2744 = vmax.f32 %v2047, %v2437
        %v2745 = vmax.f32 %v2149, %v2439
        %v2746 = vmax.f32 %v2150, %v2441
        %v2747 = vmax.f32 %v2151, %v2443
        %v2748 = vmax.f32 %v2048, %v2445
        %v2749 = vmax.f32 %v2152, %v2447
        %v2750 = vmax.f32 %v2153, %v2449
        %v2751 = vmax.f32 %v2154, %v2451
        %v2752 = vmax.f32 %v2049, %v2453
        %v2753 = vmax.f32 %v2155, %v2455
        %v2754 = vmax.f32 %v2156, %v2457
        %v2755 = vmax.f32 %v2157, %v2459
        %v2756 = vmax.f32 %v2050, %v2461
        %v2757 = vmax.f32 %v2158, %v2463
        %v2758 = vmax.f32 %v2159, %v2465
        %v2759 = vmax.f32 %v2160, %v2467
        %v2760 = vmax.f32 %v2051, %v2469
        %v2761 = vmax.f32 %v2161, %v2471
        %v2762 = vmax.f32 %v2162, %v2473
        %v2763 = vmax.f32 %v2163, %v2475
        %v2764 = vmax.f32 %v2052, %v2477
        %v2765 = vmax.f32 %v2164, %v2479
        %v2766 = vmax.f32 %v2165, %v2481
        %v2767 = vmax.f32 %v2166, %v2483
        %v2768 = vmax.f32 %v2053, %v2485
        %v2769 = vmax.f32 %v2167, %v2487
        %v2770 = vmax.f32 %v2168, %v2489
        %v2771 = vmax.f32 %v2169, %v2491
        %v2772 = vmax.f32 %v2054, %v2493
        %v2773 = vmax.f32 %v2170, %v2495
        %v2774 = vmax.f32 %v2171, %v2497
        %v2775 = vmax.f32 %v2172, %v2499
        %v2776 = vmax.f32 %v2055, %v2501
        %v2777 = vmax.f32 %v2173, %v2503
        %v2778 = vmax.f32 %v2174, %v2505
        %v2779 = vmax.f32 %v2175, %v2507
        %v2780 = vmax.f32 %v2056, %v2509
        %v2781 = vmax.f32 %v2176, %v2511
        %v2782 = vmax.f32 %v2177, %v2513
        %v2783 = vmax.f32 %v2178, %v2515
        %v2784 = vmax.f32 %v2057, %v2517
        %v2785 = vmax.f32 %v2179, %v2519
        %v2786 = vmax.f32 %v2180, %v2521
        %v2787 = vmax.f32 %v2181, %v2523
        %v2788 = vmax.f32 %v2058, %v2525
        %v2789 = vmax.f32 %v2182, %v2527
        %v2790 = vmax.f32 %v2183, %v2529
        %v2791 = vmax.f32 %v2184, %v2531
        %v2792 = vmax.f32 %v2059, %v2533
        %v2793 = vmax.f32 %v2185, %v2535
        %v2794 = vmax.f32 %v2186, %v2537
        %v2795 = vmax.f32 %v2187, %v2539
        %v2796 = vmax.f32 %v2668, %v2684
        %v2797 = vmax.f32 %v2669, %v2685
        %v2798 = vmax.f32 %v2670, %v2686
        %v2799 = vmax.f32 %v2671, %v2687
        %v2800 = vmax.f32 %v2672, %v2688
        %v2801 = vmax.f32 %v2673, %v2689
        %v2802 = vmax.f32 %v2674, %v2690
        %v2803 = vmax.f32 %v2675, %v2691
        %v2804 = vmax.f32 %v2676, %v2692
        %v2805 = vmax.f32 %v2677, %v2693
        %v2806 = vmax.f32 %v2678, %v2694
        %v2807 = vmax.f32 %v2679, %v2695
        %v2808 = vmax.f32 %v2680, %v2696
        %v2809 = vmax.f32 %v2681, %v2697
        %v2810 = vmax.f32 %v2682, %v2698
        %v2811 = vmax.f32 %v2683, %v2699
        %v2812 = vmax.f32 %v2700, %v2716
        %v2813 = vmax.f32 %v2701, %v2717
        %v2814 = vmax.f32 %v2702, %v2718
        %v2815 = vmax.f32 %v2703, %v2719
        %v2816 = vmax.f32 %v2704, %v2720
        %v2817 = vmax.f32 %v2705, %v2721
        %v2818 = vmax.f32 %v2706, %v2722
        %v2819 = vmax.f32 %v2707, %v2723
        %v2820 = vmax.f32 %v2708, %v2724
        %v2821 = vmax.f32 %v2709, %v2725
        %v2822 = vmax.f32 %v2710, %v2726
        %v2823 = vmax.f32 %v2711, %v2727
        %v2824 = vmax.f32 %v2712, %v2728
        %v2825 = vmax.f32 %v2713, %v2729
        %v2826 = vmax.f32 %v2714, %v2730
        %v2827 = vmax.f32 %v2715, %v2731
        %v2828 = vmax.f32 %v2732, %v2748
        %v2829 = vmax.f32 %v2733, %v2749
        %v2830 = vmax.f32 %v2734, %v2750
        %v2831 = vmax.f32 %v2735, %v2751
        %v2832 = vmax.f32 %v2736, %v2752
        %v2833 = vmax.f32 %v2737, %v2753
        %v2834 = vmax.f32 %v2738, %v2754
        %v2835 = vmax.f32 %v2739, %v2755
        %v2836 = vmax.f32 %v2740, %v2756
        %v2837 = vmax.f32 %v2741, %v2757
        %v2838 = vmax.f32 %v2742, %v2758
        %v2839 = vmax.f32 %v2743, %v2759
        %v2840 = vmax.f32 %v2744, %v2760
        %v2841 = vmax.f32 %v2745, %v2761
        %v2842 = vmax.f32 %v2746, %v2762
        %v2843 = vmax.f32 %v2747, %v2763
        %v2844 = vmax.f32 %v2764, %v2780
        %v2845 = vmax.f32 %v2765, %v2781
        %v2846 = vmax.f32 %v2766, %v2782
        %v2847 = vmax.f32 %v2767, %v2783
        %v2848 = vmax.f32 %v2768, %v2784
        %v2849 = vmax.f32 %v2769, %v2785
        %v2850 = vmax.f32 %v2770, %v2786
        %v2851 = vmax.f32 %v2771, %v2787
        %v2852 = vmax.f32 %v2772, %v2788
        %v2853 = vmax.f32 %v2773, %v2789
        %v2854 = vmax.f32 %v2774, %v2790
        %v2855 = vmax.f32 %v2775, %v2791
        %v2856 = vmax.f32 %v2776, %v2792
        %v2857 = vmax.f32 %v2777, %v2793
        %v2858 = vmax.f32 %v2778, %v2794
        %v2859 = vmax.f32 %v2779, %v2795
        %v2860 = vmax.f32 %v2796, 0.0
        %v2861 = vmax.f32 %v2797, 0.0
        %v2862 = vmax.f32 %v2798, 0.0
        %v2863 = vmax.f32 %v2799, 0.0
        %v2864 = vmax.f32 %v2800, 0.0
        %v2865 = vmax.f32 %v2801, 0.0
        %v2866 = vmax.f32 %v2802, 0.0
        %v2867 = vmax.f32 %v2803, 0.0
        %v2868 = vmax.f32 %v2804, 0.0
        %v2869 = vmax.f32 %v2805, 0.0
        %v2870 = vmax.f32 %v2806, 0.0
        %v2871 = vmax.f32 %v2807, 0.0
        %v2872 = vmax.f32 %v2808, 0.0
        %v2873 = vmax.f32 %v2809, 0.0
        %v2874 = vmax.f32 %v2810, 0.0
        %v2875 = vmax.f32 %v2811, 0.0
        %v2876 = vmax.f32 %v2812, 0.0
        %v2877 = vmax.f32 %v2813, 0.0
        %v2878 = vmax.f32 %v2814, 0.0
        %v2879 = vmax.f32 %v2815, 0.0
        %v2880 = vmax.f32 %v2816, 0.0
        %v2881 = vmax.f32 %v2817, 0.0
        %v2882 = vmax.f32 %v2818, 0.0
        %v2883 = vmax.f32 %v2819, 0.0
        %v2884 = vmax.f32 %v2820, 0.0
        %v2885 = vmax.f32 %v2821, 0.0
        %v2886 = vmax.f32 %v2822, 0.0
        %v2887 = vmax.f32 %v2823, 0.0
        %v2888 = vmax.f32 %v2824, 0.0
        %v2889 = vmax.f32 %v2825, 0.0
        %v2890 = vmax.f32 %v2826, 0.0
        %v2891 = vmax.f32 %v2827, 0.0
        %v2892 = vmax.f32 %v2828, 0.0
        %v2893 = vmax.f32 %v2829, 0.0
        %v2894 = vmax.f32 %v2830, 0.0
        %v2895 = vmax.f32 %v2831, 0.0
        %v2896 = vmax.f32 %v2832, 0.0
        %v2897 = vmax.f32 %v2833, 0.0
        %v2898 = vmax.f32 %v2834, 0.0
        %v2899 = vmax.f32 %v2835, 0.0
        %v2900 = vmax.f32 %v2836, 0.0
        %v2901 = vmax.f32 %v2837, 0.0
        %v2902 = vmax.f32 %v2838, 0.0
        %v2903 = vmax.f32 %v2839, 0.0
        %v2904 = vmax.f32 %v2840, 0.0
        %v2905 = vmax.f32 %v2841, 0.0
        %v2906 = vmax.f32 %v2842, 0.0
        %v2907 = vmax.f32 %v2843, 0.0
        %v2908 = vmax.f32 %v2844, 0.0
        %v2909 = vmax.f32 %v2845, 0.0
        %v2910 = vmax.f32 %v2846, 0.0
        %v2911 = vmax.f32 %v2847, 0.0
        %v2912 = vmax.f32 %v2848, 0.0
        %v2913 = vmax.f32 %v2849, 0.0
        %v2914 = vmax.f32 %v2850, 0.0
        %v2915 = vmax.f32 %v2851, 0.0
        %v2916 = vmax.f32 %v2852, 0.0
        %v2917 = vmax.f32 %v2853, 0.0
        %v2918 = vmax.f32 %v2854, 0.0
        %v2919 = vmax.f32 %v2855, 0.0
        %v2920 = vmax.f32 %v2856, 0.0
        %v2921 = vmax.f32 %v2857, 0.0
        %v2922 = vmax.f32 %v2858, 0.0
        %v2923 = vmax.f32 %v2859, 0.0
        %s2924 = smul.u32 %s202, 4
        %v2989 = vperm.slane %v2860, 0
        %v2990 = vperm.slane %v2861, 0
        %v2991 = vperm.slane %v2862, 0
        %v2992 = vperm.slane %v2863, 0
        %v2993 = vperm.slane %v2864, 0
        %v2994 = vperm.slane %v2865, 0
        %v2995 = vperm.slane %v2866, 0
        %v2996 = vperm.slane %v2867, 0
        %v2997 = vperm.slane %v2868, 0
        %v2998 = vperm.slane %v2869, 0
        %v2999 = vperm.slane %v2870, 0
        %v3000 = vperm.slane %v2871, 0
        %v3001 = vperm.slane %v2872, 0
        %v3002 = vperm.slane %v2873, 0
        %v3003 = vperm.slane %v2874, 0
        %v3004 = vperm.slane %v2875, 0
        %v3005 = vperm.slane %v2876, 0
        %v3006 = vperm.slane %v2877, 0
        %v3007 = vperm.slane %v2878, 0
        %v3008 = vperm.slane %v2879, 0
        %v3009 = vperm.slane %v2880, 0
        %v3010 = vperm.slane %v2881, 0
        %v3011 = vperm.slane %v2882, 0
        %v3012 = vperm.slane %v2883, 0
        %v3013 = vperm.slane %v2884, 0
        %v3014 = vperm.slane %v2885, 0
        %v3015 = vperm.slane %v2886, 0
        %v3016 = vperm.slane %v2887, 0
        %v3017 = vperm.slane %v2888, 0
        %v3018 = vperm.slane %v2889, 0
        %v3019 = vperm.slane %v2890, 0
        %v3020 = vperm.slane %v2891, 0
        %v3021 = vperm.slane %v2892, 0
        %v3022 = vperm.slane %v2893, 0
        %v3023 = vperm.slane %v2894, 0
        %v3024 = vperm.slane %v2895, 0
        %v3025 = vperm.slane %v2896, 0
        %v3026 = vperm.slane %v2897, 0
        %v3027 = vperm.slane %v2898, 0
        %v3028 = vperm.slane %v2899, 0
        %v3029 = vperm.slane %v2900, 0
        %v3030 = vperm.slane %v2901, 0
        %v3031 = vperm.slane %v2902, 0
        %v3032 = vperm.slane %v2903, 0
        %v3033 = vperm.slane %v2904, 0
        %v3034 = vperm.slane %v2905, 0
        %v3035 = vperm.slane %v2906, 0
        %v3036 = vperm.slane %v2907, 0
        %v3037 = vperm.slane %v2908, 0
        %v3038 = vperm.slane %v2909, 0
        %v3039 = vperm.slane %v2910, 0
        %v3040 = vperm.slane %v2911, 0
        %v3041 = vperm.slane %v2912, 0
        %v3042 = vperm.slane %v2913, 0
        %v3043 = vperm.slane %v2914, 0
        %v3044 = vperm.slane %v2915, 0
        %v3045 = vperm.slane %v2916, 0
        %v3046 = vperm.slane %v2917, 0
        %v3047 = vperm.slane %v2918, 0
        %v3048 = vperm.slane %v2919, 0
        %v3049 = vperm.slane %v2920, 0
        %v3050 = vperm.slane %v2921, 0
        %v3051 = vperm.slane %v2922, 0
        %v3052 = vperm.slane %v2923, 0
        %vm3053 = vcmask 1041409
        %v3054 = vsel %vm3053, %v2990, %v2989
        %vm3055 = vcmask 1042434
        %v3056 = vsel %vm3055, %v2991, %v3054
        %vm3057 = vcmask 1043459
        %v3058 = vsel %vm3057, %v2992, %v3056
        %vm3059 = vcmask 1044484
        %v3060 = vsel %vm3059, %v2993, %v3058
        %vm3061 = vcmask 1045509
        %v3062 = vsel %vm3061, %v2994, %v3060
        %vm3063 = vcmask 1046534
        %v3064 = vsel %vm3063, %v2995, %v3062
        %vm3065 = vcmask 1047559
        %v3066 = vsel %vm3065, %v2996, %v3064
        %v3067 = vsel %vm3053, %v2998, %v2997
        %v3068 = vsel %vm3055, %v2999, %v3067
        %v3069 = vsel %vm3057, %v3000, %v3068
        %v3070 = vsel %vm3059, %v3001, %v3069
        %v3071 = vsel %vm3061, %v3002, %v3070
        %v3072 = vsel %vm3063, %v3003, %v3071
        %v3073 = vsel %vm3065, %v3004, %v3072
        %v3074 = vsel %vm3053, %v3006, %v3005
        %v3075 = vsel %vm3055, %v3007, %v3074
        %v3076 = vsel %vm3057, %v3008, %v3075
        %v3077 = vsel %vm3059, %v3009, %v3076
        %v3078 = vsel %vm3061, %v3010, %v3077
        %v3079 = vsel %vm3063, %v3011, %v3078
        %v3080 = vsel %vm3065, %v3012, %v3079
        %v3081 = vsel %vm3053, %v3014, %v3013
        %v3082 = vsel %vm3055, %v3015, %v3081
        %v3083 = vsel %vm3057, %v3016, %v3082
        %v3084 = vsel %vm3059, %v3017, %v3083
        %v3085 = vsel %vm3061, %v3018, %v3084
        %v3086 = vsel %vm3063, %v3019, %v3085
        %v3087 = vsel %vm3065, %v3020, %v3086
        %v3088 = vsel %vm3053, %v3022, %v3021
        %v3089 = vsel %vm3055, %v3023, %v3088
        %v3090 = vsel %vm3057, %v3024, %v3089
        %v3091 = vsel %vm3059, %v3025, %v3090
        %v3092 = vsel %vm3061, %v3026, %v3091
        %v3093 = vsel %vm3063, %v3027, %v3092
        %v3094 = vsel %vm3065, %v3028, %v3093
        %v3095 = vsel %vm3053, %v3030, %v3029
        %v3096 = vsel %vm3055, %v3031, %v3095
        %v3097 = vsel %vm3057, %v3032, %v3096
        %v3098 = vsel %vm3059, %v3033, %v3097
        %v3099 = vsel %vm3061, %v3034, %v3098
        %v3100 = vsel %vm3063, %v3035, %v3099
        %v3101 = vsel %vm3065, %v3036, %v3100
        %v3102 = vsel %vm3053, %v3038, %v3037
        %v3103 = vsel %vm3055, %v3039, %v3102
        %v3104 = vsel %vm3057, %v3040, %v3103
        %v3105 = vsel %vm3059, %v3041, %v3104
        %v3106 = vsel %vm3061, %v3042, %v3105
        %v3107 = vsel %vm3063, %v3043, %v3106
        %v3108 = vsel %vm3065, %v3044, %v3107
        %v3109 = vsel %vm3053, %v3046, %v3045
        %v3110 = vsel %vm3055, %v3047, %v3109
        %v3111 = vsel %vm3057, %v3048, %v3110
        %v3112 = vsel %vm3059, %v3049, %v3111
        %v3113 = vsel %vm3061, %v3050, %v3112
        %v3114 = vsel %vm3063, %v3051, %v3113
        %v3115 = vsel %vm3065, %v3052, %v3114
        %s3124 = smul.u32 %s2924, 16
        %s3125 = scalar_lea.vmem %s197, %s3124
        %vm3126 = vcmask 523264
        %3127 = vst.msk [vmem:[%s3125] sm:$0xff] %vm3126, %v3066
        %3128 = vst.msk [vmem:[%s3125 + $0x8] sm:$0xff] %vm3126, %v3073
        %3129 = vst.msk [vmem:[%s3125 + $0x10] sm:$0xff] %vm3126, %v3080
        %3130 = vst.msk [vmem:[%s3125 + $0x18] sm:$0xff] %vm3126, %v3087
        %3131 = vst.msk [vmem:[%s3125 + $0x20] sm:$0xff] %vm3126, %v3094
        %3132 = vst.msk [vmem:[%s3125 + $0x28] sm:$0xff] %vm3126, %v3101
        %3133 = vst.msk [vmem:[%s3125 + $0x30] sm:$0xff] %vm3126, %v3108
        %3134 = vst.msk [vmem:[%s3125 + $0x38] sm:$0xff] %vm3126, %v3115
      $region41: #{tiny_imagenet_forward.5} parent=35 // loop_footer
        %s206 = sadd.s32 1, %s202
      $region42: #{tiny_imagenet_forward.5} parent=35 // loop_footer_branch
        %201 = sbr.rel target = $region38
      $region43: #{tiny_imagenet_forward.5} parent=35 // loop_exit
        _
      %p3135 = scmp.lt.s32.totalorder %s15, 1
      %s3136 = scalar_select %p3135, %s15, 1
      %s3137 = smul.addr %s3136, 32
      %s3138 = smul.addr %s3137, 8
      %s3139 = scalar_lea.vmem %s4, %s3138
      // Predicated region
      $region44: #{tiny_imagenet_forward.5} parent=35 // pred_check
        %p3140 = pneg %p122
      $region45: #{tiny_imagenet_forward.5} parent=35 // pred_check_branch
        %3142 = sbr.rel (%p3140) target = $region47
      $region46: #{tiny_imagenet_forward.5} parent=35 // pred_region
        _
      $region47: #{tiny_imagenet_forward.5} parent=35 // pred_fallthru
        _
    $region36: #{tiny_imagenet_forward.5} parent=5 // pred_fallthru
      _
    %p3143 = scmp.le.s32.totalorder 2, %s10
    // Predicated region
    $region48: #{tiny_imagenet_forward.5} parent=5 // pred_check
      %p3144 = pneg %p3143
    $region49: #{tiny_imagenet_forward.5} parent=5 // pred_check_branch
      %3146 = sbr.rel (%p3144) target = $region51
    $region50: #{tiny_imagenet_forward.5} parent=5 // pred_region
      %s3147 = ssub.s32 %s10, 2
      // Predicated region
      $region52: #{tiny_imagenet_forward.5} parent=50 // pred_check
        %p3148 = pneg %p128
      $region53: #{tiny_imagenet_forward.5} parent=50 // pred_check_branch
        %3150 = sbr.rel (%p3148) target = $region55
      $region54: #{tiny_imagenet_forward.5} parent=50 // pred_region
        %p3151 = scmp.lt.s32.totalorder %s16, 1
        %s3152 = scalar_select %p3151, %s16, 1
        %s3153 = smul.addr %s3152, 32
        %s3154 = smul.addr %s3153, 8
        %s3155 = scalar_lea.vmem %s4, %s3154
      $region55: #{tiny_imagenet_forward.5} parent=50 // pred_fallthru
        _
    $region51: #{tiny_imagenet_forward.5} parent=5 // pred_fallthru
      _
  $region6: #{tiny_imagenet_forward.5} parent=0 // loop_footer
    %s14 = sadd.s32 1, %s10
  $region7: #{tiny_imagenet_forward.5} parent=0 // loop_footer_branch
    %9 = sbr.rel target = $region3
  $region8: #{tiny_imagenet_forward.5} parent=0 // loop_exit
    _

// kernel: tiny_imagenet_forward.6
$region0: #{tiny_imagenet_forward.6}
  #allocation0 [shape = 'u32[]', space=smem, size = 0x4, offset = 0x4, fixed_abs, tag = 'smem constant byte address 0x4 - core index']
  #allocation1 [shape = 'u32[72,128]{1,0:T(1,128)}', space=vmem, size = 0x9000, scoped, tag = 'internal scratch']
  %s0 = inlined_call_operand.vmem [shape: f32[2,18,18,64], index: 0, kind: input, shape index: {}]
  %s1 = inlined_call_operand.vmem [shape: bf16[3,3,64,128], index: 1, kind: input, shape index: {}]
  %s2 = inlined_call_operand.vmem [shape: f32[1,128], index: 2, kind: input, shape index: {}]
  %s3 = inlined_call_operand.vmem [shape: f32[1,128], index: 3, kind: input, shape index: {}]
  %s4 = inlined_call_operand.vmem [shape: f32[2,8,8,128], index: 4, kind: output, shape index: {}]
  %s5 = sld [smem:[#allocation0]]
  $region56: #{tiny_imagenet_forward.6} parent=0
    _
  %s7 = ssub.s32 1, %s5
  %s8 = scalar_select 0, %s7, %s5
  loop: start=0, step=1, limit=4
  $region2: #{tiny_imagenet_forward.6} parent=0 // loop_pre_header
    _
  $region3: #{tiny_imagenet_forward.6} parent=0 // loop_header
    %s10 = sphi 0, %s14
    %p11 = scmp.ge.s32.totalorder %s10, 4
    %s20 = sphi 0, %s22
    %s23 = sphi 0, %s20
    %s24 = sphi 0, %s23
    %s40 = sphi 0, %s24
    %s44 = sphi 0, %s44
    %s46 = sphi 0, %s44
    %s47 = sphi 0, %s46
    %s61 = sphi 0, %s47
    %s65 = sphi 0, %s65
    %s67 = sphi 0, %s65
    %s68 = sphi 0, %s67
    %s82 = sphi 0, %s68
    %s86 = sphi 0, %s86
    %s88 = sphi 0, %s86
    %s89 = sphi 0, %s88
    %s103 = sphi 0, %s89
    %s109 = sphi 0, %s111
    %s112 = sphi 0, %s109
    %s113 = sphi 0, %s112
    %s129 = sphi 0, %s113
  $region4: #{tiny_imagenet_forward.6} parent=0 // loop_header_branch
    %13 = sbr.rel (%p11) target = $region8
  $region5: #{tiny_imagenet_forward.6} parent=0 // loop_body
    %s15 = ssub.s32 %s10, 1
    %s16 = ssub.s32 %s10, 2
    %s17 = sadd.s32 %s10, 1
    %s18 = ssub.s32 %s10, %s17
    %p19 = scmp.eq.s32.totalorder %s18, 0
    %s21 = sadd.s32 %s20, 1
    %s22 = scalar_select %p19, %s20, %s21
    %p25 = pneg %p19
    %p26 = scmp.eq.s32.totalorder %s10, 1
    %p27 = por %p25, %p26
    %p28 = scmp.ne.s32.totalorder %s20, %s23
    %p29 = scmp.eq.s32.totalorder %s10, 0
    %p30 = por %p28, %p29
    %p31 = scmp.ne.s32.totalorder %s20, %s23
    %p32 = scmp.eq.s32.totalorder %s15, 1
    %p33 = por %p31, %p32
    %p34 = scmp.ne.s32.totalorder %s23, %s24
    %p35 = scmp.eq.s32.totalorder %s15, 0
    %p36 = por %p34, %p35
    %p37 = scmp.ne.s32.totalorder %s23, %s24
    %p38 = scmp.eq.s32.totalorder %s16, 1
    %p39 = por %p37, %p38
    %p41 = scmp.ne.s32.totalorder %s24, %s40
    %p42 = scmp.eq.s32.totalorder %s16, 0
    %p43 = por %p41, %p42
    %s45 = sadd.s32 %s44, 1
    %p48 = scmp.eq.s32.totalorder %s10, 1
    %p49 = scmp.ne.s32.totalorder %s44, %s46
    %p50 = scmp.eq.s32.totalorder %s10, 0
    %p51 = por %p49, %p50
    %p52 = scmp.ne.s32.totalorder %s44, %s46
    %p53 = scmp.eq.s32.totalorder %s15, 1
    %p54 = por %p52, %p53
    %p55 = scmp.ne.s32.totalorder %s46, %s47
    %p56 = scmp.eq.s32.totalorder %s15, 0
    %p57 = por %p55, %p56
    %p58 = scmp.ne.s32.totalorder %s46, %s47
    %p59 = scmp.eq.s32.totalorder %s16, 1
    %p60 = por %p58, %p59
    %p62 = scmp.ne.s32.totalorder %s47, %s61
    %p63 = scmp.eq.s32.totalorder %s16, 0
    %p64 = por %p62, %p63
    %s66 = sadd.s32 %s65, 1
    %p69 = scmp.eq.s32.totalorder %s10, 1
    %p70 = scmp.ne.s32.totalorder %s65, %s67
    %p71 = scmp.eq.s32.totalorder %s10, 0
    %p72 = por %p70, %p71
    %p73 = scmp.ne.s32.totalorder %s65, %s67
    %p74 = scmp.eq.s32.totalorder %s15, 1
    %p75 = por %p73, %p74
    %p76 = scmp.ne.s32.totalorder %s67, %s68
    %p77 = scmp.eq.s32.totalorder %s15, 0
    %p78 = por %p76, %p77
    %p79 = scmp.ne.s32.totalorder %s67, %s68
    %p80 = scmp.eq.s32.totalorder %s16, 1
    %p81 = por %p79, %p80
    %p83 = scmp.ne.s32.totalorder %s68, %s82
    %p84 = scmp.eq.s32.totalorder %s16, 0
    %p85 = por %p83, %p84
    %s87 = sadd.s32 %s86, 1
    %p90 = scmp.eq.s32.totalorder %s10, 1
    %p91 = scmp.ne.s32.totalorder %s86, %s88
    %p92 = scmp.eq.s32.totalorder %s10, 0
    %p93 = por %p91, %p92
    %p94 = scmp.ne.s32.totalorder %s86, %s88
    %p95 = scmp.eq.s32.totalorder %s15, 1
    %p96 = por %p94, %p95
    %p97 = scmp.ne.s32.totalorder %s88, %s89
    %p98 = scmp.eq.s32.totalorder %s15, 0
    %p99 = por %p97, %p98
    %p100 = scmp.ne.s32.totalorder %s88, %s89
    %p101 = scmp.eq.s32.totalorder %s16, 1
    %p102 = por %p100, %p101
    %p104 = scmp.ne.s32.totalorder %s89, %s103
    %p105 = scmp.eq.s32.totalorder %s16, 0
    %p106 = por %p104, %p105
    %s107 = ssub.s32 %s10, %s17
    %p108 = scmp.eq.s32.totalorder %s107, 0
    %s110 = sadd.s32 %s109, 1
    %s111 = scalar_select %p108, %s109, %s110
    %p114 = pneg %p108
    %p115 = scmp.eq.s32.totalorder %s10, 1
    %p116 = por %p114, %p115
    %p117 = scmp.ne.s32.totalorder %s109, %s112
    %p118 = scmp.eq.s32.totalorder %s10, 0
    %p119 = por %p117, %p118
    %p120 = scmp.ne.s32.totalorder %s109, %s112
    %p121 = scmp.eq.s32.totalorder %s15, 1
    %p122 = por %p120, %p121
    %p123 = scmp.ne.s32.totalorder %s112, %s113
    %p124 = scmp.eq.s32.totalorder %s15, 0
    %p125 = por %p123, %p124
    %p126 = scmp.ne.s32.totalorder %s112, %s113
    %p127 = scmp.eq.s32.totalorder %s16, 1
    %p128 = por %p126, %p127
    %p130 = scmp.ne.s32.totalorder %s113, %s129
    %p131 = scmp.eq.s32.totalorder %s16, 0
    %p132 = por %p130, %p131
    %p133 = scmp.le.s32.totalorder 1, %s10
    %p134 = scmp.lt.s32.totalorder %s10, 3
    %p135 = pnand %p133, %p134
    %p136 = pneg %p135
    // Predicated region
    $region9: #{tiny_imagenet_forward.6} parent=5 // pred_check
      _
    $region10: #{tiny_imagenet_forward.6} parent=5 // pred_check_branch
      %138 = sbr.rel (%p135) target = $region12
    $region11: #{tiny_imagenet_forward.6} parent=5 // pred_region
      %s139 = ssub.s32 %s10, 1
      // Predicated region
      $region13: #{tiny_imagenet_forward.6} parent=11 // pred_check
        %p140 = pneg %p57
      $region14: #{tiny_imagenet_forward.6} parent=11 // pred_check_branch
        %142 = sbr.rel (%p140) target = $region16
      $region15: #{tiny_imagenet_forward.6} parent=11 // pred_region
        _
      $region16: #{tiny_imagenet_forward.6} parent=11 // pred_fallthru
        _
      // Predicated region
      $region17: #{tiny_imagenet_forward.6} parent=11 // pred_check
        %p143 = pneg %p78
      $region18: #{tiny_imagenet_forward.6} parent=11 // pred_check_branch
        %145 = sbr.rel (%p143) target = $region20
      $region19: #{tiny_imagenet_forward.6} parent=11 // pred_region
        _
      $region20: #{tiny_imagenet_forward.6} parent=11 // pred_fallthru
        _
      // Predicated region
      $region21: #{tiny_imagenet_forward.6} parent=11 // pred_check
        %p146 = pneg %p99
      $region22: #{tiny_imagenet_forward.6} parent=11 // pred_check_branch
        %148 = sbr.rel (%p146) target = $region24
      $region23: #{tiny_imagenet_forward.6} parent=11 // pred_region
        _
      $region24: #{tiny_imagenet_forward.6} parent=11 // pred_fallthru
        _
    $region12: #{tiny_imagenet_forward.6} parent=5 // pred_fallthru
      _
    %p149 = scmp.lt.s32.totalorder %s10, 2
    // Predicated region
    $region25: #{tiny_imagenet_forward.6} parent=5 // pred_check
      %p150 = pneg %p149
    $region26: #{tiny_imagenet_forward.6} parent=5 // pred_check_branch
      %152 = sbr.rel (%p150) target = $region28
    $region27: #{tiny_imagenet_forward.6} parent=5 // pred_region
      // Predicated region
      $region29: #{tiny_imagenet_forward.6} parent=27 // pred_check
        %p153 = pneg %p30
      $region30: #{tiny_imagenet_forward.6} parent=27 // pred_check_branch
        %155 = sbr.rel (%p153) target = $region32
      $region31: #{tiny_imagenet_forward.6} parent=27 // pred_region
        %p156 = scmp.lt.s32.totalorder %s10, 1
        %s157 = scalar_select %p156, %s10, 1
        %s158 = smul.addr %s157, 54
        %s159 = smul.addr %s158, 8
        %s160 = scalar_lea.vmem %s0, %s159
      $region32: #{tiny_imagenet_forward.6} parent=27 // pred_fallthru
        _
    $region28: #{tiny_imagenet_forward.6} parent=5 // pred_fallthru
      _
    %p161 = scmp.le.s32.totalorder 1, %s10
    %p162 = scmp.lt.s32.totalorder %s10, 3
    %p163 = pnand %p161, %p162
    %p164 = pneg %p163
    // Predicated region
    $region33: #{tiny_imagenet_forward.6} parent=5 // pred_check
      _
    $region34: #{tiny_imagenet_forward.6} parent=5 // pred_check_branch
      %166 = sbr.rel (%p163) target = $region36
    $region35: #{tiny_imagenet_forward.6} parent=5 // pred_region
      %s167 = ssub.s32 %s10, 1
      %p168 = scmp.lt.s32.totalorder %s15, 1
      %s169 = scalar_select %p168, %s15, 1
      %s170 = smul.addr %s169, 54
      %s171 = smul.addr %s170, 8
      %s172 = scalar_lea.vmem %s0, %s171
      %p173 = pneg %p36
      %p174 = pneg %p33
      %p175 = pneg %p57
      %p176 = pneg %p54
      %p177 = pneg %p78
      %p178 = pneg %p75
      %p179 = pneg %p99
      %p180 = pneg %p96
      %p181 = pneg %p125
      %p182 = pneg %p122
      %p183 = scmp.lt.s32.totalorder %s15, 1
      %s184 = scalar_select %p183, %s15, 1
      %s185 = smul.addr %s184, 8
      %s186 = smul.addr %s185, 8
      %s187 = scalar_lea.vmem %s4, %s186
      %p188 = scmp.lt.s32.totalorder %s15, 1
      %s189 = scalar_select %p188, %s15, 1
      %s190 = smul.addr %s189, 54
      %s191 = smul.addr %s190, 8
      %s192 = scalar_lea.vmem %s0, %s191
      %p193 = scmp.lt.s32.totalorder %s15, 1
      %s194 = scalar_select %p193, %s15, 1
      %s195 = smul.addr %s194, 8
      %s196 = smul.addr %s195, 8
      %s197 = scalar_lea.vmem %s4, %s196
      %v199 = vld [vmem:[%s2] sm:$0x1]
      %v200 = vld [vmem:[%s3] sm:$0x1]
      loop: start=0, step=1, limit=2
      $region37: #{tiny_imagenet_forward.6} parent=35 // loop_pre_header
        _
      $region38: #{tiny_imagenet_forward.6} parent=35 // loop_header
        %s202 = sphi 0, %s206
        %p203 = scmp.ge.s32.totalorder %s202, 2
      $region39: #{tiny_imagenet_forward.6} parent=35 // loop_header_branch
        %205 = sbr.rel (%p203) target = $region43
      $region40: #{tiny_imagenet_forward.6} parent=35 // loop_body
        %s207 = smul.u32 %s202, 8
        %s208 = smul.u32 %s207, 24
        %s209 = scalar_lea.vmem %s192, %s208
        %v210 = vld [vmem:[%s209] sm:$0xff]
        %v211 = vld [vmem:[%s209 + $0x8] sm:$0xff]
        %v212 = vld [vmem:[%s209 + $0x10] sm:$0x3]
        %v213 = vld [vmem:[%s209 + $0x18] sm:$0xff]
        %v214 = vld [vmem:[%s209 + $0x20] sm:$0xff]
        %v215 = vld [vmem:[%s209 + $0x28] sm:$0x3]
        %v216 = vld [vmem:[%s209 + $0x30] sm:$0xff]
        %v217 = vld [vmem:[%s209 + $0x38] sm:$0xff]
        %v218 = vld [vmem:[%s209 + $0x40] sm:$0x3]
        %v219 = vld [vmem:[%s209 + $0x48] sm:$0xff]
        %v220 = vld [vmem:[%s209 + $0x50] sm:$0xff]
        %v221 = vld [vmem:[%s209 + $0x58] sm:$0x3]
        %v222 = vld [vmem:[%s209 + $0x60] sm:$0xff]
        %v223 = vld [vmem:[%s209 + $0x68] sm:$0xff]
        %v224 = vld [vmem:[%s209 + $0x70] sm:$0x3]
        %v225 = vld [vmem:[%s209 + $0x78] sm:$0xff]
        %v226 = vld [vmem:[%s209 + $0x80] sm:$0xff]
        %v227 = vld [vmem:[%s209 + $0x88] sm:$0x3]
        %v228 = vld [vmem:[%s209 + $0x90] sm:$0xff]
        %v229 = vld [vmem:[%s209 + $0x98] sm:$0xff]
        %v230 = vld [vmem:[%s209 + $0xa0] sm:$0x3]
        %v231 = vld [vmem:[%s209 + $0xa8] sm:$0xff]
        %v232 = vld [vmem:[%s209 + $0xb0] sm:$0xff]
        %v233 = vld [vmem:[%s209 + $0xb8] sm:$0x3]
        %v234 = vld [vmem:[%s209 + $0xc0] sm:$0xff]
        %v235 = vld [vmem:[%s209 + $0xc8] sm:$0xff]
        %v236 = vld [vmem:[%s209 + $0xd0] sm:$0x3]
        %v237 = vld [vmem:[%s209 + $0xd8] sm:$0xff]
        %v238 = vld [vmem:[%s209 + $0xe0] sm:$0xff]
        %v239 = vld [vmem:[%s209 + $0xe8] sm:$0x3]
        %v240 = vpack.c.bf16 %v211, %v210
        %v241 = vpack.c.bf16 %v214, %v213
        %v242 = vpack.c.bf16 %v217, %v216
        %v243 = vpack.c.bf16 %v220, %v219
        %v244 = vpack.c.bf16 %v223, %v222
        %v245 = vpack.c.bf16 %v226, %v225
        %v246 = vpack.c.bf16 %v229, %v228
        %v247 = vpack.c.bf16 %v232, %v231
        %v248 = vld [vmem:[%s1] sm:$0xf]
        %v249 = vld [vmem:[%s1 + $0x4] sm:$0xf]
        %v250 = vld [vmem:[%s1 + $0x8] sm:$0xf]
        %v251 = vld [vmem:[%s1 + $0xc] sm:$0xf]
        %v252 = vld [vmem:[%s1 + $0x10] sm:$0xf]
        %v253 = vld [vmem:[%s1 + $0x14] sm:$0xf]
        %v254 = vld [vmem:[%s1 + $0x18] sm:$0xf]
        %v255 = vld [vmem:[%s1 + $0x1c] sm:$0xf]
        %vm280 = vcmask 1046528
        %v281 = vrot.slane %v210, 1
        %v282 = vrot.slane %v211, 1
        %v283 = vsel %vm280, %v281, %v282
        %v284 = vrot.slane %v212, 1
        %v285 = vsel %vm280, %v282, %v284
        %v286 = vrot.slane %v213, 1
        %v287 = vrot.slane %v214, 1
        %v288 = vsel %vm280, %v286, %v287
        %v289 = vrot.slane %v215, 1
        %v290 = vsel %vm280, %v287, %v289
        %v291 = vrot.slane %v216, 1
        %v292 = vrot.slane %v217, 1
        %v293 = vsel %vm280, %v291, %v292
        %v294 = vrot.slane %v218, 1
        %v295 = vsel %vm280, %v292, %v294
        %v296 = vrot.slane %v219, 1
        %v297 = vrot.slane %v220, 1
        %v298 = vsel %vm280, %v296, %v297
        %v299 = vrot.slane %v221, 1
        %v300 = vsel %vm280, %v297, %v299
        %v301 = vrot.slane %v222, 1
        %v302 = vrot.slane %v223, 1
        %v303 = vsel %vm280, %v301, %v302
        %v304 = vrot.slane %v224, 1
        %v305 = vsel %vm280, %v302, %v304
        %v306 = vrot.slane %v225, 1
        %v307 = vrot.slane %v226, 1
        %v308 = vsel %vm280, %v306, %v307
        %v309 = vrot.slane %v227, 1
        %v310 = vsel %vm280, %v307, %v309
        %v311 = vrot.slane %v228, 1
        %v312 = vrot.slane %v229, 1
        %v313 = vsel %vm280, %v311, %v312
        %v314 = vrot.slane %v230, 1
        %v315 = vsel %vm280, %v312, %v314
        %v316 = vrot.slane %v231, 1
        %v317 = vrot.slane %v232, 1
        %v318 = vsel %vm280, %v316, %v317
        %v319 = vrot.slane %v233, 1
        %v320 = vsel %vm280, %v317, %v319
        %v337 = vpack.c.bf16 %v285, %v283
        %v338 = vpack.c.bf16 %v290, %v288
        %v339 = vpack.c.bf16 %v295, %v293
        %v340 = vpack.c.bf16 %v300, %v298
        %v341 = vpack.c.bf16 %v305, %v303
        %v342 = vpack.c.bf16 %v310, %v308
        %v343 = vpack.c.bf16 %v315, %v313
        %v344 = vpack.c.bf16 %v320, %v318
        %s345 = scalar_lea.vmem %s1, 32
        %v346 = vld [vmem:[%s345] sm:$0xf]
        %v347 = vld [vmem:[%s345 + $0x4] sm:$0xf]
        %v348 = vld [vmem:[%s345 + $0x8] sm:$0xf]
        %v349 = vld [vmem:[%s345 + $0xc] sm:$0xf]
        %v350 = vld [vmem:[%s345 + $0x10] sm:$0xf]
        %v351 = vld [vmem:[%s345 + $0x14] sm:$0xf]
        %v352 = vld [vmem:[%s345 + $0x18] sm:$0xf]
        %v353 = vld [vmem:[%s345 + $0x1c] sm:$0xf]
        %v362 = vunpack.c.l.b16 %v346
        %v363 = vunpack.c.l.b16 %v347
        %v364 = vunpack.c.l.b16 %v348
        %v365 = vunpack.c.l.b16 %v349
        %v366 = vunpack.c.l.b16 %v350
        %v367 = vunpack.c.l.b16 %v351
        %v368 = vunpack.c.l.b16 %v352
        %v369 = vunpack.c.l.b16 %v353
        %v370 = vpack.c.b16 %v363, %v362
        %v371 = vpack.c.b16 %v365, %v364
        %v372 = vpack.c.b16 %v367, %v366
        %v373 = vpack.c.b16 %v369, %v368
        %vm378 = vcmask 523264
        %v380 = vsel %vm378, %v337, 0
        %v383 = vsel %vm378, %v338, 0
        %v386 = vsel %vm378, %v339, 0
        %v389 = vsel %vm378, %v340, 0
        %v392 = vsel %vm378, %v341, 0
        %v395 = vsel %vm378, %v342, 0
        %v398 = vsel %vm378, %v343, 0
        %v401 = vsel %vm378, %v344, 0
        %403 = vmatpush.bf16.msra.mxu0 0
        %404 = vmatpush.bf16.msra.mxu0 0
        %405 = vmatpush.bf16.msra.mxu0 0
        %406 = vmatpush.bf16.msra.mxu0 0
        %407 = vmatpush.bf16.msra.mxu0 %v373
        %408 = vmatpush.bf16.msra.mxu0 %v372
        %409 = vmatpush.bf16.msra.mxu0 %v371
        %410 = vmatpush.bf16.msra.mxu0 %v370
        %411 = vmatmul.bf16.gmra.mxu0 %v380
        %v412 = vpop.f32.mrf.mxu0
        %v413 = vadd.f32 0.0, %v412
        %v414 = vpop.f32.mrf.mxu0
        %v415 = vadd.f32 0.0, %v414
        %416 = vmatmul.bf16.gmra.mxu0 %v383
        %v417 = vpop.f32.mrf.mxu0
        %v418 = vadd.f32 0.0, %v417
        %v419 = vpop.f32.mrf.mxu0
        %v420 = vadd.f32 0.0, %v419
        %421 = vmatmul.bf16.gmra.mxu0 %v386
        %v422 = vpop.f32.mrf.mxu0
        %v423 = vadd.f32 0.0, %v422
        %v424 = vpop.f32.mrf.mxu0
        %v425 = vadd.f32 0.0, %v424
        %426 = vmatmul.bf16.gmra.mxu0 %v389
        %v427 = vpop.f32.mrf.mxu0
        %v428 = vadd.f32 0.0, %v427
        %v429 = vpop.f32.mrf.mxu0
        %v430 = vadd.f32 0.0, %v429
        %431 = vmatmul.bf16.gmra.mxu0 %v392
        %v432 = vpop.f32.mrf.mxu0
        %v433 = vadd.f32 0.0, %v432
        %v434 = vpop.f32.mrf.mxu0
        %v435 = vadd.f32 0.0, %v434
        %436 = vmatmul.bf16.gmra.mxu0 %v395
        %v437 = vpop.f32.mrf.mxu0
        %v438 = vadd.f32 0.0, %v437
        %v439 = vpop.f32.mrf.mxu0
        %v440 = vadd.f32 0.0, %v439
        %441 = vmatmul.bf16.gmra.mxu0 %v398
        %v442 = vpop.f32.mrf.mxu0
        %v443 = vadd.f32 0.0, %v442
        %v444 = vpop.f32.mrf.mxu0
        %v445 = vadd.f32 0.0, %v444
        %446 = vmatmul.bf16.gmra.mxu0 %v401
        %v447 = vpop.f32.mrf.mxu0
        %v448 = vadd.f32 0.0, %v447
        %v449 = vpop.f32.mrf.mxu0
        %v450 = vadd.f32 0.0, %v449
        %451 = vdwg.mxu0
        %v460 = vunpack.c.l.b16 %v248
        %v461 = vunpack.c.l.b16 %v249
        %v462 = vunpack.c.l.b16 %v250
        %v463 = vunpack.c.l.b16 %v251
        %v464 = vunpack.c.l.b16 %v252
        %v465 = vunpack.c.l.b16 %v253
        %v466 = vunpack.c.l.b16 %v254
        %v467 = vunpack.c.l.b16 %v255
        %v468 = vpack.c.b16 %v461, %v460
        %v469 = vpack.c.b16 %v463, %v462
        %v470 = vpack.c.b16 %v465, %v464
        %v471 = vpack.c.b16 %v467, %v466
        %v477 = vsel %vm378, %v240, 0
        %v480 = vsel %vm378, %v241, 0
        %v483 = vsel %vm378, %v242, 0
        %v486 = vsel %vm378, %v243, 0
        %v489 = vsel %vm378, %v244, 0
        %v492 = vsel %vm378, %v245, 0
        %v495 = vsel %vm378, %v246, 0
        %v498 = vsel %vm378, %v247, 0
        %500 = vmatpush.bf16.msra.mxu0 0
        %501 = vmatpush.bf16.msra.mxu0 0
        %502 = vmatpush.bf16.msra.mxu0 0
        %503 = vmatpush.bf16.msra.mxu0 0
        %504 = vmatpush.bf16.msra.mxu0 %v471
        %505 = vmatpush.bf16.msra.mxu0 %v470
        %506 = vmatpush.bf16.msra.mxu0 %v469
        %507 = vmatpush.bf16.msra.mxu0 %v468
        %508 = vmatmul.bf16.gmra.mxu0 %v477
        %v509 = vpop.f32.mrf.mxu0
        %v510 = vadd.f32 %v413, %v509
        %v511 = vpop.f32.mrf.mxu0
        %v512 = vadd.f32 %v415, %v511
        %513 = vmatmul.bf16.gmra.mxu0 %v480
        %v514 = vpop.f32.mrf.mxu0
        %v515 = vadd.f32 %v418, %v514
        %v516 = vpop.f32.mrf.mxu0
        %v517 = vadd.f32 %v420, %v516
        %518 = vmatmul.bf16.gmra.mxu0 %v483
        %v519 = vpop.f32.mrf.mxu0
        %v520 = vadd.f32 %v423, %v519
        %v521 = vpop.f32.mrf.mxu0
        %v522 = vadd.f32 %v425, %v521
        %523 = vmatmul.bf16.gmra.mxu0 %v486
        %v524 = vpop.f32.mrf.mxu0
        %v525 = vadd.f32 %v428, %v524
        %v526 = vpop.f32.mrf.mxu0
        %v527 = vadd.f32 %v430, %v526
        %528 = vmatmul.bf16.gmra.mxu0 %v489
        %v529 = vpop.f32.mrf.mxu0
        %v530 = vadd.f32 %v433, %v529
        %v531 = vpop.f32.mrf.mxu0
        %v532 = vadd.f32 %v435, %v531
        %533 = vmatmul.bf16.gmra.mxu0 %v492
        %v534 = vpop.f32.mrf.mxu0
        %v535 = vadd.f32 %v438, %v534
        %v536 = vpop.f32.mrf.mxu0
        %v537 = vadd.f32 %v440, %v536
        %538 = vmatmul.bf16.gmra.mxu0 %v495
        %v539 = vpop.f32.mrf.mxu0
        %v540 = vadd.f32 %v443, %v539
        %v541 = vpop.f32.mrf.mxu0
        %v542 = vadd.f32 %v445, %v541
        %543 = vmatmul.bf16.gmra.mxu0 %v498
        %v544 = vpop.f32.mrf.mxu0
        %v545 = vadd.f32 %v448, %v544
        %v546 = vpop.f32.mrf.mxu0
        %v547 = vadd.f32 %v450, %v546
        %548 = vdwg.mxu0
        %vm549 = vcmask 1045504
        %v550 = vrot.slane %v210, 2
        %v551 = vrot.slane %v211, 2
        %v552 = vsel %vm549, %v550, %v551
        %v553 = vrot.slane %v212, 2
        %v554 = vsel %vm549, %v551, %v553
        %v555 = vrot.slane %v213, 2
        %v556 = vrot.slane %v214, 2
        %v557 = vsel %vm549, %v555, %v556
        %v558 = vrot.slane %v215, 2
        %v559 = vsel %vm549, %v556, %v558
        %v560 = vrot.slane %v216, 2
        %v561 = vrot.slane %v217, 2
        %v562 = vsel %vm549, %v560, %v561
        %v563 = vrot.slane %v218, 2
        %v564 = vsel %vm549, %v561, %v563
        %v565 = vrot.slane %v219, 2
        %v566 = vrot.slane %v220, 2
        %v567 = vsel %vm549, %v565, %v566
        %v568 = vrot.slane %v221, 2
        %v569 = vsel %vm549, %v566, %v568
        %v570 = vrot.slane %v222, 2
        %v571 = vrot.slane %v223, 2
        %v572 = vsel %vm549, %v570, %v571
        %v573 = vrot.slane %v224, 2
        %v574 = vsel %vm549, %v571, %v573
        %v575 = vrot.slane %v225, 2
        %v576 = vrot.slane %v226, 2
        %v577 = vsel %vm549, %v575, %v576
        %v578 = vrot.slane %v227, 2
        %v579 = vsel %vm549, %v576, %v578
        %v580 = vrot.slane %v228, 2
        %v581 = vrot.slane %v229, 2
        %v582 = vsel %vm549, %v580, %v581
        %v583 = vrot.slane %v230, 2
        %v584 = vsel %vm549, %v581, %v583
        %v585 = vrot.slane %v231, 2
        %v586 = vrot.slane %v232, 2
        %v587 = vsel %vm549, %v585, %v586
        %v588 = vrot.slane %v233, 2
        %v589 = vsel %vm549, %v586, %v588
        %v606 = vpack.c.bf16 %v554, %v552
        %v607 = vpack.c.bf16 %v559, %v557
        %v608 = vpack.c.bf16 %v564, %v562
        %v609 = vpack.c.bf16 %v569, %v567
        %v610 = vpack.c.bf16 %v574, %v572
        %v611 = vpack.c.bf16 %v579, %v577
        %v612 = vpack.c.bf16 %v584, %v582
        %v613 = vpack.c.bf16 %v589, %v587
        %s614 = scalar_lea.vmem %s1, 64
        %v615 = vld [vmem:[%s614] sm:$0xf]
        %v616 = vld [vmem:[%s614 + $0x4] sm:$0xf]
        %v617 = vld [vmem:[%s614 + $0x8] sm:$0xf]
        %v618 = vld [vmem:[%s614 + $0xc] sm:$0xf]
        %v619 = vld [vmem:[%s614 + $0x10] sm:$0xf]
        %v620 = vld [vmem:[%s614 + $0x14] sm:$0xf]
        %v621 = vld [vmem:[%s614 + $0x18] sm:$0xf]
        %v622 = vld [vmem:[%s614 + $0x1c] sm:$0xf]
        %v631 = vunpack.c.l.b16 %v615
        %v632 = vunpack.c.l.b16 %v616
        %v633 = vunpack.c.l.b16 %v617
        %v634 = vunpack.c.l.b16 %v618
        %v635 = vunpack.c.l.b16 %v619
        %v636 = vunpack.c.l.b16 %v620
        %v637 = vunpack.c.l.b16 %v621
        %v638 = vunpack.c.l.b16 %v622
        %v639 = vpack.c.b16 %v632, %v631
        %v640 = vpack.c.b16 %v634, %v633
        %v641 = vpack.c.b16 %v636, %v635
        %v642 = vpack.c.b16 %v638, %v637
        %v648 = vsel %vm378, %v606, 0
        %v651 = vsel %vm378, %v607, 0
        %v654 = vsel %vm378, %v608, 0
        %v657 = vsel %vm378, %v609, 0
        %v660 = vsel %vm378, %v610, 0
        %v663 = vsel %vm378, %v611, 0
        %v666 = vsel %vm378, %v612, 0
        %v669 = vsel %vm378, %v613, 0
        %671 = vmatpush.bf16.msra.mxu0 0
        %672 = vmatpush.bf16.msra.mxu0 0
        %673 = vmatpush.bf16.msra.mxu0 0
        %674 = vmatpush.bf16.msra.mxu0 0
        %675 = vmatpush.bf16.msra.mxu0 %v642
        %676 = vmatpush.bf16.msra.mxu0 %v641
        %677 = vmatpush.bf16.msra.mxu0 %v640
        %678 = vmatpush.bf16.msra.mxu0 %v639
        %679 = vmatmul.bf16.gmra.mxu0 %v648
        %v680 = vpop.f32.mrf.mxu0
        %v681 = vadd.f32 0.0, %v680
        %v682 = vpop.f32.mrf.mxu0
        %v683 = vadd.f32 0.0, %v682
        %684 = vmatmul.bf16.gmra.mxu0 %v651
        %v685 = vpop.f32.mrf.mxu0
        %v686 = vadd.f32 0.0, %v685
        %v687 = vpop.f32.mrf.mxu0
        %v688 = vadd.f32 0.0, %v687
        %689 = vmatmul.bf16.gmra.mxu0 %v654
        %v690 = vpop.f32.mrf.mxu0
        %v691 = vadd.f32 0.0, %v690
        %v692 = vpop.f32.mrf.mxu0
        %v693 = vadd.f32 0.0, %v692
        %694 = vmatmul.bf16.gmra.mxu0 %v657
        %v695 = vpop.f32.mrf.mxu0
        %v696 = vadd.f32 0.0, %v695
        %v697 = vpop.f32.mrf.mxu0
        %v698 = vadd.f32 0.0, %v697
        %699 = vmatmul.bf16.gmra.mxu0 %v660
        %v700 = vpop.f32.mrf.mxu0
        %v701 = vadd.f32 0.0, %v700
        %v702 = vpop.f32.mrf.mxu0
        %v703 = vadd.f32 0.0, %v702
        %704 = vmatmul.bf16.gmra.mxu0 %v663
        %v705 = vpop.f32.mrf.mxu0
        %v706 = vadd.f32 0.0, %v705
        %v707 = vpop.f32.mrf.mxu0
        %v708 = vadd.f32 0.0, %v707
        %709 = vmatmul.bf16.gmra.mxu0 %v666
        %v710 = vpop.f32.mrf.mxu0
        %v711 = vadd.f32 0.0, %v710
        %v712 = vpop.f32.mrf.mxu0
        %v713 = vadd.f32 0.0, %v712
        %714 = vmatmul.bf16.gmra.mxu0 %v669
        %v715 = vpop.f32.mrf.mxu0
        %v716 = vadd.f32 0.0, %v715
        %v717 = vpop.f32.mrf.mxu0
        %v718 = vadd.f32 0.0, %v717
        %719 = vdwg.mxu0
        %v720 = vadd.f32 %v510, %v681
        %v721 = vadd.f32 %v512, %v683
        %v722 = vadd.f32 %v515, %v686
        %v723 = vadd.f32 %v517, %v688
        %v724 = vadd.f32 %v520, %v691
        %v725 = vadd.f32 %v522, %v693
        %v726 = vadd.f32 %v525, %v696
        %v727 = vadd.f32 %v527, %v698
        %v728 = vadd.f32 %v530, %v701
        %v729 = vadd.f32 %v532, %v703
        %v730 = vadd.f32 %v535, %v706
        %v731 = vadd.f32 %v537, %v708
        %v732 = vadd.f32 %v540, %v711
        %v733 = vadd.f32 %v542, %v713
        %v734 = vadd.f32 %v545, %v716
        %v735 = vadd.f32 %v547, %v718
        %v736 = vpack.c.bf16 %v235, %v234
        %s737 = scalar_lea.vmem %s1, 96
        %v738 = vld [vmem:[%s737] sm:$0xf]
        %v739 = vld [vmem:[%s737 + $0x4] sm:$0xf]
        %v740 = vld [vmem:[%s737 + $0x8] sm:$0xf]
        %v741 = vld [vmem:[%s737 + $0xc] sm:$0xf]
        %v742 = vld [vmem:[%s737 + $0x10] sm:$0xf]
        %v743 = vld [vmem:[%s737 + $0x14] sm:$0xf]
        %v744 = vld [vmem:[%s737 + $0x18] sm:$0xf]
        %v745 = vld [vmem:[%s737 + $0x1c] sm:$0xf]
        %v754 = vunpack.c.l.b16 %v738
        %v755 = vunpack.c.l.b16 %v739
        %v756 = vunpack.c.l.b16 %v740
        %v757 = vunpack.c.l.b16 %v741
        %v758 = vunpack.c.l.b16 %v742
        %v759 = vunpack.c.l.b16 %v743
        %v760 = vunpack.c.l.b16 %v744
        %v761 = vunpack.c.l.b16 %v745
        %v762 = vpack.c.b16 %v755, %v754
        %v763 = vpack.c.b16 %v757, %v756
        %v764 = vpack.c.b16 %v759, %v758
        %v765 = vpack.c.b16 %v761, %v760
        %v771 = vsel %vm378, %v736, 0
        %773 = vmatpush.bf16.msra.mxu0 0
        %774 = vmatpush.bf16.msra.mxu0 0
        %775 = vmatpush.bf16.msra.mxu0 0
        %776 = vmatpush.bf16.msra.mxu0 0
        %777 = vmatpush.bf16.msra.mxu0 %v765
        %778 = vmatpush.bf16.msra.mxu0 %v764
        %779 = vmatpush.bf16.msra.mxu0 %v763
        %780 = vmatpush.bf16.msra.mxu0 %v762
        %781 = vmatmul.bf16.gmra.mxu0 %v480
        %v782 = vpop.f32.mrf.mxu0
        %v783 = vadd.f32 0.0, %v782
        %v784 = vpop.f32.mrf.mxu0
        %v785 = vadd.f32 0.0, %v784
        %786 = vmatmul.bf16.gmra.mxu0 %v483
        %v787 = vpop.f32.mrf.mxu0
        %v788 = vadd.f32 0.0, %v787
        %v789 = vpop.f32.mrf.mxu0
        %v790 = vadd.f32 0.0, %v789
        %791 = vmatmul.bf16.gmra.mxu0 %v486
        %v792 = vpop.f32.mrf.mxu0
        %v793 = vadd.f32 0.0, %v792
        %v794 = vpop.f32.mrf.mxu0
        %v795 = vadd.f32 0.0, %v794
        %796 = vmatmul.bf16.gmra.mxu0 %v489
        %v797 = vpop.f32.mrf.mxu0
        %v798 = vadd.f32 0.0, %v797
        %v799 = vpop.f32.mrf.mxu0
        %v800 = vadd.f32 0.0, %v799
        %801 = vmatmul.bf16.gmra.mxu0 %v492
        %v802 = vpop.f32.mrf.mxu0
        %v803 = vadd.f32 0.0, %v802
        %v804 = vpop.f32.mrf.mxu0
        %v805 = vadd.f32 0.0, %v804
        %806 = vmatmul.bf16.gmra.mxu0 %v495
        %v807 = vpop.f32.mrf.mxu0
        %v808 = vadd.f32 0.0, %v807
        %v809 = vpop.f32.mrf.mxu0
        %v810 = vadd.f32 0.0, %v809
        %811 = vmatmul.bf16.gmra.mxu0 %v498
        %v812 = vpop.f32.mrf.mxu0
        %v813 = vadd.f32 0.0, %v812
        %v814 = vpop.f32.mrf.mxu0
        %v815 = vadd.f32 0.0, %v814
        %816 = vmatmul.bf16.gmra.mxu0 %v771
        %v817 = vpop.f32.mrf.mxu0
        %v818 = vadd.f32 0.0, %v817
        %v819 = vpop.f32.mrf.mxu0
        %v820 = vadd.f32 0.0, %v819
        %821 = vdwg.mxu0
        %v822 = vadd.f32 %v720, %v783
        %v823 = vadd.f32 %v721, %v785
        %v824 = vadd.f32 %v722, %v788
        %v825 = vadd.f32 %v723, %v790
        %v826 = vadd.f32 %v724, %v793
        %v827 = vadd.f32 %v725, %v795
        %v828 = vadd.f32 %v726, %v798
        %v829 = vadd.f32 %v727, %v800
        %v830 = vadd.f32 %v728, %v803
        %v831 = vadd.f32 %v729, %v805
        %v832 = vadd.f32 %v730, %v808
        %v833 = vadd.f32 %v731, %v810
        %v834 = vadd.f32 %v732, %v813
        %v835 = vadd.f32 %v733, %v815
        %v836 = vadd.f32 %v734, %v818
        %v837 = vadd.f32 %v735, %v820
        %v841 = vrot.slane %v234, 1
        %v842 = vrot.slane %v235, 1
        %v843 = vsel %vm280, %v841, %v842
        %v844 = vrot.slane %v236, 1
        %v845 = vsel %vm280, %v842, %v844
        %v848 = vpack.c.bf16 %v845, %v843
        %s849 = scalar_lea.vmem %s1, 128
        %v850 = vld [vmem:[%s849] sm:$0xf]
        %v851 = vld [vmem:[%s849 + $0x4] sm:$0xf]
        %v852 = vld [vmem:[%s849 + $0x8] sm:$0xf]
        %v853 = vld [vmem:[%s849 + $0xc] sm:$0xf]
        %v854 = vld [vmem:[%s849 + $0x10] sm:$0xf]
        %v855 = vld [vmem:[%s849 + $0x14] sm:$0xf]
        %v856 = vld [vmem:[%s849 + $0x18] sm:$0xf]
        %v857 = vld [vmem:[%s849 + $0x1c] sm:$0xf]
        %v866 = vunpack.c.l.b16 %v850
        %v867 = vunpack.c.l.b16 %v851
        %v868 = vunpack.c.l.b16 %v852
        %v869 = vunpack.c.l.b16 %v853
        %v870 = vunpack.c.l.b16 %v854
        %v871 = vunpack.c.l.b16 %v855
        %v872 = vunpack.c.l.b16 %v856
        %v873 = vunpack.c.l.b16 %v857
        %v874 = vpack.c.b16 %v867, %v866
        %v875 = vpack.c.b16 %v869, %v868
        %v876 = vpack.c.b16 %v871, %v870
        %v877 = vpack.c.b16 %v873, %v872
        %v883 = vsel %vm378, %v848, 0
        %885 = vmatpush.bf16.msra.mxu0 0
        %886 = vmatpush.bf16.msra.mxu0 0
        %887 = vmatpush.bf16.msra.mxu0 0
        %888 = vmatpush.bf16.msra.mxu0 0
        %889 = vmatpush.bf16.msra.mxu0 %v877
        %890 = vmatpush.bf16.msra.mxu0 %v876
        %891 = vmatpush.bf16.msra.mxu0 %v875
        %892 = vmatpush.bf16.msra.mxu0 %v874
        %893 = vmatmul.bf16.gmra.mxu0 %v383
        %v894 = vpop.f32.mrf.mxu0
        %v895 = vadd.f32 0.0, %v894
        %v896 = vpop.f32.mrf.mxu0
        %v897 = vadd.f32 0.0, %v896
        %898 = vmatmul.bf16.gmra.mxu0 %v386
        %v899 = vpop.f32.mrf.mxu0
        %v900 = vadd.f32 0.0, %v899
        %v901 = vpop.f32.mrf.mxu0
        %v902 = vadd.f32 0.0, %v901
        %903 = vmatmul.bf16.gmra.mxu0 %v389
        %v904 = vpop.f32.mrf.mxu0
        %v905 = vadd.f32 0.0, %v904
        %v906 = vpop.f32.mrf.mxu0
        %v907 = vadd.f32 0.0, %v906
        %908 = vmatmul.bf16.gmra.mxu0 %v392
        %v909 = vpop.f32.mrf.mxu0
        %v910 = vadd.f32 0.0, %v909
        %v911 = vpop.f32.mrf.mxu0
        %v912 = vadd.f32 0.0, %v911
        %913 = vmatmul.bf16.gmra.mxu0 %v395
        %v914 = vpop.f32.mrf.mxu0
        %v915 = vadd.f32 0.0, %v914
        %v916 = vpop.f32.mrf.mxu0
        %v917 = vadd.f32 0.0, %v916
        %918 = vmatmul.bf16.gmra.mxu0 %v398
        %v919 = vpop.f32.mrf.mxu0
        %v920 = vadd.f32 0.0, %v919
        %v921 = vpop.f32.mrf.mxu0
        %v922 = vadd.f32 0.0, %v921
        %923 = vmatmul.bf16.gmra.mxu0 %v401
        %v924 = vpop.f32.mrf.mxu0
        %v925 = vadd.f32 0.0, %v924
        %v926 = vpop.f32.mrf.mxu0
        %v927 = vadd.f32 0.0, %v926
        %928 = vmatmul.bf16.gmra.mxu0 %v883
        %v929 = vpop.f32.mrf.mxu0
        %v930 = vadd.f32 0.0, %v929
        %v931 = vpop.f32.mrf.mxu0
        %v932 = vadd.f32 0.0, %v931
        %933 = vdwg.mxu0
        %v934 = vadd.f32 %v822, %v895
        %v935 = vadd.f32 %v823, %v897
        %v936 = vadd.f32 %v824, %v900
        %v937 = vadd.f32 %v825, %v902
        %v938 = vadd.f32 %v826, %v905
        %v939 = vadd.f32 %v827, %v907
        %v940 = vadd.f32 %v828, %v910
        %v941 = vadd.f32 %v829, %v912
        %v942 = vadd.f32 %v830, %v915
        %v943 = vadd.f32 %v831, %v917
        %v944 = vadd.f32 %v832, %v920
        %v945 = vadd.f32 %v833, %v922
        %v946 = vadd.f32 %v834, %v925
        %v947 = vadd.f32 %v835, %v927
        %v948 = vadd.f32 %v836, %v930
        %v949 = vadd.f32 %v837, %v932
        %v950 = vrot.slane %v234, 2
        %v951 = vrot.slane %v235, 2
        %v952 = vsel %vm549, %v950, %v951
        %v953 = vrot.slane %v236, 2
        %v954 = vsel %vm549, %v951, %v953
        %v957 = vpack.c.bf16 %v954, %v952
        %s958 = scalar_lea.vmem %s1, 160
        %v959 = vld [vmem:[%s958] sm:$0xf]
        %v960 = vld [vmem:[%s958 + $0x4] sm:$0xf]
        %v961 = vld [vmem:[%s958 + $0x8] sm:$0xf]
        %v962 = vld [vmem:[%s958 + $0xc] sm:$0xf]
        %v963 = vld [vmem:[%s958 + $0x10] sm:$0xf]
        %v964 = vld [vmem:[%s958 + $0x14] sm:$0xf]
        %v965 = vld [vmem:[%s958 + $0x18] sm:$0xf]
        %v966 = vld [vmem:[%s958 + $0x1c] sm:$0xf]
        %v975 = vunpack.c.l.b16 %v959
        %v976 = vunpack.c.l.b16 %v960
        %v977 = vunpack.c.l.b16 %v961
        %v978 = vunpack.c.l.b16 %v962
        %v979 = vunpack.c.l.b16 %v963
        %v980 = vunpack.c.l.b16 %v964
        %v981 = vunpack.c.l.b16 %v965
        %v982 = vunpack.c.l.b16 %v966
        %v983 = vpack.c.b16 %v976, %v975
        %v984 = vpack.c.b16 %v978, %v977
        %v985 = vpack.c.b16 %v980, %v979
        %v986 = vpack.c.b16 %v982, %v981
        %v992 = vsel %vm378, %v957, 0
        %994 = vmatpush.bf16.msra.mxu0 0
        %995 = vmatpush.bf16.msra.mxu0 0
        %996 = vmatpush.bf16.msra.mxu0 0
        %997 = vmatpush.bf16.msra.mxu0 0
        %998 = vmatpush.bf16.msra.mxu0 %v986
        %999 = vmatpush.bf16.msra.mxu0 %v985
        %1000 = vmatpush.bf16.msra.mxu0 %v984
        %1001 = vmatpush.bf16.msra.mxu0 %v983
        %1002 = vmatmul.bf16.gmra.mxu0 %v651
        %v1003 = vpop.f32.mrf.mxu0
        %v1004 = vadd.f32 0.0, %v1003
        %v1005 = vpop.f32.mrf.mxu0
        %v1006 = vadd.f32 0.0, %v1005
        %1007 = vmatmul.bf16.gmra.mxu0 %v654
        %v1008 = vpop.f32.mrf.mxu0
        %v1009 = vadd.f32 0.0, %v1008
        %v1010 = vpop.f32.mrf.mxu0
        %v1011 = vadd.f32 0.0, %v1010
        %1012 = vmatmul.bf16.gmra.mxu0 %v657
        %v1013 = vpop.f32.mrf.mxu0
        %v1014 = vadd.f32 0.0, %v1013
        %v1015 = vpop.f32.mrf.mxu0
        %v1016 = vadd.f32 0.0, %v1015
        %1017 = vmatmul.bf16.gmra.mxu0 %v660
        %v1018 = vpop.f32.mrf.mxu0
        %v1019 = vadd.f32 0.0, %v1018
        %v1020 = vpop.f32.mrf.mxu0
        %v1021 = vadd.f32 0.0, %v1020
        %1022 = vmatmul.bf16.gmra.mxu0 %v663
        %v1023 = vpop.f32.mrf.mxu0
        %v1024 = vadd.f32 0.0, %v1023
        %v1025 = vpop.f32.mrf.mxu0
        %v1026 = vadd.f32 0.0, %v1025
        %1027 = vmatmul.bf16.gmra.mxu0 %v666
        %v1028 = vpop.f32.mrf.mxu0
        %v1029 = vadd.f32 0.0, %v1028
        %v1030 = vpop.f32.mrf.mxu0
        %v1031 = vadd.f32 0.0, %v1030
        %1032 = vmatmul.bf16.gmra.mxu0 %v669
        %v1033 = vpop.f32.mrf.mxu0
        %v1034 = vadd.f32 0.0, %v1033
        %v1035 = vpop.f32.mrf.mxu0
        %v1036 = vadd.f32 0.0, %v1035
        %1037 = vmatmul.bf16.gmra.mxu0 %v992
        %v1038 = vpop.f32.mrf.mxu0
        %v1039 = vadd.f32 0.0, %v1038
        %v1040 = vpop.f32.mrf.mxu0
        %v1041 = vadd.f32 0.0, %v1040
        %1042 = vdwg.mxu0
        %v1043 = vadd.f32 %v934, %v1004
        %v1044 = vadd.f32 %v935, %v1006
        %v1045 = vadd.f32 %v936, %v1009
        %v1046 = vadd.f32 %v937, %v1011
        %v1047 = vadd.f32 %v938, %v1014
        %v1048 = vadd.f32 %v939, %v1016
        %v1049 = vadd.f32 %v940, %v1019
        %v1050 = vadd.f32 %v941, %v1021
        %v1051 = vadd.f32 %v942, %v1024
        %v1052 = vadd.f32 %v943, %v1026
        %v1053 = vadd.f32 %v944, %v1029
        %v1054 = vadd.f32 %v945, %v1031
        %v1055 = vadd.f32 %v946, %v1034
        %v1056 = vadd.f32 %v947, %v1036
        %v1057 = vadd.f32 %v948, %v1039
        %v1058 = vadd.f32 %v949, %v1041
        %v1059 = vpack.c.bf16 %v238, %v237
        %s1060 = scalar_lea.vmem %s1, 192
        %v1061 = vld [vmem:[%s1060] sm:$0xf]
        %v1062 = vld [vmem:[%s1060 + $0x4] sm:$0xf]
        %v1063 = vld [vmem:[%s1060 + $0x8] sm:$0xf]
        %v1064 = vld [vmem:[%s1060 + $0xc] sm:$0xf]
        %v1065 = vld [vmem:[%s1060 + $0x10] sm:$0xf]
        %v1066 = vld [vmem:[%s1060 + $0x14] sm:$0xf]
        %v1067 = vld [vmem:[%s1060 + $0x18] sm:$0xf]
        %v1068 = vld [vmem:[%s1060 + $0x1c] sm:$0xf]
        %v1077 = vunpack.c.l.b16 %v1061
        %v1078 = vunpack.c.l.b16 %v1062
        %v1079 = vunpack.c.l.b16 %v1063
        %v1080 = vunpack.c.l.b16 %v1064
        %v1081 = vunpack.c.l.b16 %v1065
        %v1082 = vunpack.c.l.b16 %v1066
        %v1083 = vunpack.c.l.b16 %v1067
        %v1084 = vunpack.c.l.b16 %v1068
        %v1085 = vpack.c.b16 %v1078, %v1077
        %v1086 = vpack.c.b16 %v1080, %v1079
        %v1087 = vpack.c.b16 %v1082, %v1081
        %v1088 = vpack.c.b16 %v1084, %v1083
        %v1094 = vsel %vm378, %v1059, 0
        %1096 = vmatpush.bf16.msra.mxu0 0
        %1097 = vmatpush.bf16.msra.mxu0 0
        %1098 = vmatpush.bf16.msra.mxu0 0
        %1099 = vmatpush.bf16.msra.mxu0 0
        %1100 = vmatpush.bf16.msra.mxu0 %v1088
        %1101 = vmatpush.bf16.msra.mxu0 %v1087
        %1102 = vmatpush.bf16.msra.mxu0 %v1086
        %1103 = vmatpush.bf16.msra.mxu0 %v1085
        %1104 = vmatmul.bf16.gmra.mxu0 %v483
        %v1105 = vpop.f32.mrf.mxu0
        %v1106 = vadd.f32 0.0, %v1105
        %v1107 = vpop.f32.mrf.mxu0
        %v1108 = vadd.f32 0.0, %v1107
        %1109 = vmatmul.bf16.gmra.mxu0 %v486
        %v1110 = vpop.f32.mrf.mxu0
        %v1111 = vadd.f32 0.0, %v1110
        %v1112 = vpop.f32.mrf.mxu0
        %v1113 = vadd.f32 0.0, %v1112
        %1114 = vmatmul.bf16.gmra.mxu0 %v489
        %v1115 = vpop.f32.mrf.mxu0
        %v1116 = vadd.f32 0.0, %v1115
        %v1117 = vpop.f32.mrf.mxu0
        %v1118 = vadd.f32 0.0, %v1117
        %1119 = vmatmul.bf16.gmra.mxu0 %v492
        %v1120 = vpop.f32.mrf.mxu0
        %v1121 = vadd.f32 0.0, %v1120
        %v1122 = vpop.f32.mrf.mxu0
        %v1123 = vadd.f32 0.0, %v1122
        %1124 = vmatmul.bf16.gmra.mxu0 %v495
        %v1125 = vpop.f32.mrf.mxu0
        %v1126 = vadd.f32 0.0, %v1125
        %v1127 = vpop.f32.mrf.mxu0
        %v1128 = vadd.f32 0.0, %v1127
        %1129 = vmatmul.bf16.gmra.mxu0 %v498
        %v1130 = vpop.f32.mrf.mxu0
        %v1131 = vadd.f32 0.0, %v1130
        %v1132 = vpop.f32.mrf.mxu0
        %v1133 = vadd.f32 0.0, %v1132
        %1134 = vmatmul.bf16.gmra.mxu0 %v771
        %v1135 = vpop.f32.mrf.mxu0
        %v1136 = vadd.f32 0.0, %v1135
        %v1137 = vpop.f32.mrf.mxu0
        %v1138 = vadd.f32 0.0, %v1137
        %1139 = vmatmul.bf16.gmra.mxu0 %v1094
        %v1140 = vpop.f32.mrf.mxu0
        %v1141 = vadd.f32 0.0, %v1140
        %v1142 = vpop.f32.mrf.mxu0
        %v1143 = vadd.f32 0.0, %v1142
        %1144 = vdwg.mxu0
        %v1145 = vadd.f32 %v1043, %v1106
        %v1146 = vadd.f32 %v1044, %v1108
        %v1147 = vadd.f32 %v1045, %v1111
        %v1148 = vadd.f32 %v1046, %v1113
        %v1149 = vadd.f32 %v1047, %v1116
        %v1150 = vadd.f32 %v1048, %v1118
        %v1151 = vadd.f32 %v1049, %v1121
        %v1152 = vadd.f32 %v1050, %v1123
        %v1153 = vadd.f32 %v1051, %v1126
        %v1154 = vadd.f32 %v1052, %v1128
        %v1155 = vadd.f32 %v1053, %v1131
        %v1156 = vadd.f32 %v1054, %v1133
        %v1157 = vadd.f32 %v1055, %v1136
        %v1158 = vadd.f32 %v1056, %v1138
        %v1159 = vadd.f32 %v1057, %v1141
        %v1160 = vadd.f32 %v1058, %v1143
        %v1164 = vrot.slane %v237, 1
        %v1165 = vrot.slane %v238, 1
        %v1166 = vsel %vm280, %v1164, %v1165
        %v1167 = vrot.slane %v239, 1
        %v1168 = vsel %vm280, %v1165, %v1167
        %v1171 = vpack.c.bf16 %v1168, %v1166
        %s1172 = scalar_lea.vmem %s1, 224
        %v1173 = vld [vmem:[%s1172] sm:$0xf]
        %v1174 = vld [vmem:[%s1172 + $0x4] sm:$0xf]
        %v1175 = vld [vmem:[%s1172 + $0x8] sm:$0xf]
        %v1176 = vld [vmem:[%s1172 + $0xc] sm:$0xf]
        %v1177 = vld [vmem:[%s1172 + $0x10] sm:$0xf]
        %v1178 = vld [vmem:[%s1172 + $0x14] sm:$0xf]
        %v1179 = vld [vmem:[%s1172 + $0x18] sm:$0xf]
        %v1180 = vld [vmem:[%s1172 + $0x1c] sm:$0xf]
        %v1189 = vunpack.c.l.b16 %v1173
        %v1190 = vunpack.c.l.b16 %v1174
        %v1191 = vunpack.c.l.b16 %v1175
        %v1192 = vunpack.c.l.b16 %v1176
        %v1193 = vunpack.c.l.b16 %v1177
        %v1194 = vunpack.c.l.b16 %v1178
        %v1195 = vunpack.c.l.b16 %v1179
        %v1196 = vunpack.c.l.b16 %v1180
        %v1197 = vpack.c.b16 %v1190, %v1189
        %v1198 = vpack.c.b16 %v1192, %v1191
        %v1199 = vpack.c.b16 %v1194, %v1193
        %v1200 = vpack.c.b16 %v1196, %v1195
        %v1206 = vsel %vm378, %v1171, 0
        %1208 = vmatpush.bf16.msra.mxu0 0
        %1209 = vmatpush.bf16.msra.mxu0 0
        %1210 = vmatpush.bf16.msra.mxu0 0
        %1211 = vmatpush.bf16.msra.mxu0 0
        %1212 = vmatpush.bf16.msra.mxu0 %v1200
        %1213 = vmatpush.bf16.msra.mxu0 %v1199
        %1214 = vmatpush.bf16.msra.mxu0 %v1198
        %1215 = vmatpush.bf16.msra.mxu0 %v1197
        %1216 = vmatmul.bf16.gmra.mxu0 %v386
        %v1217 = vpop.f32.mrf.mxu0
        %v1218 = vadd.f32 0.0, %v1217
        %v1219 = vpop.f32.mrf.mxu0
        %v1220 = vadd.f32 0.0, %v1219
        %1221 = vmatmul.bf16.gmra.mxu0 %v389
        %v1222 = vpop.f32.mrf.mxu0
        %v1223 = vadd.f32 0.0, %v1222
        %v1224 = vpop.f32.mrf.mxu0
        %v1225 = vadd.f32 0.0, %v1224
        %1226 = vmatmul.bf16.gmra.mxu0 %v392
        %v1227 = vpop.f32.mrf.mxu0
        %v1228 = vadd.f32 0.0, %v1227
        %v1229 = vpop.f32.mrf.mxu0
        %v1230 = vadd.f32 0.0, %v1229
        %1231 = vmatmul.bf16.gmra.mxu0 %v395
        %v1232 = vpop.f32.mrf.mxu0
        %v1233 = vadd.f32 0.0, %v1232
        %v1234 = vpop.f32.mrf.mxu0
        %v1235 = vadd.f32 0.0, %v1234
        %1236 = vmatmul.bf16.gmra.mxu0 %v398
        %v1237 = vpop.f32.mrf.mxu0
        %v1238 = vadd.f32 0.0, %v1237
        %v1239 = vpop.f32.mrf.mxu0
        %v1240 = vadd.f32 0.0, %v1239
        %1241 = vmatmul.bf16.gmra.mxu0 %v401
        %v1242 = vpop.f32.mrf.mxu0
        %v1243 = vadd.f32 0.0, %v1242
        %v1244 = vpop.f32.mrf.mxu0
        %v1245 = vadd.f32 0.0, %v1244
        %1246 = vmatmul.bf16.gmra.mxu0 %v883
        %v1247 = vpop.f32.mrf.mxu0
        %v1248 = vadd.f32 0.0, %v1247
        %v1249 = vpop.f32.mrf.mxu0
        %v1250 = vadd.f32 0.0, %v1249
        %1251 = vmatmul.bf16.gmra.mxu0 %v1206
        %v1252 = vpop.f32.mrf.mxu0
        %v1253 = vadd.f32 0.0, %v1252
        %v1254 = vpop.f32.mrf.mxu0
        %v1255 = vadd.f32 0.0, %v1254
        %1256 = vdwg.mxu0
        %v1257 = vadd.f32 %v1145, %v1218
        %v1258 = vadd.f32 %v1146, %v1220
        %v1259 = vadd.f32 %v1147, %v1223
        %v1260 = vadd.f32 %v1148, %v1225
        %v1261 = vadd.f32 %v1149, %v1228
        %v1262 = vadd.f32 %v1150, %v1230
        %v1263 = vadd.f32 %v1151, %v1233
        %v1264 = vadd.f32 %v1152, %v1235
        %v1265 = vadd.f32 %v1153, %v1238
        %v1266 = vadd.f32 %v1154, %v1240
        %v1267 = vadd.f32 %v1155, %v1243
        %v1268 = vadd.f32 %v1156, %v1245
        %v1269 = vadd.f32 %v1157, %v1248
        %v1270 = vadd.f32 %v1158, %v1250
        %v1271 = vadd.f32 %v1159, %v1253
        %v1272 = vadd.f32 %v1160, %v1255
        %v1273 = vrot.slane %v237, 2
        %v1274 = vrot.slane %v238, 2
        %v1275 = vsel %vm549, %v1273, %v1274
        %v1276 = vrot.slane %v239, 2
        %v1277 = vsel %vm549, %v1274, %v1276
        %v1280 = vpack.c.bf16 %v1277, %v1275
        %s1281 = scalar_lea.vmem %s1, 256
        %v1282 = vld [vmem:[%s1281] sm:$0xf]
        %v1283 = vld [vmem:[%s1281 + $0x4] sm:$0xf]
        %v1284 = vld [vmem:[%s1281 + $0x8] sm:$0xf]
        %v1285 = vld [vmem:[%s1281 + $0xc] sm:$0xf]
        %v1286 = vld [vmem:[%s1281 + $0x10] sm:$0xf]
        %v1287 = vld [vmem:[%s1281 + $0x14] sm:$0xf]
        %v1288 = vld [vmem:[%s1281 + $0x18] sm:$0xf]
        %v1289 = vld [vmem:[%s1281 + $0x1c] sm:$0xf]
        %v1298 = vunpack.c.l.b16 %v1282
        %v1299 = vunpack.c.l.b16 %v1283
        %v1300 = vunpack.c.l.b16 %v1284
        %v1301 = vunpack.c.l.b16 %v1285
        %v1302 = vunpack.c.l.b16 %v1286
        %v1303 = vunpack.c.l.b16 %v1287
        %v1304 = vunpack.c.l.b16 %v1288
        %v1305 = vunpack.c.l.b16 %v1289
        %v1306 = vpack.c.b16 %v1299, %v1298
        %v1307 = vpack.c.b16 %v1301, %v1300
        %v1308 = vpack.c.b16 %v1303, %v1302
        %v1309 = vpack.c.b16 %v1305, %v1304
        %v1315 = vsel %vm378, %v1280, 0
        %1317 = vmatpush.bf16.msra.mxu0 0
        %1318 = vmatpush.bf16.msra.mxu0 0
        %1319 = vmatpush.bf16.msra.mxu0 0
        %1320 = vmatpush.bf16.msra.mxu0 0
        %1321 = vmatpush.bf16.msra.mxu0 %v1309
        %1322 = vmatpush.bf16.msra.mxu0 %v1308
        %1323 = vmatpush.bf16.msra.mxu0 %v1307
        %1324 = vmatpush.bf16.msra.mxu0 %v1306
        %1325 = vmatmul.bf16.gmra.mxu0 %v654
        %v1326 = vpop.f32.mrf.mxu0
        %v1327 = vadd.f32 0.0, %v1326
        %v1328 = vpop.f32.mrf.mxu0
        %v1329 = vadd.f32 0.0, %v1328
        %1330 = vmatmul.bf16.gmra.mxu0 %v657
        %v1331 = vpop.f32.mrf.mxu0
        %v1332 = vadd.f32 0.0, %v1331
        %v1333 = vpop.f32.mrf.mxu0
        %v1334 = vadd.f32 0.0, %v1333
        %1335 = vmatmul.bf16.gmra.mxu0 %v660
        %v1336 = vpop.f32.mrf.mxu0
        %v1337 = vadd.f32 0.0, %v1336
        %v1338 = vpop.f32.mrf.mxu0
        %v1339 = vadd.f32 0.0, %v1338
        %1340 = vmatmul.bf16.gmra.mxu0 %v663
        %v1341 = vpop.f32.mrf.mxu0
        %v1342 = vadd.f32 0.0, %v1341
        %v1343 = vpop.f32.mrf.mxu0
        %v1344 = vadd.f32 0.0, %v1343
        %1345 = vmatmul.bf16.gmra.mxu0 %v666
        %v1346 = vpop.f32.mrf.mxu0
        %v1347 = vadd.f32 0.0, %v1346
        %v1348 = vpop.f32.mrf.mxu0
        %v1349 = vadd.f32 0.0, %v1348
        %1350 = vmatmul.bf16.gmra.mxu0 %v669
        %v1351 = vpop.f32.mrf.mxu0
        %v1352 = vadd.f32 0.0, %v1351
        %v1353 = vpop.f32.mrf.mxu0
        %v1354 = vadd.f32 0.0, %v1353
        %1355 = vmatmul.bf16.gmra.mxu0 %v992
        %v1356 = vpop.f32.mrf.mxu0
        %v1357 = vadd.f32 0.0, %v1356
        %v1358 = vpop.f32.mrf.mxu0
        %v1359 = vadd.f32 0.0, %v1358
        %1360 = vmatmul.bf16.gmra.mxu0 %v1315
        %v1361 = vpop.f32.mrf.mxu0
        %v1362 = vadd.f32 0.0, %v1361
        %v1363 = vpop.f32.mrf.mxu0
        %v1364 = vadd.f32 0.0, %v1363
        %1365 = vdwg.mxu0
        %v1366 = vadd.f32 %v1257, %v1327
        %v1367 = vadd.f32 %v1258, %v1329
        %v1368 = vadd.f32 %v1259, %v1332
        %v1369 = vadd.f32 %v1260, %v1334
        %v1370 = vadd.f32 %v1261, %v1337
        %v1371 = vadd.f32 %v1262, %v1339
        %v1372 = vadd.f32 %v1263, %v1342
        %v1373 = vadd.f32 %v1264, %v1344
        %v1374 = vadd.f32 %v1265, %v1347
        %v1375 = vadd.f32 %v1266, %v1349
        %v1376 = vadd.f32 %v1267, %v1352
        %v1377 = vadd.f32 %v1268, %v1354
        %v1378 = vadd.f32 %v1269, %v1357
        %v1379 = vadd.f32 %v1270, %v1359
        %v1380 = vadd.f32 %v1271, %v1362
        %v1381 = vadd.f32 %v1272, %v1364
        %v1383 = vperm.slane %v199, 0
        %v1385 = vmul.f32 %v1366, %v1383
        %v1386 = vmul.f32 %v1367, %v1383
        %v1387 = vmul.f32 %v1368, %v1383
        %v1388 = vmul.f32 %v1369, %v1383
        %v1389 = vmul.f32 %v1370, %v1383
        %v1390 = vmul.f32 %v1371, %v1383
        %v1391 = vmul.f32 %v1372, %v1383
        %v1392 = vmul.f32 %v1373, %v1383
        %v1393 = vmul.f32 %v1374, %v1383
        %v1394 = vmul.f32 %v1375, %v1383
        %v1395 = vmul.f32 %v1376, %v1383
        %v1396 = vmul.f32 %v1377, %v1383
        %v1397 = vmul.f32 %v1378, %v1383
        %v1398 = vmul.f32 %v1379, %v1383
        %v1399 = vmul.f32 %v1380, %v1383
        %v1400 = vmul.f32 %v1381, %v1383
        %v1402 = vperm.slane %v200, 0
        %v1404 = vadd.f32 %v1385, %v1402
        %v1405 = vadd.f32 %v1386, %v1402
        %v1406 = vadd.f32 %v1387, %v1402
        %v1407 = vadd.f32 %v1388, %v1402
        %v1408 = vadd.f32 %v1389, %v1402
        %v1409 = vadd.f32 %v1390, %v1402
        %v1410 = vadd.f32 %v1391, %v1402
        %v1411 = vadd.f32 %v1392, %v1402
        %v1412 = vadd.f32 %v1393, %v1402
        %v1413 = vadd.f32 %v1394, %v1402
        %v1414 = vadd.f32 %v1395, %v1402
        %v1415 = vadd.f32 %v1396, %v1402
        %v1416 = vadd.f32 %v1397, %v1402
        %v1417 = vadd.f32 %v1398, %v1402
        %v1418 = vadd.f32 %v1399, %v1402
        %v1419 = vadd.f32 %v1400, %v1402
        %v1436 = vrot.slane %v1404, 2
        %v1437 = vrot.slane %v1404, 4
        %v1438 = vrot.slane %v1404, 6
        %v1439 = vrot.slane %v1405, 2
        %v1440 = vrot.slane %v1405, 4
        %v1441 = vrot.slane %v1405, 6
        %v1442 = vrot.slane %v1406, 2
        %v1443 = vrot.slane %v1406, 4
        %v1444 = vrot.slane %v1406, 6
        %v1445 = vrot.slane %v1407, 2
        %v1446 = vrot.slane %v1407, 4
        %v1447 = vrot.slane %v1407, 6
        %v1448 = vrot.slane %v1408, 2
        %v1449 = vrot.slane %v1408, 4
        %v1450 = vrot.slane %v1408, 6
        %v1451 = vrot.slane %v1409, 2
        %v1452 = vrot.slane %v1409, 4
        %v1453 = vrot.slane %v1409, 6
        %v1454 = vrot.slane %v1410, 2
        %v1455 = vrot.slane %v1410, 4
        %v1456 = vrot.slane %v1410, 6
        %v1457 = vrot.slane %v1411, 2
        %v1458 = vrot.slane %v1411, 4
        %v1459 = vrot.slane %v1411, 6
        %v1460 = vrot.slane %v1412, 2
        %v1461 = vrot.slane %v1412, 4
        %v1462 = vrot.slane %v1412, 6
        %v1463 = vrot.slane %v1413, 2
        %v1464 = vrot.slane %v1413, 4
        %v1465 = vrot.slane %v1413, 6
        %v1466 = vrot.slane %v1414, 2
        %v1467 = vrot.slane %v1414, 4
        %v1468 = vrot.slane %v1414, 6
        %v1469 = vrot.slane %v1415, 2
        %v1470 = vrot.slane %v1415, 4
        %v1471 = vrot.slane %v1415, 6
        %v1472 = vrot.slane %v1416, 2
        %v1473 = vrot.slane %v1416, 4
        %v1474 = vrot.slane %v1416, 6
        %v1475 = vrot.slane %v1417, 2
        %v1476 = vrot.slane %v1417, 4
        %v1477 = vrot.slane %v1417, 6
        %v1478 = vrot.slane %v1418, 2
        %v1479 = vrot.slane %v1418, 4
        %v1480 = vrot.slane %v1418, 6
        %v1481 = vrot.slane %v1419, 2
        %v1482 = vrot.slane %v1419, 4
        %v1483 = vrot.slane %v1419, 6
        %v1532 = vrot.slane %v1404, 7
        %v1533 = vrot.slane %v1532, 2
        %v1534 = vrot.slane %v1436, 7
        %v1535 = vrot.slane %v1534, 2
        %v1536 = vrot.slane %v1437, 7
        %v1537 = vrot.slane %v1536, 2
        %v1538 = vrot.slane %v1438, 7
        %v1539 = vrot.slane %v1538, 2
        %v1540 = vrot.slane %v1405, 7
        %v1541 = vrot.slane %v1540, 2
        %v1542 = vrot.slane %v1439, 7
        %v1543 = vrot.slane %v1542, 2
        %v1544 = vrot.slane %v1440, 7
        %v1545 = vrot.slane %v1544, 2
        %v1546 = vrot.slane %v1441, 7
        %v1547 = vrot.slane %v1546, 2
        %v1548 = vrot.slane %v1406, 7
        %v1549 = vrot.slane %v1548, 2
        %v1550 = vrot.slane %v1442, 7
        %v1551 = vrot.slane %v1550, 2
        %v1552 = vrot.slane %v1443, 7
        %v1553 = vrot.slane %v1552, 2
        %v1554 = vrot.slane %v1444, 7
        %v1555 = vrot.slane %v1554, 2
        %v1556 = vrot.slane %v1407, 7
        %v1557 = vrot.slane %v1556, 2
        %v1558 = vrot.slane %v1445, 7
        %v1559 = vrot.slane %v1558, 2
        %v1560 = vrot.slane %v1446, 7
        %v1561 = vrot.slane %v1560, 2
        %v1562 = vrot.slane %v1447, 7
        %v1563 = vrot.slane %v1562, 2
        %v1564 = vrot.slane %v1408, 7
        %v1565 = vrot.slane %v1564, 2
        %v1566 = vrot.slane %v1448, 7
        %v1567 = vrot.slane %v1566, 2
        %v1568 = vrot.slane %v1449, 7
        %v1569 = vrot.slane %v1568, 2
        %v1570 = vrot.slane %v1450, 7
        %v1571 = vrot.slane %v1570, 2
        %v1572 = vrot.slane %v1409, 7
        %v1573 = vrot.slane %v1572, 2
        %v1574 = vrot.slane %v1451, 7
        %v1575 = vrot.slane %v1574, 2
        %v1576 = vrot.slane %v1452, 7
        %v1577 = vrot.slane %v1576, 2
        %v1578 = vrot.slane %v1453, 7
        %v1579 = vrot.slane %v1578, 2
        %v1580 = vrot.slane %v1410, 7
        %v1581 = vrot.slane %v1580, 2
        %v1582 = vrot.slane %v1454, 7
        %v1583 = vrot.slane %v1582, 2
        %v1584 = vrot.slane %v1455, 7
        %v1585 = vrot.slane %v1584, 2
        %v1586 = vrot.slane %v1456, 7
        %v1587 = vrot.slane %v1586, 2
        %v1588 = vrot.slane %v1411, 7
        %v1589 = vrot.slane %v1588, 2
        %v1590 = vrot.slane %v1457, 7
        %v1591 = vrot.slane %v1590, 2
        %v1592 = vrot.slane %v1458, 7
        %v1593 = vrot.slane %v1592, 2
        %v1594 = vrot.slane %v1459, 7
        %v1595 = vrot.slane %v1594, 2
        %v1596 = vrot.slane %v1412, 7
        %v1597 = vrot.slane %v1596, 2
        %v1598 = vrot.slane %v1460, 7
        %v1599 = vrot.slane %v1598, 2
        %v1600 = vrot.slane %v1461, 7
        %v1601 = vrot.slane %v1600, 2
        %v1602 = vrot.slane %v1462, 7
        %v1603 = vrot.slane %v1602, 2
        %v1604 = vrot.slane %v1413, 7
        %v1605 = vrot.slane %v1604, 2
        %v1606 = vrot.slane %v1463, 7
        %v1607 = vrot.slane %v1606, 2
        %v1608 = vrot.slane %v1464, 7
        %v1609 = vrot.slane %v1608, 2
        %v1610 = vrot.slane %v1465, 7
        %v1611 = vrot.slane %v1610, 2
        %v1612 = vrot.slane %v1414, 7
        %v1613 = vrot.slane %v1612, 2
        %v1614 = vrot.slane %v1466, 7
        %v1615 = vrot.slane %v1614, 2
        %v1616 = vrot.slane %v1467, 7
        %v1617 = vrot.slane %v1616, 2
        %v1618 = vrot.slane %v1468, 7
        %v1619 = vrot.slane %v1618, 2
        %v1620 = vrot.slane %v1415, 7
        %v1621 = vrot.slane %v1620, 2
        %v1622 = vrot.slane %v1469, 7
        %v1623 = vrot.slane %v1622, 2
        %v1624 = vrot.slane %v1470, 7
        %v1625 = vrot.slane %v1624, 2
        %v1626 = vrot.slane %v1471, 7
        %v1627 = vrot.slane %v1626, 2
        %v1628 = vrot.slane %v1416, 7
        %v1629 = vrot.slane %v1628, 2
        %v1630 = vrot.slane %v1472, 7
        %v1631 = vrot.slane %v1630, 2
        %v1632 = vrot.slane %v1473, 7
        %v1633 = vrot.slane %v1632, 2
        %v1634 = vrot.slane %v1474, 7
        %v1635 = vrot.slane %v1634, 2
        %v1636 = vrot.slane %v1417, 7
        %v1637 = vrot.slane %v1636, 2
        %v1638 = vrot.slane %v1475, 7
        %v1639 = vrot.slane %v1638, 2
        %v1640 = vrot.slane %v1476, 7
        %v1641 = vrot.slane %v1640, 2
        %v1642 = vrot.slane %v1477, 7
        %v1643 = vrot.slane %v1642, 2
        %v1644 = vrot.slane %v1418, 7
        %v1645 = vrot.slane %v1644, 2
        %v1646 = vrot.slane %v1478, 7
        %v1647 = vrot.slane %v1646, 2
        %v1648 = vrot.slane %v1479, 7
        %v1649 = vrot.slane %v1648, 2
        %v1650 = vrot.slane %v1480, 7
        %v1651 = vrot.slane %v1650, 2
        %v1652 = vrot.slane %v1419, 7
        %v1653 = vrot.slane %v1652, 2
        %v1654 = vrot.slane %v1481, 7
        %v1655 = vrot.slane %v1654, 2
        %v1656 = vrot.slane %v1482, 7
        %v1657 = vrot.slane %v1656, 2
        %v1658 = vrot.slane %v1483, 7
        %v1659 = vrot.slane %v1658, 2
        %v1724 = vmax.f32 %v1404, %v1533
        %v1725 = vmax.f32 %v1436, %v1535
        %v1726 = vmax.f32 %v1437, %v1537
        %v1727 = vmax.f32 %v1438, %v1539
        %v1728 = vmax.f32 %v1405, %v1541
        %v1729 = vmax.f32 %v1439, %v1543
        %v1730 = vmax.f32 %v1440, %v1545
        %v1731 = vmax.f32 %v1441, %v1547
        %v1732 = vmax.f32 %v1406, %v1549
        %v1733 = vmax.f32 %v1442, %v1551
        %v1734 = vmax.f32 %v1443, %v1553
        %v1735 = vmax.f32 %v1444, %v1555
        %v1736 = vmax.f32 %v1407, %v1557
        %v1737 = vmax.f32 %v1445, %v1559
        %v1738 = vmax.f32 %v1446, %v1561
        %v1739 = vmax.f32 %v1447, %v1563
        %v1740 = vmax.f32 %v1408, %v1565
        %v1741 = vmax.f32 %v1448, %v1567
        %v1742 = vmax.f32 %v1449, %v1569
        %v1743 = vmax.f32 %v1450, %v1571
        %v1744 = vmax.f32 %v1409, %v1573
        %v1745 = vmax.f32 %v1451, %v1575
        %v1746 = vmax.f32 %v1452, %v1577
        %v1747 = vmax.f32 %v1453, %v1579
        %v1748 = vmax.f32 %v1410, %v1581
        %v1749 = vmax.f32 %v1454, %v1583
        %v1750 = vmax.f32 %v1455, %v1585
        %v1751 = vmax.f32 %v1456, %v1587
        %v1752 = vmax.f32 %v1411, %v1589
        %v1753 = vmax.f32 %v1457, %v1591
        %v1754 = vmax.f32 %v1458, %v1593
        %v1755 = vmax.f32 %v1459, %v1595
        %v1756 = vmax.f32 %v1412, %v1597
        %v1757 = vmax.f32 %v1460, %v1599
        %v1758 = vmax.f32 %v1461, %v1601
        %v1759 = vmax.f32 %v1462, %v1603
        %v1760 = vmax.f32 %v1413, %v1605
        %v1761 = vmax.f32 %v1463, %v1607
        %v1762 = vmax.f32 %v1464, %v1609
        %v1763 = vmax.f32 %v1465, %v1611
        %v1764 = vmax.f32 %v1414, %v1613
        %v1765 = vmax.f32 %v1466, %v1615
        %v1766 = vmax.f32 %v1467, %v1617
        %v1767 = vmax.f32 %v1468, %v1619
        %v1768 = vmax.f32 %v1415, %v1621
        %v1769 = vmax.f32 %v1469, %v1623
        %v1770 = vmax.f32 %v1470, %v1625
        %v1771 = vmax.f32 %v1471, %v1627
        %v1772 = vmax.f32 %v1416, %v1629
        %v1773 = vmax.f32 %v1472, %v1631
        %v1774 = vmax.f32 %v1473, %v1633
        %v1775 = vmax.f32 %v1474, %v1635
        %v1776 = vmax.f32 %v1417, %v1637
        %v1777 = vmax.f32 %v1475, %v1639
        %v1778 = vmax.f32 %v1476, %v1641
        %v1779 = vmax.f32 %v1477, %v1643
        %v1780 = vmax.f32 %v1418, %v1645
        %v1781 = vmax.f32 %v1478, %v1647
        %v1782 = vmax.f32 %v1479, %v1649
        %v1783 = vmax.f32 %v1480, %v1651
        %v1784 = vmax.f32 %v1419, %v1653
        %v1785 = vmax.f32 %v1481, %v1655
        %v1786 = vmax.f32 %v1482, %v1657
        %v1787 = vmax.f32 %v1483, %v1659
        %v1788 = vmax.f32 %v1724, %v1732
        %v1789 = vmax.f32 %v1725, %v1733
        %v1790 = vmax.f32 %v1726, %v1734
        %v1791 = vmax.f32 %v1727, %v1735
        %v1792 = vmax.f32 %v1728, %v1736
        %v1793 = vmax.f32 %v1729, %v1737
        %v1794 = vmax.f32 %v1730, %v1738
        %v1795 = vmax.f32 %v1731, %v1739
        %v1796 = vmax.f32 %v1740, %v1748
        %v1797 = vmax.f32 %v1741, %v1749
        %v1798 = vmax.f32 %v1742, %v1750
        %v1799 = vmax.f32 %v1743, %v1751
        %v1800 = vmax.f32 %v1744, %v1752
        %v1801 = vmax.f32 %v1745, %v1753
        %v1802 = vmax.f32 %v1746, %v1754
        %v1803 = vmax.f32 %v1747, %v1755
        %v1804 = vmax.f32 %v1756, %v1764
        %v1805 = vmax.f32 %v1757, %v1765
        %v1806 = vmax.f32 %v1758, %v1766
        %v1807 = vmax.f32 %v1759, %v1767
        %v1808 = vmax.f32 %v1760, %v1768
        %v1809 = vmax.f32 %v1761, %v1769
        %v1810 = vmax.f32 %v1762, %v1770
        %v1811 = vmax.f32 %v1763, %v1771
        %v1812 = vmax.f32 %v1772, %v1780
        %v1813 = vmax.f32 %v1773, %v1781
        %v1814 = vmax.f32 %v1774, %v1782
        %v1815 = vmax.f32 %v1775, %v1783
        %v1816 = vmax.f32 %v1776, %v1784
        %v1817 = vmax.f32 %v1777, %v1785
        %v1818 = vmax.f32 %v1778, %v1786
        %v1819 = vmax.f32 %v1779, %v1787
        %v1820 = vmax.f32 %v1788, 0.0
        %v1821 = vmax.f32 %v1789, 0.0
        %v1822 = vmax.f32 %v1790, 0.0
        %v1823 = vmax.f32 %v1791, 0.0
        %v1824 = vmax.f32 %v1792, 0.0
        %v1825 = vmax.f32 %v1793, 0.0
        %v1826 = vmax.f32 %v1794, 0.0
        %v1827 = vmax.f32 %v1795, 0.0
        %v1828 = vmax.f32 %v1796, 0.0
        %v1829 = vmax.f32 %v1797, 0.0
        %v1830 = vmax.f32 %v1798, 0.0
        %v1831 = vmax.f32 %v1799, 0.0
        %v1832 = vmax.f32 %v1800, 0.0
        %v1833 = vmax.f32 %v1801, 0.0
        %v1834 = vmax.f32 %v1802, 0.0
        %v1835 = vmax.f32 %v1803, 0.0
        %v1836 = vmax.f32 %v1804, 0.0
        %v1837 = vmax.f32 %v1805, 0.0
        %v1838 = vmax.f32 %v1806, 0.0
        %v1839 = vmax.f32 %v1807, 0.0
        %v1840 = vmax.f32 %v1808, 0.0
        %v1841 = vmax.f32 %v1809, 0.0
        %v1842 = vmax.f32 %v1810, 0.0
        %v1843 = vmax.f32 %v1811, 0.0
        %v1844 = vmax.f32 %v1812, 0.0
        %v1845 = vmax.f32 %v1813, 0.0
        %v1846 = vmax.f32 %v1814, 0.0
        %v1847 = vmax.f32 %v1815, 0.0
        %v1848 = vmax.f32 %v1816, 0.0
        %v1849 = vmax.f32 %v1817, 0.0
        %v1850 = vmax.f32 %v1818, 0.0
        %v1851 = vmax.f32 %v1819, 0.0
        %s1852 = smul.u32 %s202, 4
        %v1885 = vperm.slane %v1820, 0
        %v1886 = vperm.slane %v1821, 0
        %v1887 = vperm.slane %v1822, 0
        %v1888 = vperm.slane %v1823, 0
        %v1889 = vperm.slane %v1824, 0
        %v1890 = vperm.slane %v1825, 0
        %v1891 = vperm.slane %v1826, 0
        %v1892 = vperm.slane %v1827, 0
        %v1893 = vperm.slane %v1828, 0
        %v1894 = vperm.slane %v1829, 0
        %v1895 = vperm.slane %v1830, 0
        %v1896 = vperm.slane %v1831, 0
        %v1897 = vperm.slane %v1832, 0
        %v1898 = vperm.slane %v1833, 0
        %v1899 = vperm.slane %v1834, 0
        %v1900 = vperm.slane %v1835, 0
        %v1901 = vperm.slane %v1836, 0
        %v1902 = vperm.slane %v1837, 0
        %v1903 = vperm.slane %v1838, 0
        %v1904 = vperm.slane %v1839, 0
        %v1905 = vperm.slane %v1840, 0
        %v1906 = vperm.slane %v1841, 0
        %v1907 = vperm.slane %v1842, 0
        %v1908 = vperm.slane %v1843, 0
        %v1909 = vperm.slane %v1844, 0
        %v1910 = vperm.slane %v1845, 0
        %v1911 = vperm.slane %v1846, 0
        %v1912 = vperm.slane %v1847, 0
        %v1913 = vperm.slane %v1848, 0
        %v1914 = vperm.slane %v1849, 0
        %v1915 = vperm.slane %v1850, 0
        %v1916 = vperm.slane %v1851, 0
        %vm1917 = vcmask 1041409
        %v1918 = vsel %vm1917, %v1886, %v1885
        %vm1919 = vcmask 1042434
        %v1920 = vsel %vm1919, %v1887, %v1918
        %vm1921 = vcmask 1043459
        %v1922 = vsel %vm1921, %v1888, %v1920
        %vm1923 = vcmask 1044484
        %v1924 = vsel %vm1923, %v1889, %v1922
        %vm1925 = vcmask 1045509
        %v1926 = vsel %vm1925, %v1890, %v1924
        %vm1927 = vcmask 1046534
        %v1928 = vsel %vm1927, %v1891, %v1926
        %vm1929 = vcmask 1047559
        %v1930 = vsel %vm1929, %v1892, %v1928
        %v1931 = vsel %vm1917, %v1894, %v1893
        %v1932 = vsel %vm1919, %v1895, %v1931
        %v1933 = vsel %vm1921, %v1896, %v1932
        %v1934 = vsel %vm1923, %v1897, %v1933
        %v1935 = vsel %vm1925, %v1898, %v1934
        %v1936 = vsel %vm1927, %v1899, %v1935
        %v1937 = vsel %vm1929, %v1900, %v1936
        %v1938 = vsel %vm1917, %v1902, %v1901
        %v1939 = vsel %vm1919, %v1903, %v1938
        %v1940 = vsel %vm1921, %v1904, %v1939
        %v1941 = vsel %vm1923, %v1905, %v1940
        %v1942 = vsel %vm1925, %v1906, %v1941
        %v1943 = vsel %vm1927, %v1907, %v1942
        %v1944 = vsel %vm1929, %v1908, %v1943
        %v1945 = vsel %vm1917, %v1910, %v1909
        %v1946 = vsel %vm1919, %v1911, %v1945
        %v1947 = vsel %vm1921, %v1912, %v1946
        %v1948 = vsel %vm1923, %v1913, %v1947
        %v1949 = vsel %vm1925, %v1914, %v1948
        %v1950 = vsel %vm1927, %v1915, %v1949
        %v1951 = vsel %vm1929, %v1916, %v1950
        %s1956 = smul.u32 %s1852, 8
        %s1957 = scalar_lea.vmem %s197, %s1956
        %1958 = vst [vmem:[%s1957] sm:$0xff] %v1930
        %1959 = vst [vmem:[%s1957 + $0x8] sm:$0xff] %v1937
        %1960 = vst [vmem:[%s1957 + $0x10] sm:$0xff] %v1944
        %1961 = vst [vmem:[%s1957 + $0x18] sm:$0xff] %v1951
      $region41: #{tiny_imagenet_forward.6} parent=35 // loop_footer
        %s206 = sadd.s32 1, %s202
      $region42: #{tiny_imagenet_forward.6} parent=35 // loop_footer_branch
        %201 = sbr.rel target = $region38
      $region43: #{tiny_imagenet_forward.6} parent=35 // loop_exit
        _
      %p1962 = scmp.lt.s32.totalorder %s15, 1
      %s1963 = scalar_select %p1962, %s15, 1
      %s1964 = smul.addr %s1963, 8
      %s1965 = smul.addr %s1964, 8
      %s1966 = scalar_lea.vmem %s4, %s1965
      // Predicated region
      $region44: #{tiny_imagenet_forward.6} parent=35 // pred_check
        %p1967 = pneg %p122
      $region45: #{tiny_imagenet_forward.6} parent=35 // pred_check_branch
        %1969 = sbr.rel (%p1967) target = $region47
      $region46: #{tiny_imagenet_forward.6} parent=35 // pred_region
        _
      $region47: #{tiny_imagenet_forward.6} parent=35 // pred_fallthru
        _
    $region36: #{tiny_imagenet_forward.6} parent=5 // pred_fallthru
      _
    %p1970 = scmp.le.s32.totalorder 2, %s10
    // Predicated region
    $region48: #{tiny_imagenet_forward.6} parent=5 // pred_check
      %p1971 = pneg %p1970
    $region49: #{tiny_imagenet_forward.6} parent=5 // pred_check_branch
      %1973 = sbr.rel (%p1971) target = $region51
    $region50: #{tiny_imagenet_forward.6} parent=5 // pred_region
      %s1974 = ssub.s32 %s10, 2
      // Predicated region
      $region52: #{tiny_imagenet_forward.6} parent=50 // pred_check
        %p1975 = pneg %p128
      $region53: #{tiny_imagenet_forward.6} parent=50 // pred_check_branch
        %1977 = sbr.rel (%p1975) target = $region55
      $region54: #{tiny_imagenet_forward.6} parent=50 // pred_region
        %p1978 = scmp.lt.s32.totalorder %s16, 1
        %s1979 = scalar_select %p1978, %s16, 1
        %s1980 = smul.addr %s1979, 8
        %s1981 = smul.addr %s1980, 8
        %s1982 = scalar_lea.vmem %s4, %s1981
      $region55: #{tiny_imagenet_forward.6} parent=50 // pred_fallthru
        _
    $region51: #{tiny_imagenet_forward.6} parent=5 // pred_fallthru
      _
  $region6: #{tiny_imagenet_forward.6} parent=0 // loop_footer
    %s14 = sadd.s32 1, %s10
  $region7: #{tiny_imagenet_forward.6} parent=0 // loop_footer_branch
    %9 = sbr.rel target = $region3
  $region8: #{tiny_imagenet_forward.6} parent=0 // loop_exit
    _

// kernel: tiny_imagenet_forward.7
$region0: #{tiny_imagenet_forward.7}
  #allocation0 [shape = 'u32[]', space=smem, size = 0x4, offset = 0x4, fixed_abs, tag = 'smem constant byte address 0x4 - core index']
  #allocation1 [shape = 'u32[72,128]{1,0:T(1,128)}', space=vmem, size = 0x9000, scoped, tag = 'internal scratch']
  #allocation2 [shape = 'f32[2,256]{1,0:T(2,128)}', space=vmem, size = 0x800, scoped, tag = 'scratch operand']
  %s0 = inlined_call_operand.vmem [shape: bf16[2,8192], index: 0, kind: input, shape index: {}]
  %s1 = inlined_call_operand.vmem [shape: bf16[8192,256], index: 1, kind: input, shape index: {}]
  %s2 = inlined_call_operand.vmem [shape: f32[1,256], index: 2, kind: input, shape index: {}]
  %s3 = inlined_call_operand.vmem [shape: f32[1,256], index: 3, kind: input, shape index: {}]
  %s4 = inlined_call_operand.vmem [shape: f32[256,200], index: 4, kind: input, shape index: {}]
  %s5 = inlined_call_operand.vmem [shape: f32[1,200], index: 5, kind: input, shape index: {}]
  %s6 = inlined_call_operand.hbm [shape: f32[2,200], index: 6, kind: output, shape index: {}]
  %s7 = sld [smem:[#allocation0]]
  $region65: #{tiny_imagenet_forward.7} parent=0
    _
  %s9 = ssub.s32 1, %s7
  %s10 = scalar_select 0, %s9, %s7
  $region1: #{tiny_imagenet_forward.7} parent=0
    #allocation3 [shape = 'u8[2048]{0}', space=vmem, size = 0x800, scoped, tag = 'output window, operand 0, single buffered']
    #allocation4 [shape = 's32[2]{0}', space=sflag, size = 0x8, scoped, tag = 'scoped memory for tiny_imagenet_forward.7']
    %11 = vsyncpa [#allocation4], 0
    loop: start=0, step=1, limit=10
    $region2: #{tiny_imagenet_forward.7} parent=1 // loop_pre_header
      _
    $region3: #{tiny_imagenet_forward.7} parent=1 // loop_header
      %s13 = sphi 0, %s17
      %p14 = scmp.ge.s32.totalorder %s13, 10
      %s23 = sphi 0, %s25
      %s26 = sphi 0, %s23
      %s27 = sphi 0, %s26
      %s43 = sphi 0, %s27
      %s49 = sphi 0, %s51
      %s52 = sphi 0, %s49
      %s53 = sphi 0, %s52
      %s69 = sphi 0, %s53
      %s73 = sphi 0, %s73
      %s75 = sphi 0, %s73
      %s76 = sphi 0, %s75
      %s90 = sphi 0, %s76
      %s94 = sphi 0, %s94
      %s96 = sphi 0, %s94
      %s97 = sphi 0, %s96
      %s111 = sphi 0, %s97
      %s115 = sphi 0, %s115
      %s117 = sphi 0, %s115
      %s118 = sphi 0, %s117
      %s132 = sphi 0, %s118
      %s136 = sphi 0, %s136
      %s138 = sphi 0, %s136
      %s139 = sphi 0, %s138
      %s153 = sphi 0, %s139
      %s157 = sphi 0, %s157
      %s159 = sphi 0, %s157
      %s160 = sphi 0, %s159
      %s174 = sphi 0, %s160
    $region4: #{tiny_imagenet_forward.7} parent=1 // loop_header_branch
      %16 = sbr.rel (%p14) target = $region8
    $region5: #{tiny_imagenet_forward.7} parent=1 // loop_body
      %s18 = ssub.s32 %s13, 1
      %s19 = ssub.s32 %s13, 2
      %s20 = sadd.s32 %s13, 1
      %s21 = ssub.s32 %s13, %s20
      %p22 = scmp.eq.s32.totalorder %s21, 0
      %s24 = sadd.s32 %s23, 1
      %s25 = scalar_select %p22, %s23, %s24
      %p28 = pneg %p22
      %p29 = scmp.eq.s32.totalorder %s13, 7
      %p30 = por %p28, %p29
      %p31 = scmp.ne.s32.totalorder %s23, %s26
      %p32 = scmp.eq.s32.totalorder %s13, 0
      %p33 = por %p31, %p32
      %p34 = scmp.ne.s32.totalorder %s23, %s26
      %p35 = scmp.eq.s32.totalorder %s18, 7
      %p36 = por %p34, %p35
      %p37 = scmp.ne.s32.totalorder %s26, %s27
      %p38 = scmp.eq.s32.totalorder %s18, 0
      %p39 = por %p37, %p38
      %p40 = scmp.ne.s32.totalorder %s26, %s27
      %p41 = scmp.eq.s32.totalorder %s19, 7
      %p42 = por %p40, %p41
      %p44 = scmp.ne.s32.totalorder %s27, %s43
      %p45 = scmp.eq.s32.totalorder %s19, 0
      %p46 = por %p44, %p45
      %s47 = ssub.s32 %s13, %s20
      %p48 = scmp.eq.s32.totalorder %s47, 0
      %s50 = sadd.s32 %s49, 1
      %s51 = scalar_select %p48, %s49, %s50
      %p54 = pneg %p48
      %p55 = scmp.eq.s32.totalorder %s13, 7
      %p56 = por %p54, %p55
      %p57 = scmp.ne.s32.totalorder %s49, %s52
      %p58 = scmp.eq.s32.totalorder %s13, 0
      %p59 = por %p57, %p58
      %p60 = scmp.ne.s32.totalorder %s49, %s52
      %p61 = scmp.eq.s32.totalorder %s18, 7
      %p62 = por %p60, %p61
      %p63 = scmp.ne.s32.totalorder %s52, %s53
      %p64 = scmp.eq.s32.totalorder %s18, 0
      %p65 = por %p63, %p64
      %p66 = scmp.ne.s32.totalorder %s52, %s53
      %p67 = scmp.eq.s32.totalorder %s19, 7
      %p68 = por %p66, %p67
      %p70 = scmp.ne.s32.totalorder %s53, %s69
      %p71 = scmp.eq.s32.totalorder %s19, 0
      %p72 = por %p70, %p71
      %s74 = sadd.s32 %s73, 1
      %p77 = scmp.eq.s32.totalorder %s13, 7
      %p78 = scmp.ne.s32.totalorder %s73, %s75
      %p79 = scmp.eq.s32.totalorder %s13, 0
      %p80 = por %p78, %p79
      %p81 = scmp.ne.s32.totalorder %s73, %s75
      %p82 = scmp.eq.s32.totalorder %s18, 7
      %p83 = por %p81, %p82
      %p84 = scmp.ne.s32.totalorder %s75, %s76
      %p85 = scmp.eq.s32.totalorder %s18, 0
      %p86 = por %p84, %p85
      %p87 = scmp.ne.s32.totalorder %s75, %s76
      %p88 = scmp.eq.s32.totalorder %s19, 7
      %p89 = por %p87, %p88
      %p91 = scmp.ne.s32.totalorder %s76, %s90
      %p92 = scmp.eq.s32.totalorder %s19, 0
      %p93 = por %p91, %p92
      %s95 = sadd.s32 %s94, 1
      %p98 = scmp.eq.s32.totalorder %s13, 7
      %p99 = scmp.ne.s32.totalorder %s94, %s96
      %p100 = scmp.eq.s32.totalorder %s13, 0
      %p101 = por %p99, %p100
      %p102 = scmp.ne.s32.totalorder %s94, %s96
      %p103 = scmp.eq.s32.totalorder %s18, 7
      %p104 = por %p102, %p103
      %p105 = scmp.ne.s32.totalorder %s96, %s97
      %p106 = scmp.eq.s32.totalorder %s18, 0
      %p107 = por %p105, %p106
      %p108 = scmp.ne.s32.totalorder %s96, %s97
      %p109 = scmp.eq.s32.totalorder %s19, 7
      %p110 = por %p108, %p109
      %p112 = scmp.ne.s32.totalorder %s97, %s111
      %p113 = scmp.eq.s32.totalorder %s19, 0
      %p114 = por %p112, %p113
      %s116 = sadd.s32 %s115, 1
      %p119 = scmp.eq.s32.totalorder %s13, 7
      %p120 = scmp.ne.s32.totalorder %s115, %s117
      %p121 = scmp.eq.s32.totalorder %s13, 0
      %p122 = por %p120, %p121
      %p123 = scmp.ne.s32.totalorder %s115, %s117
      %p124 = scmp.eq.s32.totalorder %s18, 7
      %p125 = por %p123, %p124
      %p126 = scmp.ne.s32.totalorder %s117, %s118
      %p127 = scmp.eq.s32.totalorder %s18, 0
      %p128 = por %p126, %p127
      %p129 = scmp.ne.s32.totalorder %s117, %s118
      %p130 = scmp.eq.s32.totalorder %s19, 7
      %p131 = por %p129, %p130
      %p133 = scmp.ne.s32.totalorder %s118, %s132
      %p134 = scmp.eq.s32.totalorder %s19, 0
      %p135 = por %p133, %p134
      %s137 = sadd.s32 %s136, 1
      %p140 = scmp.eq.s32.totalorder %s13, 7
      %p141 = scmp.ne.s32.totalorder %s136, %s138
      %p142 = scmp.eq.s32.totalorder %s13, 0
      %p143 = por %p141, %p142
      %p144 = scmp.ne.s32.totalorder %s136, %s138
      %p145 = scmp.eq.s32.totalorder %s18, 7
      %p146 = por %p144, %p145
      %p147 = scmp.ne.s32.totalorder %s138, %s139
      %p148 = scmp.eq.s32.totalorder %s18, 0
      %p149 = por %p147, %p148
      %p150 = scmp.ne.s32.totalorder %s138, %s139
      %p151 = scmp.eq.s32.totalorder %s19, 7
      %p152 = por %p150, %p151
      %p154 = scmp.ne.s32.totalorder %s139, %s153
      %p155 = scmp.eq.s32.totalorder %s19, 0
      %p156 = por %p154, %p155
      %s158 = sadd.s32 %s157, 1
      %p161 = scmp.eq.s32.totalorder %s13, 7
      %p162 = scmp.ne.s32.totalorder %s157, %s159
      %p163 = scmp.eq.s32.totalorder %s13, 0
      %p164 = por %p162, %p163
      %p165 = scmp.ne.s32.totalorder %s157, %s159
      %p166 = scmp.eq.s32.totalorder %s18, 7
      %p167 = por %p165, %p166
      %p168 = scmp.ne.s32.totalorder %s159, %s160
      %p169 = scmp.eq.s32.totalorder %s18, 0
      %p170 = por %p168, %p169
      %p171 = scmp.ne.s32.totalorder %s159, %s160
      %p172 = scmp.eq.s32.totalorder %s19, 7
      %p173 = por %p171, %p172
      %p175 = scmp.ne.s32.totalorder %s160, %s174
      %p176 = scmp.eq.s32.totalorder %s19, 0
      %p177 = por %p175, %p176
      %p178 = scmp.le.s32.totalorder 1, %s13
      %p179 = scmp.lt.s32.totalorder %s13, 9
      %p180 = pnand %p178, %p179
      %p181 = pneg %p180
      // Predicated region
      $region9: #{tiny_imagenet_forward.7} parent=5 // pred_check
        _
      $region10: #{tiny_imagenet_forward.7} parent=5 // pred_check_branch
        %183 = sbr.rel (%p180) target = $region12
      $region11: #{tiny_imagenet_forward.7} parent=5 // pred_region
        %s184 = ssub.s32 %s13, 1
        // Predicated region
        $region13: #{tiny_imagenet_forward.7} parent=11 // pred_check
          %p185 = pneg %p86
        $region14: #{tiny_imagenet_forward.7} parent=11 // pred_check_branch
          %187 = sbr.rel (%p185) target = $region16
        $region15: #{tiny_imagenet_forward.7} parent=11 // pred_region
          _
        $region16: #{tiny_imagenet_forward.7} parent=11 // pred_fallthru
          _
        // Predicated region
        $region17: #{tiny_imagenet_forward.7} parent=11 // pred_check
          %p188 = pneg %p107
        $region18: #{tiny_imagenet_forward.7} parent=11 // pred_check_branch
          %190 = sbr.rel (%p188) target = $region20
        $region19: #{tiny_imagenet_forward.7} parent=11 // pred_region
          _
        $region20: #{tiny_imagenet_forward.7} parent=11 // pred_fallthru
          _
        // Predicated region
        $region21: #{tiny_imagenet_forward.7} parent=11 // pred_check
          %p191 = pneg %p128
        $region22: #{tiny_imagenet_forward.7} parent=11 // pred_check_branch
          %193 = sbr.rel (%p191) target = $region24
        $region23: #{tiny_imagenet_forward.7} parent=11 // pred_region
          _
        $region24: #{tiny_imagenet_forward.7} parent=11 // pred_fallthru
          _
        // Predicated region
        $region25: #{tiny_imagenet_forward.7} parent=11 // pred_check
          %p194 = pneg %p149
        $region26: #{tiny_imagenet_forward.7} parent=11 // pred_check_branch
          %196 = sbr.rel (%p194) target = $region28
        $region27: #{tiny_imagenet_forward.7} parent=11 // pred_region
          _
        $region28: #{tiny_imagenet_forward.7} parent=11 // pred_fallthru
          _
      $region12: #{tiny_imagenet_forward.7} parent=5 // pred_fallthru
        _
      %p197 = scmp.lt.s32.totalorder %s13, 8
      // Predicated region
      $region29: #{tiny_imagenet_forward.7} parent=5 // pred_check
        %p198 = pneg %p197
      $region30: #{tiny_imagenet_forward.7} parent=5 // pred_check_branch
        %200 = sbr.rel (%p198) target = $region32
      $region31: #{tiny_imagenet_forward.7} parent=5 // pred_region
        // Predicated region
        $region33: #{tiny_imagenet_forward.7} parent=31 // pred_check
          %p201 = pneg %p33
        $region34: #{tiny_imagenet_forward.7} parent=31 // pred_check_branch
          %203 = sbr.rel (%p201) target = $region36
        $region35: #{tiny_imagenet_forward.7} parent=31 // pred_region
          %s204 = smul.u32 8, %s13
          %p205 = scmp.lt.s32.totalorder %s204, 63
          %s206 = scalar_select %p205, %s204, 63
          %s207 = scalar_lea.vmem %s0, %s206
          %s208 = smul.u32 8, %s13
        $region36: #{tiny_imagenet_forward.7} parent=31 // pred_fallthru
          _
        // Predicated region
        $region37: #{tiny_imagenet_forward.7} parent=31 // pred_check
          %p209 = pneg %p59
        $region38: #{tiny_imagenet_forward.7} parent=31 // pred_check_branch
          %211 = sbr.rel (%p209) target = $region40
        $region39: #{tiny_imagenet_forward.7} parent=31 // pred_region
          %s212 = smul.u32 128, %s13
          %p213 = scmp.lt.s32.totalorder %s212, 1023
          %s214 = scalar_select %p213, %s212, 1023
          %s215 = smul.addr %s214, 2
          %s216 = smul.addr %s215, 4
          %s217 = scalar_lea.vmem %s1, %s216
          %s218 = smul.u32 128, %s13
        $region40: #{tiny_imagenet_forward.7} parent=31 // pred_fallthru
          _
      $region32: #{tiny_imagenet_forward.7} parent=5 // pred_fallthru
        _
      %p219 = scmp.le.s32.totalorder 1, %s13
      %p220 = scmp.lt.s32.totalorder %s13, 9
      %p221 = pnand %p219, %p220
      %p222 = pneg %p221
      // Predicated region
      $region41: #{tiny_imagenet_forward.7} parent=5 // pred_check
        _
      $region42: #{tiny_imagenet_forward.7} parent=5 // pred_check_branch
        %224 = sbr.rel (%p221) target = $region44
      $region43: #{tiny_imagenet_forward.7} parent=5 // pred_region
        %s225 = ssub.s32 %s13, 1
        %s226 = smul.u32 8, %s18
        %p227 = scmp.lt.s32.totalorder %s226, 63
        %s228 = scalar_select %p227, %s226, 63
        %s229 = scalar_lea.vmem %s0, %s228
        %p230 = pneg %p39
        %p231 = pneg %p36
        %s232 = smul.u32 128, %s18
        %p233 = scmp.lt.s32.totalorder %s232, 1023
        %s234 = scalar_select %p233, %s232, 1023
        %s235 = smul.addr %s234, 2
        %s236 = smul.addr %s235, 4
        %s237 = scalar_lea.vmem %s1, %s236
        %p238 = pneg %p65
        %p239 = pneg %p62
        %p240 = pneg %p86
        %p241 = pneg %p83
        %p242 = pneg %p107
        %p243 = pneg %p104
        %p244 = pneg %p128
        %p245 = pneg %p125
        %p246 = pneg %p149
        %p247 = pneg %p146
        %p248 = pneg %p170
        %p249 = pneg %p167
        %s250 = smul.u32 8, %s18
        %p251 = scmp.lt.s32.totalorder %s250, 63
        %s252 = scalar_select %p251, %s250, 63
        %s253 = scalar_lea.vmem %s0, %s252
        %s254 = smul.u32 8, %s18
        %s255 = smul.u32 128, %s18
        %p256 = scmp.lt.s32.totalorder %s255, 1023
        %s257 = scalar_select %p256, %s255, 1023
        %s258 = smul.addr %s257, 2
        %s259 = smul.addr %s258, 4
        %s260 = scalar_lea.vmem %s1, %s259
        %s261 = smul.u32 128, %s18
        %p262 = scmp.eq.s32.totalorder %s18, 0
        // Predicated region
        $region45: #{tiny_imagenet_forward.7} parent=43 // pred_check
          %p263 = pneg %p262
        $region46: #{tiny_imagenet_forward.7} parent=43 // pred_check_branch
          %265 = sbr.rel (%p263) target = $region48
        $region47: #{tiny_imagenet_forward.7} parent=43 // pred_region
          %266 = vst [vmem:[#allocation2] sm:$0xf] 0.0
        $region48: #{tiny_imagenet_forward.7} parent=43 // pred_fallthru
          _
        %v267 = vld [vmem:[#allocation2] sm:$0xf]
        %v268 = vld [vmem:[%s253] sm:$0xff]
        %v269 = vld [vmem:[%s260] sm:$0xff]
        %v270 = vld [vmem:[%s260 + $0x8] sm:$0xff]
        %v271 = vld [vmem:[%s260 + $0x10] sm:$0xff]
        %v272 = vld [vmem:[%s260 + $0x18] sm:$0xff]
        %v273 = vld [vmem:[%s260 + $0x20] sm:$0xff]
        %v274 = vld [vmem:[%s260 + $0x28] sm:$0xff]
        %v275 = vld [vmem:[%s260 + $0x30] sm:$0xff]
        %v276 = vld [vmem:[%s260 + $0x38] sm:$0xff]
        %v277 = vld [vmem:[%s260 + $0x40] sm:$0xff]
        %v278 = vld [vmem:[%s260 + $0x48] sm:$0xff]
        %v279 = vld [vmem:[%s260 + $0x50] sm:$0xff]
        %v280 = vld [vmem:[%s260 + $0x58] sm:$0xff]
        %v281 = vld [vmem:[%s260 + $0x60] sm:$0xff]
        %v282 = vld [vmem:[%s260 + $0x68] sm:$0xff]
        %v283 = vld [vmem:[%s260 + $0x70] sm:$0xff]
        %v284 = vld [vmem:[%s260 + $0x78] sm:$0xff]
        %v285 = vld [vmem:[%s260 + $0x80] sm:$0xff]
        %v286 = vld [vmem:[%s260 + $0x88] sm:$0xff]
        %v287 = vld [vmem:[%s260 + $0x90] sm:$0xff]
        %v288 = vld [vmem:[%s260 + $0x98] sm:$0xff]
        %v289 = vld [vmem:[%s260 + $0xa0] sm:$0xff]
        %v290 = vld [vmem:[%s260 + $0xa8] sm:$0xff]
        %v291 = vld [vmem:[%s260 + $0xb0] sm:$0xff]
        %v292 = vld [vmem:[%s260 + $0xb8] sm:$0xff]
        %v293 = vld [vmem:[%s260 + $0xc0] sm:$0xff]
        %v294 = vld [vmem:[%s260 + $0xc8] sm:$0xff]
        %v295 = vld [vmem:[%s260 + $0xd0] sm:$0xff]
        %v296 = vld [vmem:[%s260 + $0xd8] sm:$0xff]
        %v297 = vld [vmem:[%s260 + $0xe0] sm:$0xff]
        %v298 = vld [vmem:[%s260 + $0xe8] sm:$0xff]
        %v299 = vld [vmem:[%s260 + $0xf0] sm:$0xff]
        %v300 = vld [vmem:[%s260 + $0xf8] sm:$0xff]
        %v301 = vld [vmem:[%s260 + $0x100] sm:$0xff]
        %v302 = vld [vmem:[%s260 + $0x108] sm:$0xff]
        %v303 = vld [vmem:[%s260 + $0x110] sm:$0xff]
        %v304 = vld [vmem:[%s260 + $0x118] sm:$0xff]
        %v305 = vld [vmem:[%s260 + $0x120] sm:$0xff]
        %v306 = vld [vmem:[%s260 + $0x128] sm:$0xff]
        %v307 = vld [vmem:[%s260 + $0x130] sm:$0xff]
        %v308 = vld [vmem:[%s260 + $0x138] sm:$0xff]
        %v309 = vld [vmem:[%s260 + $0x140] sm:$0xff]
        %v310 = vld [vmem:[%s260 + $0x148] sm:$0xff]
        %v311 = vld [vmem:[%s260 + $0x150] sm:$0xff]
        %v312 = vld [vmem:[%s260 + $0x158] sm:$0xff]
        %v313 = vld [vmem:[%s260 + $0x160] sm:$0xff]
        %v314 = vld [vmem:[%s260 + $0x168] sm:$0xff]
        %v315 = vld [vmem:[%s260 + $0x170] sm:$0xff]
        %v316 = vld [vmem:[%s260 + $0x178] sm:$0xff]
        %v317 = vld [vmem:[%s260 + $0x180] sm:$0xff]
        %v318 = vld [vmem:[%s260 + $0x188] sm:$0xff]
        %v319 = vld [vmem:[%s260 + $0x190] sm:$0xff]
        %v320 = vld [vmem:[%s260 + $0x198] sm:$0xff]
        %v321 = vld [vmem:[%s260 + $0x1a0] sm:$0xff]
        %v322 = vld [vmem:[%s260 + $0x1a8] sm:$0xff]
        %v323 = vld [vmem:[%s260 + $0x1b0] sm:$0xff]
        %v324 = vld [vmem:[%s260 + $0x1b8] sm:$0xff]
        %v325 = vld [vmem:[%s260 + $0x1c0] sm:$0xff]
        %v326 = vld [vmem:[%s260 + $0x1c8] sm:$0xff]
        %v327 = vld [vmem:[%s260 + $0x1d0] sm:$0xff]
        %v328 = vld [vmem:[%s260 + $0x1d8] sm:$0xff]
        %v329 = vld [vmem:[%s260 + $0x1e0] sm:$0xff]
        %v330 = vld [vmem:[%s260 + $0x1e8] sm:$0xff]
        %v331 = vld [vmem:[%s260 + $0x1f0] sm:$0xff]
        %v332 = vld [vmem:[%s260 + $0x1f8] sm:$0xff]
        %v333 = vld [vmem:[%s260 + $0x200] sm:$0xff]
        %v334 = vld [vmem:[%s260 + $0x208] sm:$0xff]
        %v335 = vld [vmem:[%s260 + $0x210] sm:$0xff]
        %v336 = vld [vmem:[%s260 + $0x218] sm:$0xff]
        %v337 = vld [vmem:[%s260 + $0x220] sm:$0xff]
        %v338 = vld [vmem:[%s260 + $0x228] sm:$0xff]
        %v339 = vld [vmem:[%s260 + $0x230] sm:$0xff]
        %v340 = vld [vmem:[%s260 + $0x238] sm:$0xff]
        %v341 = vld [vmem:[%s260 + $0x240] sm:$0xff]
        %v342 = vld [vmem:[%s260 + $0x248] sm:$0xff]
        %v343 = vld [vmem:[%s260 + $0x250] sm:$0xff]
        %v344 = vld [vmem:[%s260 + $0x258] sm:$0xff]
        %v345 = vld [vmem:[%s260 + $0x260] sm:$0xff]
        %v346 = vld [vmem:[%s260 + $0x268] sm:$0xff]
        %v347 = vld [vmem:[%s260 + $0x270] sm:$0xff]
        %v348 = vld [vmem:[%s260 + $0x278] sm:$0xff]
        %v349 = vld [vmem:[%s260 + $0x280] sm:$0xff]
        %v350 = vld [vmem:[%s260 + $0x288] sm:$0xff]
        %v351 = vld [vmem:[%s260 + $0x290] sm:$0xff]
        %v352 = vld [vmem:[%s260 + $0x298] sm:$0xff]
        %v353 = vld [vmem:[%s260 + $0x2a0] sm:$0xff]
        %v354 = vld [vmem:[%s260 + $0x2a8] sm:$0xff]
        %v355 = vld [vmem:[%s260 + $0x2b0] sm:$0xff]
        %v356 = vld [vmem:[%s260 + $0x2b8] sm:$0xff]
        %v357 = vld [vmem:[%s260 + $0x2c0] sm:$0xff]
        %v358 = vld [vmem:[%s260 + $0x2c8] sm:$0xff]
        %v359 = vld [vmem:[%s260 + $0x2d0] sm:$0xff]
        %v360 = vld [vmem:[%s260 + $0x2d8] sm:$0xff]
        %v361 = vld [vmem:[%s260 + $0x2e0] sm:$0xff]
        %v362 = vld [vmem:[%s260 + $0x2e8] sm:$0xff]
        %v363 = vld [vmem:[%s260 + $0x2f0] sm:$0xff]
        %v364 = vld [vmem:[%s260 + $0x2f8] sm:$0xff]
        %v365 = vld [vmem:[%s260 + $0x300] sm:$0xff]
        %v366 = vld [vmem:[%s260 + $0x308] sm:$0xff]
        %v367 = vld [vmem:[%s260 + $0x310] sm:$0xff]
        %v368 = vld [vmem:[%s260 + $0x318] sm:$0xff]
        %v369 = vld [vmem:[%s260 + $0x320] sm:$0xff]
        %v370 = vld [vmem:[%s260 + $0x328] sm:$0xff]
        %v371 = vld [vmem:[%s260 + $0x330] sm:$0xff]
        %v372 = vld [vmem:[%s260 + $0x338] sm:$0xff]
        %v373 = vld [vmem:[%s260 + $0x340] sm:$0xff]
        %v374 = vld [vmem:[%s260 + $0x348] sm:$0xff]
        %v375 = vld [vmem:[%s260 + $0x350] sm:$0xff]
        %v376 = vld [vmem:[%s260 + $0x358] sm:$0xff]
        %v377 = vld [vmem:[%s260 + $0x360] sm:$0xff]
        %v378 = vld [vmem:[%s260 + $0x368] sm:$0xff]
        %v379 = vld [vmem:[%s260 + $0x370] sm:$0xff]
        %v380 = vld [vmem:[%s260 + $0x378] sm:$0xff]
        %v381 = vld [vmem:[%s260 + $0x380] sm:$0xff]
        %v382 = vld [vmem:[%s260 + $0x388] sm:$0xff]
        %v383 = vld [vmem:[%s260 + $0x390] sm:$0xff]
        %v384 = vld [vmem:[%s260 + $0x398] sm:$0xff]
        %v385 = vld [vmem:[%s260 + $0x3a0] sm:$0xff]
        %v386 = vld [vmem:[%s260 + $0x3a8] sm:$0xff]
        %v387 = vld [vmem:[%s260 + $0x3b0] sm:$0xff]
        %v388 = vld [vmem:[%s260 + $0x3b8] sm:$0xff]
        %v389 = vld [vmem:[%s260 + $0x3c0] sm:$0xff]
        %v390 = vld [vmem:[%s260 + $0x3c8] sm:$0xff]
        %v391 = vld [vmem:[%s260 + $0x3d0] sm:$0xff]
        %v392 = vld [vmem:[%s260 + $0x3d8] sm:$0xff]
        %v393 = vld [vmem:[%s260 + $0x3e0] sm:$0xff]
        %v394 = vld [vmem:[%s260 + $0x3e8] sm:$0xff]
        %v395 = vld [vmem:[%s260 + $0x3f0] sm:$0xff]
        %v396 = vld [vmem:[%s260 + $0x3f8] sm:$0xff]
        %398 = vst [vmem:[#allocation1] ss:$9 sm:$0xff] %v268
        %v399 = vld [vmem:[#allocation1] sm:$0xff]
        %v400 = vld [vmem:[#allocation1 + $0x9] sm:$0xff]
        %v401 = vld [vmem:[#allocation1 + $0x12] sm:$0xff]
        %v402 = vld [vmem:[#allocation1 + $0x1b] sm:$0xff]
        %v403 = vld [vmem:[#allocation1 + $0x24] sm:$0xff]
        %v404 = vld [vmem:[#allocation1 + $0x2d] sm:$0xff]
        %v405 = vld [vmem:[#allocation1 + $0x36] sm:$0xff]
        %v406 = vld [vmem:[#allocation1 + $0x3f] sm:$0xff]
        %v543 = vunpack.c.l.b16 %v269
        %v544 = vunpack.c.h.b16 %v269
        %v545 = vunpack.c.l.b16 %v270
        %v546 = vunpack.c.h.b16 %v270
        %v547 = vunpack.c.l.b16 %v271
        %v548 = vunpack.c.h.b16 %v271
        %v549 = vunpack.c.l.b16 %v272
        %v550 = vunpack.c.h.b16 %v272
        %v551 = vunpack.c.l.b16 %v273
        %v552 = vunpack.c.h.b16 %v273
        %v553 = vunpack.c.l.b16 %v274
        %v554 = vunpack.c.h.b16 %v274
        %v555 = vunpack.c.l.b16 %v275
        %v556 = vunpack.c.h.b16 %v275
        %v557 = vunpack.c.l.b16 %v276
        %v558 = vunpack.c.h.b16 %v276
        %v559 = vunpack.c.l.b16 %v277
        %v560 = vunpack.c.h.b16 %v277
        %v561 = vunpack.c.l.b16 %v278
        %v562 = vunpack.c.h.b16 %v278
        %v563 = vunpack.c.l.b16 %v279
        %v564 = vunpack.c.h.b16 %v279
        %v565 = vunpack.c.l.b16 %v280
        %v566 = vunpack.c.h.b16 %v280
        %v567 = vunpack.c.l.b16 %v281
        %v568 = vunpack.c.h.b16 %v281
        %v569 = vunpack.c.l.b16 %v282
        %v570 = vunpack.c.h.b16 %v282
        %v571 = vunpack.c.l.b16 %v283
        %v572 = vunpack.c.h.b16 %v283
        %v573 = vunpack.c.l.b16 %v284
        %v574 = vunpack.c.h.b16 %v284
        %v575 = vunpack.c.l.b16 %v285
        %v576 = vunpack.c.h.b16 %v285
        %v577 = vunpack.c.l.b16 %v286
        %v578 = vunpack.c.h.b16 %v286
        %v579 = vunpack.c.l.b16 %v287
        %v580 = vunpack.c.h.b16 %v287
        %v581 = vunpack.c.l.b16 %v288
        %v582 = vunpack.c.h.b16 %v288
        %v583 = vunpack.c.l.b16 %v289
        %v584 = vunpack.c.h.b16 %v289
        %v585 = vunpack.c.l.b16 %v290
        %v586 = vunpack.c.h.b16 %v290
        %v587 = vunpack.c.l.b16 %v291
        %v588 = vunpack.c.h.b16 %v291
        %v589 = vunpack.c.l.b16 %v292
        %v590 = vunpack.c.h.b16 %v292
        %v591 = vunpack.c.l.b16 %v293
        %v592 = vunpack.c.h.b16 %v293
        %v593 = vunpack.c.l.b16 %v294
        %v594 = vunpack.c.h.b16 %v294
        %v595 = vunpack.c.l.b16 %v295
        %v596 = vunpack.c.h.b16 %v295
        %v597 = vunpack.c.l.b16 %v296
        %v598 = vunpack.c.h.b16 %v296
        %v599 = vunpack.c.l.b16 %v297
        %v600 = vunpack.c.h.b16 %v297
        %v601 = vunpack.c.l.b16 %v298
        %v602 = vunpack.c.h.b16 %v298
        %v603 = vunpack.c.l.b16 %v299
        %v604 = vunpack.c.h.b16 %v299
        %v605 = vunpack.c.l.b16 %v300
        %v606 = vunpack.c.h.b16 %v300
        %v607 = vunpack.c.l.b16 %v301
        %v608 = vunpack.c.h.b16 %v301
        %v609 = vunpack.c.l.b16 %v302
        %v610 = vunpack.c.h.b16 %v302
        %v611 = vunpack.c.l.b16 %v303
        %v612 = vunpack.c.h.b16 %v303
        %v613 = vunpack.c.l.b16 %v304
        %v614 = vunpack.c.h.b16 %v304
        %v615 = vunpack.c.l.b16 %v305
        %v616 = vunpack.c.h.b16 %v305
        %v617 = vunpack.c.l.b16 %v306
        %v618 = vunpack.c.h.b16 %v306
        %v619 = vunpack.c.l.b16 %v307
        %v620 = vunpack.c.h.b16 %v307
        %v621 = vunpack.c.l.b16 %v308
        %v622 = vunpack.c.h.b16 %v308
        %v623 = vunpack.c.l.b16 %v309
        %v624 = vunpack.c.h.b16 %v309
        %v625 = vunpack.c.l.b16 %v310
        %v626 = vunpack.c.h.b16 %v310
        %v627 = vunpack.c.l.b16 %v311
        %v628 = vunpack.c.h.b16 %v311
        %v629 = vunpack.c.l.b16 %v312
        %v630 = vunpack.c.h.b16 %v312
        %v631 = vunpack.c.l.b16 %v313
        %v632 = vunpack.c.h.b16 %v313
        %v633 = vunpack.c.l.b16 %v314
        %v634 = vunpack.c.h.b16 %v314
        %v635 = vunpack.c.l.b16 %v315
        %v636 = vunpack.c.h.b16 %v315
        %v637 = vunpack.c.l.b16 %v316
        %v638 = vunpack.c.h.b16 %v316
        %v639 = vunpack.c.l.b16 %v317
        %v640 = vunpack.c.h.b16 %v317
        %v641 = vunpack.c.l.b16 %v318
        %v642 = vunpack.c.h.b16 %v318
        %v643 = vunpack.c.l.b16 %v319
        %v644 = vunpack.c.h.b16 %v319
        %v645 = vunpack.c.l.b16 %v320
        %v646 = vunpack.c.h.b16 %v320
        %v647 = vunpack.c.l.b16 %v321
        %v648 = vunpack.c.h.b16 %v321
        %v649 = vunpack.c.l.b16 %v322
        %v650 = vunpack.c.h.b16 %v322
        %v651 = vunpack.c.l.b16 %v323
        %v652 = vunpack.c.h.b16 %v323
        %v653 = vunpack.c.l.b16 %v324
        %v654 = vunpack.c.h.b16 %v324
        %v655 = vunpack.c.l.b16 %v325
        %v656 = vunpack.c.h.b16 %v325
        %v657 = vunpack.c.l.b16 %v326
        %v658 = vunpack.c.h.b16 %v326
        %v659 = vunpack.c.l.b16 %v327
        %v660 = vunpack.c.h.b16 %v327
        %v661 = vunpack.c.l.b16 %v328
        %v662 = vunpack.c.h.b16 %v328
        %v663 = vunpack.c.l.b16 %v329
        %v664 = vunpack.c.h.b16 %v329
        %v665 = vunpack.c.l.b16 %v330
        %v666 = vunpack.c.h.b16 %v330
        %v667 = vunpack.c.l.b16 %v331
        %v668 = vunpack.c.h.b16 %v331
        %v669 = vunpack.c.l.b16 %v332
        %v670 = vunpack.c.h.b16 %v332
        %v671 = vunpack.c.l.b16 %v333
        %v672 = vunpack.c.h.b16 %v333
        %v673 = vunpack.c.l.b16 %v334
        %v674 = vunpack.c.h.b16 %v334
        %v675 = vunpack.c.l.b16 %v335
        %v676 = vunpack.c.h.b16 %v335
        %v677 = vunpack.c.l.b16 %v336
        %v678 = vunpack.c.h.b16 %v336
        %v679 = vunpack.c.l.b16 %v337
        %v680 = vunpack.c.h.b16 %v337
        %v681 = vunpack.c.l.b16 %v338
        %v682 = vunpack.c.h.b16 %v338
        %v683 = vunpack.c.l.b16 %v339
        %v684 = vunpack.c.h.b16 %v339
        %v685 = vunpack.c.l.b16 %v340
        %v686 = vunpack.c.h.b16 %v340
        %v687 = vunpack.c.l.b16 %v341
        %v688 = vunpack.c.h.b16 %v341
        %v689 = vunpack.c.l.b16 %v342
        %v690 = vunpack.c.h.b16 %v342
        %v691 = vunpack.c.l.b16 %v343
        %v692 = vunpack.c.h.b16 %v343
        %v693 = vunpack.c.l.b16 %v344
        %v694 = vunpack.c.h.b16 %v344
        %v695 = vunpack.c.l.b16 %v345
        %v696 = vunpack.c.h.b16 %v345
        %v697 = vunpack.c.l.b16 %v346
        %v698 = vunpack.c.h.b16 %v346
        %v699 = vunpack.c.l.b16 %v347
        %v700 = vunpack.c.h.b16 %v347
        %v701 = vunpack.c.l.b16 %v348
        %v702 = vunpack.c.h.b16 %v348
        %v703 = vunpack.c.l.b16 %v349
        %v704 = vunpack.c.h.b16 %v349
        %v705 = vunpack.c.l.b16 %v350
        %v706 = vunpack.c.h.b16 %v350
        %v707 = vunpack.c.l.b16 %v351
        %v708 = vunpack.c.h.b16 %v351
        %v709 = vunpack.c.l.b16 %v352
        %v710 = vunpack.c.h.b16 %v352
        %v711 = vunpack.c.l.b16 %v353
        %v712 = vunpack.c.h.b16 %v353
        %v713 = vunpack.c.l.b16 %v354
        %v714 = vunpack.c.h.b16 %v354
        %v715 = vunpack.c.l.b16 %v355
        %v716 = vunpack.c.h.b16 %v355
        %v717 = vunpack.c.l.b16 %v356
        %v718 = vunpack.c.h.b16 %v356
        %v719 = vunpack.c.l.b16 %v357
        %v720 = vunpack.c.h.b16 %v357
        %v721 = vunpack.c.l.b16 %v358
        %v722 = vunpack.c.h.b16 %v358
        %v723 = vunpack.c.l.b16 %v359
        %v724 = vunpack.c.h.b16 %v359
        %v725 = vunpack.c.l.b16 %v360
        %v726 = vunpack.c.h.b16 %v360
        %v727 = vunpack.c.l.b16 %v361
        %v728 = vunpack.c.h.b16 %v361
        %v729 = vunpack.c.l.b16 %v362
        %v730 = vunpack.c.h.b16 %v362
        %v731 = vunpack.c.l.b16 %v363
        %v732 = vunpack.c.h.b16 %v363
        %v733 = vunpack.c.l.b16 %v364
        %v734 = vunpack.c.h.b16 %v364
        %v735 = vunpack.c.l.b16 %v365
        %v736 = vunpack.c.h.b16 %v365
        %v737 = vunpack.c.l.b16 %v366
        %v738 = vunpack.c.h.b16 %v366
        %v739 = vunpack.c.l.b16 %v367
        %v740 = vunpack.c.h.b16 %v367
        %v741 = vunpack.c.l.b16 %v368
        %v742 = vunpack.c.h.b16 %v368
        %v743 = vunpack.c.l.b16 %v369
        %v744 = vunpack.c.h.b16 %v369
        %v745 = vunpack.c.l.b16 %v370
        %v746 = vunpack.c.h.b16 %v370
        %v747 = vunpack.c.l.b16 %v371
        %v748 = vunpack.c.h.b16 %v371
        %v749 = vunpack.c.l.b16 %v372
        %v750 = vunpack.c.h.b16 %v372
        %v751 = vunpack.c.l.b16 %v373
        %v752 = vunpack.c.h.b16 %v373
        %v753 = vunpack.c.l.b16 %v374
        %v754 = vunpack.c.h.b16 %v374
        %v755 = vunpack.c.l.b16 %v375
        %v756 = vunpack.c.h.b16 %v375
        %v757 = vunpack.c.l.b16 %v376
        %v758 = vunpack.c.h.b16 %v376
        %v759 = vunpack.c.l.b16 %v377
        %v760 = vunpack.c.h.b16 %v377
        %v761 = vunpack.c.l.b16 %v378
        %v762 = vunpack.c.h.b16 %v378
        %v763 = vunpack.c.l.b16 %v379
        %v764 = vunpack.c.h.b16 %v379
        %v765 = vunpack.c.l.b16 %v380
        %v766 = vunpack.c.h.b16 %v380
        %v767 = vunpack.c.l.b16 %v381
        %v768 = vunpack.c.h.b16 %v381
        %v769 = vunpack.c.l.b16 %v382
        %v770 = vunpack.c.h.b16 %v382
        %v771 = vunpack.c.l.b16 %v383
        %v772 = vunpack.c.h.b16 %v383
        %v773 = vunpack.c.l.b16 %v384
        %v774 = vunpack.c.h.b16 %v384
        %v775 = vunpack.c.l.b16 %v385
        %v776 = vunpack.c.h.b16 %v385
        %v777 = vunpack.c.l.b16 %v386
        %v778 = vunpack.c.h.b16 %v386
        %v779 = vunpack.c.l.b16 %v387
        %v780 = vunpack.c.h.b16 %v387
        %v781 = vunpack.c.l.b16 %v388
        %v782 = vunpack.c.h.b16 %v388
        %v783 = vunpack.c.l.b16 %v389
        %v784 = vunpack.c.h.b16 %v389
        %v785 = vunpack.c.l.b16 %v390
        %v786 = vunpack.c.h.b16 %v390
        %v787 = vunpack.c.l.b16 %v391
        %v788 = vunpack.c.h.b16 %v391
        %v789 = vunpack.c.l.b16 %v392
        %v790 = vunpack.c.h.b16 %v392
        %v791 = vunpack.c.l.b16 %v393
        %v792 = vunpack.c.h.b16 %v393
        %v793 = vunpack.c.l.b16 %v394
        %v794 = vunpack.c.h.b16 %v394
        %v795 = vunpack.c.l.b16 %v395
        %v796 = vunpack.c.h.b16 %v395
        %v797 = vunpack.c.l.b16 %v396
        %v798 = vunpack.c.h.b16 %v396
        %v799 = vpack.c.b16 %v545, %v543
        %v800 = vpack.c.b16 %v546, %v544
        %v801 = vpack.c.b16 %v549, %v547
        %v802 = vpack.c.b16 %v550, %v548
        %v803 = vpack.c.b16 %v553, %v551
        %v804 = vpack.c.b16 %v554, %v552
        %v805 = vpack.c.b16 %v557, %v555
        %v806 = vpack.c.b16 %v558, %v556
        %v807 = vpack.c.b16 %v561, %v559
        %v808 = vpack.c.b16 %v562, %v560
        %v809 = vpack.c.b16 %v565, %v563
        %v810 = vpack.c.b16 %v566, %v564
        %v811 = vpack.c.b16 %v569, %v567
        %v812 = vpack.c.b16 %v570, %v568
        %v813 = vpack.c.b16 %v573, %v571
        %v814 = vpack.c.b16 %v574, %v572
        %v815 = vpack.c.b16 %v577, %v575
        %v816 = vpack.c.b16 %v578, %v576
        %v817 = vpack.c.b16 %v581, %v579
        %v818 = vpack.c.b16 %v582, %v580
        %v819 = vpack.c.b16 %v585, %v583
        %v820 = vpack.c.b16 %v586, %v584
        %v821 = vpack.c.b16 %v589, %v587
        %v822 = vpack.c.b16 %v590, %v588
        %v823 = vpack.c.b16 %v593, %v591
        %v824 = vpack.c.b16 %v594, %v592
        %v825 = vpack.c.b16 %v597, %v595
        %v826 = vpack.c.b16 %v598, %v596
        %v827 = vpack.c.b16 %v601, %v599
        %v828 = vpack.c.b16 %v602, %v600
        %v829 = vpack.c.b16 %v605, %v603
        %v830 = vpack.c.b16 %v606, %v604
        %v831 = vpack.c.b16 %v609, %v607
        %v832 = vpack.c.b16 %v610, %v608
        %v833 = vpack.c.b16 %v613, %v611
        %v834 = vpack.c.b16 %v614, %v612
        %v835 = vpack.c.b16 %v617, %v615
        %v836 = vpack.c.b16 %v618, %v616
        %v837 = vpack.c.b16 %v621, %v619
        %v838 = vpack.c.b16 %v622, %v620
        %v839 = vpack.c.b16 %v625, %v623
        %v840 = vpack.c.b16 %v626, %v624
        %v841 = vpack.c.b16 %v629, %v627
        %v842 = vpack.c.b16 %v630, %v628
        %v843 = vpack.c.b16 %v633, %v631
        %v844 = vpack.c.b16 %v634, %v632
        %v845 = vpack.c.b16 %v637, %v635
        %v846 = vpack.c.b16 %v638, %v636
        %v847 = vpack.c.b16 %v641, %v639
        %v848 = vpack.c.b16 %v642, %v640
        %v849 = vpack.c.b16 %v645, %v643
        %v850 = vpack.c.b16 %v646, %v644
        %v851 = vpack.c.b16 %v649, %v647
        %v852 = vpack.c.b16 %v650, %v648
        %v853 = vpack.c.b16 %v653, %v651
        %v854 = vpack.c.b16 %v654, %v652
        %v855 = vpack.c.b16 %v657, %v655
        %v856 = vpack.c.b16 %v658, %v656
        %v857 = vpack.c.b16 %v661, %v659
        %v858 = vpack.c.b16 %v662, %v660
        %v859 = vpack.c.b16 %v665, %v663
        %v860 = vpack.c.b16 %v666, %v664
        %v861 = vpack.c.b16 %v669, %v667
        %v862 = vpack.c.b16 %v670, %v668
        %v863 = vpack.c.b16 %v673, %v671
        %v864 = vpack.c.b16 %v674, %v672
        %v865 = vpack.c.b16 %v677, %v675
        %v866 = vpack.c.b16 %v678, %v676
        %v867 = vpack.c.b16 %v681, %v679
        %v868 = vpack.c.b16 %v682, %v680
        %v869 = vpack.c.b16 %v685, %v683
        %v870 = vpack.c.b16 %v686, %v684
        %v871 = vpack.c.b16 %v689, %v687
        %v872 = vpack.c.b16 %v690, %v688
        %v873 = vpack.c.b16 %v693, %v691
        %v874 = vpack.c.b16 %v694, %v692
        %v875 = vpack.c.b16 %v697, %v695
        %v876 = vpack.c.b16 %v698, %v696
        %v877 = vpack.c.b16 %v701, %v699
        %v878 = vpack.c.b16 %v702, %v700
        %v879 = vpack.c.b16 %v705, %v703
        %v880 = vpack.c.b16 %v706, %v704
        %v881 = vpack.c.b16 %v709, %v707
        %v882 = vpack.c.b16 %v710, %v708
        %v883 = vpack.c.b16 %v713, %v711
        %v884 = vpack.c.b16 %v714, %v712
        %v885 = vpack.c.b16 %v717, %v715
        %v886 = vpack.c.b16 %v718, %v716
        %v887 = vpack.c.b16 %v721, %v719
        %v888 = vpack.c.b16 %v722, %v720
        %v889 = vpack.c.b16 %v725, %v723
        %v890 = vpack.c.b16 %v726, %v724
        %v891 = vpack.c.b16 %v729, %v727
        %v892 = vpack.c.b16 %v730, %v728
        %v893 = vpack.c.b16 %v733, %v731
        %v894 = vpack.c.b16 %v734, %v732
        %v895 = vpack.c.b16 %v737, %v735
        %v896 = vpack.c.b16 %v738, %v736
        %v897 = vpack.c.b16 %v741, %v739
        %v898 = vpack.c.b16 %v742, %v740
        %v899 = vpack.c.b16 %v745, %v743
        %v900 = vpack.c.b16 %v746, %v744
        %v901 = vpack.c.b16 %v749, %v747
        %v902 = vpack.c.b16 %v750, %v748
        %v903 = vpack.c.b16 %v753, %v751
        %v904 = vpack.c.b16 %v754, %v752
        %v905 = vpack.c.b16 %v757, %v755
        %v906 = vpack.c.b16 %v758, %v756
        %v907 = vpack.c.b16 %v761, %v759
        %v908 = vpack.c.b16 %v762, %v760
        %v909 = vpack.c.b16 %v765, %v763
        %v910 = vpack.c.b16 %v766, %v764
        %v911 = vpack.c.b16 %v769, %v767
        %v912 = vpack.c.b16 %v770, %v768
        %v913 = vpack.c.b16 %v773, %v771
        %v914 = vpack.c.b16 %v774, %v772
        %v915 = vpack.c.b16 %v777, %v775
        %v916 = vpack.c.b16 %v778, %v776
        %v917 = vpack.c.b16 %v781, %v779
        %v918 = vpack.c.b16 %v782, %v780
        %v919 = vpack.c.b16 %v785, %v783
        %v920 = vpack.c.b16 %v786, %v784
        %v921 = vpack.c.b16 %v789, %v787
        %v922 = vpack.c.b16 %v790, %v788
        %v923 = vpack.c.b16 %v793, %v791
        %v924 = vpack.c.b16 %v794, %v792
        %v925 = vpack.c.b16 %v797, %v795
        %v926 = vpack.c.b16 %v798, %v796
        %1055 = vmatpush.bf16.msra.mxu0 %v813
        %1056 = vmatpush.bf16.msra.mxu0 %v811
        %1057 = vmatpush.bf16.msra.mxu0 %v809
        %1058 = vmatpush.bf16.msra.mxu0 %v807
        %1059 = vmatpush.bf16.msra.mxu0 %v805
        %1060 = vmatpush.bf16.msra.mxu0 %v803
        %1061 = vmatpush.bf16.msra.mxu0 %v801
        %1062 = vmatpush.bf16.msra.mxu0 %v799
        %1063 = vmatmul.bf16.gmra.mxu0 %v399
        %v1064 = vpop.f32.mrf.mxu0
        %v1065 = vadd.f32 0.0, %v1064
        %v1066 = vpop.f32.mrf.mxu0
        %1067 = vdwg.mxu0
        %1068 = vmatpush.bf16.msra.mxu0 %v829
        %1069 = vmatpush.bf16.msra.mxu0 %v827
        %1070 = vmatpush.bf16.msra.mxu0 %v825
        %1071 = vmatpush.bf16.msra.mxu0 %v823
        %1072 = vmatpush.bf16.msra.mxu0 %v821
        %1073 = vmatpush.bf16.msra.mxu0 %v819
        %1074 = vmatpush.bf16.msra.mxu0 %v817
        %1075 = vmatpush.bf16.msra.mxu0 %v815
        %1076 = vmatmul.bf16.gmra.mxu0 %v400
        %v1077 = vpop.f32.mrf.mxu0
        %v1078 = vadd.f32 %v1065, %v1077
        %v1079 = vpop.f32.mrf.mxu0
        %1080 = vdwg.mxu0
        %1081 = vmatpush.bf16.msra.mxu0 %v845
        %1082 = vmatpush.bf16.msra.mxu0 %v843
        %1083 = vmatpush.bf16.msra.mxu0 %v841
        %1084 = vmatpush.bf16.msra.mxu0 %v839
        %1085 = vmatpush.bf16.msra.mxu0 %v837
        %1086 = vmatpush.bf16.msra.mxu0 %v835
        %1087 = vmatpush.bf16.msra.mxu0 %v833
        %1088 = vmatpush.bf16.msra.mxu0 %v831
        %1089 = vmatmul.bf16.gmra.mxu0 %v401
        %v1090 = vpop.f32.mrf.mxu0
        %v1091 = vadd.f32 %v1078, %v1090
        %v1092 = vpop.f32.mrf.mxu0
        %1093 = vdwg.mxu0
        %1094 = vmatpush.bf16.msra.mxu0 %v861
        %1095 = vmatpush.bf16.msra.mxu0 %v859
        %1096 = vmatpush.bf16.msra.mxu0 %v857
        %1097 = vmatpush.bf16.msra.mxu0 %v855
        %1098 = vmatpush.bf16.msra.mxu0 %v853
        %1099 = vmatpush.bf16.msra.mxu0 %v851
        %1100 = vmatpush.bf16.msra.mxu0 %v849
        %1101 = vmatpush.bf16.msra.mxu0 %v847
        %1102 = vmatmul.bf16.gmra.mxu0 %v402
        %v1103 = vpop.f32.mrf.mxu0
        %v1104 = vadd.f32 %v1091, %v1103
        %v1105 = vpop.f32.mrf.mxu0
        %1106 = vdwg.mxu0
        %1107 = vmatpush.bf16.msra.mxu0 %v877
        %1108 = vmatpush.bf16.msra.mxu0 %v875
        %1109 = vmatpush.bf16.msra.mxu0 %v873
        %1110 = vmatpush.bf16.msra.mxu0 %v871
        %1111 = vmatpush.bf16.msra.mxu0 %v869
        %1112 = vmatpush.bf16.msra.mxu0 %v867
        %1113 = vmatpush.bf16.msra.mxu0 %v865
        %1114 = vmatpush.bf16.msra.mxu0 %v863
        %1115 = vmatmul.bf16.gmra.mxu0 %v403
        %v1116 = vpop.f32.mrf.mxu0
        %v1117 = vadd.f32 %v1104, %v1116
        %v1118 = vpop.f32.mrf.mxu0
        %1119 = vdwg.mxu0
        %1120 = vmatpush.bf16.msra.mxu0 %v893
        %1121 = vmatpush.bf16.msra.mxu0 %v891
        %1122 = vmatpush.bf16.msra.mxu0 %v889
        %1123 = vmatpush.bf16.msra.mxu0 %v887
        %1124 = vmatpush.bf16.msra.mxu0 %v885
        %1125 = vmatpush.bf16.msra.mxu0 %v883
        %1126 = vmatpush.bf16.msra.mxu0 %v881
        %1127 = vmatpush.bf16.msra.mxu0 %v879
        %1128 = vmatmul.bf16.gmra.mxu0 %v404
        %v1129 = vpop.f32.mrf.mxu0
        %v1130 = vadd.f32 %v1117, %v1129
        %v1131 = vpop.f32.mrf.mxu0
        %1132 = vdwg.mxu0
        %1133 = vmatpush.bf16.msra.mxu0 %v909
        %1134 = vmatpush.bf16.msra.mxu0 %v907
        %1135 = vmatpush.bf16.msra.mxu0 %v905
        %1136 = vmatpush.bf16.msra.mxu0 %v903
        %1137 = vmatpush.bf16.msra.mxu0 %v901
        %1138 = vmatpush.bf16.msra.mxu0 %v899
        %1139 = vmatpush.bf16.msra.mxu0 %v897
        %1140 = vmatpush.bf16.msra.mxu0 %v895
        %1141 = vmatmul.bf16.gmra.mxu0 %v405
        %v1142 = vpop.f32.mrf.mxu0
        %v1143 = vadd.f32 %v1130, %v1142
        %v1144 = vpop.f32.mrf.mxu0
        %1145 = vdwg.mxu0
        %1146 = vmatpush.bf16.msra.mxu0 %v925
        %1147 = vmatpush.bf16.msra.mxu0 %v923
        %1148 = vmatpush.bf16.msra.mxu0 %v921
        %1149 = vmatpush.bf16.msra.mxu0 %v919
        %1150 = vmatpush.bf16.msra.mxu0 %v917
        %1151 = vmatpush.bf16.msra.mxu0 %v915
        %1152 = vmatpush.bf16.msra.mxu0 %v913
        %1153 = vmatpush.bf16.msra.mxu0 %v911
        %1154 = vmatmul.bf16.gmra.mxu0 %v406
        %v1155 = vpop.f32.mrf.mxu0
        %v1156 = vadd.f32 %v1143, %v1155
        %v1157 = vpop.f32.mrf.mxu0
        %1158 = vdwg.mxu0
        %1159 = vmatpush.bf16.msra.mxu0 %v814
        %1160 = vmatpush.bf16.msra.mxu0 %v812
        %1161 = vmatpush.bf16.msra.mxu0 %v810
        %1162 = vmatpush.bf16.msra.mxu0 %v808
        %1163 = vmatpush.bf16.msra.mxu0 %v806
        %1164 = vmatpush.bf16.msra.mxu0 %v804
        %1165 = vmatpush.bf16.msra.mxu0 %v802
        %1166 = vmatpush.bf16.msra.mxu0 %v800
        %1167 = vmatmul.bf16.gmra.mxu0 %v399
        %v1168 = vpop.f32.mrf.mxu0
        %v1169 = vadd.f32 0.0, %v1168
        %v1170 = vpop.f32.mrf.mxu0
        %1171 = vdwg.mxu0
        %1172 = vmatpush.bf16.msra.mxu0 %v830
        %1173 = vmatpush.bf16.msra.mxu0 %v828
        %1174 = vmatpush.bf16.msra.mxu0 %v826
        %1175 = vmatpush.bf16.msra.mxu0 %v824
        %1176 = vmatpush.bf16.msra.mxu0 %v822
        %1177 = vmatpush.bf16.msra.mxu0 %v820
        %1178 = vmatpush.bf16.msra.mxu0 %v818
        %1179 = vmatpush.bf16.msra.mxu0 %v816
        %1180 = vmatmul.bf16.gmra.mxu0 %v400
        %v1181 = vpop.f32.mrf.mxu0
        %v1182 = vadd.f32 %v1169, %v1181
        %v1183 = vpop.f32.mrf.mxu0
        %1184 = vdwg.mxu0
        %1185 = vmatpush.bf16.msra.mxu0 %v846
        %1186 = vmatpush.bf16.msra.mxu0 %v844
        %1187 = vmatpush.bf16.msra.mxu0 %v842
        %1188 = vmatpush.bf16.msra.mxu0 %v840
        %1189 = vmatpush.bf16.msra.mxu0 %v838
        %1190 = vmatpush.bf16.msra.mxu0 %v836
        %1191 = vmatpush.bf16.msra.mxu0 %v834
        %1192 = vmatpush.bf16.msra.mxu0 %v832
        %1193 = vmatmul.bf16.gmra.mxu0 %v401
        %v1194 = vpop.f32.mrf.mxu0
        %v1195 = vadd.f32 %v1182, %v1194
        %v1196 = vpop.f32.mrf.mxu0
        %1197 = vdwg.mxu0
        %1198 = vmatpush.bf16.msra.mxu0 %v862
        %1199 = vmatpush.bf16.msra.mxu0 %v860
        %1200 = vmatpush.bf16.msra.mxu0 %v858
        %1201 = vmatpush.bf16.msra.mxu0 %v856
        %1202 = vmatpush.bf16.msra.mxu0 %v854
        %1203 = vmatpush.bf16.msra.mxu0 %v852
        %1204 = vmatpush.bf16.msra.mxu0 %v850
        %1205 = vmatpush.bf16.msra.mxu0 %v848
        %1206 = vmatmul.bf16.gmra.mxu0 %v402
        %v1207 = vpop.f32.mrf.mxu0
        %v1208 = vadd.f32 %v1195, %v1207
        %v1209 = vpop.f32.mrf.mxu0
        %1210 = vdwg.mxu0
        %1211 = vmatpush.bf16.msra.mxu0 %v878
        %1212 = vmatpush.bf16.msra.mxu0 %v876
        %1213 = vmatpush.bf16.msra.mxu0 %v874
        %1214 = vmatpush.bf16.msra.mxu0 %v872
        %1215 = vmatpush.bf16.msra.mxu0 %v870
        %1216 = vmatpush.bf16.msra.mxu0 %v868
        %1217 = vmatpush.bf16.msra.mxu0 %v866
        %1218 = vmatpush.bf16.msra.mxu0 %v864
        %1219 = vmatmul.bf16.gmra.mxu0 %v403
        %v1220 = vpop.f32.mrf.mxu0
        %v1221 = vadd.f32 %v1208, %v1220
        %v1222 = vpop.f32.mrf.mxu0
        %1223 = vdwg.mxu0
        %1224 = vmatpush.bf16.msra.mxu0 %v894
        %1225 = vmatpush.bf16.msra.mxu0 %v892
        %1226 = vmatpush.bf16.msra.mxu0 %v890
        %1227 = vmatpush.bf16.msra.mxu0 %v888
        %1228 = vmatpush.bf16.msra.mxu0 %v886
        %1229 = vmatpush.bf16.msra.mxu0 %v884
        %1230 = vmatpush.bf16.msra.mxu0 %v882
        %1231 = vmatpush.bf16.msra.mxu0 %v880
        %1232 = vmatmul.bf16.gmra.mxu0 %v404
        %v1233 = vpop.f32.mrf.mxu0
        %v1234 = vadd.f32 %v1221, %v1233
        %v1235 = vpop.f32.mrf.mxu0
        %1236 = vdwg.mxu0
        %1237 = vmatpush.bf16.msra.mxu0 %v910
        %1238 = vmatpush.bf16.msra.mxu0 %v908
        %1239 = vmatpush.bf16.msra.mxu0 %v906
        %1240 = vmatpush.bf16.msra.mxu0 %v904
        %1241 = vmatpush.bf16.msra.mxu0 %v902
        %1242 = vmatpush.bf16.msra.mxu0 %v900
        %1243 = vmatpush.bf16.msra.mxu0 %v898
        %1244 = vmatpush.bf16.msra.mxu0 %v896
        %1245 = vmatmul.bf16.gmra.mxu0 %v405
        %v1246 = vpop.f32.mrf.mxu0
        %v1247 = vadd.f32 %v1234, %v1246
        %v1248 = vpop.f32.mrf.mxu0
        %1249 = vdwg.mxu0
        %1250 = vmatpush.bf16.msra.mxu0 %v926
        %1251 = vmatpush.bf16.msra.mxu0 %v924
        %1252 = vmatpush.bf16.msra.mxu0 %v922
        %1253 = vmatpush.bf16.msra.mxu0 %v920
        %1254 = vmatpush.bf16.msra.mxu0 %v918
        %1255 = vmatpush.bf16.msra.mxu0 %v916
        %1256 = vmatpush.bf16.msra.mxu0 %v914
        %1257 = vmatpush.bf16.msra.mxu0 %v912
        %1258 = vmatmul.bf16.gmra.mxu0 %v406
        %v1259 = vpop.f32.mrf.mxu0
        %v1260 = vadd.f32 %v1247, %v1259
        %v1261 = vpop.f32.mrf.mxu0
        %1262 = vdwg.mxu0
        %v1265 = vrot.slane %v1260, 6
        %vm1266 = vcmask 1041408
        %v1267 = vsel %vm1266, %v1156, %v1265
        %v1269 = vadd.f32 %v267, %v1267
        %1270 = vst [vmem:[#allocation2] sm:$0xf] %v1269
        %p1271 = scmp.eq.s32.totalorder %s18, 7
        // Predicated region
        $region49: #{tiny_imagenet_forward.7} parent=43 // pred_check
          %p1272 = pneg %p1271
        $region50: #{tiny_imagenet_forward.7} parent=43 // pred_check_branch
          %1274 = sbr.rel (%p1272) target = $region52
        $region51: #{tiny_imagenet_forward.7} parent=43 // pred_region
          %v1275 = vld [vmem:[#allocation2] sm:$0xf]
          %v1276 = vld [vmem:[%s2] sm:$0x3]
          %v1278 = vperm.slane %v1276, 0
          %v1279 = vperm.slane %v1276, 1
          %v1280 = vrot.slane %v1279, 6
          %v1281 = vsel %vm1266, %v1278, %v1280
          %v1283 = vmul.f32 %v1275, %v1281
          %v1284 = vld [vmem:[%s3] sm:$0x3]
          %v1286 = vperm.slane %v1284, 0
          %v1287 = vperm.slane %v1284, 1
          %v1288 = vrot.slane %v1287, 6
          %v1289 = vsel %vm1266, %v1286, %v1288
          %v1291 = vadd.f32 %v1283, %v1289
          %v1292 = vmax.f32 %v1291, 0.0
          %v1293 = vld [vmem:[%s4] sm:$0xff]
          %v1294 = vld [vmem:[%s4 + $0x8] sm:$0xff]
          %v1295 = vld [vmem:[%s4 + $0x10] sm:$0xff]
          %v1296 = vld [vmem:[%s4 + $0x18] sm:$0xff]
          %v1297 = vld [vmem:[%s4 + $0x20] sm:$0xff]
          %v1298 = vld [vmem:[%s4 + $0x28] sm:$0xff]
          %v1299 = vld [vmem:[%s4 + $0x30] sm:$0xff]
          %v1300 = vld [vmem:[%s4 + $0x38] sm:$0xff]
          %v1301 = vld [vmem:[%s4 + $0x40] sm:$0xff]
          %v1302 = vld [vmem:[%s4 + $0x48] sm:$0xff]
          %v1303 = vld [vmem:[%s4 + $0x50] sm:$0xff]
          %v1304 = vld [vmem:[%s4 + $0x58] sm:$0xff]
          %v1305 = vld [vmem:[%s4 + $0x60] sm:$0xff]
          %v1306 = vld [vmem:[%s4 + $0x68] sm:$0xff]
          %v1307 = vld [vmem:[%s4 + $0x70] sm:$0xff]
          %v1308 = vld [vmem:[%s4 + $0x78] sm:$0xff]
          %v1309 = vld [vmem:[%s4 + $0x80] sm:$0xff]
          %v1310 = vld [vmem:[%s4 + $0x88] sm:$0xff]
          %v1311 = vld [vmem:[%s4 + $0x90] sm:$0xff]
          %v1312 = vld [vmem:[%s4 + $0x98] sm:$0xff]
          %v1313 = vld [vmem:[%s4 + $0xa0] sm:$0xff]
          %v1314 = vld [vmem:[%s4 + $0xa8] sm:$0xff]
          %v1315 = vld [vmem:[%s4 + $0xb0] sm:$0xff]
          %v1316 = vld [vmem:[%s4 + $0xb8] sm:$0xff]
          %v1317 = vld [vmem:[%s4 + $0xc0] sm:$0xff]
          %v1318 = vld [vmem:[%s4 + $0xc8] sm:$0xff]
          %v1319 = vld [vmem:[%s4 + $0xd0] sm:$0xff]
          %v1320 = vld [vmem:[%s4 + $0xd8] sm:$0xff]
          %v1321 = vld [vmem:[%s4 + $0xe0] sm:$0xff]
          %v1322 = vld [vmem:[%s4 + $0xe8] sm:$0xff]
          %v1323 = vld [vmem:[%s4 + $0xf0] sm:$0xff]
          %v1324 = vld [vmem:[%s4 + $0xf8] sm:$0xff]
          %v1325 = vld [vmem:[%s4 + $0x100] sm:$0xff]
          %v1326 = vld [vmem:[%s4 + $0x108] sm:$0xff]
          %v1327 = vld [vmem:[%s4 + $0x110] sm:$0xff]
          %v1328 = vld [vmem:[%s4 + $0x118] sm:$0xff]
          %v1329 = vld [vmem:[%s4 + $0x120] sm:$0xff]
          %v1330 = vld [vmem:[%s4 + $0x128] sm:$0xff]
          %v1331 = vld [vmem:[%s4 + $0x130] sm:$0xff]
          %v1332 = vld [vmem:[%s4 + $0x138] sm:$0xff]
          %v1333 = vld [vmem:[%s4 + $0x140] sm:$0xff]
          %v1334 = vld [vmem:[%s4 + $0x148] sm:$0xff]
          %v1335 = vld [vmem:[%s4 + $0x150] sm:$0xff]
          %v1336 = vld [vmem:[%s4 + $0x158] sm:$0xff]
          %v1337 = vld [vmem:[%s4 + $0x160] sm:$0xff]
          %v1338 = vld [vmem:[%s4 + $0x168] sm:$0xff]
          %v1339 = vld [vmem:[%s4 + $0x170] sm:$0xff]
          %v1340 = vld [vmem:[%s4 + $0x178] sm:$0xff]
          %v1341 = vld [vmem:[%s4 + $0x180] sm:$0xff]
          %v1342 = vld [vmem:[%s4 + $0x188] sm:$0xff]
          %v1343 = vld [vmem:[%s4 + $0x190] sm:$0xff]
          %v1344 = vld [vmem:[%s4 + $0x198] sm:$0xff]
          %v1345 = vld [vmem:[%s4 + $0x1a0] sm:$0xff]
          %v1346 = vld [vmem:[%s4 + $0x1a8] sm:$0xff]
          %v1347 = vld [vmem:[%s4 + $0x1b0] sm:$0xff]
          %v1348 = vld [vmem:[%s4 + $0x1b8] sm:$0xff]
          %v1349 = vld [vmem:[%s4 + $0x1c0] sm:$0xff]
          %v1350 = vld [vmem:[%s4 + $0x1c8] sm:$0xff]
          %v1351 = vld [vmem:[%s4 + $0x1d0] sm:$0xff]
          %v1352 = vld [vmem:[%s4 + $0x1d8] sm:$0xff]
          %v1353 = vld [vmem:[%s4 + $0x1e0] sm:$0xff]
          %v1354 = vld [vmem:[%s4 + $0x1e8] sm:$0xff]
          %v1355 = vld [vmem:[%s4 + $0x1f0] sm:$0xff]
          %v1356 = vld [vmem:[%s4 + $0x1f8] sm:$0xff]
          %v1357 = vld [vmem:[%s5] sm:$0x3]
          %v1359 = vperm.slane %v1357, 0
          %v1360 = vperm.slane %v1357, 1
          %1364 = vst [vmem:[#allocation1] ss:$4 sm:$0xff] %v1292
          %v1365 = vld.sshfl [vmem:[#allocation1] sm:$0xff pattern:$0x73625140]
          %v1366 = vld.sshfl [vmem:[#allocation1 + $0x8] sm:$0xff pattern:$0x73625140]
          %1369 = vmatpush.msra.mxu0 %v1323
          %1370 = vmatpush.msra.mxu0 %v1321
          %1371 = vmatpush.msra.mxu0 %v1319
          %1372 = vmatpush.msra.mxu0 %v1317
          %1373 = vmatpush.msra.mxu0 %v1315
          %1374 = vmatpush.msra.mxu0 %v1313
          %1375 = vmatpush.msra.mxu0 %v1311
          %1376 = vmatpush.msra.mxu0 %v1309
          %1377 = vmatpush.msra.mxu0 %v1307
          %1378 = vmatpush.msra.mxu0 %v1305
          %1379 = vmatpush.msra.mxu0 %v1303
          %1380 = vmatpush.msra.mxu0 %v1301
          %1381 = vmatpush.msra.mxu0 %v1299
          %1382 = vmatpush.msra.mxu0 %v1297
          %1383 = vmatpush.msra.mxu0 %v1295
          %1384 = vmatpush.msra.mxu0 %v1293
          %1385 = vmatmul.f32.gmra.mxu0 %v1365
          %v1386 = vpop.f32.mrf.mxu0
          %v1387 = vadd.f32 %v1359, %v1386
          %1388 = vdwg.mxu0
          %1389 = vmatpush.msra.mxu0 %v1355
          %1390 = vmatpush.msra.mxu0 %v1353
          %1391 = vmatpush.msra.mxu0 %v1351
          %1392 = vmatpush.msra.mxu0 %v1349
          %1393 = vmatpush.msra.mxu0 %v1347
          %1394 = vmatpush.msra.mxu0 %v1345
          %1395 = vmatpush.msra.mxu0 %v1343
          %1396 = vmatpush.msra.mxu0 %v1341
          %1397 = vmatpush.msra.mxu0 %v1339
          %1398 = vmatpush.msra.mxu0 %v1337
          %1399 = vmatpush.msra.mxu0 %v1335
          %1400 = vmatpush.msra.mxu0 %v1333
          %1401 = vmatpush.msra.mxu0 %v1331
          %1402 = vmatpush.msra.mxu0 %v1329
          %1403 = vmatpush.msra.mxu0 %v1327
          %1404 = vmatpush.msra.mxu0 %v1325
          %1405 = vmatmul.f32.gmra.mxu0 %v1366
          %v1406 = vpop.f32.mrf.mxu0
          %v1407 = vadd.f32 %v1387, %v1406
          %1408 = vdwg.mxu0
          %1409 = vmatpush.msra.mxu0 %v1324
          %1410 = vmatpush.msra.mxu0 %v1322
          %1411 = vmatpush.msra.mxu0 %v1320
          %1412 = vmatpush.msra.mxu0 %v1318
          %1413 = vmatpush.msra.mxu0 %v1316
          %1414 = vmatpush.msra.mxu0 %v1314
          %1415 = vmatpush.msra.mxu0 %v1312
          %1416 = vmatpush.msra.mxu0 %v1310
          %1417 = vmatpush.msra.mxu0 %v1308
          %1418 = vmatpush.msra.mxu0 %v1306
          %1419 = vmatpush.msra.mxu0 %v1304
          %1420 = vmatpush.msra.mxu0 %v1302
          %1421 = vmatpush.msra.mxu0 %v1300
          %1422 = vmatpush.msra.mxu0 %v1298
          %1423 = vmatpush.msra.mxu0 %v1296
          %1424 = vmatpush.msra.mxu0 %v1294
          %1425 = vmatmul.f32.gmra.mxu0 %v1365
          %v1426 = vpop.f32.mrf.mxu0
          %v1427 = vadd.f32 %v1360, %v1426
          %1428 = vdwg.mxu0
          %1429 = vmatpush.msra.mxu0 %v1356
          %1430 = vmatpush.msra.mxu0 %v1354
          %1431 = vmatpush.msra.mxu0 %v1352
          %1432 = vmatpush.msra.mxu0 %v1350
          %1433 = vmatpush.msra.mxu0 %v1348
          %1434 = vmatpush.msra.mxu0 %v1346
          %1435 = vmatpush.msra.mxu0 %v1344
          %1436 = vmatpush.msra.mxu0 %v1342
          %1437 = vmatpush.msra.mxu0 %v1340
          %1438 = vmatpush.msra.mxu0 %v1338
          %1439 = vmatpush.msra.mxu0 %v1336
          %1440 = vmatpush.msra.mxu0 %v1334
          %1441 = vmatpush.msra.mxu0 %v1332
          %1442 = vmatpush.msra.mxu0 %v1330
          %1443 = vmatpush.msra.mxu0 %v1328
          %1444 = vmatpush.msra.mxu0 %v1326
          %1445 = vmatmul.f32.gmra.mxu0 %v1366
          %v1446 = vpop.f32.mrf.mxu0
          %v1447 = vadd.f32 %v1427, %v1446
          %1448 = vdwg.mxu0
          %v1449 = vsel %vm1266, %v1407, -inf
          %vm1450 = vcmask 582656
          %v1451 = vsel %vm1450, %v1447, -inf
          %v1452 = vmax.f32 %v1449, %v1451
          %1453 = vmax.xlane.f32.xlu0 %v1452
          %v1454 = vpop.xlane.xlu0 %1453
          %v1455 = vsub.f32 %v1407, %v1454
          %v1456 = vsub.f32 %v1447, %v1454
          %v1457 = vmul.f32 %v1455, 1.442695
          %v1458 = vpow.pop %v1457
          %v1459 = vmul.f32 %v1456, 1.442695
          %v1460 = vpow.pop %v1459
          %v1461 = vsel %vm1266, %v1458, 0.0
          %v1462 = vsel %vm1450, %v1460, 0.0
          %v1463 = vadd.f32 %v1461, %v1462
          %1464 = vadd.xlane.f32.xlu0 %v1463
          %v1465 = vpop.xlane.xlu0 %1464
          %v1466 = vrcp.pop %v1465
          %v1467 = vmul.f32 %v1465, %v1466
          %v1468 = vsub.f32 1.0, %v1467
          %v1469 = vmul.f32 %v1466, %v1468
          %v1470 = vadd.f32 %v1466, %v1469
          %vm1471 = vweird.f32 %v1465
          %vm1472 = vweird.f32 %v1466
          %vm1473 = vmor %vm1471, %vm1472
          %v1474 = vsel %vm1473, %v1466, %v1470
          %v1475 = vand.u32 2147483647, %v1465
          %vm1476 = vcmp.eq.f32.partialorder %v1475, 8.507059e+37
          %v1477 = vand.u32 %v1465, 2147483648
          %v1478 = vor.u32 1.1754944e-38, %v1477
          %v1479 = vsel %vm1476, %v1478, %v1474
          %v1480 = vmul.f32 %v1458, %v1479
          %v1481 = vmul.f32 %v1460, %v1479
          %v1484 = vrot.slane %v1481, 6
          %v1485 = vsel %vm1266, %v1480, %v1484
          %vm1487 = vcmask 584706
          %vm1488 = vmor %vm1487, %vm1266
          %1489 = vst.msk [vmem:[#allocation3] sm:$0xf] %vm1488, %v1485
        $region52: #{tiny_imagenet_forward.7} parent=43 // pred_fallthru
          _
        // Predicated region
        $region53: #{tiny_imagenet_forward.7} parent=43 // pred_check
          %p1490 = pneg %p167
        $region54: #{tiny_imagenet_forward.7} parent=43 // pred_check_branch
          %1492 = sbr.rel (%p1490) target = $region56
        $region55: #{tiny_imagenet_forward.7} parent=43 // pred_region
          %1494 = vsyncadd [#allocation4], 0
          %s1496 = sshll.u32 [#allocation3], 4
          %s1497 = int_to_ptr.vmem [resolvable:$true] %s1496
          %s1498 = sshll.u32 %s6, 4
          %s1499 = int_to_ptr.hbm [resolvable:$true] %s1498
          %1501 = dma.vmem_to_hbm [thread:$0]  %s1497, 64, %s1499, [#allocation4]
        $region56: #{tiny_imagenet_forward.7} parent=43 // pred_fallthru
          _
        // Predicated region
        $region57: #{tiny_imagenet_forward.7} parent=43 // pred_check
          %p1502 = pneg %p167
        $region58: #{tiny_imagenet_forward.7} parent=43 // pred_check_branch
          %1504 = sbr.rel (%p1502) target = $region60
        $region59: #{tiny_imagenet_forward.7} parent=43 // pred_region
          %1506 = dma.done [#allocation4], 64
        $region60: #{tiny_imagenet_forward.7} parent=43 // pred_fallthru
          _
      $region44: #{tiny_imagenet_forward.7} parent=5 // pred_fallthru
        _
      %p1507 = scmp.le.s32.totalorder 2, %s13
      // Predicated region
      $region61: #{tiny_imagenet_forward.7} parent=5 // pred_check
        %p1508 = pneg %p1507
      $region62: #{tiny_imagenet_forward.7} parent=5 // pred_check_branch
        %1510 = sbr.rel (%p1508) target = $region64
      $region63: #{tiny_imagenet_forward.7} parent=5 // pred_region
        %s1511 = ssub.s32 %s13, 2
      $region64: #{tiny_imagenet_forward.7} parent=5 // pred_fallthru
        _
    $region6: #{tiny_imagenet_forward.7} parent=1 // loop_footer
      %s17 = sadd.s32 1, %s13
    $region7: #{tiny_imagenet_forward.7} parent=1 // loop_footer_branch
      %12 = sbr.rel target = $region3
    $region8: #{tiny_imagenet_forward.7} parent=1 // loop_exit
      _
    %1512 = vsyncpa [#allocation4], 1
    %s1513 = scalar_lea.sflag [#allocation4], 1
    %1514 = vsyncpa %s1513, 1

</llo_original>
